<compile_context>
chip_gen: v6e
topology: v6e:2x2x1
jax: 0.10.0
libtpu: 0.0.40
codegen_flags: <defaults>
</compile_context>

<pallas_src>
import numpy as np
import jax
import jax.numpy as jnp
from jax import lax
from jax.experimental import pallas as pl
from jax.experimental.pallas import tpu as pltpu

F32 = jnp.float32
_PREC_REF = jax.lax.Precision.HIGHEST      # reference only
B_TILE = 8                                 # samples per grid step
OUT_LANES = 128                            # lane-dense padded output width


def _dot(a, b):
    # Default MXU precision (single bf16 pass) -- per perf review.
    return jnp.dot(a, b, preferred_element_type=F32)


# ----------------------------- Pallas kernel ------------------------------- #
def net_kernel(x_ref, cb1_ref, cbias1_ref, cb2_ref, cbias2_ref,
               sh1_ref, sw1_ref, sh2_ref, sw2_ref,
               wl1_ref, bl1_ref, wl2_ref, bl2_ref, wl3_ref, bl3_ref,
               out_ref, r1_ref, p2_ref):
    bm = x_ref.shape[0]              # B*32 input rows in this block
    b_tile = bm // 32                # samples per block
    m1 = bm - 2                      # rows that have a full 3-row conv window

    # ---- conv1 + relu, M-batched over the whole block ----------------------
    # r1[b*32 + h] = sum_ky x[b*32 + h + ky] @ cb1[ky], valid for h in 0..29;
    # rows h in {30, 31} of each sample contain cross-sample garbage and are
    # never read back.
    r1_ref[0:m1, :] = _dot(x_ref[0:m1, :], cb1_ref[0])
    r1_ref[0:m1, :] = r1_ref[0:m1, :] + _dot(x_ref[1:m1 + 1, :], cb1_ref[1])
    r1_ref[0:m1, :] = jnp.maximum(
        r1_ref[0:m1, :] + _dot(x_ref[2:m1 + 2, :], cb1_ref[2])
        + cbias1_ref[...], 0.0)                                  # (m1, 180)

    # ---- pool1 / conv2 / pool2: per sample, fully unrolled, static offsets --
    for b in range(b_tile):
        r1 = r1_ref[b * 32:b * 32 + 30, :]                       # (30, 180)

        # maxpool 2x2 stride 2 (part 1): shifted elementwise max.
        a1 = jnp.maximum(jnp.maximum(r1[0:29, 0:174], r1[1:30, 0:174]),
                         jnp.maximum(r1[0:29, 6:180], r1[1:30, 6:180]))
        # (part 2): even-row / even-column-block selection matmuls.
        p1 = _dot(_dot(sh1_ref[...], a1), sw1_ref[...])          # (15, 90)

        # conv2 (valid 3x3, 6->16) as 3 banded matmuls, bias + relu.
        acc2 = (_dot(p1[0:13, :], cb2_ref[0])
                + _dot(p1[1:14, :], cb2_ref[1])
                + _dot(p1[2:15, :], cb2_ref[2]))
        r2 = jnp.maximum(acc2 + cbias2_ref[...], 0.0)            # (13, 208)

        a2 = jnp.maximum(jnp.maximum(r2[0:12, 0:192], r2[1:13, 0:192]),
                         jnp.maximum(r2[0:12, 16:208], r2[1:13, 16:208]))
        p2_ref[b] = _dot(_dot(sh2_ref[...], a2), sw2_ref[...])   # (6, 96)

    # ---- FC tail, batched over the whole block ------------------------------
    # lin1: contract the (6, 96) per-sample slab against (6, 96, 120); the
    # weight layout already folds the PyTorch (c, h, w) flatten order.
    z = _dot(p2_ref[:, 0, :], wl1_ref[0])                        # (B, 120)
    for h in range(1, 6):
        z = z + _dot(p2_ref[:, h, :], wl1_ref[h])
    z = jnp.maximum(z + bl1_ref[...], 0.0)                       # (B, 120)
    z = jnp.maximum(_dot(z, wl2_ref[...]) + bl2_ref[...], 0.0)   # (B, 84)
    # lin3 weight/bias are zero-padded to 128 lanes -> unmasked 128-lane store.
    out_ref[...] = _dot(z, wl3_ref[...]) + bl3_ref[...]          # (B, 128)


# --------------------------- wrapper-side glue ------------------------------ #
def _banded_conv_mats(w_oihw, win):
    """w_oihw: (Cout, Cin, KH, KW) torch layout -> (KH, win*Cin, wout*Cout)."""
    cout, cin, kh, kw = w_oihw.shape
    wout = win - kw + 1
    b = np.zeros((kh, win * cin, wout * cout), np.float32)
    wt = np.transpose(w_oihw, (2, 3, 1, 0))                  # (kh, kw, cin, cout)
    for ky in range(kh):
        for kx in range(kw):
            for w in range(wout):
                b[ky, (w + kx) * cin:(w + kx + 1) * cin,
                      w * cout:(w + 1) * cout] = wt[ky, kx]
    return b


def _row_select(n_out, n_in):
    s = np.zeros((n_out, n_in), np.float32)
    s[np.arange(n_out), 2 * np.arange(n_out)] = 1.0
    return s


def _col_select(n_out_w, n_in_w, c):
    s = np.zeros((n_in_w * c, n_out_w * c), np.float32)
    for j in range(n_out_w):
        for ch in range(c):
            s[2 * j * c + ch, j * c + ch] = 1.0
    return s


def net_forward_pallas(x_nchw, params, block_b=B_TILE):
    n = x_nchw.shape[0]
    c1w = np.asarray(params["conv1_w"]); c1b = np.asarray(params["conv1_b"])
    c2w = np.asarray(params["conv2_w"]); c2b = np.asarray(params["conv2_b"])
    l1w = np.asarray(params["lin1_w"]);  l1b = np.asarray(params["lin1_b"])
    l2w = np.asarray(params["lin2_w"]);  l2b = np.asarray(params["lin2_b"])
    l3w = np.asarray(params["lin3_w"]);  l3b = np.asarray(params["lin3_b"])

    cb1 = jnp.asarray(_banded_conv_mats(c1w, 32))            # (3, 32, 180)
    cbias1 = jnp.asarray(np.tile(c1b, 30)[None, :])          # (1, 180)
    cb2 = jnp.asarray(_banded_conv_mats(c2w, 15))            # (3, 90, 208)
    cbias2 = jnp.asarray(np.tile(c2b, 13)[None, :])          # (1, 208)
    sh1 = jnp.asarray(_row_select(15, 29))                   # (15, 29)
    sw1 = jnp.asarray(_col_select(15, 29, 6))                # (174, 90)
    sh2 = jnp.asarray(_row_select(6, 12))                    # (6, 12)
    sw2 = jnp.asarray(_col_select(6, 12, 16))                # (192, 96)
    # lin1 weight (120, 576), torch feature order c*36 + h*6 + w
    #   -> (6, 96, 120) indexed [h, w*16 + c, k] to match the kernel layout.
    wl1 = jnp.asarray(np.transpose(l1w.reshape(120, 16, 6, 6),
                                   (2, 3, 1, 0)).reshape(6, 96, 120))
    bl1 = jnp.asarray(l1b[None, :])                          # (1, 120)
    wl2 = jnp.asarray(l2w.T)                                 # (120, 84)
    bl2 = jnp.asarray(l2b[None, :])                          # (1, 84)
    # lin3 zero-padded to 128 output lanes for a lane-dense output store.
    wl3p = np.zeros((84, OUT_LANES), np.float32); wl3p[:, :10] = l3w.T
    bl3p = np.zeros((1, OUT_LANES), np.float32);  bl3p[0, :10] = l3b
    wl3 = jnp.asarray(wl3p)                                  # (84, 128)
    bl3 = jnp.asarray(bl3p)                                  # (1, 128)

    # Pad the batch up to a multiple of block_b and flatten to (N_pad*32, 32).
    n_blocks = -(-n // block_b)
    n_pad = n_blocks * block_b
    x_slab = jnp.asarray(x_nchw[:, 0, :, :], F32)            # (N, 32, 32)
    if n_pad != n:
        x_slab = jnp.pad(x_slab, ((0, n_pad - n), (0, 0), (0, 0)))
    x2d = x_slab.reshape(n_pad * 32, 32)                     # (N_pad*32, 32)

    consts = [cb1, cbias1, cb2, cbias2, sh1, sw1, sh2, sw2,
              wl1, bl1, wl2, bl2, wl3, bl3]

    def full_spec(a):
        nd = a.ndim
        return pl.BlockSpec(a.shape, lambda i, _nd=nd: (0,) * _nd)

    grid_spec = pltpu.PrefetchScalarGridSpec(
        num_scalar_prefetch=0,
        grid=(n_blocks,),
        in_specs=[pl.BlockSpec((block_b * 32, 32), lambda i: (i, 0))]
                 + [full_spec(a) for a in consts],
        out_specs=pl.BlockSpec((block_b, OUT_LANES), lambda i: (i, 0)),
        scratch_shapes=[
            pltpu.VMEM((block_b * 32, 180), F32),   # batched conv1 output
            pltpu.VMEM((block_b, 6, 96), F32),      # per-sample pool2 output
        ],
    )

    out = pl.pallas_call(
        net_kernel,
        out_shape=jax.ShapeDtypeStruct((n_pad, OUT_LANES), F32),
        grid_spec=grid_spec,
        compiler_params=pltpu.CompilerParams(
            dimension_semantics=("parallel",)),
    )(x2d, *consts)
    return out[:n, :10]


# --------------------------- pure-JAX reference ----------------------------- #
def net_forward_reference(x_nchw, p):
    dn = ("NCHW", "OIHW", "NCHW")
    y = lax.conv_general_dilated(x_nchw, p["conv1_w"], (1, 1), "VALID",
                                 dimension_numbers=dn, precision=_PREC_REF)
    y = jnp.maximum(y + p["conv1_b"][None, :, None, None], 0.0)
    y = lax.reduce_window(y, -jnp.inf, lax.max, (1, 1, 2, 2), (1, 1, 2, 2), "VALID")
    y = lax.conv_general_dilated(y, p["conv2_w"], (1, 1), "VALID",
                                 dimension_numbers=dn, precision=_PREC_REF)
    y = jnp.maximum(y + p["conv2_b"][None, :, None, None], 0.0)
    y = lax.reduce_window(y, -jnp.inf, lax.max, (1, 1, 2, 2), (1, 1, 2, 2), "VALID")
    y = y.reshape(y.shape[0], -1)                            # (N, 576), (c,h,w) order
    y = jnp.maximum(jnp.dot(y, p["lin1_w"].T, precision=_PREC_REF) + p["lin1_b"], 0.0)
    y = jnp.maximum(jnp.dot(y, p["lin2_w"].T, precision=_PREC_REF) + p["lin2_b"], 0.0)
    y = jnp.dot(y, p["lin3_w"].T, precision=_PREC_REF) + p["lin3_b"]
    return y


def init_params(key):
    ks = jax.random.split(key, 10)

    def w(k, shape, fan_in):
        return (jax.random.normal(k, shape, F32) / np.sqrt(fan_in)).astype(F32)

    return {
        "conv1_w": w(ks[0], (6, 1, 3, 3), 9),
        "conv1_b": 0.1 * jax.random.normal(ks[1], (6,), F32),
        "conv2_w": w(ks[2], (16, 6, 3, 3), 54),
        "conv2_b": 0.1 * jax.random.normal(ks[3], (16,), F32),
        "lin1_w": w(ks[4], (120, 576), 576),
        "lin1_b": 0.1 * jax.random.normal(ks[5], (120,), F32),
        "lin2_w": w(ks[6], (84, 120), 120),
        "lin2_b": 0.1 * jax.random.normal(ks[7], (84,), F32),
        "lin3_w": w(ks[8], (10, 84), 84),
        "lin3_b": 0.1 * jax.random.normal(ks[9], (10,), F32),
    }


if __name__ == "__main__":
    params = init_params(jax.random.PRNGKey(42))
    x = jax.random.normal(jax.random.PRNGKey(0), (2, 1, 32, 32), F32)

    out = jax.block_until_ready(net_forward_pallas(x, params))
    ref = jax.block_until_ready(net_forward_reference(x, params))
    # Kernel matmuls run at default (single bf16 pass) MXU precision, so the
    # comparison tolerance is set to bf16-level; any layout/semantics bug
    # would produce O(1) errors and still fail this check.
    np.testing.assert_allclose(np.asarray(out), np.asarray(ref),
                               rtol=2e-2, atol=2e-2)
    print("KERNEL_OK")
</pallas_src>

<mosaic_0001>
module attributes {stable_mosaic.version = 11 : i64} {
  func.func @net_kernel(%arg0: i32, %arg1: memref<256x32xf32, #tpu.memory_space<vmem>>, %arg2: memref<3x32x180xf32, #tpu.memory_space<vmem>>, %arg3: memref<1x180xf32, #tpu.memory_space<vmem>>, %arg4: memref<3x90x208xf32, #tpu.memory_space<vmem>>, %arg5: memref<1x208xf32, #tpu.memory_space<vmem>>, %arg6: memref<15x29xf32, #tpu.memory_space<vmem>>, %arg7: memref<174x90xf32, #tpu.memory_space<vmem>>, %arg8: memref<6x12xf32, #tpu.memory_space<vmem>>, %arg9: memref<192x96xf32, #tpu.memory_space<vmem>>, %arg10: memref<6x96x120xf32, #tpu.memory_space<vmem>>, %arg11: memref<1x120xf32, #tpu.memory_space<vmem>>, %arg12: memref<120x84xf32, #tpu.memory_space<vmem>>, %arg13: memref<1x84xf32, #tpu.memory_space<vmem>>, %arg14: memref<84x128xf32, #tpu.memory_space<vmem>>, %arg15: memref<1x128xf32, #tpu.memory_space<vmem>>, %arg16: memref<8x128xf32, #tpu.memory_space<vmem>>, %arg17: memref<256x180xf32, #tpu.memory_space<vmem>>, %arg18: memref<8x6x96xf32, #tpu.memory_space<vmem>>) attributes {dimension_semantics = [#tpu.dimension_semantics<parallel>], iteration_bounds = array<i64: 1>, scalar_prefetch = 0 : i64, scratch_operands = 2 : i64, tpu.core_type = #tpu.core_type<tc>, window_params = [{transform_indices = @transform_0, window_bounds = array<i64: 256, 32>}, {pipeline_mode = #tpu.pipeline_mode<synchronous>, transform_indices = @transform_1, window_bounds = array<i64: 3, 32, 180>}, {pipeline_mode = #tpu.pipeline_mode<synchronous>, transform_indices = @transform_2, window_bounds = array<i64: 1, 180>}, {pipeline_mode = #tpu.pipeline_mode<synchronous>, transform_indices = @transform_3, window_bounds = array<i64: 3, 90, 208>}, {pipeline_mode = #tpu.pipeline_mode<synchronous>, transform_indices = @transform_4, window_bounds = array<i64: 1, 208>}, {pipeline_mode = #tpu.pipeline_mode<synchronous>, transform_indices = @transform_5, window_bounds = array<i64: 15, 29>}, {pipeline_mode = #tpu.pipeline_mode<synchronous>, transform_indices = @transform_6, window_bounds = array<i64: 174, 90>}, {pipeline_mode = #tpu.pipeline_mode<synchronous>, transform_indices = @transform_7, window_bounds = array<i64: 6, 12>}, {pipeline_mode = #tpu.pipeline_mode<synchronous>, transform_indices = @transform_8, window_bounds = array<i64: 192, 96>}, {pipeline_mode = #tpu.pipeline_mode<synchronous>, transform_indices = @transform_9, window_bounds = array<i64: 6, 96, 120>}, {pipeline_mode = #tpu.pipeline_mode<synchronous>, transform_indices = @transform_10, window_bounds = array<i64: 1, 120>}, {pipeline_mode = #tpu.pipeline_mode<synchronous>, transform_indices = @transform_11, window_bounds = array<i64: 120, 84>}, {pipeline_mode = #tpu.pipeline_mode<synchronous>, transform_indices = @transform_12, window_bounds = array<i64: 1, 84>}, {pipeline_mode = #tpu.pipeline_mode<synchronous>, transform_indices = @transform_13, window_bounds = array<i64: 84, 128>}, {pipeline_mode = #tpu.pipeline_mode<synchronous>, transform_indices = @transform_14, window_bounds = array<i64: 1, 128>}, {transform_indices = @transform_15, window_bounds = array<i64: 8, 128>}]} {
    %c0 = arith.constant 0 : index
    %c0_0 = arith.constant 0 : index
    %0 = vector.load %arg1[%c0, %c0_0] : memref<256x32xf32, #tpu.memory_space<vmem>>, vector<254x32xf32>
    %c0_1 = arith.constant 0 : index
    %c0_2 = arith.constant 0 : index
    %c0_3 = arith.constant 0 : index
    %1 = vector.load %arg2[%c0_1, %c0_2, %c0_3] : memref<3x32x180xf32, #tpu.memory_space<vmem>>, vector<1x32x180xf32>
    %2 = vector.shape_cast %1 : vector<1x32x180xf32> to vector<32x180xf32>
    %cst = arith.constant dense<0.000000e+00> : vector<254x180xf32>
    %3 = tpu.matmul %0, %2, %cst {dimension_numbers = #tpu.dot_dimension_numbers<[1], [0], [0], [1], [0, 0, 1, 1], [], []>} : vector<254x32xf32>, vector<32x180xf32>, vector<254x180xf32> -> vector<254x180xf32>
    %c0_4 = arith.constant 0 : index
    %c0_5 = arith.constant 0 : index
    %4 = vector.load %arg17[%c0_4, %c0_5] : memref<256x180xf32, #tpu.memory_space<vmem>>, vector<254x180xf32>
    tpu.vector_store %arg17[%c0_4, %c0_5], %3 {strides = array<i32>} : memref<256x180xf32, #tpu.memory_space<vmem>>, vector<254x180xf32>,
    %c0_6 = arith.constant 0 : index
    %c0_7 = arith.constant 0 : index
    %5 = vector.load %arg17[%c0_6, %c0_7] : memref<256x180xf32, #tpu.memory_space<vmem>>, vector<254x180xf32>
    %c1 = arith.constant 1 : index
    %c0_8 = arith.constant 0 : index
    %6 = vector.load %arg1[%c1, %c0_8] : memref<256x32xf32, #tpu.memory_space<vmem>>, vector<254x32xf32>
    %c1_9 = arith.constant 1 : index
    %c0_10 = arith.constant 0 : index
    %c0_11 = arith.constant 0 : index
    %7 = vector.load %arg2[%c1_9, %c0_10, %c0_11] : memref<3x32x180xf32, #tpu.memory_space<vmem>>, vector<1x32x180xf32>
    %8 = vector.shape_cast %7 : vector<1x32x180xf32> to vector<32x180xf32>
    %cst_12 = arith.constant dense<0.000000e+00> : vector<254x180xf32>
    %9 = tpu.matmul %6, %8, %cst_12 {dimension_numbers = #tpu.dot_dimension_numbers<[1], [0], [0], [1], [0, 0, 1, 1], [], []>} : vector<254x32xf32>, vector<32x180xf32>, vector<254x180xf32> -> vector<254x180xf32>
    %10 = arith.addf %5, %9 : vector<254x180xf32>
    %c0_13 = arith.constant 0 : index
    %c0_14 = arith.constant 0 : index
    %11 = vector.load %arg17[%c0_13, %c0_14] : memref<256x180xf32, #tpu.memory_space<vmem>>, vector<254x180xf32>
    tpu.vector_store %arg17[%c0_13, %c0_14], %10 {strides = array<i32>} : memref<256x180xf32, #tpu.memory_space<vmem>>, vector<254x180xf32>,
    %c0_15 = arith.constant 0 : index
    %c0_16 = arith.constant 0 : index
    %12 = vector.load %arg17[%c0_15, %c0_16] : memref<256x180xf32, #tpu.memory_space<vmem>>, vector<254x180xf32>
    %c2 = arith.constant 2 : index
    %c0_17 = arith.constant 0 : index
    %13 = vector.load %arg1[%c2, %c0_17] : memref<256x32xf32, #tpu.memory_space<vmem>>, vector<254x32xf32>
    %c2_18 = arith.constant 2 : index
    %c0_19 = arith.constant 0 : index
    %c0_20 = arith.constant 0 : index
    %14 = vector.load %arg2[%c2_18, %c0_19, %c0_20] : memref<3x32x180xf32, #tpu.memory_space<vmem>>, vector<1x32x180xf32>
    %15 = vector.shape_cast %14 : vector<1x32x180xf32> to vector<32x180xf32>
    %cst_21 = arith.constant dense<0.000000e+00> : vector<254x180xf32>
    %16 = tpu.matmul %13, %15, %cst_21 {dimension_numbers = #tpu.dot_dimension_numbers<[1], [0], [0], [1], [0, 0, 1, 1], [], []>} : vector<254x32xf32>, vector<32x180xf32>, vector<254x180xf32> -> vector<254x180xf32>
    %17 = arith.addf %12, %16 : vector<254x180xf32>
    %c0_22 = arith.constant 0 : index
    %c0_23 = arith.constant 0 : index
    %18 = vector.load %arg3[%c0_22, %c0_23] : memref<1x180xf32, #tpu.memory_space<vmem>>, vector<1x180xf32>
    %19 = vector.broadcast %18 : vector<1x180xf32> to vector<254x180xf32>
    %20 = arith.addf %17, %19 : vector<254x180xf32>
    %cst_24 = arith.constant 0.000000e+00 : f32
    %21 = vector.broadcast %cst_24 : f32 to vector<254x180xf32>
    %22 = arith.maximumf %20, %21 : vector<254x180xf32>
    %c0_25 = arith.constant 0 : index
    %c0_26 = arith.constant 0 : index
    %23 = vector.load %arg17[%c0_25, %c0_26] : memref<256x180xf32, #tpu.memory_space<vmem>>, vector<254x180xf32>
    tpu.vector_store %arg17[%c0_25, %c0_26], %22 {strides = array<i32>} : memref<256x180xf32, #tpu.memory_space<vmem>>, vector<254x180xf32>,
    %c0_27 = arith.constant 0 : index
    %c0_28 = arith.constant 0 : index
    %24 = vector.load %arg17[%c0_27, %c0_28] : memref<256x180xf32, #tpu.memory_space<vmem>>, vector<30x180xf32>
    %25 = vector.extract_strided_slice %24 {offsets = [0, 0], sizes = [29, 174], strides = [1, 1]} : vector<30x180xf32> to vector<29x174xf32>
    %26 = vector.extract_strided_slice %24 {offsets = [1, 0], sizes = [29, 174], strides = [1, 1]} : vector<30x180xf32> to vector<29x174xf32>
    %27 = arith.maximumf %25, %26 : vector<29x174xf32>
    %28 = vector.extract_strided_slice %24 {offsets = [0, 6], sizes = [29, 174], strides = [1, 1]} : vector<30x180xf32> to vector<29x174xf32>
    %29 = vector.extract_strided_slice %24 {offsets = [1, 6], sizes = [29, 174], strides = [1, 1]} : vector<30x180xf32> to vector<29x174xf32>
    %30 = arith.maximumf %28, %29 : vector<29x174xf32>
    %31 = arith.maximumf %27, %30 : vector<29x174xf32>
    %c0_29 = arith.constant 0 : index
    %c0_30 = arith.constant 0 : index
    %32 = vector.load %arg6[%c0_29, %c0_30] : memref<15x29xf32, #tpu.memory_space<vmem>>, vector<15x29xf32>
    %cst_31 = arith.constant dense<0.000000e+00> : vector<15x174xf32>
    %33 = tpu.matmul %32, %31, %cst_31 {dimension_numbers = #tpu.dot_dimension_numbers<[1], [0], [0], [1], [0, 0, 1, 1], [], []>} : vector<15x29xf32>, vector<29x174xf32>, vector<15x174xf32> -> vector<15x174xf32>
    %c0_32 = arith.constant 0 : index
    %c0_33 = arith.constant 0 : index
    %34 = vector.load %arg7[%c0_32, %c0_33] : memref<174x90xf32, #tpu.memory_space<vmem>>, vector<174x90xf32>
    %cst_34 = arith.constant dense<0.000000e+00> : vector<15x90xf32>
    %35 = tpu.matmul %33, %34, %cst_34 {dimension_numbers = #tpu.dot_dimension_numbers<[1], [0], [0], [1], [0, 0, 1, 1], [], []>} : vector<15x174xf32>, vector<174x90xf32>, vector<15x90xf32> -> vector<15x90xf32>
    %36 = vector.extract_strided_slice %35 {offsets = [0, 0], sizes = [13, 90], strides = [1, 1]} : vector<15x90xf32> to vector<13x90xf32>
    %c0_35 = arith.constant 0 : index
    %c0_36 = arith.constant 0 : index
    %c0_37 = arith.constant 0 : index
    %37 = vector.load %arg4[%c0_35, %c0_36, %c0_37] : memref<3x90x208xf32, #tpu.memory_space<vmem>>, vector<1x90x208xf32>
    %38 = vector.shape_cast %37 : vector<1x90x208xf32> to vector<90x208xf32>
    %cst_38 = arith.constant dense<0.000000e+00> : vector<13x208xf32>
    %39 = tpu.matmul %36, %38, %cst_38 {dimension_numbers = #tpu.dot_dimension_numbers<[1], [0], [0], [1], [0, 0, 1, 1], [], []>} : vector<13x90xf32>, vector<90x208xf32>, vector<13x208xf32> -> vector<13x208xf32>
    %40 = vector.extract_strided_slice %35 {offsets = [1, 0], sizes = [13, 90], strides = [1, 1]} : vector<15x90xf32> to vector<13x90xf32>
    %c1_39 = arith.constant 1 : index
    %c0_40 = arith.constant 0 : index
    %c0_41 = arith.constant 0 : index
    %41 = vector.load %arg4[%c1_39, %c0_40, %c0_41] : memref<3x90x208xf32, #tpu.memory_space<vmem>>, vector<1x90x208xf32>
    %42 = vector.shape_cast %41 : vector<1x90x208xf32> to vector<90x208xf32>
    %cst_42 = arith.constant dense<0.000000e+00> : vector<13x208xf32>
    %43 = tpu.matmul %40, %42, %cst_42 {dimension_numbers = #tpu.dot_dimension_numbers<[1], [0], [0], [1], [0, 0, 1, 1], [], []>} : vector<13x90xf32>, vector<90x208xf32>, vector<13x208xf32> -> vector<13x208xf32>
    %44 = arith.addf %39, %43 : vector<13x208xf32>
    %45 = vector.extract_strided_slice %35 {offsets = [2, 0], sizes = [13, 90], strides = [1, 1]} : vector<15x90xf32> to vector<13x90xf32>
    %c2_43 = arith.constant 2 : index
    %c0_44 = arith.constant 0 : index
    %c0_45 = arith.constant 0 : index
    %46 = vector.load %arg4[%c2_43, %c0_44, %c0_45] : memref<3x90x208xf32, #tpu.memory_space<vmem>>, vector<1x90x208xf32>
    %47 = vector.shape_cast %46 : vector<1x90x208xf32> to vector<90x208xf32>
    %cst_46 = arith.constant dense<0.000000e+00> : vector<13x208xf32>
    %48 = tpu.matmul %45, %47, %cst_46 {dimension_numbers = #tpu.dot_dimension_numbers<[1], [0], [0], [1], [0, 0, 1, 1], [], []>} : vector<13x90xf32>, vector<90x208xf32>, vector<13x208xf32> -> vector<13x208xf32>
    %49 = arith.addf %44, %48 : vector<13x208xf32>
    %c0_47 = arith.constant 0 : index
    %c0_48 = arith.constant 0 : index
    %50 = vector.load %arg5[%c0_47, %c0_48] : memref<1x208xf32, #tpu.memory_space<vmem>>, vector<1x208xf32>
    %51 = vector.broadcast %50 : vector<1x208xf32> to vector<13x208xf32>
    %52 = arith.addf %49, %51 : vector<13x208xf32>
    %cst_49 = arith.constant 0.000000e+00 : f32
    %53 = vector.broadcast %cst_49 : f32 to vector<13x208xf32>
    %54 = arith.maximumf %52, %53 : vector<13x208xf32>
    %55 = vector.extract_strided_slice %54 {offsets = [0, 0], sizes = [12, 192], strides = [1, 1]} : vector<13x208xf32> to vector<12x192xf32>
    %56 = vector.extract_strided_slice %54 {offsets = [1, 0], sizes = [12, 192], strides = [1, 1]} : vector<13x208xf32> to vector<12x192xf32>
    %57 = arith.maximumf %55, %56 : vector<12x192xf32>
    %58 = vector.extract_strided_slice %54 {offsets = [0, 16], sizes = [12, 192], strides = [1, 1]} : vector<13x208xf32> to vector<12x192xf32>
    %59 = vector.extract_strided_slice %54 {offsets = [1, 16], sizes = [12, 192], strides = [1, 1]} : vector<13x208xf32> to vector<12x192xf32>
    %60 = arith.maximumf %58, %59 : vector<12x192xf32>
    %61 = arith.maximumf %57, %60 : vector<12x192xf32>
    %c0_50 = arith.constant 0 : index
    %c0_51 = arith.constant 0 : index
    %62 = vector.load %arg8[%c0_50, %c0_51] : memref<6x12xf32, #tpu.memory_space<vmem>>, vector<6x12xf32>
    %cst_52 = arith.constant dense<0.000000e+00> : vector<6x192xf32>
    %63 = tpu.matmul %62, %61, %cst_52 {dimension_numbers = #tpu.dot_dimension_numbers<[1], [0], [0], [1], [0, 0, 1, 1], [], []>} : vector<6x12xf32>, vector<12x192xf32>, vector<6x192xf32> -> vector<6x192xf32>
    %c0_53 = arith.constant 0 : index
    %c0_54 = arith.constant 0 : index
    %64 = vector.load %arg9[%c0_53, %c0_54] : memref<192x96xf32, #tpu.memory_space<vmem>>, vector<192x96xf32>
    %cst_55 = arith.constant dense<0.000000e+00> : vector<6x96xf32>
    %65 = tpu.matmul %63, %64, %cst_55 {dimension_numbers = #tpu.dot_dimension_numbers<[1], [0], [0], [1], [0, 0, 1, 1], [], []>} : vector<6x192xf32>, vector<192x96xf32>, vector<6x96xf32> -> vector<6x96xf32>
    %c0_56 = arith.constant 0 : index
    %c0_57 = arith.constant 0 : index
    %c0_58 = arith.constant 0 : index
    %66 = vector.load %arg18[%c0_56, %c0_57, %c0_58] : memref<8x6x96xf32, #tpu.memory_space<vmem>>, vector<1x6x96xf32>
    %67 = vector.shape_cast %66 : vector<1x6x96xf32> to vector<6x96xf32>
    %68 = vector.shape_cast %65 : vector<6x96xf32> to vector<1x6x96xf32>
    tpu.vector_store %arg18[%c0_56, %c0_57, %c0_58], %68 {strides = array<i32>} : memref<8x6x96xf32, #tpu.memory_space<vmem>>, vector<1x6x96xf32>,
    %c32 = arith.constant 32 : index
    %c0_59 = arith.constant 0 : index
    %69 = vector.load %arg17[%c32, %c0_59] : memref<256x180xf32, #tpu.memory_space<vmem>>, vector<30x180xf32>
    %70 = vector.extract_strided_slice %69 {offsets = [0, 0], sizes = [29, 174], strides = [1, 1]} : vector<30x180xf32> to vector<29x174xf32>
    %71 = vector.extract_strided_slice %69 {offsets = [1, 0], sizes = [29, 174], strides = [1, 1]} : vector<30x180xf32> to vector<29x174xf32>
    %72 = arith.maximumf %70, %71 : vector<29x174xf32>
    %73 = vector.extract_strided_slice %69 {offsets = [0, 6], sizes = [29, 174], strides = [1, 1]} : vector<30x180xf32> to vector<29x174xf32>
    %74 = vector.extract_strided_slice %69 {offsets = [1, 6], sizes = [29, 174], strides = [1, 1]} : vector<30x180xf32> to vector<29x174xf32>
    %75 = arith.maximumf %73, %74 : vector<29x174xf32>
    %76 = arith.maximumf %72, %75 : vector<29x174xf32>
    %c0_60 = arith.constant 0 : index
    %c0_61 = arith.constant 0 : index
    %77 = vector.load %arg6[%c0_60, %c0_61] : memref<15x29xf32, #tpu.memory_space<vmem>>, vector<15x29xf32>
    %cst_62 = arith.constant dense<0.000000e+00> : vector<15x174xf32>
    %78 = tpu.matmul %77, %76, %cst_62 {dimension_numbers = #tpu.dot_dimension_numbers<[1], [0], [0], [1], [0, 0, 1, 1], [], []>} : vector<15x29xf32>, vector<29x174xf32>, vector<15x174xf32> -> vector<15x174xf32>
    %c0_63 = arith.constant 0 : index
    %c0_64 = arith.constant 0 : index
    %79 = vector.load %arg7[%c0_63, %c0_64] : memref<174x90xf32, #tpu.memory_space<vmem>>, vector<174x90xf32>
    %cst_65 = arith.constant dense<0.000000e+00> : vector<15x90xf32>
    %80 = tpu.matmul %78, %79, %cst_65 {dimension_numbers = #tpu.dot_dimension_numbers<[1], [0], [0], [1], [0, 0, 1, 1], [], []>} : vector<15x174xf32>, vector<174x90xf32>, vector<15x90xf32> -> vector<15x90xf32>
    %81 = vector.extract_strided_slice %80 {offsets = [0, 0], sizes = [13, 90], strides = [1, 1]} : vector<15x90xf32> to vector<13x90xf32>
    %c0_66 = arith.constant 0 : index
    %c0_67 = arith.constant 0 : index
    %c0_68 = arith.constant 0 : index
    %82 = vector.load %arg4[%c0_66, %c0_67, %c0_68] : memref<3x90x208xf32, #tpu.memory_space<vmem>>, vector<1x90x208xf32>
    %83 = vector.shape_cast %82 : vector<1x90x208xf32> to vector<90x208xf32>
    %cst_69 = arith.constant dense<0.000000e+00> : vector<13x208xf32>
    %84 = tpu.matmul %81, %83, %cst_69 {dimension_numbers = #tpu.dot_dimension_numbers<[1], [0], [0], [1], [0, 0, 1, 1], [], []>} : vector<13x90xf32>, vector<90x208xf32>, vector<13x208xf32> -> vector<13x208xf32>
    %85 = vector.extract_strided_slice %80 {offsets = [1, 0], sizes = [13, 90], strides = [1, 1]} : vector<15x90xf32> to vector<13x90xf32>
    %c1_70 = arith.constant 1 : index
    %c0_71 = arith.constant 0 : index
    %c0_72 = arith.constant 0 : index
    %86 = vector.load %arg4[%c1_70, %c0_71, %c0_72] : memref<3x90x208xf32, #tpu.memory_space<vmem>>, vector<1x90x208xf32>
    %87 = vector.shape_cast %86 : vector<1x90x208xf32> to vector<90x208xf32>
    %cst_73 = arith.constant dense<0.000000e+00> : vector<13x208xf32>
    %88 = tpu.matmul %85, %87, %cst_73 {dimension_numbers = #tpu.dot_dimension_numbers<[1], [0], [0], [1], [0, 0, 1, 1], [], []>} : vector<13x90xf32>, vector<90x208xf32>, vector<13x208xf32> -> vector<13x208xf32>
    %89 = arith.addf %84, %88 : vector<13x208xf32>
    %90 = vector.extract_strided_slice %80 {offsets = [2, 0], sizes = [13, 90], strides = [1, 1]} : vector<15x90xf32> to vector<13x90xf32>
    %c2_74 = arith.constant 2 : index
    %c0_75 = arith.constant 0 : index
    %c0_76 = arith.constant 0 : index
    %91 = vector.load %arg4[%c2_74, %c0_75, %c0_76] : memref<3x90x208xf32, #tpu.memory_space<vmem>>, vector<1x90x208xf32>
    %92 = vector.shape_cast %91 : vector<1x90x208xf32> to vector<90x208xf32>
    %cst_77 = arith.constant dense<0.000000e+00> : vector<13x208xf32>
    %93 = tpu.matmul %90, %92, %cst_77 {dimension_numbers = #tpu.dot_dimension_numbers<[1], [0], [0], [1], [0, 0, 1, 1], [], []>} : vector<13x90xf32>, vector<90x208xf32>, vector<13x208xf32> -> vector<13x208xf32>
    %94 = arith.addf %89, %93 : vector<13x208xf32>
    %c0_78 = arith.constant 0 : index
    %c0_79 = arith.constant 0 : index
    %95 = vector.load %arg5[%c0_78, %c0_79] : memref<1x208xf32, #tpu.memory_space<vmem>>, vector<1x208xf32>
    %96 = vector.broadcast %95 : vector<1x208xf32> to vector<13x208xf32>
    %97 = arith.addf %94, %96 : vector<13x208xf32>
    %cst_80 = arith.constant 0.000000e+00 : f32
    %98 = vector.broadcast %cst_80 : f32 to vector<13x208xf32>
    %99 = arith.maximumf %97, %98 : vector<13x208xf32>
    %100 = vector.extract_strided_slice %99 {offsets = [0, 0], sizes = [12, 192], strides = [1, 1]} : vector<13x208xf32> to vector<12x192xf32>
    %101 = vector.extract_strided_slice %99 {offsets = [1, 0], sizes = [12, 192], strides = [1, 1]} : vector<13x208xf32> to vector<12x192xf32>
    %102 = arith.maximumf %100, %101 : vector<12x192xf32>
    %103 = vector.extract_strided_slice %99 {offsets = [0, 16], sizes = [12, 192], strides = [1, 1]} : vector<13x208xf32> to vector<12x192xf32>
    %104 = vector.extract_strided_slice %99 {offsets = [1, 16], sizes = [12, 192], strides = [1, 1]} : vector<13x208xf32> to vector<12x192xf32>
    %105 = arith.maximumf %103, %104 : vector<12x192xf32>
    %106 = arith.maximumf %102, %105 : vector<12x192xf32>
    %c0_81 = arith.constant 0 : index
    %c0_82 = arith.constant 0 : index
    %107 = vector.load %arg8[%c0_81, %c0_82] : memref<6x12xf32, #tpu.memory_space<vmem>>, vector<6x12xf32>
    %cst_83 = arith.constant dense<0.000000e+00> : vector<6x192xf32>
    %108 = tpu.matmul %107, %106, %cst_83 {dimension_numbers = #tpu.dot_dimension_numbers<[1], [0], [0], [1], [0, 0, 1, 1], [], []>} : vector<6x12xf32>, vector<12x192xf32>, vector<6x192xf32> -> vector<6x192xf32>
    %c0_84 = arith.constant 0 : index
    %c0_85 = arith.constant 0 : index
    %109 = vector.load %arg9[%c0_84, %c0_85] : memref<192x96xf32, #tpu.memory_space<vmem>>, vector<192x96xf32>
    %cst_86 = arith.constant dense<0.000000e+00> : vector<6x96xf32>
    %110 = tpu.matmul %108, %109, %cst_86 {dimension_numbers = #tpu.dot_dimension_numbers<[1], [0], [0], [1], [0, 0, 1, 1], [], []>} : vector<6x192xf32>, vector<192x96xf32>, vector<6x96xf32> -> vector<6x96xf32>
    %c1_87 = arith.constant 1 : index
    %c0_88 = arith.constant 0 : index
    %c0_89 = arith.constant 0 : index
    %111 = vector.load %arg18[%c1_87, %c0_88, %c0_89] : memref<8x6x96xf32, #tpu.memory_space<vmem>>, vector<1x6x96xf32>
    %112 = vector.shape_cast %111 : vector<1x6x96xf32> to vector<6x96xf32>
    %113 = vector.shape_cast %110 : vector<6x96xf32> to vector<1x6x96xf32>
    tpu.vector_store %arg18[%c1_87, %c0_88, %c0_89], %113 {strides = array<i32>} : memref<8x6x96xf32, #tpu.memory_space<vmem>>, vector<1x6x96xf32>,
    %c64 = arith.constant 64 : index
    %c0_90 = arith.constant 0 : index
    %114 = vector.load %arg17[%c64, %c0_90] : memref<256x180xf32, #tpu.memory_space<vmem>>, vector<30x180xf32>
    %115 = vector.extract_strided_slice %114 {offsets = [0, 0], sizes = [29, 174], strides = [1, 1]} : vector<30x180xf32> to vector<29x174xf32>
    %116 = vector.extract_strided_slice %114 {offsets = [1, 0], sizes = [29, 174], strides = [1, 1]} : vector<30x180xf32> to vector<29x174xf32>
    %117 = arith.maximumf %115, %116 : vector<29x174xf32>
    %118 = vector.extract_strided_slice %114 {offsets = [0, 6], sizes = [29, 174], strides = [1, 1]} : vector<30x180xf32> to vector<29x174xf32>
    %119 = vector.extract_strided_slice %114 {offsets = [1, 6], sizes = [29, 174], strides = [1, 1]} : vector<30x180xf32> to vector<29x174xf32>
    %120 = arith.maximumf %118, %119 : vector<29x174xf32>
    %121 = arith.maximumf %117, %120 : vector<29x174xf32>
    %c0_91 = arith.constant 0 : index
    %c0_92 = arith.constant 0 : index
    %122 = vector.load %arg6[%c0_91, %c0_92] : memref<15x29xf32, #tpu.memory_space<vmem>>, vector<15x29xf32>
    %cst_93 = arith.constant dense<0.000000e+00> : vector<15x174xf32>
    %123 = tpu.matmul %122, %121, %cst_93 {dimension_numbers = #tpu.dot_dimension_numbers<[1], [0], [0], [1], [0, 0, 1, 1], [], []>} : vector<15x29xf32>, vector<29x174xf32>, vector<15x174xf32> -> vector<15x174xf32>
    %c0_94 = arith.constant 0 : index
    %c0_95 = arith.constant 0 : index
    %124 = vector.load %arg7[%c0_94, %c0_95] : memref<174x90xf32, #tpu.memory_space<vmem>>, vector<174x90xf32>
    %cst_96 = arith.constant dense<0.000000e+00> : vector<15x90xf32>
    %125 = tpu.matmul %123, %124, %cst_96 {dimension_numbers = #tpu.dot_dimension_numbers<[1], [0], [0], [1], [0, 0, 1, 1], [], []>} : vector<15x174xf32>, vector<174x90xf32>, vector<15x90xf32> -> vector<15x90xf32>
    %126 = vector.extract_strided_slice %125 {offsets = [0, 0], sizes = [13, 90], strides = [1, 1]} : vector<15x90xf32> to vector<13x90xf32>
    %c0_97 = arith.constant 0 : index
    %c0_98 = arith.constant 0 : index
    %c0_99 = arith.constant 0 : index
    %127 = vector.load %arg4[%c0_97, %c0_98, %c0_99] : memref<3x90x208xf32, #tpu.memory_space<vmem>>, vector<1x90x208xf32>
    %128 = vector.shape_cast %127 : vector<1x90x208xf32> to vector<90x208xf32>
    %cst_100 = arith.constant dense<0.000000e+00> : vector<13x208xf32>
    %129 = tpu.matmul %126, %128, %cst_100 {dimension_numbers = #tpu.dot_dimension_numbers<[1], [0], [0], [1], [0, 0, 1, 1], [], []>} : vector<13x90xf32>, vector<90x208xf32>, vector<13x208xf32> -> vector<13x208xf32>
    %130 = vector.extract_strided_slice %125 {offsets = [1, 0], sizes = [13, 90], strides = [1, 1]} : vector<15x90xf32> to vector<13x90xf32>
    %c1_101 = arith.constant 1 : index
    %c0_102 = arith.constant 0 : index
    %c0_103 = arith.constant 0 : index
    %131 = vector.load %arg4[%c1_101, %c0_102, %c0_103] : memref<3x90x208xf32, #tpu.memory_space<vmem>>, vector<1x90x208xf32>
    %132 = vector.shape_cast %131 : vector<1x90x208xf32> to vector<90x208xf32>
    %cst_104 = arith.constant dense<0.000000e+00> : vector<13x208xf32>
    %133 = tpu.matmul %130, %132, %cst_104 {dimension_numbers = #tpu.dot_dimension_numbers<[1], [0], [0], [1], [0, 0, 1, 1], [], []>} : vector<13x90xf32>, vector<90x208xf32>, vector<13x208xf32> -> vector<13x208xf32>
    %134 = arith.addf %129, %133 : vector<13x208xf32>
    %135 = vector.extract_strided_slice %125 {offsets = [2, 0], sizes = [13, 90], strides = [1, 1]} : vector<15x90xf32> to vector<13x90xf32>
    %c2_105 = arith.constant 2 : index
    %c0_106 = arith.constant 0 : index
    %c0_107 = arith.constant 0 : index
    %136 = vector.load %arg4[%c2_105, %c0_106, %c0_107] : memref<3x90x208xf32, #tpu.memory_space<vmem>>, vector<1x90x208xf32>
    %137 = vector.shape_cast %136 : vector<1x90x208xf32> to vector<90x208xf32>
    %cst_108 = arith.constant dense<0.000000e+00> : vector<13x208xf32>
    %138 = tpu.matmul %135, %137, %cst_108 {dimension_numbers = #tpu.dot_dimension_numbers<[1], [0], [0], [1], [0, 0, 1, 1], [], []>} : vector<13x90xf32>, vector<90x208xf32>, vector<13x208xf32> -> vector<13x208xf32>
    %139 = arith.addf %134, %138 : vector<13x208xf32>
    %c0_109 = arith.constant 0 : index
    %c0_110 = arith.constant 0 : index
    %140 = vector.load %arg5[%c0_109, %c0_110] : memref<1x208xf32, #tpu.memory_space<vmem>>, vector<1x208xf32>
    %141 = vector.broadcast %140 : vector<1x208xf32> to vector<13x208xf32>
    %142 = arith.addf %139, %141 : vector<13x208xf32>
    %cst_111 = arith.constant 0.000000e+00 : f32
    %143 = vector.broadcast %cst_111 : f32 to vector<13x208xf32>
    %144 = arith.maximumf %142, %143 : vector<13x208xf32>
    %145 = vector.extract_strided_slice %144 {offsets = [0, 0], sizes = [12, 192], strides = [1, 1]} : vector<13x208xf32> to vector<12x192xf32>
    %146 = vector.extract_strided_slice %144 {offsets = [1, 0], sizes = [12, 192], strides = [1, 1]} : vector<13x208xf32> to vector<12x192xf32>
    %147 = arith.maximumf %145, %146 : vector<12x192xf32>
    %148 = vector.extract_strided_slice %144 {offsets = [0, 16], sizes = [12, 192], strides = [1, 1]} : vector<13x208xf32> to vector<12x192xf32>
    %149 = vector.extract_strided_slice %144 {offsets = [1, 16], sizes = [12, 192], strides = [1, 1]} : vector<13x208xf32> to vector<12x192xf32>
    %150 = arith.maximumf %148, %149 : vector<12x192xf32>
    %151 = arith.maximumf %147, %150 : vector<12x192xf32>
    %c0_112 = arith.constant 0 : index
    %c0_113 = arith.constant 0 : index
    %152 = vector.load %arg8[%c0_112, %c0_113] : memref<6x12xf32, #tpu.memory_space<vmem>>, vector<6x12xf32>
    %cst_114 = arith.constant dense<0.000000e+00> : vector<6x192xf32>
    %153 = tpu.matmul %152, %151, %cst_114 {dimension_numbers = #tpu.dot_dimension_numbers<[1], [0], [0], [1], [0, 0, 1, 1], [], []>} : vector<6x12xf32>, vector<12x192xf32>, vector<6x192xf32> -> vector<6x192xf32>
    %c0_115 = arith.constant 0 : index
    %c0_116 = arith.constant 0 : index
    %154 = vector.load %arg9[%c0_115, %c0_116] : memref<192x96xf32, #tpu.memory_space<vmem>>, vector<192x96xf32>
    %cst_117 = arith.constant dense<0.000000e+00> : vector<6x96xf32>
    %155 = tpu.matmul %153, %154, %cst_117 {dimension_numbers = #tpu.dot_dimension_numbers<[1], [0], [0], [1], [0, 0, 1, 1], [], []>} : vector<6x192xf32>, vector<192x96xf32>, vector<6x96xf32> -> vector<6x96xf32>
    %c2_118 = arith.constant 2 : index
    %c0_119 = arith.constant 0 : index
    %c0_120 = arith.constant 0 : index
    %156 = vector.load %arg18[%c2_118, %c0_119, %c0_120] : memref<8x6x96xf32, #tpu.memory_space<vmem>>, vector<1x6x96xf32>
    %157 = vector.shape_cast %156 : vector<1x6x96xf32> to vector<6x96xf32>
    %158 = vector.shape_cast %155 : vector<6x96xf32> to vector<1x6x96xf32>
    tpu.vector_store %arg18[%c2_118, %c0_119, %c0_120], %158 {strides = array<i32>} : memref<8x6x96xf32, #tpu.memory_space<vmem>>, vector<1x6x96xf32>,
    %c96 = arith.constant 96 : index
    %c0_121 = arith.constant 0 : index
    %159 = vector.load %arg17[%c96, %c0_121] : memref<256x180xf32, #tpu.memory_space<vmem>>, vector<30x180xf32>
    %160 = vector.extract_strided_slice %159 {offsets = [0, 0], sizes = [29, 174], strides = [1, 1]} : vector<30x180xf32> to vector<29x174xf32>
    %161 = vector.extract_strided_slice %159 {offsets = [1, 0], sizes = [29, 174], strides = [1, 1]} : vector<30x180xf32> to vector<29x174xf32>
    %162 = arith.maximumf %160, %161 : vector<29x174xf32>
    %163 = vector.extract_strided_slice %159 {offsets = [0, 6], sizes = [29, 174], strides = [1, 1]} : vector<30x180xf32> to vector<29x174xf32>
    %164 = vector.extract_strided_slice %159 {offsets = [1, 6], sizes = [29, 174], strides = [1, 1]} : vector<30x180xf32> to vector<29x174xf32>
    %165 = arith.maximumf %163, %164 : vector<29x174xf32>
    %166 = arith.maximumf %162, %165 : vector<29x174xf32>
    %c0_122 = arith.constant 0 : index
    %c0_123 = arith.constant 0 : index
    %167 = vector.load %arg6[%c0_122, %c0_123] : memref<15x29xf32, #tpu.memory_space<vmem>>, vector<15x29xf32>
    %cst_124 = arith.constant dense<0.000000e+00> : vector<15x174xf32>
    %168 = tpu.matmul %167, %166, %cst_124 {dimension_numbers = #tpu.dot_dimension_numbers<[1], [0], [0], [1], [0, 0, 1, 1], [], []>} : vector<15x29xf32>, vector<29x174xf32>, vector<15x174xf32> -> vector<15x174xf32>
    %c0_125 = arith.constant 0 : index
    %c0_126 = arith.constant 0 : index
    %169 = vector.load %arg7[%c0_125, %c0_126] : memref<174x90xf32, #tpu.memory_space<vmem>>, vector<174x90xf32>
    %cst_127 = arith.constant dense<0.000000e+00> : vector<15x90xf32>
    %170 = tpu.matmul %168, %169, %cst_127 {dimension_numbers = #tpu.dot_dimension_numbers<[1], [0], [0], [1], [0, 0, 1, 1], [], []>} : vector<15x174xf32>, vector<174x90xf32>, vector<15x90xf32> -> vector<15x90xf32>
    %171 = vector.extract_strided_slice %170 {offsets = [0, 0], sizes = [13, 90], strides = [1, 1]} : vector<15x90xf32> to vector<13x90xf32>
    %c0_128 = arith.constant 0 : index
    %c0_129 = arith.constant 0 : index
    %c0_130 = arith.constant 0 : index
    %172 = vector.load %arg4[%c0_128, %c0_129, %c0_130] : memref<3x90x208xf32, #tpu.memory_space<vmem>>, vector<1x90x208xf32>
    %173 = vector.shape_cast %172 : vector<1x90x208xf32> to vector<90x208xf32>
    %cst_131 = arith.constant dense<0.000000e+00> : vector<13x208xf32>
    %174 = tpu.matmul %171, %173, %cst_131 {dimension_numbers = #tpu.dot_dimension_numbers<[1], [0], [0], [1], [0, 0, 1, 1], [], []>} : vector<13x90xf32>, vector<90x208xf32>, vector<13x208xf32> -> vector<13x208xf32>
    %175 = vector.extract_strided_slice %170 {offsets = [1, 0], sizes = [13, 90], strides = [1, 1]} : vector<15x90xf32> to vector<13x90xf32>
    %c1_132 = arith.constant 1 : index
    %c0_133 = arith.constant 0 : index
    %c0_134 = arith.constant 0 : index
    %176 = vector.load %arg4[%c1_132, %c0_133, %c0_134] : memref<3x90x208xf32, #tpu.memory_space<vmem>>, vector<1x90x208xf32>
    %177 = vector.shape_cast %176 : vector<1x90x208xf32> to vector<90x208xf32>
    %cst_135 = arith.constant dense<0.000000e+00> : vector<13x208xf32>
    %178 = tpu.matmul %175, %177, %cst_135 {dimension_numbers = #tpu.dot_dimension_numbers<[1], [0], [0], [1], [0, 0, 1, 1], [], []>} : vector<13x90xf32>, vector<90x208xf32>, vector<13x208xf32> -> vector<13x208xf32>
    %179 = arith.addf %174, %178 : vector<13x208xf32>
    %180 = vector.extract_strided_slice %170 {offsets = [2, 0], sizes = [13, 90], strides = [1, 1]} : vector<15x90xf32> to vector<13x90xf32>
    %c2_136 = arith.constant 2 : index
    %c0_137 = arith.constant 0 : index
    %c0_138 = arith.constant 0 : index
    %181 = vector.load %arg4[%c2_136, %c0_137, %c0_138] : memref<3x90x208xf32, #tpu.memory_space<vmem>>, vector<1x90x208xf32>
    %182 = vector.shape_cast %181 : vector<1x90x208xf32> to vector<90x208xf32>
    %cst_139 = arith.constant dense<0.000000e+00> : vector<13x208xf32>
    %183 = tpu.matmul %180, %182, %cst_139 {dimension_numbers = #tpu.dot_dimension_numbers<[1], [0], [0], [1], [0, 0, 1, 1], [], []>} : vector<13x90xf32>, vector<90x208xf32>, vector<13x208xf32> -> vector<13x208xf32>
    %184 = arith.addf %179, %183 : vector<13x208xf32>
    %c0_140 = arith.constant 0 : index
    %c0_141 = arith.constant 0 : index
    %185 = vector.load %arg5[%c0_140, %c0_141] : memref<1x208xf32, #tpu.memory_space<vmem>>, vector<1x208xf32>
    %186 = vector.broadcast %185 : vector<1x208xf32> to vector<13x208xf32>
    %187 = arith.addf %184, %186 : vector<13x208xf32>
    %cst_142 = arith.constant 0.000000e+00 : f32
    %188 = vector.broadcast %cst_142 : f32 to vector<13x208xf32>
    %189 = arith.maximumf %187, %188 : vector<13x208xf32>
    %190 = vector.extract_strided_slice %189 {offsets = [0, 0], sizes = [12, 192], strides = [1, 1]} : vector<13x208xf32> to vector<12x192xf32>
    %191 = vector.extract_strided_slice %189 {offsets = [1, 0], sizes = [12, 192], strides = [1, 1]} : vector<13x208xf32> to vector<12x192xf32>
    %192 = arith.maximumf %190, %191 : vector<12x192xf32>
    %193 = vector.extract_strided_slice %189 {offsets = [0, 16], sizes = [12, 192], strides = [1, 1]} : vector<13x208xf32> to vector<12x192xf32>
    %194 = vector.extract_strided_slice %189 {offsets = [1, 16], sizes = [12, 192], strides = [1, 1]} : vector<13x208xf32> to vector<12x192xf32>
    %195 = arith.maximumf %193, %194 : vector<12x192xf32>
    %196 = arith.maximumf %192, %195 : vector<12x192xf32>
    %c0_143 = arith.constant 0 : index
    %c0_144 = arith.constant 0 : index
    %197 = vector.load %arg8[%c0_143, %c0_144] : memref<6x12xf32, #tpu.memory_space<vmem>>, vector<6x12xf32>
    %cst_145 = arith.constant dense<0.000000e+00> : vector<6x192xf32>
    %198 = tpu.matmul %197, %196, %cst_145 {dimension_numbers = #tpu.dot_dimension_numbers<[1], [0], [0], [1], [0, 0, 1, 1], [], []>} : vector<6x12xf32>, vector<12x192xf32>, vector<6x192xf32> -> vector<6x192xf32>
    %c0_146 = arith.constant 0 : index
    %c0_147 = arith.constant 0 : index
    %199 = vector.load %arg9[%c0_146, %c0_147] : memref<192x96xf32, #tpu.memory_space<vmem>>, vector<192x96xf32>
    %cst_148 = arith.constant dense<0.000000e+00> : vector<6x96xf32>
    %200 = tpu.matmul %198, %199, %cst_148 {dimension_numbers = #tpu.dot_dimension_numbers<[1], [0], [0], [1], [0, 0, 1, 1], [], []>} : vector<6x192xf32>, vector<192x96xf32>, vector<6x96xf32> -> vector<6x96xf32>
    %c3 = arith.constant 3 : index
    %c0_149 = arith.constant 0 : index
    %c0_150 = arith.constant 0 : index
    %201 = vector.load %arg18[%c3, %c0_149, %c0_150] : memref<8x6x96xf32, #tpu.memory_space<vmem>>, vector<1x6x96xf32>
    %202 = vector.shape_cast %201 : vector<1x6x96xf32> to vector<6x96xf32>
    %203 = vector.shape_cast %200 : vector<6x96xf32> to vector<1x6x96xf32>
    tpu.vector_store %arg18[%c3, %c0_149, %c0_150], %203 {strides = array<i32>} : memref<8x6x96xf32, #tpu.memory_space<vmem>>, vector<1x6x96xf32>,
    %c128 = arith.constant 128 : index
    %c0_151 = arith.constant 0 : index
    %204 = vector.load %arg17[%c128, %c0_151] : memref<256x180xf32, #tpu.memory_space<vmem>>, vector<30x180xf32>
    %205 = vector.extract_strided_slice %204 {offsets = [0, 0], sizes = [29, 174], strides = [1, 1]} : vector<30x180xf32> to vector<29x174xf32>
    %206 = vector.extract_strided_slice %204 {offsets = [1, 0], sizes = [29, 174], strides = [1, 1]} : vector<30x180xf32> to vector<29x174xf32>
    %207 = arith.maximumf %205, %206 : vector<29x174xf32>
    %208 = vector.extract_strided_slice %204 {offsets = [0, 6], sizes = [29, 174], strides = [1, 1]} : vector<30x180xf32> to vector<29x174xf32>
    %209 = vector.extract_strided_slice %204 {offsets = [1, 6], sizes = [29, 174], strides = [1, 1]} : vector<30x180xf32> to vector<29x174xf32>
    %210 = arith.maximumf %208, %209 : vector<29x174xf32>
    %211 = arith.maximumf %207, %210 : vector<29x174xf32>
    %c0_152 = arith.constant 0 : index
    %c0_153 = arith.constant 0 : index
    %212 = vector.load %arg6[%c0_152, %c0_153] : memref<15x29xf32, #tpu.memory_space<vmem>>, vector<15x29xf32>
    %cst_154 = arith.constant dense<0.000000e+00> : vector<15x174xf32>
    %213 = tpu.matmul %212, %211, %cst_154 {dimension_numbers = #tpu.dot_dimension_numbers<[1], [0], [0], [1], [0, 0, 1, 1], [], []>} : vector<15x29xf32>, vector<29x174xf32>, vector<15x174xf32> -> vector<15x174xf32>
    %c0_155 = arith.constant 0 : index
    %c0_156 = arith.constant 0 : index
    %214 = vector.load %arg7[%c0_155, %c0_156] : memref<174x90xf32, #tpu.memory_space<vmem>>, vector<174x90xf32>
    %cst_157 = arith.constant dense<0.000000e+00> : vector<15x90xf32>
    %215 = tpu.matmul %213, %214, %cst_157 {dimension_numbers = #tpu.dot_dimension_numbers<[1], [0], [0], [1], [0, 0, 1, 1], [], []>} : vector<15x174xf32>, vector<174x90xf32>, vector<15x90xf32> -> vector<15x90xf32>
    %216 = vector.extract_strided_slice %215 {offsets = [0, 0], sizes = [13, 90], strides = [1, 1]} : vector<15x90xf32> to vector<13x90xf32>
    %c0_158 = arith.constant 0 : index
    %c0_159 = arith.constant 0 : index
    %c0_160 = arith.constant 0 : index
    %217 = vector.load %arg4[%c0_158, %c0_159, %c0_160] : memref<3x90x208xf32, #tpu.memory_space<vmem>>, vector<1x90x208xf32>
    %218 = vector.shape_cast %217 : vector<1x90x208xf32> to vector<90x208xf32>
    %cst_161 = arith.constant dense<0.000000e+00> : vector<13x208xf32>
    %219 = tpu.matmul %216, %218, %cst_161 {dimension_numbers = #tpu.dot_dimension_numbers<[1], [0], [0], [1], [0, 0, 1, 1], [], []>} : vector<13x90xf32>, vector<90x208xf32>, vector<13x208xf32> -> vector<13x208xf32>
    %220 = vector.extract_strided_slice %215 {offsets = [1, 0], sizes = [13, 90], strides = [1, 1]} : vector<15x90xf32> to vector<13x90xf32>
    %c1_162 = arith.constant 1 : index
    %c0_163 = arith.constant 0 : index
    %c0_164 = arith.constant 0 : index
    %221 = vector.load %arg4[%c1_162, %c0_163, %c0_164] : memref<3x90x208xf32, #tpu.memory_space<vmem>>, vector<1x90x208xf32>
    %222 = vector.shape_cast %221 : vector<1x90x208xf32> to vector<90x208xf32>
    %cst_165 = arith.constant dense<0.000000e+00> : vector<13x208xf32>
    %223 = tpu.matmul %220, %222, %cst_165 {dimension_numbers = #tpu.dot_dimension_numbers<[1], [0], [0], [1], [0, 0, 1, 1], [], []>} : vector<13x90xf32>, vector<90x208xf32>, vector<13x208xf32> -> vector<13x208xf32>
    %224 = arith.addf %219, %223 : vector<13x208xf32>
    %225 = vector.extract_strided_slice %215 {offsets = [2, 0], sizes = [13, 90], strides = [1, 1]} : vector<15x90xf32> to vector<13x90xf32>
    %c2_166 = arith.constant 2 : index
    %c0_167 = arith.constant 0 : index
    %c0_168 = arith.constant 0 : index
    %226 = vector.load %arg4[%c2_166, %c0_167, %c0_168] : memref<3x90x208xf32, #tpu.memory_space<vmem>>, vector<1x90x208xf32>
    %227 = vector.shape_cast %226 : vector<1x90x208xf32> to vector<90x208xf32>
    %cst_169 = arith.constant dense<0.000000e+00> : vector<13x208xf32>
    %228 = tpu.matmul %225, %227, %cst_169 {dimension_numbers = #tpu.dot_dimension_numbers<[1], [0], [0], [1], [0, 0, 1, 1], [], []>} : vector<13x90xf32>, vector<90x208xf32>, vector<13x208xf32> -> vector<13x208xf32>
    %229 = arith.addf %224, %228 : vector<13x208xf32>
    %c0_170 = arith.constant 0 : index
    %c0_171 = arith.constant 0 : index
    %230 = vector.load %arg5[%c0_170, %c0_171] : memref<1x208xf32, #tpu.memory_space<vmem>>, vector<1x208xf32>
    %231 = vector.broadcast %230 : vector<1x208xf32> to vector<13x208xf32>
    %232 = arith.addf %229, %231 : vector<13x208xf32>
    %cst_172 = arith.constant 0.000000e+00 : f32
    %233 = vector.broadcast %cst_172 : f32 to vector<13x208xf32>
    %234 = arith.maximumf %232, %233 : vector<13x208xf32>
    %235 = vector.extract_strided_slice %234 {offsets = [0, 0], sizes = [12, 192], strides = [1, 1]} : vector<13x208xf32> to vector<12x192xf32>
    %236 = vector.extract_strided_slice %234 {offsets = [1, 0], sizes = [12, 192], strides = [1, 1]} : vector<13x208xf32> to vector<12x192xf32>
    %237 = arith.maximumf %235, %236 : vector<12x192xf32>
    %238 = vector.extract_strided_slice %234 {offsets = [0, 16], sizes = [12, 192], strides = [1, 1]} : vector<13x208xf32> to vector<12x192xf32>
    %239 = vector.extract_strided_slice %234 {offsets = [1, 16], sizes = [12, 192], strides = [1, 1]} : vector<13x208xf32> to vector<12x192xf32>
    %240 = arith.maximumf %238, %239 : vector<12x192xf32>
    %241 = arith.maximumf %237, %240 : vector<12x192xf32>
    %c0_173 = arith.constant 0 : index
    %c0_174 = arith.constant 0 : index
    %242 = vector.load %arg8[%c0_173, %c0_174] : memref<6x12xf32, #tpu.memory_space<vmem>>, vector<6x12xf32>
    %cst_175 = arith.constant dense<0.000000e+00> : vector<6x192xf32>
    %243 = tpu.matmul %242, %241, %cst_175 {dimension_numbers = #tpu.dot_dimension_numbers<[1], [0], [0], [1], [0, 0, 1, 1], [], []>} : vector<6x12xf32>, vector<12x192xf32>, vector<6x192xf32> -> vector<6x192xf32>
    %c0_176 = arith.constant 0 : index
    %c0_177 = arith.constant 0 : index
    %244 = vector.load %arg9[%c0_176, %c0_177] : memref<192x96xf32, #tpu.memory_space<vmem>>, vector<192x96xf32>
    %cst_178 = arith.constant dense<0.000000e+00> : vector<6x96xf32>
    %245 = tpu.matmul %243, %244, %cst_178 {dimension_numbers = #tpu.dot_dimension_numbers<[1], [0], [0], [1], [0, 0, 1, 1], [], []>} : vector<6x192xf32>, vector<192x96xf32>, vector<6x96xf32> -> vector<6x96xf32>
    %c4 = arith.constant 4 : index
    %c0_179 = arith.constant 0 : index
    %c0_180 = arith.constant 0 : index
    %246 = vector.load %arg18[%c4, %c0_179, %c0_180] : memref<8x6x96xf32, #tpu.memory_space<vmem>>, vector<1x6x96xf32>
    %247 = vector.shape_cast %246 : vector<1x6x96xf32> to vector<6x96xf32>
    %248 = vector.shape_cast %245 : vector<6x96xf32> to vector<1x6x96xf32>
    tpu.vector_store %arg18[%c4, %c0_179, %c0_180], %248 {strides = array<i32>} : memref<8x6x96xf32, #tpu.memory_space<vmem>>, vector<1x6x96xf32>,
    %c160 = arith.constant 160 : index
    %c0_181 = arith.constant 0 : index
    %249 = vector.load %arg17[%c160, %c0_181] : memref<256x180xf32, #tpu.memory_space<vmem>>, vector<30x180xf32>
    %250 = vector.extract_strided_slice %249 {offsets = [0, 0], sizes = [29, 174], strides = [1, 1]} : vector<30x180xf32> to vector<29x174xf32>
    %251 = vector.extract_strided_slice %249 {offsets = [1, 0], sizes = [29, 174], strides = [1, 1]} : vector<30x180xf32> to vector<29x174xf32>
    %252 = arith.maximumf %250, %251 : vector<29x174xf32>
    %253 = vector.extract_strided_slice %249 {offsets = [0, 6], sizes = [29, 174], strides = [1, 1]} : vector<30x180xf32> to vector<29x174xf32>
    %254 = vector.extract_strided_slice %249 {offsets = [1, 6], sizes = [29, 174], strides = [1, 1]} : vector<30x180xf32> to vector<29x174xf32>
    %255 = arith.maximumf %253, %254 : vector<29x174xf32>
    %256 = arith.maximumf %252, %255 : vector<29x174xf32>
    %c0_182 = arith.constant 0 : index
    %c0_183 = arith.constant 0 : index
    %257 = vector.load %arg6[%c0_182, %c0_183] : memref<15x29xf32, #tpu.memory_space<vmem>>, vector<15x29xf32>
    %cst_184 = arith.constant dense<0.000000e+00> : vector<15x174xf32>
    %258 = tpu.matmul %257, %256, %cst_184 {dimension_numbers = #tpu.dot_dimension_numbers<[1], [0], [0], [1], [0, 0, 1, 1], [], []>} : vector<15x29xf32>, vector<29x174xf32>, vector<15x174xf32> -> vector<15x174xf32>
    %c0_185 = arith.constant 0 : index
    %c0_186 = arith.constant 0 : index
    %259 = vector.load %arg7[%c0_185, %c0_186] : memref<174x90xf32, #tpu.memory_space<vmem>>, vector<174x90xf32>
    %cst_187 = arith.constant dense<0.000000e+00> : vector<15x90xf32>
    %260 = tpu.matmul %258, %259, %cst_187 {dimension_numbers = #tpu.dot_dimension_numbers<[1], [0], [0], [1], [0, 0, 1, 1], [], []>} : vector<15x174xf32>, vector<174x90xf32>, vector<15x90xf32> -> vector<15x90xf32>
    %261 = vector.extract_strided_slice %260 {offsets = [0, 0], sizes = [13, 90], strides = [1, 1]} : vector<15x90xf32> to vector<13x90xf32>
    %c0_188 = arith.constant 0 : index
    %c0_189 = arith.constant 0 : index
    %c0_190 = arith.constant 0 : index
    %262 = vector.load %arg4[%c0_188, %c0_189, %c0_190] : memref<3x90x208xf32, #tpu.memory_space<vmem>>, vector<1x90x208xf32>
    %263 = vector.shape_cast %262 : vector<1x90x208xf32> to vector<90x208xf32>
    %cst_191 = arith.constant dense<0.000000e+00> : vector<13x208xf32>
    %264 = tpu.matmul %261, %263, %cst_191 {dimension_numbers = #tpu.dot_dimension_numbers<[1], [0], [0], [1], [0, 0, 1, 1], [], []>} : vector<13x90xf32>, vector<90x208xf32>, vector<13x208xf32> -> vector<13x208xf32>
    %265 = vector.extract_strided_slice %260 {offsets = [1, 0], sizes = [13, 90], strides = [1, 1]} : vector<15x90xf32> to vector<13x90xf32>
    %c1_192 = arith.constant 1 : index
    %c0_193 = arith.constant 0 : index
    %c0_194 = arith.constant 0 : index
    %266 = vector.load %arg4[%c1_192, %c0_193, %c0_194] : memref<3x90x208xf32, #tpu.memory_space<vmem>>, vector<1x90x208xf32>
    %267 = vector.shape_cast %266 : vector<1x90x208xf32> to vector<90x208xf32>
    %cst_195 = arith.constant dense<0.000000e+00> : vector<13x208xf32>
    %268 = tpu.matmul %265, %267, %cst_195 {dimension_numbers = #tpu.dot_dimension_numbers<[1], [0], [0], [1], [0, 0, 1, 1], [], []>} : vector<13x90xf32>, vector<90x208xf32>, vector<13x208xf32> -> vector<13x208xf32>
    %269 = arith.addf %264, %268 : vector<13x208xf32>
    %270 = vector.extract_strided_slice %260 {offsets = [2, 0], sizes = [13, 90], strides = [1, 1]} : vector<15x90xf32> to vector<13x90xf32>
    %c2_196 = arith.constant 2 : index
    %c0_197 = arith.constant 0 : index
    %c0_198 = arith.constant 0 : index
    %271 = vector.load %arg4[%c2_196, %c0_197, %c0_198] : memref<3x90x208xf32, #tpu.memory_space<vmem>>, vector<1x90x208xf32>
    %272 = vector.shape_cast %271 : vector<1x90x208xf32> to vector<90x208xf32>
    %cst_199 = arith.constant dense<0.000000e+00> : vector<13x208xf32>
    %273 = tpu.matmul %270, %272, %cst_199 {dimension_numbers = #tpu.dot_dimension_numbers<[1], [0], [0], [1], [0, 0, 1, 1], [], []>} : vector<13x90xf32>, vector<90x208xf32>, vector<13x208xf32> -> vector<13x208xf32>
    %274 = arith.addf %269, %273 : vector<13x208xf32>
    %c0_200 = arith.constant 0 : index
    %c0_201 = arith.constant 0 : index
    %275 = vector.load %arg5[%c0_200, %c0_201] : memref<1x208xf32, #tpu.memory_space<vmem>>, vector<1x208xf32>
    %276 = vector.broadcast %275 : vector<1x208xf32> to vector<13x208xf32>
    %277 = arith.addf %274, %276 : vector<13x208xf32>
    %cst_202 = arith.constant 0.000000e+00 : f32
    %278 = vector.broadcast %cst_202 : f32 to vector<13x208xf32>
    %279 = arith.maximumf %277, %278 : vector<13x208xf32>
    %280 = vector.extract_strided_slice %279 {offsets = [0, 0], sizes = [12, 192], strides = [1, 1]} : vector<13x208xf32> to vector<12x192xf32>
    %281 = vector.extract_strided_slice %279 {offsets = [1, 0], sizes = [12, 192], strides = [1, 1]} : vector<13x208xf32> to vector<12x192xf32>
    %282 = arith.maximumf %280, %281 : vector<12x192xf32>
    %283 = vector.extract_strided_slice %279 {offsets = [0, 16], sizes = [12, 192], strides = [1, 1]} : vector<13x208xf32> to vector<12x192xf32>
    %284 = vector.extract_strided_slice %279 {offsets = [1, 16], sizes = [12, 192], strides = [1, 1]} : vector<13x208xf32> to vector<12x192xf32>
    %285 = arith.maximumf %283, %284 : vector<12x192xf32>
    %286 = arith.maximumf %282, %285 : vector<12x192xf32>
    %c0_203 = arith.constant 0 : index
    %c0_204 = arith.constant 0 : index
    %287 = vector.load %arg8[%c0_203, %c0_204] : memref<6x12xf32, #tpu.memory_space<vmem>>, vector<6x12xf32>
    %cst_205 = arith.constant dense<0.000000e+00> : vector<6x192xf32>
    %288 = tpu.matmul %287, %286, %cst_205 {dimension_numbers = #tpu.dot_dimension_numbers<[1], [0], [0], [1], [0, 0, 1, 1], [], []>} : vector<6x12xf32>, vector<12x192xf32>, vector<6x192xf32> -> vector<6x192xf32>
    %c0_206 = arith.constant 0 : index
    %c0_207 = arith.constant 0 : index
    %289 = vector.load %arg9[%c0_206, %c0_207] : memref<192x96xf32, #tpu.memory_space<vmem>>, vector<192x96xf32>
    %cst_208 = arith.constant dense<0.000000e+00> : vector<6x96xf32>
    %290 = tpu.matmul %288, %289, %cst_208 {dimension_numbers = #tpu.dot_dimension_numbers<[1], [0], [0], [1], [0, 0, 1, 1], [], []>} : vector<6x192xf32>, vector<192x96xf32>, vector<6x96xf32> -> vector<6x96xf32>
    %c5 = arith.constant 5 : index
    %c0_209 = arith.constant 0 : index
    %c0_210 = arith.constant 0 : index
    %291 = vector.load %arg18[%c5, %c0_209, %c0_210] : memref<8x6x96xf32, #tpu.memory_space<vmem>>, vector<1x6x96xf32>
    %292 = vector.shape_cast %291 : vector<1x6x96xf32> to vector<6x96xf32>
    %293 = vector.shape_cast %290 : vector<6x96xf32> to vector<1x6x96xf32>
    tpu.vector_store %arg18[%c5, %c0_209, %c0_210], %293 {strides = array<i32>} : memref<8x6x96xf32, #tpu.memory_space<vmem>>, vector<1x6x96xf32>,
    %c192 = arith.constant 192 : index
    %c0_211 = arith.constant 0 : index
    %294 = vector.load %arg17[%c192, %c0_211] : memref<256x180xf32, #tpu.memory_space<vmem>>, vector<30x180xf32>
    %295 = vector.extract_strided_slice %294 {offsets = [0, 0], sizes = [29, 174], strides = [1, 1]} : vector<30x180xf32> to vector<29x174xf32>
    %296 = vector.extract_strided_slice %294 {offsets = [1, 0], sizes = [29, 174], strides = [1, 1]} : vector<30x180xf32> to vector<29x174xf32>
    %297 = arith.maximumf %295, %296 : vector<29x174xf32>
    %298 = vector.extract_strided_slice %294 {offsets = [0, 6], sizes = [29, 174], strides = [1, 1]} : vector<30x180xf32> to vector<29x174xf32>
    %299 = vector.extract_strided_slice %294 {offsets = [1, 6], sizes = [29, 174], strides = [1, 1]} : vector<30x180xf32> to vector<29x174xf32>
    %300 = arith.maximumf %298, %299 : vector<29x174xf32>
    %301 = arith.maximumf %297, %300 : vector<29x174xf32>
    %c0_212 = arith.constant 0 : index
    %c0_213 = arith.constant 0 : index
    %302 = vector.load %arg6[%c0_212, %c0_213] : memref<15x29xf32, #tpu.memory_space<vmem>>, vector<15x29xf32>
    %cst_214 = arith.constant dense<0.000000e+00> : vector<15x174xf32>
    %303 = tpu.matmul %302, %301, %cst_214 {dimension_numbers = #tpu.dot_dimension_numbers<[1], [0], [0], [1], [0, 0, 1, 1], [], []>} : vector<15x29xf32>, vector<29x174xf32>, vector<15x174xf32> -> vector<15x174xf32>
    %c0_215 = arith.constant 0 : index
    %c0_216 = arith.constant 0 : index
    %304 = vector.load %arg7[%c0_215, %c0_216] : memref<174x90xf32, #tpu.memory_space<vmem>>, vector<174x90xf32>
    %cst_217 = arith.constant dense<0.000000e+00> : vector<15x90xf32>
    %305 = tpu.matmul %303, %304, %cst_217 {dimension_numbers = #tpu.dot_dimension_numbers<[1], [0], [0], [1], [0, 0, 1, 1], [], []>} : vector<15x174xf32>, vector<174x90xf32>, vector<15x90xf32> -> vector<15x90xf32>
    %306 = vector.extract_strided_slice %305 {offsets = [0, 0], sizes = [13, 90], strides = [1, 1]} : vector<15x90xf32> to vector<13x90xf32>
    %c0_218 = arith.constant 0 : index
    %c0_219 = arith.constant 0 : index
    %c0_220 = arith.constant 0 : index
    %307 = vector.load %arg4[%c0_218, %c0_219, %c0_220] : memref<3x90x208xf32, #tpu.memory_space<vmem>>, vector<1x90x208xf32>
    %308 = vector.shape_cast %307 : vector<1x90x208xf32> to vector<90x208xf32>
    %cst_221 = arith.constant dense<0.000000e+00> : vector<13x208xf32>
    %309 = tpu.matmul %306, %308, %cst_221 {dimension_numbers = #tpu.dot_dimension_numbers<[1], [0], [0], [1], [0, 0, 1, 1], [], []>} : vector<13x90xf32>, vector<90x208xf32>, vector<13x208xf32> -> vector<13x208xf32>
    %310 = vector.extract_strided_slice %305 {offsets = [1, 0], sizes = [13, 90], strides = [1, 1]} : vector<15x90xf32> to vector<13x90xf32>
    %c1_222 = arith.constant 1 : index
    %c0_223 = arith.constant 0 : index
    %c0_224 = arith.constant 0 : index
    %311 = vector.load %arg4[%c1_222, %c0_223, %c0_224] : memref<3x90x208xf32, #tpu.memory_space<vmem>>, vector<1x90x208xf32>
    %312 = vector.shape_cast %311 : vector<1x90x208xf32> to vector<90x208xf32>
    %cst_225 = arith.constant dense<0.000000e+00> : vector<13x208xf32>
    %313 = tpu.matmul %310, %312, %cst_225 {dimension_numbers = #tpu.dot_dimension_numbers<[1], [0], [0], [1], [0, 0, 1, 1], [], []>} : vector<13x90xf32>, vector<90x208xf32>, vector<13x208xf32> -> vector<13x208xf32>
    %314 = arith.addf %309, %313 : vector<13x208xf32>
    %315 = vector.extract_strided_slice %305 {offsets = [2, 0], sizes = [13, 90], strides = [1, 1]} : vector<15x90xf32> to vector<13x90xf32>
    %c2_226 = arith.constant 2 : index
    %c0_227 = arith.constant 0 : index
    %c0_228 = arith.constant 0 : index
    %316 = vector.load %arg4[%c2_226, %c0_227, %c0_228] : memref<3x90x208xf32, #tpu.memory_space<vmem>>, vector<1x90x208xf32>
    %317 = vector.shape_cast %316 : vector<1x90x208xf32> to vector<90x208xf32>
    %cst_229 = arith.constant dense<0.000000e+00> : vector<13x208xf32>
    %318 = tpu.matmul %315, %317, %cst_229 {dimension_numbers = #tpu.dot_dimension_numbers<[1], [0], [0], [1], [0, 0, 1, 1], [], []>} : vector<13x90xf32>, vector<90x208xf32>, vector<13x208xf32> -> vector<13x208xf32>
    %319 = arith.addf %314, %318 : vector<13x208xf32>
    %c0_230 = arith.constant 0 : index
    %c0_231 = arith.constant 0 : index
    %320 = vector.load %arg5[%c0_230, %c0_231] : memref<1x208xf32, #tpu.memory_space<vmem>>, vector<1x208xf32>
    %321 = vector.broadcast %320 : vector<1x208xf32> to vector<13x208xf32>
    %322 = arith.addf %319, %321 : vector<13x208xf32>
    %cst_232 = arith.constant 0.000000e+00 : f32
    %323 = vector.broadcast %cst_232 : f32 to vector<13x208xf32>
    %324 = arith.maximumf %322, %323 : vector<13x208xf32>
    %325 = vector.extract_strided_slice %324 {offsets = [0, 0], sizes = [12, 192], strides = [1, 1]} : vector<13x208xf32> to vector<12x192xf32>
    %326 = vector.extract_strided_slice %324 {offsets = [1, 0], sizes = [12, 192], strides = [1, 1]} : vector<13x208xf32> to vector<12x192xf32>
    %327 = arith.maximumf %325, %326 : vector<12x192xf32>
    %328 = vector.extract_strided_slice %324 {offsets = [0, 16], sizes = [12, 192], strides = [1, 1]} : vector<13x208xf32> to vector<12x192xf32>
    %329 = vector.extract_strided_slice %324 {offsets = [1, 16], sizes = [12, 192], strides = [1, 1]} : vector<13x208xf32> to vector<12x192xf32>
    %330 = arith.maximumf %328, %329 : vector<12x192xf32>
    %331 = arith.maximumf %327, %330 : vector<12x192xf32>
    %c0_233 = arith.constant 0 : index
    %c0_234 = arith.constant 0 : index
    %332 = vector.load %arg8[%c0_233, %c0_234] : memref<6x12xf32, #tpu.memory_space<vmem>>, vector<6x12xf32>
    %cst_235 = arith.constant dense<0.000000e+00> : vector<6x192xf32>
    %333 = tpu.matmul %332, %331, %cst_235 {dimension_numbers = #tpu.dot_dimension_numbers<[1], [0], [0], [1], [0, 0, 1, 1], [], []>} : vector<6x12xf32>, vector<12x192xf32>, vector<6x192xf32> -> vector<6x192xf32>
    %c0_236 = arith.constant 0 : index
    %c0_237 = arith.constant 0 : index
    %334 = vector.load %arg9[%c0_236, %c0_237] : memref<192x96xf32, #tpu.memory_space<vmem>>, vector<192x96xf32>
    %cst_238 = arith.constant dense<0.000000e+00> : vector<6x96xf32>
    %335 = tpu.matmul %333, %334, %cst_238 {dimension_numbers = #tpu.dot_dimension_numbers<[1], [0], [0], [1], [0, 0, 1, 1], [], []>} : vector<6x192xf32>, vector<192x96xf32>, vector<6x96xf32> -> vector<6x96xf32>
    %c6 = arith.constant 6 : index
    %c0_239 = arith.constant 0 : index
    %c0_240 = arith.constant 0 : index
    %336 = vector.load %arg18[%c6, %c0_239, %c0_240] : memref<8x6x96xf32, #tpu.memory_space<vmem>>, vector<1x6x96xf32>
    %337 = vector.shape_cast %336 : vector<1x6x96xf32> to vector<6x96xf32>
    %338 = vector.shape_cast %335 : vector<6x96xf32> to vector<1x6x96xf32>
    tpu.vector_store %arg18[%c6, %c0_239, %c0_240], %338 {strides = array<i32>} : memref<8x6x96xf32, #tpu.memory_space<vmem>>, vector<1x6x96xf32>,
    %c224 = arith.constant 224 : index
    %c0_241 = arith.constant 0 : index
    %339 = vector.load %arg17[%c224, %c0_241] : memref<256x180xf32, #tpu.memory_space<vmem>>, vector<30x180xf32>
    %340 = vector.extract_strided_slice %339 {offsets = [0, 0], sizes = [29, 174], strides = [1, 1]} : vector<30x180xf32> to vector<29x174xf32>
    %341 = vector.extract_strided_slice %339 {offsets = [1, 0], sizes = [29, 174], strides = [1, 1]} : vector<30x180xf32> to vector<29x174xf32>
    %342 = arith.maximumf %340, %341 : vector<29x174xf32>
    %343 = vector.extract_strided_slice %339 {offsets = [0, 6], sizes = [29, 174], strides = [1, 1]} : vector<30x180xf32> to vector<29x174xf32>
    %344 = vector.extract_strided_slice %339 {offsets = [1, 6], sizes = [29, 174], strides = [1, 1]} : vector<30x180xf32> to vector<29x174xf32>
    %345 = arith.maximumf %343, %344 : vector<29x174xf32>
    %346 = arith.maximumf %342, %345 : vector<29x174xf32>
    %c0_242 = arith.constant 0 : index
    %c0_243 = arith.constant 0 : index
    %347 = vector.load %arg6[%c0_242, %c0_243] : memref<15x29xf32, #tpu.memory_space<vmem>>, vector<15x29xf32>
    %cst_244 = arith.constant dense<0.000000e+00> : vector<15x174xf32>
    %348 = tpu.matmul %347, %346, %cst_244 {dimension_numbers = #tpu.dot_dimension_numbers<[1], [0], [0], [1], [0, 0, 1, 1], [], []>} : vector<15x29xf32>, vector<29x174xf32>, vector<15x174xf32> -> vector<15x174xf32>
    %c0_245 = arith.constant 0 : index
    %c0_246 = arith.constant 0 : index
    %349 = vector.load %arg7[%c0_245, %c0_246] : memref<174x90xf32, #tpu.memory_space<vmem>>, vector<174x90xf32>
    %cst_247 = arith.constant dense<0.000000e+00> : vector<15x90xf32>
    %350 = tpu.matmul %348, %349, %cst_247 {dimension_numbers = #tpu.dot_dimension_numbers<[1], [0], [0], [1], [0, 0, 1, 1], [], []>} : vector<15x174xf32>, vector<174x90xf32>, vector<15x90xf32> -> vector<15x90xf32>
    %351 = vector.extract_strided_slice %350 {offsets = [0, 0], sizes = [13, 90], strides = [1, 1]} : vector<15x90xf32> to vector<13x90xf32>
    %c0_248 = arith.constant 0 : index
    %c0_249 = arith.constant 0 : index
    %c0_250 = arith.constant 0 : index
    %352 = vector.load %arg4[%c0_248, %c0_249, %c0_250] : memref<3x90x208xf32, #tpu.memory_space<vmem>>, vector<1x90x208xf32>
    %353 = vector.shape_cast %352 : vector<1x90x208xf32> to vector<90x208xf32>
    %cst_251 = arith.constant dense<0.000000e+00> : vector<13x208xf32>
    %354 = tpu.matmul %351, %353, %cst_251 {dimension_numbers = #tpu.dot_dimension_numbers<[1], [0], [0], [1], [0, 0, 1, 1], [], []>} : vector<13x90xf32>, vector<90x208xf32>, vector<13x208xf32> -> vector<13x208xf32>
    %355 = vector.extract_strided_slice %350 {offsets = [1, 0], sizes = [13, 90], strides = [1, 1]} : vector<15x90xf32> to vector<13x90xf32>
    %c1_252 = arith.constant 1 : index
    %c0_253 = arith.constant 0 : index
    %c0_254 = arith.constant 0 : index
    %356 = vector.load %arg4[%c1_252, %c0_253, %c0_254] : memref<3x90x208xf32, #tpu.memory_space<vmem>>, vector<1x90x208xf32>
    %357 = vector.shape_cast %356 : vector<1x90x208xf32> to vector<90x208xf32>
    %cst_255 = arith.constant dense<0.000000e+00> : vector<13x208xf32>
    %358 = tpu.matmul %355, %357, %cst_255 {dimension_numbers = #tpu.dot_dimension_numbers<[1], [0], [0], [1], [0, 0, 1, 1], [], []>} : vector<13x90xf32>, vector<90x208xf32>, vector<13x208xf32> -> vector<13x208xf32>
    %359 = arith.addf %354, %358 : vector<13x208xf32>
    %360 = vector.extract_strided_slice %350 {offsets = [2, 0], sizes = [13, 90], strides = [1, 1]} : vector<15x90xf32> to vector<13x90xf32>
    %c2_256 = arith.constant 2 : index
    %c0_257 = arith.constant 0 : index
    %c0_258 = arith.constant 0 : index
    %361 = vector.load %arg4[%c2_256, %c0_257, %c0_258] : memref<3x90x208xf32, #tpu.memory_space<vmem>>, vector<1x90x208xf32>
    %362 = vector.shape_cast %361 : vector<1x90x208xf32> to vector<90x208xf32>
    %cst_259 = arith.constant dense<0.000000e+00> : vector<13x208xf32>
    %363 = tpu.matmul %360, %362, %cst_259 {dimension_numbers = #tpu.dot_dimension_numbers<[1], [0], [0], [1], [0, 0, 1, 1], [], []>} : vector<13x90xf32>, vector<90x208xf32>, vector<13x208xf32> -> vector<13x208xf32>
    %364 = arith.addf %359, %363 : vector<13x208xf32>
    %c0_260 = arith.constant 0 : index
    %c0_261 = arith.constant 0 : index
    %365 = vector.load %arg5[%c0_260, %c0_261] : memref<1x208xf32, #tpu.memory_space<vmem>>, vector<1x208xf32>
    %366 = vector.broadcast %365 : vector<1x208xf32> to vector<13x208xf32>
    %367 = arith.addf %364, %366 : vector<13x208xf32>
    %cst_262 = arith.constant 0.000000e+00 : f32
    %368 = vector.broadcast %cst_262 : f32 to vector<13x208xf32>
    %369 = arith.maximumf %367, %368 : vector<13x208xf32>
    %370 = vector.extract_strided_slice %369 {offsets = [0, 0], sizes = [12, 192], strides = [1, 1]} : vector<13x208xf32> to vector<12x192xf32>
    %371 = vector.extract_strided_slice %369 {offsets = [1, 0], sizes = [12, 192], strides = [1, 1]} : vector<13x208xf32> to vector<12x192xf32>
    %372 = arith.maximumf %370, %371 : vector<12x192xf32>
    %373 = vector.extract_strided_slice %369 {offsets = [0, 16], sizes = [12, 192], strides = [1, 1]} : vector<13x208xf32> to vector<12x192xf32>
    %374 = vector.extract_strided_slice %369 {offsets = [1, 16], sizes = [12, 192], strides = [1, 1]} : vector<13x208xf32> to vector<12x192xf32>
    %375 = arith.maximumf %373, %374 : vector<12x192xf32>
    %376 = arith.maximumf %372, %375 : vector<12x192xf32>
    %c0_263 = arith.constant 0 : index
    %c0_264 = arith.constant 0 : index
    %377 = vector.load %arg8[%c0_263, %c0_264] : memref<6x12xf32, #tpu.memory_space<vmem>>, vector<6x12xf32>
    %cst_265 = arith.constant dense<0.000000e+00> : vector<6x192xf32>
    %378 = tpu.matmul %377, %376, %cst_265 {dimension_numbers = #tpu.dot_dimension_numbers<[1], [0], [0], [1], [0, 0, 1, 1], [], []>} : vector<6x12xf32>, vector<12x192xf32>, vector<6x192xf32> -> vector<6x192xf32>
    %c0_266 = arith.constant 0 : index
    %c0_267 = arith.constant 0 : index
    %379 = vector.load %arg9[%c0_266, %c0_267] : memref<192x96xf32, #tpu.memory_space<vmem>>, vector<192x96xf32>
    %cst_268 = arith.constant dense<0.000000e+00> : vector<6x96xf32>
    %380 = tpu.matmul %378, %379, %cst_268 {dimension_numbers = #tpu.dot_dimension_numbers<[1], [0], [0], [1], [0, 0, 1, 1], [], []>} : vector<6x192xf32>, vector<192x96xf32>, vector<6x96xf32> -> vector<6x96xf32>
    %c7 = arith.constant 7 : index
    %c0_269 = arith.constant 0 : index
    %c0_270 = arith.constant 0 : index
    %381 = vector.load %arg18[%c7, %c0_269, %c0_270] : memref<8x6x96xf32, #tpu.memory_space<vmem>>, vector<1x6x96xf32>
    %382 = vector.shape_cast %381 : vector<1x6x96xf32> to vector<6x96xf32>
    %383 = vector.shape_cast %380 : vector<6x96xf32> to vector<1x6x96xf32>
    tpu.vector_store %arg18[%c7, %c0_269, %c0_270], %383 {strides = array<i32>} : memref<8x6x96xf32, #tpu.memory_space<vmem>>, vector<1x6x96xf32>,
    %c0_271 = arith.constant 0 : index
    %c0_272 = arith.constant 0 : index
    %c0_273 = arith.constant 0 : index
    %384 = vector.load %arg18[%c0_271, %c0_272, %c0_273] : memref<8x6x96xf32, #tpu.memory_space<vmem>>, vector<8x1x96xf32>
    %385 = vector.shape_cast %384 : vector<8x1x96xf32> to vector<8x96xf32>
    %c0_274 = arith.constant 0 : index
    %c0_275 = arith.constant 0 : index
    %c0_276 = arith.constant 0 : index
    %386 = vector.load %arg10[%c0_274, %c0_275, %c0_276] : memref<6x96x120xf32, #tpu.memory_space<vmem>>, vector<1x96x120xf32>
    %387 = vector.shape_cast %386 : vector<1x96x120xf32> to vector<96x120xf32>
    %cst_277 = arith.constant dense<0.000000e+00> : vector<8x120xf32>
    %388 = tpu.matmul %385, %387, %cst_277 {dimension_numbers = #tpu.dot_dimension_numbers<[1], [0], [0], [1], [0, 0, 1, 1], [], []>} : vector<8x96xf32>, vector<96x120xf32>, vector<8x120xf32> -> vector<8x120xf32>
    %c0_278 = arith.constant 0 : index
    %c1_279 = arith.constant 1 : index
    %c0_280 = arith.constant 0 : index
    %389 = vector.load %arg18[%c0_278, %c1_279, %c0_280] : memref<8x6x96xf32, #tpu.memory_space<vmem>>, vector<8x1x96xf32>
    %390 = vector.shape_cast %389 : vector<8x1x96xf32> to vector<8x96xf32>
    %c1_281 = arith.constant 1 : index
    %c0_282 = arith.constant 0 : index
    %c0_283 = arith.constant 0 : index
    %391 = vector.load %arg10[%c1_281, %c0_282, %c0_283] : memref<6x96x120xf32, #tpu.memory_space<vmem>>, vector<1x96x120xf32>
    %392 = vector.shape_cast %391 : vector<1x96x120xf32> to vector<96x120xf32>
    %cst_284 = arith.constant dense<0.000000e+00> : vector<8x120xf32>
    %393 = tpu.matmul %390, %392, %cst_284 {dimension_numbers = #tpu.dot_dimension_numbers<[1], [0], [0], [1], [0, 0, 1, 1], [], []>} : vector<8x96xf32>, vector<96x120xf32>, vector<8x120xf32> -> vector<8x120xf32>
    %394 = arith.addf %388, %393 : vector<8x120xf32>
    %c0_285 = arith.constant 0 : index
    %c2_286 = arith.constant 2 : index
    %c0_287 = arith.constant 0 : index
    %395 = vector.load %arg18[%c0_285, %c2_286, %c0_287] : memref<8x6x96xf32, #tpu.memory_space<vmem>>, vector<8x1x96xf32>
    %396 = vector.shape_cast %395 : vector<8x1x96xf32> to vector<8x96xf32>
    %c2_288 = arith.constant 2 : index
    %c0_289 = arith.constant 0 : index
    %c0_290 = arith.constant 0 : index
    %397 = vector.load %arg10[%c2_288, %c0_289, %c0_290] : memref<6x96x120xf32, #tpu.memory_space<vmem>>, vector<1x96x120xf32>
    %398 = vector.shape_cast %397 : vector<1x96x120xf32> to vector<96x120xf32>
    %cst_291 = arith.constant dense<0.000000e+00> : vector<8x120xf32>
    %399 = tpu.matmul %396, %398, %cst_291 {dimension_numbers = #tpu.dot_dimension_numbers<[1], [0], [0], [1], [0, 0, 1, 1], [], []>} : vector<8x96xf32>, vector<96x120xf32>, vector<8x120xf32> -> vector<8x120xf32>
    %400 = arith.addf %394, %399 : vector<8x120xf32>
    %c0_292 = arith.constant 0 : index
    %c3_293 = arith.constant 3 : index
    %c0_294 = arith.constant 0 : index
    %401 = vector.load %arg18[%c0_292, %c3_293, %c0_294] : memref<8x6x96xf32, #tpu.memory_space<vmem>>, vector<8x1x96xf32>
    %402 = vector.shape_cast %401 : vector<8x1x96xf32> to vector<8x96xf32>
    %c3_295 = arith.constant 3 : index
    %c0_296 = arith.constant 0 : index
    %c0_297 = arith.constant 0 : index
    %403 = vector.load %arg10[%c3_295, %c0_296, %c0_297] : memref<6x96x120xf32, #tpu.memory_space<vmem>>, vector<1x96x120xf32>
    %404 = vector.shape_cast %403 : vector<1x96x120xf32> to vector<96x120xf32>
    %cst_298 = arith.constant dense<0.000000e+00> : vector<8x120xf32>
    %405 = tpu.matmul %402, %404, %cst_298 {dimension_numbers = #tpu.dot_dimension_numbers<[1], [0], [0], [1], [0, 0, 1, 1], [], []>} : vector<8x96xf32>, vector<96x120xf32>, vector<8x120xf32> -> vector<8x120xf32>
    %406 = arith.addf %400, %405 : vector<8x120xf32>
    %c0_299 = arith.constant 0 : index
    %c4_300 = arith.constant 4 : index
    %c0_301 = arith.constant 0 : index
    %407 = vector.load %arg18[%c0_299, %c4_300, %c0_301] : memref<8x6x96xf32, #tpu.memory_space<vmem>>, vector<8x1x96xf32>
    %408 = vector.shape_cast %407 : vector<8x1x96xf32> to vector<8x96xf32>
    %c4_302 = arith.constant 4 : index
    %c0_303 = arith.constant 0 : index
    %c0_304 = arith.constant 0 : index
    %409 = vector.load %arg10[%c4_302, %c0_303, %c0_304] : memref<6x96x120xf32, #tpu.memory_space<vmem>>, vector<1x96x120xf32>
    %410 = vector.shape_cast %409 : vector<1x96x120xf32> to vector<96x120xf32>
    %cst_305 = arith.constant dense<0.000000e+00> : vector<8x120xf32>
    %411 = tpu.matmul %408, %410, %cst_305 {dimension_numbers = #tpu.dot_dimension_numbers<[1], [0], [0], [1], [0, 0, 1, 1], [], []>} : vector<8x96xf32>, vector<96x120xf32>, vector<8x120xf32> -> vector<8x120xf32>
    %412 = arith.addf %406, %411 : vector<8x120xf32>
    %c0_306 = arith.constant 0 : index
    %c5_307 = arith.constant 5 : index
    %c0_308 = arith.constant 0 : index
    %413 = vector.load %arg18[%c0_306, %c5_307, %c0_308] : memref<8x6x96xf32, #tpu.memory_space<vmem>>, vector<8x1x96xf32>
    %414 = vector.shape_cast %413 : vector<8x1x96xf32> to vector<8x96xf32>
    %c5_309 = arith.constant 5 : index
    %c0_310 = arith.constant 0 : index
    %c0_311 = arith.constant 0 : index
    %415 = vector.load %arg10[%c5_309, %c0_310, %c0_311] : memref<6x96x120xf32, #tpu.memory_space<vmem>>, vector<1x96x120xf32>
    %416 = vector.shape_cast %415 : vector<1x96x120xf32> to vector<96x120xf32>
    %cst_312 = arith.constant dense<0.000000e+00> : vector<8x120xf32>
    %417 = tpu.matmul %414, %416, %cst_312 {dimension_numbers = #tpu.dot_dimension_numbers<[1], [0], [0], [1], [0, 0, 1, 1], [], []>} : vector<8x96xf32>, vector<96x120xf32>, vector<8x120xf32> -> vector<8x120xf32>
    %418 = arith.addf %412, %417 : vector<8x120xf32>
    %c0_313 = arith.constant 0 : index
    %c0_314 = arith.constant 0 : index
    %419 = vector.load %arg11[%c0_313, %c0_314] : memref<1x120xf32, #tpu.memory_space<vmem>>, vector<1x120xf32>
    %420 = vector.broadcast %419 : vector<1x120xf32> to vector<8x120xf32>
    %421 = arith.addf %418, %420 : vector<8x120xf32>
    %cst_315 = arith.constant 0.000000e+00 : f32
    %422 = vector.broadcast %cst_315 : f32 to vector<8x120xf32>
    %423 = arith.maximumf %421, %422 : vector<8x120xf32>
    %c0_316 = arith.constant 0 : index
    %c0_317 = arith.constant 0 : index
    %424 = vector.load %arg12[%c0_316, %c0_317] : memref<120x84xf32, #tpu.memory_space<vmem>>, vector<120x84xf32>
    %cst_318 = arith.constant dense<0.000000e+00> : vector<8x84xf32>
    %425 = tpu.matmul %423, %424, %cst_318 {dimension_numbers = #tpu.dot_dimension_numbers<[1], [0], [0], [1], [0, 0, 1, 1], [], []>} : vector<8x120xf32>, vector<120x84xf32>, vector<8x84xf32> -> vector<8x84xf32>
    %c0_319 = arith.constant 0 : index
    %c0_320 = arith.constant 0 : index
    %426 = vector.load %arg13[%c0_319, %c0_320] : memref<1x84xf32, #tpu.memory_space<vmem>>, vector<1x84xf32>
    %427 = vector.broadcast %426 : vector<1x84xf32> to vector<8x84xf32>
    %428 = arith.addf %425, %427 : vector<8x84xf32>
    %cst_321 = arith.constant 0.000000e+00 : f32
    %429 = vector.broadcast %cst_321 : f32 to vector<8x84xf32>
    %430 = arith.maximumf %428, %429 : vector<8x84xf32>
    %c0_322 = arith.constant 0 : index
    %c0_323 = arith.constant 0 : index
    %431 = vector.load %arg14[%c0_322, %c0_323] : memref<84x128xf32, #tpu.memory_space<vmem>>, vector<84x128xf32>
    %cst_324 = arith.constant dense<0.000000e+00> : vector<8x128xf32>
    %432 = tpu.matmul %430, %431, %cst_324 {dimension_numbers = #tpu.dot_dimension_numbers<[1], [0], [0], [1], [0, 0, 1, 1], [], []>} : vector<8x84xf32>, vector<84x128xf32>, vector<8x128xf32> -> vector<8x128xf32>
    %c0_325 = arith.constant 0 : index
    %c0_326 = arith.constant 0 : index
    %433 = vector.load %arg15[%c0_325, %c0_326] : memref<1x128xf32, #tpu.memory_space<vmem>>, vector<1x128xf32>
    %434 = vector.broadcast %433 : vector<1x128xf32> to vector<8x128xf32>
    %435 = arith.addf %432, %434 : vector<8x128xf32>
    %c0_327 = arith.constant 0 : index
    %c0_328 = arith.constant 0 : index
    %436 = vector.load %arg16[%c0_327, %c0_328] : memref<8x128xf32, #tpu.memory_space<vmem>>, vector<8x128xf32>
    tpu.vector_store %arg16[%c0_327, %c0_328], %435 {strides = array<i32>} : memref<8x128xf32, #tpu.memory_space<vmem>>, vector<8x128xf32>,
    return
  }
  func.func @transform_0(%arg0: i32) -> (i32, i32) {
    %c0_i32 = arith.constant 0 : i32
    %c0_i32_0 = arith.constant 0 : i32
    return %arg0, %c0_i32 : i32, i32
  }
  func.func @transform_1(%arg0: i32) -> (i32, i32, i32) {
    %c0_i32 = arith.constant 0 : i32
    %c0_i32_0 = arith.constant 0 : i32
    %c0_i32_1 = arith.constant 0 : i32
    %c0_i32_2 = arith.constant 0 : i32
    return %c0_i32, %c0_i32_0, %c0_i32_1 : i32, i32, i32
  }
  func.func @transform_2(%arg0: i32) -> (i32, i32) {
    %c0_i32 = arith.constant 0 : i32
    %c0_i32_0 = arith.constant 0 : i32
    %c0_i32_1 = arith.constant 0 : i32
    return %c0_i32, %c0_i32_0 : i32, i32
  }
  func.func @transform_3(%arg0: i32) -> (i32, i32, i32) {
    %c0_i32 = arith.constant 0 : i32
    %c0_i32_0 = arith.constant 0 : i32
    %c0_i32_1 = arith.constant 0 : i32
    %c0_i32_2 = arith.constant 0 : i32
    return %c0_i32, %c0_i32_0, %c0_i32_1 : i32, i32, i32
  }
  func.func @transform_4(%arg0: i32) -> (i32, i32) {
    %c0_i32 = arith.constant 0 : i32
    %c0_i32_0 = arith.constant 0 : i32
    %c0_i32_1 = arith.constant 0 : i32
    return %c0_i32, %c0_i32_0 : i32, i32
  }
  func.func @transform_5(%arg0: i32) -> (i32, i32) {
    %c0_i32 = arith.constant 0 : i32
    %c0_i32_0 = arith.constant 0 : i32
    %c0_i32_1 = arith.constant 0 : i32
    return %c0_i32, %c0_i32_0 : i32, i32
  }
  func.func @transform_6(%arg0: i32) -> (i32, i32) {
    %c0_i32 = arith.constant 0 : i32
    %c0_i32_0 = arith.constant 0 : i32
    %c0_i32_1 = arith.constant 0 : i32
    return %c0_i32, %c0_i32_0 : i32, i32
  }
  func.func @transform_7(%arg0: i32) -> (i32, i32) {
    %c0_i32 = arith.constant 0 : i32
    %c0_i32_0 = arith.constant 0 : i32
    %c0_i32_1 = arith.constant 0 : i32
    return %c0_i32, %c0_i32_0 : i32, i32
  }
  func.func @transform_8(%arg0: i32) -> (i32, i32) {
    %c0_i32 = arith.constant 0 : i32
    %c0_i32_0 = arith.constant 0 : i32
    %c0_i32_1 = arith.constant 0 : i32
    return %c0_i32, %c0_i32_0 : i32, i32
  }
  func.func @transform_9(%arg0: i32) -> (i32, i32, i32) {
    %c0_i32 = arith.constant 0 : i32
    %c0_i32_0 = arith.constant 0 : i32
    %c0_i32_1 = arith.constant 0 : i32
    %c0_i32_2 = arith.constant 0 : i32
    return %c0_i32, %c0_i32_0, %c0_i32_1 : i32, i32, i32
  }
  func.func @transform_10(%arg0: i32) -> (i32, i32) {
    %c0_i32 = arith.constant 0 : i32
    %c0_i32_0 = arith.constant 0 : i32
    %c0_i32_1 = arith.constant 0 : i32
    return %c0_i32, %c0_i32_0 : i32, i32
  }
  func.func @transform_11(%arg0: i32) -> (i32, i32) {
    %c0_i32 = arith.constant 0 : i32
    %c0_i32_0 = arith.constant 0 : i32
    %c0_i32_1 = arith.constant 0 : i32
    return %c0_i32, %c0_i32_0 : i32, i32
  }
  func.func @transform_12(%arg0: i32) -> (i32, i32) {
    %c0_i32 = arith.constant 0 : i32
    %c0_i32_0 = arith.constant 0 : i32
    %c0_i32_1 = arith.constant 0 : i32
    return %c0_i32, %c0_i32_0 : i32, i32
  }
  func.func @transform_13(%arg0: i32) -> (i32, i32) {
    %c0_i32 = arith.constant 0 : i32
    %c0_i32_0 = arith.constant 0 : i32
    %c0_i32_1 = arith.constant 0 : i32
    return %c0_i32, %c0_i32_0 : i32, i32
  }
  func.func @transform_14(%arg0: i32) -> (i32, i32) {
    %c0_i32 = arith.constant 0 : i32
    %c0_i32_0 = arith.constant 0 : i32
    %c0_i32_1 = arith.constant 0 : i32
    return %c0_i32, %c0_i32_0 : i32, i32
  }
  func.func @transform_15(%arg0: i32) -> (i32, i32) {
    %c0_i32 = arith.constant 0 : i32
    %c0_i32_0 = arith.constant 0 : i32
    return %arg0, %c0_i32 : i32, i32
  }
}

</mosaic_0001>

<llo_original>
// kernel: tpu_custom_call.1
$region0: #{tpu_custom_call.1}
  #allocation0 [shape = 'u32[]', space=smem, size = 0x4, offset = 0x4, fixed_abs, tag = 'smem constant byte address 0x4 - core index']
  #allocation1 [shape = 'u32[144,128]{1,0:T(1,128)}', space=vmem, size = 0x12000, scoped, tag = 'internal scratch']
  #allocation2 [shape = 'f32[256,180]{1,0:T(8,128)}', space=vmem, size = 0x40000, scoped, tag = 'scratch operand']
  #allocation3 [shape = 'f32[8,6,96]{2,1,0:T(8,128)}', space=vmem, size = 0x8000, scoped, tag = 'scratch operand']
  %s0 = inlined_call_operand.vmem [shape: f32[256,32], index: 0, kind: input, shape index: {}]
  %s1 = inlined_call_operand.vmem [shape: f32[3,32,180], index: 1, kind: input, shape index: {}]
  %s2 = inlined_call_operand.vmem [shape: f32[1,180], index: 2, kind: input, shape index: {}]
  %s3 = inlined_call_operand.hbm [shape: f32[3,90,208], index: 3, kind: input, shape index: {}]
  %s4 = inlined_call_operand.vmem [shape: f32[1,208], index: 4, kind: input, shape index: {}]
  %s5 = inlined_call_operand.vmem [shape: f32[15,29], index: 5, kind: input, shape index: {}]
  %s6 = inlined_call_operand.hbm [shape: f32[174,90], index: 6, kind: input, shape index: {}]
  %s7 = inlined_call_operand.vmem [shape: f32[6,12], index: 7, kind: input, shape index: {}]
  %s8 = inlined_call_operand.vmem [shape: f32[192,96], index: 8, kind: input, shape index: {}]
  %s9 = inlined_call_operand.hbm [shape: f32[6,96,120], index: 9, kind: input, shape index: {}]
  %s10 = inlined_call_operand.vmem [shape: f32[1,120], index: 10, kind: input, shape index: {}]
  %s11 = inlined_call_operand.vmem [shape: f32[120,84], index: 11, kind: input, shape index: {}]
  %s12 = inlined_call_operand.vmem [shape: f32[1,84], index: 12, kind: input, shape index: {}]
  %s13 = inlined_call_operand.vmem [shape: f32[84,128], index: 13, kind: input, shape index: {}]
  %s14 = inlined_call_operand.vmem [shape: f32[1,128], index: 14, kind: input, shape index: {}]
  %s15 = inlined_call_operand.hbm [shape: f32[8,128], index: 15, kind: output, shape index: {}]
  %s16 = sld [smem:[#allocation0]]
  $region82: #{tpu_custom_call.1} parent=0
    _
  %s18 = ssub.s32 1, %s16
  %s19 = scalar_select 0, %s18, %s16
  $region1: #{tpu_custom_call.1} parent=0
    #allocation4 [shape = 'u8[294912]{0}', space=vmem, size = 0x48000, scoped, tag = 'input window, operand 3, single buffered']
    #allocation5 [shape = 's32[1]{0}', space=sflag, size = 0x4, scoped, tag = 'scoped memory for tpu_custom_call.1']
    #allocation6 [shape = 's32[1]{0}', space=sflag, size = 0x4, scoped, tag = 'scoped memory for tpu_custom_call.1']
    #allocation7 [shape = 'u8[90112]{0}', space=vmem, size = 0x16000, scoped, tag = 'input window, operand 6, single buffered']
    #allocation8 [shape = 's32[1]{0}', space=sflag, size = 0x4, scoped, tag = 'scoped memory for tpu_custom_call.1']
    #allocation9 [shape = 'u8[294912]{0}', space=vmem, size = 0x48000, scoped, tag = 'input window, operand 9, single buffered']
    #allocation10 [shape = 'u8[4096]{0}', space=vmem, size = 0x1000, scoped, tag = 'output window, operand 0, single buffered']
    %20 = vsyncpa [#allocation5], 0
    %21 = vsyncpa [#allocation8], 0
    %22 = vsyncpa [#allocation6], 0
    // Predicated region
    $region2: #{tpu_custom_call.1} parent=1 // pred_check
      _
    $region3: #{tpu_custom_call.1} parent=1 // pred_check_branch
      %24 = sbr.rel (0) target = $region5
    $region4: #{tpu_custom_call.1} parent=1 // pred_region
      _
    $region5: #{tpu_custom_call.1} parent=1 // pred_fallthru
      _
    // Predicated region
    $region6: #{tpu_custom_call.1} parent=1 // pred_check
      _
    $region7: #{tpu_custom_call.1} parent=1 // pred_check_branch
      %26 = sbr.rel (0) target = $region9
    $region8: #{tpu_custom_call.1} parent=1 // pred_region
      _
    $region9: #{tpu_custom_call.1} parent=1 // pred_fallthru
      _
    // Predicated region
    $region10: #{tpu_custom_call.1} parent=1 // pred_check
      _
    $region11: #{tpu_custom_call.1} parent=1 // pred_check_branch
      %28 = sbr.rel (0) target = $region13
    $region12: #{tpu_custom_call.1} parent=1 // pred_region
      _
    $region13: #{tpu_custom_call.1} parent=1 // pred_fallthru
      _
    // Predicated region
    $region14: #{tpu_custom_call.1} parent=1 // pred_check
      _
    $region15: #{tpu_custom_call.1} parent=1 // pred_check_branch
      %30 = sbr.rel (0) target = $region17
    $region16: #{tpu_custom_call.1} parent=1 // pred_region
      %s32 = ssub.s32 9216, 9216
      %33 = vsyncadd [#allocation5], %s32
      %s34 = sshll.u32 [#allocation4], 4
      %s35 = int_to_ptr.vmem [resolvable:$true] %s34
      %40 = dma.hbm_to_vmem [thread:$0]  %s3, 9216, %s35, [#allocation5], 256, 256, 16
    $region17: #{tpu_custom_call.1} parent=1 // pred_fallthru
      _
    // Predicated region
    $region18: #{tpu_custom_call.1} parent=1 // pred_check
      _
    $region19: #{tpu_custom_call.1} parent=1 // pred_check_branch
      %42 = sbr.rel (0) target = $region21
    $region20: #{tpu_custom_call.1} parent=1 // pred_region
      _
    $region21: #{tpu_custom_call.1} parent=1 // pred_fallthru
      _
    // Predicated region
    $region22: #{tpu_custom_call.1} parent=1 // pred_check
      _
    $region23: #{tpu_custom_call.1} parent=1 // pred_check_branch
      %44 = sbr.rel (0) target = $region25
    $region24: #{tpu_custom_call.1} parent=1 // pred_region
      _
    $region25: #{tpu_custom_call.1} parent=1 // pred_fallthru
      _
    // Predicated region
    $region26: #{tpu_custom_call.1} parent=1 // pred_check
      _
    $region27: #{tpu_custom_call.1} parent=1 // pred_check_branch
      %46 = sbr.rel (0) target = $region29
    $region28: #{tpu_custom_call.1} parent=1 // pred_region
      %s48 = ssub.s32 2816, 2816
      %49 = vsyncadd [#allocation8], %s48
      %s50 = sshll.u32 [#allocation7], 4
      %s51 = int_to_ptr.vmem [resolvable:$true] %s50
      %56 = dma.hbm_to_vmem [thread:$0]  %s6, 2816, %s51, [#allocation8], 128, 128, 8
    $region29: #{tpu_custom_call.1} parent=1 // pred_fallthru
      _
    // Predicated region
    $region30: #{tpu_custom_call.1} parent=1 // pred_check
      _
    $region31: #{tpu_custom_call.1} parent=1 // pred_check_branch
      %58 = sbr.rel (0) target = $region33
    $region32: #{tpu_custom_call.1} parent=1 // pred_region
      _
    $region33: #{tpu_custom_call.1} parent=1 // pred_fallthru
      _
    // Predicated region
    $region34: #{tpu_custom_call.1} parent=1 // pred_check
      _
    $region35: #{tpu_custom_call.1} parent=1 // pred_check_branch
      %60 = sbr.rel (0) target = $region37
    $region36: #{tpu_custom_call.1} parent=1 // pred_region
      _
    $region37: #{tpu_custom_call.1} parent=1 // pred_fallthru
      _
    // Predicated region
    $region38: #{tpu_custom_call.1} parent=1 // pred_check
      _
    $region39: #{tpu_custom_call.1} parent=1 // pred_check_branch
      %62 = sbr.rel (0) target = $region41
    $region40: #{tpu_custom_call.1} parent=1 // pred_region
      %s64 = ssub.s32 9216, 9216
      %65 = vsyncadd [#allocation8], %s64
      %s66 = sshll.u32 [#allocation9], 4
      %s67 = int_to_ptr.vmem [resolvable:$true] %s66
      %72 = dma.hbm_to_vmem [thread:$0]  %s9, 9216, %s67, [#allocation8], 128, 128, 8
    $region41: #{tpu_custom_call.1} parent=1 // pred_fallthru
      _
    // Predicated region
    $region42: #{tpu_custom_call.1} parent=1 // pred_check
      _
    $region43: #{tpu_custom_call.1} parent=1 // pred_check_branch
      %74 = sbr.rel (0) target = $region45
    $region44: #{tpu_custom_call.1} parent=1 // pred_region
      _
    $region45: #{tpu_custom_call.1} parent=1 // pred_fallthru
      _
    // Predicated region
    $region46: #{tpu_custom_call.1} parent=1 // pred_check
      _
    $region47: #{tpu_custom_call.1} parent=1 // pred_check_branch
      %76 = sbr.rel (0) target = $region49
    $region48: #{tpu_custom_call.1} parent=1 // pred_region
      _
    $region49: #{tpu_custom_call.1} parent=1 // pred_fallthru
      _
    // Predicated region
    $region50: #{tpu_custom_call.1} parent=1 // pred_check
      _
    $region51: #{tpu_custom_call.1} parent=1 // pred_check_branch
      %78 = sbr.rel (0) target = $region53
    $region52: #{tpu_custom_call.1} parent=1 // pred_region
      _
    $region53: #{tpu_custom_call.1} parent=1 // pred_fallthru
      _
    // Predicated region
    $region54: #{tpu_custom_call.1} parent=1 // pred_check
      _
    $region55: #{tpu_custom_call.1} parent=1 // pred_check_branch
      %80 = sbr.rel (0) target = $region57
    $region56: #{tpu_custom_call.1} parent=1 // pred_region
      _
    $region57: #{tpu_custom_call.1} parent=1 // pred_fallthru
      _
    // Predicated region
    $region58: #{tpu_custom_call.1} parent=1 // pred_check
      _
    $region59: #{tpu_custom_call.1} parent=1 // pred_check_branch
      %82 = sbr.rel (0) target = $region61
    $region60: #{tpu_custom_call.1} parent=1 // pred_region
      _
    $region61: #{tpu_custom_call.1} parent=1 // pred_fallthru
      _
    // Predicated region
    $region62: #{tpu_custom_call.1} parent=1 // pred_check
      _
    $region63: #{tpu_custom_call.1} parent=1 // pred_check_branch
      %84 = sbr.rel (0) target = $region65
    $region64: #{tpu_custom_call.1} parent=1 // pred_region
      %85 = dma.done [#allocation5], 9216
    $region65: #{tpu_custom_call.1} parent=1 // pred_fallthru
      _
    // Predicated region
    $region66: #{tpu_custom_call.1} parent=1 // pred_check
      _
    $region67: #{tpu_custom_call.1} parent=1 // pred_check_branch
      %87 = sbr.rel (0) target = $region69
    $region68: #{tpu_custom_call.1} parent=1 // pred_region
      %88 = dma.done [#allocation8], 2816
    $region69: #{tpu_custom_call.1} parent=1 // pred_fallthru
      _
    // Predicated region
    $region70: #{tpu_custom_call.1} parent=1 // pred_check
      _
    $region71: #{tpu_custom_call.1} parent=1 // pred_check_branch
      %90 = sbr.rel (0) target = $region73
    $region72: #{tpu_custom_call.1} parent=1 // pred_region
      %91 = dma.done [#allocation8], 9216
    $region73: #{tpu_custom_call.1} parent=1 // pred_fallthru
      _
    %v92 = vld [vmem:[%s0] sm:$0xff]
    %v93 = vld [vmem:[%s0 + $0x8] sm:$0xff]
    %v94 = vld [vmem:[%s0 + $0x10] sm:$0xff]
    %v95 = vld [vmem:[%s0 + $0x18] sm:$0xff]
    %v96 = vld [vmem:[%s0 + $0x20] sm:$0xff]
    %v97 = vld [vmem:[%s0 + $0x28] sm:$0xff]
    %v98 = vld [vmem:[%s0 + $0x30] sm:$0xff]
    %v99 = vld [vmem:[%s0 + $0x38] sm:$0xff]
    %v100 = vld [vmem:[%s0 + $0x40] sm:$0xff]
    %v101 = vld [vmem:[%s0 + $0x48] sm:$0xff]
    %v102 = vld [vmem:[%s0 + $0x50] sm:$0xff]
    %v103 = vld [vmem:[%s0 + $0x58] sm:$0xff]
    %v104 = vld [vmem:[%s0 + $0x60] sm:$0xff]
    %v105 = vld [vmem:[%s0 + $0x68] sm:$0xff]
    %v106 = vld [vmem:[%s0 + $0x70] sm:$0xff]
    %v107 = vld [vmem:[%s0 + $0x78] sm:$0xff]
    %v108 = vld [vmem:[%s0 + $0x80] sm:$0xff]
    %v109 = vld [vmem:[%s0 + $0x88] sm:$0xff]
    %v110 = vld [vmem:[%s0 + $0x90] sm:$0xff]
    %v111 = vld [vmem:[%s0 + $0x98] sm:$0xff]
    %v112 = vld [vmem:[%s0 + $0xa0] sm:$0xff]
    %v113 = vld [vmem:[%s0 + $0xa8] sm:$0xff]
    %v114 = vld [vmem:[%s0 + $0xb0] sm:$0xff]
    %v115 = vld [vmem:[%s0 + $0xb8] sm:$0xff]
    %v116 = vld [vmem:[%s0 + $0xc0] sm:$0xff]
    %v117 = vld [vmem:[%s0 + $0xc8] sm:$0xff]
    %v118 = vld [vmem:[%s0 + $0xd0] sm:$0xff]
    %v119 = vld [vmem:[%s0 + $0xd8] sm:$0xff]
    %v120 = vld [vmem:[%s0 + $0xe0] sm:$0xff]
    %v121 = vld [vmem:[%s0 + $0xe8] sm:$0xff]
    %v122 = vld [vmem:[%s0 + $0xf0] sm:$0xff]
    %v123 = vld [vmem:[%s0 + $0xf8] sm:$0x3f]
    %v124 = vld [vmem:[%s1] sm:$0xff]
    %v125 = vld [vmem:[%s1 + $0x8] sm:$0xff]
    %v126 = vld [vmem:[%s1 + $0x10] sm:$0xff]
    %v127 = vld [vmem:[%s1 + $0x18] sm:$0xff]
    %v128 = vld [vmem:[%s1 + $0x20] sm:$0xff]
    %v129 = vld [vmem:[%s1 + $0x28] sm:$0xff]
    %v130 = vld [vmem:[%s1 + $0x30] sm:$0xff]
    %v131 = vld [vmem:[%s1 + $0x38] sm:$0xff]
    %vm132 = vcmask 261120
    %v134 = vsel %vm132, %v92, 0
    %v137 = vsel %vm132, %v93, 0
    %v140 = vsel %vm132, %v94, 0
    %v143 = vsel %vm132, %v95, 0
    %v146 = vsel %vm132, %v96, 0
    %v149 = vsel %vm132, %v97, 0
    %v152 = vsel %vm132, %v98, 0
    %v155 = vsel %vm132, %v99, 0
    %v158 = vsel %vm132, %v100, 0
    %v161 = vsel %vm132, %v101, 0
    %v164 = vsel %vm132, %v102, 0
    %v167 = vsel %vm132, %v103, 0
    %v170 = vsel %vm132, %v104, 0
    %v173 = vsel %vm132, %v105, 0
    %v176 = vsel %vm132, %v106, 0
    %v179 = vsel %vm132, %v107, 0
    %v182 = vsel %vm132, %v108, 0
    %v185 = vsel %vm132, %v109, 0
    %v188 = vsel %vm132, %v110, 0
    %v191 = vsel %vm132, %v111, 0
    %v194 = vsel %vm132, %v112, 0
    %v197 = vsel %vm132, %v113, 0
    %v200 = vsel %vm132, %v114, 0
    %v203 = vsel %vm132, %v115, 0
    %v206 = vsel %vm132, %v116, 0
    %v209 = vsel %vm132, %v117, 0
    %v212 = vsel %vm132, %v118, 0
    %v215 = vsel %vm132, %v119, 0
    %v218 = vsel %vm132, %v120, 0
    %v221 = vsel %vm132, %v121, 0
    %v224 = vsel %vm132, %v122, 0
    %v227 = vsel %vm132, %v123, 0
    %229 = vmatprep.subr.mxu0 0.0
    %230 = vmatpush1.msra.mxu0 0.0
    %231 = vmatprep.subr.mxu0 0.0
    %232 = vmatpush1.msra.mxu0 0.0
    %233 = vmatprep.subr.mxu0 0.0
    %234 = vmatpush1.msra.mxu0 0.0
    %235 = vmatprep.subr.mxu0 0.0
    %236 = vmatpush1.msra.mxu0 0.0
    %237 = vmatprep.subr.mxu0 0.0
    %238 = vmatpush1.msra.mxu0 0.0
    %239 = vmatprep.subr.mxu0 0.0
    %240 = vmatpush1.msra.mxu0 0.0
    %241 = vmatprep.subr.mxu0 0.0
    %242 = vmatpush1.msra.mxu0 0.0
    %243 = vmatprep.subr.mxu0 0.0
    %244 = vmatpush1.msra.mxu0 0.0
    %245 = vmatprep.subr.mxu0 0.0
    %246 = vmatpush1.msra.mxu0 0.0
    %247 = vmatprep.subr.mxu0 0.0
    %248 = vmatpush1.msra.mxu0 0.0
    %249 = vmatprep.subr.mxu0 0.0
    %250 = vmatpush1.msra.mxu0 0.0
    %251 = vmatprep.subr.mxu0 0.0
    %252 = vmatpush1.msra.mxu0 0.0
    %253 = vmatprep.subr.mxu0 %v131
    %254 = vmatpush1.msra.mxu0 %v130
    %255 = vmatprep.subr.mxu0 %v129
    %256 = vmatpush1.msra.mxu0 %v128
    %257 = vmatprep.subr.mxu0 %v127
    %258 = vmatpush1.msra.mxu0 %v126
    %259 = vmatprep.subr.mxu0 %v125
    %260 = vmatpush1.msra.mxu0 %v124
    %261 = vmatprep.subr.mxu0 0.0
    %262 = vmatpush2.msra.mxu0 0.0
    %263 = vmatprep.subr.mxu0 0.0
    %264 = vmatpush2.msra.mxu0 0.0
    %265 = vmatprep.subr.mxu0 0.0
    %266 = vmatpush2.msra.mxu0 0.0
    %267 = vmatprep.subr.mxu0 0.0
    %268 = vmatpush2.msra.mxu0 0.0
    %269 = vmatprep.subr.mxu0 0.0
    %270 = vmatpush2.msra.mxu0 0.0
    %271 = vmatprep.subr.mxu0 0.0
    %272 = vmatpush2.msra.mxu0 0.0
    %273 = vmatprep.subr.mxu0 0.0
    %274 = vmatpush2.msra.mxu0 0.0
    %275 = vmatprep.subr.mxu0 0.0
    %276 = vmatpush2.msra.mxu0 0.0
    %277 = vmatprep.subr.mxu0 0.0
    %278 = vmatpush2.msra.mxu0 0.0
    %279 = vmatprep.subr.mxu0 0.0
    %280 = vmatpush2.msra.mxu0 0.0
    %281 = vmatprep.subr.mxu0 0.0
    %282 = vmatpush2.msra.mxu0 0.0
    %283 = vmatprep.subr.mxu0 0.0
    %284 = vmatpush2.msra.mxu0 0.0
    %285 = vmatprep.subr.mxu0 0.0
    %286 = vmatpush2.msra.mxu0 0.0
    %287 = vmatprep.subr.mxu0 0.0
    %288 = vmatpush2.msra.mxu0 0.0
    %289 = vmatprep.subr.mxu0 0.0
    %290 = vmatpush2.msra.mxu0 0.0
    %291 = vmatprep.subr.mxu0 0.0
    %292 = vmatpush2.msra.mxu0 0.0
    %293 = vmatprep.mubr.f32.mxu0 0.0
    %294 = vmatmul.mubr.f32.gmra.mxu0 %v134
    %v295 = vpop.f32.mrf.mxu0
    %v296 = vadd.f32 0.0, %v295
    %v297 = vpop.f32.mrf.mxu0
    %v298 = vadd.f32 0.0, %v297
    %299 = vmatprep.mubr.f32.mxu0 0.0
    %300 = vmatmul.mubr.f32.gmra.mxu0 %v137
    %v301 = vpop.f32.mrf.mxu0
    %v302 = vadd.f32 0.0, %v301
    %v303 = vpop.f32.mrf.mxu0
    %v304 = vadd.f32 0.0, %v303
    %305 = vmatprep.mubr.f32.mxu0 0.0
    %306 = vmatmul.mubr.f32.gmra.mxu0 %v140
    %v307 = vpop.f32.mrf.mxu0
    %v308 = vadd.f32 0.0, %v307
    %v309 = vpop.f32.mrf.mxu0
    %v310 = vadd.f32 0.0, %v309
    %311 = vmatprep.mubr.f32.mxu0 0.0
    %312 = vmatmul.mubr.f32.gmra.mxu0 %v143
    %v313 = vpop.f32.mrf.mxu0
    %v314 = vadd.f32 0.0, %v313
    %v315 = vpop.f32.mrf.mxu0
    %v316 = vadd.f32 0.0, %v315
    %317 = vmatprep.mubr.f32.mxu0 0.0
    %318 = vmatmul.mubr.f32.gmra.mxu0 %v146
    %v319 = vpop.f32.mrf.mxu0
    %v320 = vadd.f32 0.0, %v319
    %v321 = vpop.f32.mrf.mxu0
    %v322 = vadd.f32 0.0, %v321
    %323 = vmatprep.mubr.f32.mxu0 0.0
    %324 = vmatmul.mubr.f32.gmra.mxu0 %v149
    %v325 = vpop.f32.mrf.mxu0
    %v326 = vadd.f32 0.0, %v325
    %v327 = vpop.f32.mrf.mxu0
    %v328 = vadd.f32 0.0, %v327
    %329 = vmatprep.mubr.f32.mxu0 0.0
    %330 = vmatmul.mubr.f32.gmra.mxu0 %v152
    %v331 = vpop.f32.mrf.mxu0
    %v332 = vadd.f32 0.0, %v331
    %v333 = vpop.f32.mrf.mxu0
    %v334 = vadd.f32 0.0, %v333
    %335 = vmatprep.mubr.f32.mxu0 0.0
    %336 = vmatmul.mubr.f32.gmra.mxu0 %v155
    %v337 = vpop.f32.mrf.mxu0
    %v338 = vadd.f32 0.0, %v337
    %v339 = vpop.f32.mrf.mxu0
    %v340 = vadd.f32 0.0, %v339
    %341 = vmatprep.mubr.f32.mxu0 0.0
    %342 = vmatmul.mubr.f32.gmra.mxu0 %v158
    %v343 = vpop.f32.mrf.mxu0
    %v344 = vadd.f32 0.0, %v343
    %v345 = vpop.f32.mrf.mxu0
    %v346 = vadd.f32 0.0, %v345
    %347 = vmatprep.mubr.f32.mxu0 0.0
    %348 = vmatmul.mubr.f32.gmra.mxu0 %v161
    %v349 = vpop.f32.mrf.mxu0
    %v350 = vadd.f32 0.0, %v349
    %v351 = vpop.f32.mrf.mxu0
    %v352 = vadd.f32 0.0, %v351
    %353 = vmatprep.mubr.f32.mxu0 0.0
    %354 = vmatmul.mubr.f32.gmra.mxu0 %v164
    %v355 = vpop.f32.mrf.mxu0
    %v356 = vadd.f32 0.0, %v355
    %v357 = vpop.f32.mrf.mxu0
    %v358 = vadd.f32 0.0, %v357
    %359 = vmatprep.mubr.f32.mxu0 0.0
    %360 = vmatmul.mubr.f32.gmra.mxu0 %v167
    %v361 = vpop.f32.mrf.mxu0
    %v362 = vadd.f32 0.0, %v361
    %v363 = vpop.f32.mrf.mxu0
    %v364 = vadd.f32 0.0, %v363
    %365 = vmatprep.mubr.f32.mxu0 0.0
    %366 = vmatmul.mubr.f32.gmra.mxu0 %v170
    %v367 = vpop.f32.mrf.mxu0
    %v368 = vadd.f32 0.0, %v367
    %v369 = vpop.f32.mrf.mxu0
    %v370 = vadd.f32 0.0, %v369
    %371 = vmatprep.mubr.f32.mxu0 0.0
    %372 = vmatmul.mubr.f32.gmra.mxu0 %v173
    %v373 = vpop.f32.mrf.mxu0
    %v374 = vadd.f32 0.0, %v373
    %v375 = vpop.f32.mrf.mxu0
    %v376 = vadd.f32 0.0, %v375
    %377 = vmatprep.mubr.f32.mxu0 0.0
    %378 = vmatmul.mubr.f32.gmra.mxu0 %v176
    %v379 = vpop.f32.mrf.mxu0
    %v380 = vadd.f32 0.0, %v379
    %v381 = vpop.f32.mrf.mxu0
    %v382 = vadd.f32 0.0, %v381
    %383 = vmatprep.mubr.f32.mxu0 0.0
    %384 = vmatmul.mubr.f32.gmra.mxu0 %v179
    %v385 = vpop.f32.mrf.mxu0
    %v386 = vadd.f32 0.0, %v385
    %v387 = vpop.f32.mrf.mxu0
    %v388 = vadd.f32 0.0, %v387
    %389 = vmatprep.mubr.f32.mxu0 0.0
    %390 = vmatmul.mubr.f32.gmra.mxu0 %v182
    %v391 = vpop.f32.mrf.mxu0
    %v392 = vadd.f32 0.0, %v391
    %v393 = vpop.f32.mrf.mxu0
    %v394 = vadd.f32 0.0, %v393
    %395 = vmatprep.mubr.f32.mxu0 0.0
    %396 = vmatmul.mubr.f32.gmra.mxu0 %v185
    %v397 = vpop.f32.mrf.mxu0
    %v398 = vadd.f32 0.0, %v397
    %v399 = vpop.f32.mrf.mxu0
    %v400 = vadd.f32 0.0, %v399
    %401 = vmatprep.mubr.f32.mxu0 0.0
    %402 = vmatmul.mubr.f32.gmra.mxu0 %v188
    %v403 = vpop.f32.mrf.mxu0
    %v404 = vadd.f32 0.0, %v403
    %v405 = vpop.f32.mrf.mxu0
    %v406 = vadd.f32 0.0, %v405
    %407 = vmatprep.mubr.f32.mxu0 0.0
    %408 = vmatmul.mubr.f32.gmra.mxu0 %v191
    %v409 = vpop.f32.mrf.mxu0
    %v410 = vadd.f32 0.0, %v409
    %v411 = vpop.f32.mrf.mxu0
    %v412 = vadd.f32 0.0, %v411
    %413 = vmatprep.mubr.f32.mxu0 0.0
    %414 = vmatmul.mubr.f32.gmra.mxu0 %v194
    %v415 = vpop.f32.mrf.mxu0
    %v416 = vadd.f32 0.0, %v415
    %v417 = vpop.f32.mrf.mxu0
    %v418 = vadd.f32 0.0, %v417
    %419 = vmatprep.mubr.f32.mxu0 0.0
    %420 = vmatmul.mubr.f32.gmra.mxu0 %v197
    %v421 = vpop.f32.mrf.mxu0
    %v422 = vadd.f32 0.0, %v421
    %v423 = vpop.f32.mrf.mxu0
    %v424 = vadd.f32 0.0, %v423
    %425 = vmatprep.mubr.f32.mxu0 0.0
    %426 = vmatmul.mubr.f32.gmra.mxu0 %v200
    %v427 = vpop.f32.mrf.mxu0
    %v428 = vadd.f32 0.0, %v427
    %v429 = vpop.f32.mrf.mxu0
    %v430 = vadd.f32 0.0, %v429
    %431 = vmatprep.mubr.f32.mxu0 0.0
    %432 = vmatmul.mubr.f32.gmra.mxu0 %v203
    %v433 = vpop.f32.mrf.mxu0
    %v434 = vadd.f32 0.0, %v433
    %v435 = vpop.f32.mrf.mxu0
    %v436 = vadd.f32 0.0, %v435
    %437 = vmatprep.mubr.f32.mxu0 0.0
    %438 = vmatmul.mubr.f32.gmra.mxu0 %v206
    %v439 = vpop.f32.mrf.mxu0
    %v440 = vadd.f32 0.0, %v439
    %v441 = vpop.f32.mrf.mxu0
    %v442 = vadd.f32 0.0, %v441
    %443 = vmatprep.mubr.f32.mxu0 0.0
    %444 = vmatmul.mubr.f32.gmra.mxu0 %v209
    %v445 = vpop.f32.mrf.mxu0
    %v446 = vadd.f32 0.0, %v445
    %v447 = vpop.f32.mrf.mxu0
    %v448 = vadd.f32 0.0, %v447
    %449 = vmatprep.mubr.f32.mxu0 0.0
    %450 = vmatmul.mubr.f32.gmra.mxu0 %v212
    %v451 = vpop.f32.mrf.mxu0
    %v452 = vadd.f32 0.0, %v451
    %v453 = vpop.f32.mrf.mxu0
    %v454 = vadd.f32 0.0, %v453
    %455 = vmatprep.mubr.f32.mxu0 0.0
    %456 = vmatmul.mubr.f32.gmra.mxu0 %v215
    %v457 = vpop.f32.mrf.mxu0
    %v458 = vadd.f32 0.0, %v457
    %v459 = vpop.f32.mrf.mxu0
    %v460 = vadd.f32 0.0, %v459
    %461 = vmatprep.mubr.f32.mxu0 0.0
    %462 = vmatmul.mubr.f32.gmra.mxu0 %v218
    %v463 = vpop.f32.mrf.mxu0
    %v464 = vadd.f32 0.0, %v463
    %v465 = vpop.f32.mrf.mxu0
    %v466 = vadd.f32 0.0, %v465
    %467 = vmatprep.mubr.f32.mxu0 0.0
    %468 = vmatmul.mubr.f32.gmra.mxu0 %v221
    %v469 = vpop.f32.mrf.mxu0
    %v470 = vadd.f32 0.0, %v469
    %v471 = vpop.f32.mrf.mxu0
    %v472 = vadd.f32 0.0, %v471
    %473 = vmatprep.mubr.f32.mxu0 0.0
    %474 = vmatmul.mubr.f32.gmra.mxu0 %v224
    %v475 = vpop.f32.mrf.mxu0
    %v476 = vadd.f32 0.0, %v475
    %v477 = vpop.f32.mrf.mxu0
    %v478 = vadd.f32 0.0, %v477
    %479 = vmatprep.mubr.f32.mxu0 0.0
    %480 = vmatmul.mubr.f32.gmra.mxu0 %v227
    %v481 = vpop.f32.mrf.mxu0
    %v482 = vadd.f32 0.0, %v481
    %v483 = vpop.f32.mrf.mxu0
    %v484 = vadd.f32 0.0, %v483
    %485 = vdwg.mxu0
    %486 = vst [vmem:[#allocation2] sm:$0xff] %v296
    %vm487 = vcmask 424960
    %488 = vst.msk [vmem:[#allocation2 + $0x8] sm:$0xff] %vm487, %v298
    %489 = vst [vmem:[#allocation2 + $0x10] sm:$0xff] %v302
    %490 = vst.msk [vmem:[#allocation2 + $0x18] sm:$0xff] %vm487, %v304
    %491 = vst [vmem:[#allocation2 + $0x20] sm:$0xff] %v308
    %492 = vst.msk [vmem:[#allocation2 + $0x28] sm:$0xff] %vm487, %v310
    %493 = vst [vmem:[#allocation2 + $0x30] sm:$0xff] %v314
    %494 = vst.msk [vmem:[#allocation2 + $0x38] sm:$0xff] %vm487, %v316
    %495 = vst [vmem:[#allocation2 + $0x40] sm:$0xff] %v320
    %496 = vst.msk [vmem:[#allocation2 + $0x48] sm:$0xff] %vm487, %v322
    %497 = vst [vmem:[#allocation2 + $0x50] sm:$0xff] %v326
    %498 = vst.msk [vmem:[#allocation2 + $0x58] sm:$0xff] %vm487, %v328
    %499 = vst [vmem:[#allocation2 + $0x60] sm:$0xff] %v332
    %500 = vst.msk [vmem:[#allocation2 + $0x68] sm:$0xff] %vm487, %v334
    %501 = vst [vmem:[#allocation2 + $0x70] sm:$0xff] %v338
    %502 = vst.msk [vmem:[#allocation2 + $0x78] sm:$0xff] %vm487, %v340
    %503 = vst [vmem:[#allocation2 + $0x80] sm:$0xff] %v344
    %504 = vst.msk [vmem:[#allocation2 + $0x88] sm:$0xff] %vm487, %v346
    %505 = vst [vmem:[#allocation2 + $0x90] sm:$0xff] %v350
    %506 = vst.msk [vmem:[#allocation2 + $0x98] sm:$0xff] %vm487, %v352
    %507 = vst [vmem:[#allocation2 + $0xa0] sm:$0xff] %v356
    %508 = vst.msk [vmem:[#allocation2 + $0xa8] sm:$0xff] %vm487, %v358
    %509 = vst [vmem:[#allocation2 + $0xb0] sm:$0xff] %v362
    %510 = vst.msk [vmem:[#allocation2 + $0xb8] sm:$0xff] %vm487, %v364
    %511 = vst [vmem:[#allocation2 + $0xc0] sm:$0xff] %v368
    %512 = vst.msk [vmem:[#allocation2 + $0xc8] sm:$0xff] %vm487, %v370
    %513 = vst [vmem:[#allocation2 + $0xd0] sm:$0xff] %v374
    %514 = vst.msk [vmem:[#allocation2 + $0xd8] sm:$0xff] %vm487, %v376
    %515 = vst [vmem:[#allocation2 + $0xe0] sm:$0xff] %v380
    %516 = vst.msk [vmem:[#allocation2 + $0xe8] sm:$0xff] %vm487, %v382
    %517 = vst [vmem:[#allocation2 + $0xf0] sm:$0xff] %v386
    %518 = vst.msk [vmem:[#allocation2 + $0xf8] sm:$0xff] %vm487, %v388
    %519 = vst [vmem:[#allocation2 + $0x100] sm:$0xff] %v392
    %520 = vst.msk [vmem:[#allocation2 + $0x108] sm:$0xff] %vm487, %v394
    %521 = vst [vmem:[#allocation2 + $0x110] sm:$0xff] %v398
    %522 = vst.msk [vmem:[#allocation2 + $0x118] sm:$0xff] %vm487, %v400
    %523 = vst [vmem:[#allocation2 + $0x120] sm:$0xff] %v404
    %524 = vst.msk [vmem:[#allocation2 + $0x128] sm:$0xff] %vm487, %v406
    %525 = vst [vmem:[#allocation2 + $0x130] sm:$0xff] %v410
    %526 = vst.msk [vmem:[#allocation2 + $0x138] sm:$0xff] %vm487, %v412
    %527 = vst [vmem:[#allocation2 + $0x140] sm:$0xff] %v416
    %528 = vst.msk [vmem:[#allocation2 + $0x148] sm:$0xff] %vm487, %v418
    %529 = vst [vmem:[#allocation2 + $0x150] sm:$0xff] %v422
    %530 = vst.msk [vmem:[#allocation2 + $0x158] sm:$0xff] %vm487, %v424
    %531 = vst [vmem:[#allocation2 + $0x160] sm:$0xff] %v428
    %532 = vst.msk [vmem:[#allocation2 + $0x168] sm:$0xff] %vm487, %v430
    %533 = vst [vmem:[#allocation2 + $0x170] sm:$0xff] %v434
    %534 = vst.msk [vmem:[#allocation2 + $0x178] sm:$0xff] %vm487, %v436
    %535 = vst [vmem:[#allocation2 + $0x180] sm:$0xff] %v440
    %536 = vst.msk [vmem:[#allocation2 + $0x188] sm:$0xff] %vm487, %v442
    %537 = vst [vmem:[#allocation2 + $0x190] sm:$0xff] %v446
    %538 = vst.msk [vmem:[#allocation2 + $0x198] sm:$0xff] %vm487, %v448
    %539 = vst [vmem:[#allocation2 + $0x1a0] sm:$0xff] %v452
    %540 = vst.msk [vmem:[#allocation2 + $0x1a8] sm:$0xff] %vm487, %v454
    %541 = vst [vmem:[#allocation2 + $0x1b0] sm:$0xff] %v458
    %542 = vst.msk [vmem:[#allocation2 + $0x1b8] sm:$0xff] %vm487, %v460
    %543 = vst [vmem:[#allocation2 + $0x1c0] sm:$0xff] %v464
    %544 = vst.msk [vmem:[#allocation2 + $0x1c8] sm:$0xff] %vm487, %v466
    %545 = vst [vmem:[#allocation2 + $0x1d0] sm:$0xff] %v470
    %546 = vst.msk [vmem:[#allocation2 + $0x1d8] sm:$0xff] %vm487, %v472
    %547 = vst [vmem:[#allocation2 + $0x1e0] sm:$0xff] %v476
    %548 = vst.msk [vmem:[#allocation2 + $0x1e8] sm:$0xff] %vm487, %v478
    %549 = vst [vmem:[#allocation2 + $0x1f0] sm:$0x3f] %v482
    %vm550 = vcmask 422912
    %551 = vst.msk [vmem:[#allocation2 + $0x1f8] sm:$0x3f] %vm550, %v484
    %v552 = vld [vmem:[#allocation2] sm:$0xff]
    %v553 = vld [vmem:[#allocation2 + $0x8] sm:$0xff]
    %v554 = vld [vmem:[#allocation2 + $0x10] sm:$0xff]
    %v555 = vld [vmem:[#allocation2 + $0x18] sm:$0xff]
    %v556 = vld [vmem:[#allocation2 + $0x20] sm:$0xff]
    %v557 = vld [vmem:[#allocation2 + $0x28] sm:$0xff]
    %v558 = vld [vmem:[#allocation2 + $0x30] sm:$0xff]
    %v559 = vld [vmem:[#allocation2 + $0x38] sm:$0xff]
    %v560 = vld [vmem:[#allocation2 + $0x40] sm:$0xff]
    %v561 = vld [vmem:[#allocation2 + $0x48] sm:$0xff]
    %v562 = vld [vmem:[#allocation2 + $0x50] sm:$0xff]
    %v563 = vld [vmem:[#allocation2 + $0x58] sm:$0xff]
    %v564 = vld [vmem:[#allocation2 + $0x60] sm:$0xff]
    %v565 = vld [vmem:[#allocation2 + $0x68] sm:$0xff]
    %v566 = vld [vmem:[#allocation2 + $0x70] sm:$0xff]
    %v567 = vld [vmem:[#allocation2 + $0x78] sm:$0xff]
    %v568 = vld [vmem:[#allocation2 + $0x80] sm:$0xff]
    %v569 = vld [vmem:[#allocation2 + $0x88] sm:$0xff]
    %v570 = vld [vmem:[#allocation2 + $0x90] sm:$0xff]
    %v571 = vld [vmem:[#allocation2 + $0x98] sm:$0xff]
    %v572 = vld [vmem:[#allocation2 + $0xa0] sm:$0xff]
    %v573 = vld [vmem:[#allocation2 + $0xa8] sm:$0xff]
    %v574 = vld [vmem:[#allocation2 + $0xb0] sm:$0xff]
    %v575 = vld [vmem:[#allocation2 + $0xb8] sm:$0xff]
    %v576 = vld [vmem:[#allocation2 + $0xc0] sm:$0xff]
    %v577 = vld [vmem:[#allocation2 + $0xc8] sm:$0xff]
    %v578 = vld [vmem:[#allocation2 + $0xd0] sm:$0xff]
    %v579 = vld [vmem:[#allocation2 + $0xd8] sm:$0xff]
    %v580 = vld [vmem:[#allocation2 + $0xe0] sm:$0xff]
    %v581 = vld [vmem:[#allocation2 + $0xe8] sm:$0xff]
    %v582 = vld [vmem:[#allocation2 + $0xf0] sm:$0xff]
    %v583 = vld [vmem:[#allocation2 + $0xf8] sm:$0xff]
    %v584 = vld [vmem:[#allocation2 + $0x100] sm:$0xff]
    %v585 = vld [vmem:[#allocation2 + $0x108] sm:$0xff]
    %v586 = vld [vmem:[#allocation2 + $0x110] sm:$0xff]
    %v587 = vld [vmem:[#allocation2 + $0x118] sm:$0xff]
    %v588 = vld [vmem:[#allocation2 + $0x120] sm:$0xff]
    %v589 = vld [vmem:[#allocation2 + $0x128] sm:$0xff]
    %v590 = vld [vmem:[#allocation2 + $0x130] sm:$0xff]
    %v591 = vld [vmem:[#allocation2 + $0x138] sm:$0xff]
    %v592 = vld [vmem:[#allocation2 + $0x140] sm:$0xff]
    %v593 = vld [vmem:[#allocation2 + $0x148] sm:$0xff]
    %v594 = vld [vmem:[#allocation2 + $0x150] sm:$0xff]
    %v595 = vld [vmem:[#allocation2 + $0x158] sm:$0xff]
    %v596 = vld [vmem:[#allocation2 + $0x160] sm:$0xff]
    %v597 = vld [vmem:[#allocation2 + $0x168] sm:$0xff]
    %v598 = vld [vmem:[#allocation2 + $0x170] sm:$0xff]
    %v599 = vld [vmem:[#allocation2 + $0x178] sm:$0xff]
    %v600 = vld [vmem:[#allocation2 + $0x180] sm:$0xff]
    %v601 = vld [vmem:[#allocation2 + $0x188] sm:$0xff]
    %v602 = vld [vmem:[#allocation2 + $0x190] sm:$0xff]
    %v603 = vld [vmem:[#allocation2 + $0x198] sm:$0xff]
    %v604 = vld [vmem:[#allocation2 + $0x1a0] sm:$0xff]
    %v605 = vld [vmem:[#allocation2 + $0x1a8] sm:$0xff]
    %v606 = vld [vmem:[#allocation2 + $0x1b0] sm:$0xff]
    %v607 = vld [vmem:[#allocation2 + $0x1b8] sm:$0xff]
    %v608 = vld [vmem:[#allocation2 + $0x1c0] sm:$0xff]
    %v609 = vld [vmem:[#allocation2 + $0x1c8] sm:$0xff]
    %v610 = vld [vmem:[#allocation2 + $0x1d0] sm:$0xff]
    %v611 = vld [vmem:[#allocation2 + $0x1d8] sm:$0xff]
    %v612 = vld [vmem:[#allocation2 + $0x1e0] sm:$0xff]
    %v613 = vld [vmem:[#allocation2 + $0x1e8] sm:$0xff]
    %v614 = vld [vmem:[#allocation2 + $0x1f0] sm:$0x3f]
    %v615 = vld [vmem:[#allocation2 + $0x1f8] sm:$0x3f]
    %v616 = vld [vmem:[%s0 + $0x1] sm:$0xff]
    %v617 = vld [vmem:[%s0 + $0x9] sm:$0xff]
    %v618 = vld [vmem:[%s0 + $0x11] sm:$0xff]
    %v619 = vld [vmem:[%s0 + $0x19] sm:$0xff]
    %v620 = vld [vmem:[%s0 + $0x21] sm:$0xff]
    %v621 = vld [vmem:[%s0 + $0x29] sm:$0xff]
    %v622 = vld [vmem:[%s0 + $0x31] sm:$0xff]
    %v623 = vld [vmem:[%s0 + $0x39] sm:$0xff]
    %v624 = vld [vmem:[%s0 + $0x41] sm:$0xff]
    %v625 = vld [vmem:[%s0 + $0x49] sm:$0xff]
    %v626 = vld [vmem:[%s0 + $0x51] sm:$0xff]
    %v627 = vld [vmem:[%s0 + $0x59] sm:$0xff]
    %v628 = vld [vmem:[%s0 + $0x61] sm:$0xff]
    %v629 = vld [vmem:[%s0 + $0x69] sm:$0xff]
    %v630 = vld [vmem:[%s0 + $0x71] sm:$0xff]
    %v631 = vld [vmem:[%s0 + $0x79] sm:$0xff]
    %v632 = vld [vmem:[%s0 + $0x81] sm:$0xff]
    %v633 = vld [vmem:[%s0 + $0x89] sm:$0xff]
    %v634 = vld [vmem:[%s0 + $0x91] sm:$0xff]
    %v635 = vld [vmem:[%s0 + $0x99] sm:$0xff]
    %v636 = vld [vmem:[%s0 + $0xa1] sm:$0xff]
    %v637 = vld [vmem:[%s0 + $0xa9] sm:$0xff]
    %v638 = vld [vmem:[%s0 + $0xb1] sm:$0xff]
    %v639 = vld [vmem:[%s0 + $0xb9] sm:$0xff]
    %v640 = vld [vmem:[%s0 + $0xc1] sm:$0xff]
    %v641 = vld [vmem:[%s0 + $0xc9] sm:$0xff]
    %v642 = vld [vmem:[%s0 + $0xd1] sm:$0xff]
    %v643 = vld [vmem:[%s0 + $0xd9] sm:$0xff]
    %v644 = vld [vmem:[%s0 + $0xe1] sm:$0xff]
    %v645 = vld [vmem:[%s0 + $0xe9] sm:$0xff]
    %v646 = vld [vmem:[%s0 + $0xf1] sm:$0xff]
    %v647 = vld [vmem:[%s0 + $0xf9] sm:$0x3f]
    %s648 = scalar_lea.vmem %s1, 64
    %v649 = vld [vmem:[%s648] sm:$0xff]
    %v650 = vld [vmem:[%s648 + $0x8] sm:$0xff]
    %v651 = vld [vmem:[%s648 + $0x10] sm:$0xff]
    %v652 = vld [vmem:[%s648 + $0x18] sm:$0xff]
    %v653 = vld [vmem:[%s648 + $0x20] sm:$0xff]
    %v654 = vld [vmem:[%s648 + $0x28] sm:$0xff]
    %v655 = vld [vmem:[%s648 + $0x30] sm:$0xff]
    %v656 = vld [vmem:[%s648 + $0x38] sm:$0xff]
    %v658 = vsel %vm132, %v616, 0
    %v661 = vsel %vm132, %v617, 0
    %v664 = vsel %vm132, %v618, 0
    %v667 = vsel %vm132, %v619, 0
    %v670 = vsel %vm132, %v620, 0
    %v673 = vsel %vm132, %v621, 0
    %v676 = vsel %vm132, %v622, 0
    %v679 = vsel %vm132, %v623, 0
    %v682 = vsel %vm132, %v624, 0
    %v685 = vsel %vm132, %v625, 0
    %v688 = vsel %vm132, %v626, 0
    %v691 = vsel %vm132, %v627, 0
    %v694 = vsel %vm132, %v628, 0
    %v697 = vsel %vm132, %v629, 0
    %v700 = vsel %vm132, %v630, 0
    %v703 = vsel %vm132, %v631, 0
    %v706 = vsel %vm132, %v632, 0
    %v709 = vsel %vm132, %v633, 0
    %v712 = vsel %vm132, %v634, 0
    %v715 = vsel %vm132, %v635, 0
    %v718 = vsel %vm132, %v636, 0
    %v721 = vsel %vm132, %v637, 0
    %v724 = vsel %vm132, %v638, 0
    %v727 = vsel %vm132, %v639, 0
    %v730 = vsel %vm132, %v640, 0
    %v733 = vsel %vm132, %v641, 0
    %v736 = vsel %vm132, %v642, 0
    %v739 = vsel %vm132, %v643, 0
    %v742 = vsel %vm132, %v644, 0
    %v745 = vsel %vm132, %v645, 0
    %v748 = vsel %vm132, %v646, 0
    %v751 = vsel %vm132, %v647, 0
    %753 = vmatprep.subr.mxu0 0.0
    %754 = vmatpush1.msra.mxu0 0.0
    %755 = vmatprep.subr.mxu0 0.0
    %756 = vmatpush1.msra.mxu0 0.0
    %757 = vmatprep.subr.mxu0 0.0
    %758 = vmatpush1.msra.mxu0 0.0
    %759 = vmatprep.subr.mxu0 0.0
    %760 = vmatpush1.msra.mxu0 0.0
    %761 = vmatprep.subr.mxu0 0.0
    %762 = vmatpush1.msra.mxu0 0.0
    %763 = vmatprep.subr.mxu0 0.0
    %764 = vmatpush1.msra.mxu0 0.0
    %765 = vmatprep.subr.mxu0 0.0
    %766 = vmatpush1.msra.mxu0 0.0
    %767 = vmatprep.subr.mxu0 0.0
    %768 = vmatpush1.msra.mxu0 0.0
    %769 = vmatprep.subr.mxu0 0.0
    %770 = vmatpush1.msra.mxu0 0.0
    %771 = vmatprep.subr.mxu0 0.0
    %772 = vmatpush1.msra.mxu0 0.0
    %773 = vmatprep.subr.mxu0 0.0
    %774 = vmatpush1.msra.mxu0 0.0
    %775 = vmatprep.subr.mxu0 0.0
    %776 = vmatpush1.msra.mxu0 0.0
    %777 = vmatprep.subr.mxu0 %v656
    %778 = vmatpush1.msra.mxu0 %v655
    %779 = vmatprep.subr.mxu0 %v654
    %780 = vmatpush1.msra.mxu0 %v653
    %781 = vmatprep.subr.mxu0 %v652
    %782 = vmatpush1.msra.mxu0 %v651
    %783 = vmatprep.subr.mxu0 %v650
    %784 = vmatpush1.msra.mxu0 %v649
    %785 = vmatprep.subr.mxu0 0.0
    %786 = vmatpush2.msra.mxu0 0.0
    %787 = vmatprep.subr.mxu0 0.0
    %788 = vmatpush2.msra.mxu0 0.0
    %789 = vmatprep.subr.mxu0 0.0
    %790 = vmatpush2.msra.mxu0 0.0
    %791 = vmatprep.subr.mxu0 0.0
    %792 = vmatpush2.msra.mxu0 0.0
    %793 = vmatprep.subr.mxu0 0.0
    %794 = vmatpush2.msra.mxu0 0.0
    %795 = vmatprep.subr.mxu0 0.0
    %796 = vmatpush2.msra.mxu0 0.0
    %797 = vmatprep.subr.mxu0 0.0
    %798 = vmatpush2.msra.mxu0 0.0
    %799 = vmatprep.subr.mxu0 0.0
    %800 = vmatpush2.msra.mxu0 0.0
    %801 = vmatprep.subr.mxu0 0.0
    %802 = vmatpush2.msra.mxu0 0.0
    %803 = vmatprep.subr.mxu0 0.0
    %804 = vmatpush2.msra.mxu0 0.0
    %805 = vmatprep.subr.mxu0 0.0
    %806 = vmatpush2.msra.mxu0 0.0
    %807 = vmatprep.subr.mxu0 0.0
    %808 = vmatpush2.msra.mxu0 0.0
    %809 = vmatprep.subr.mxu0 0.0
    %810 = vmatpush2.msra.mxu0 0.0
    %811 = vmatprep.subr.mxu0 0.0
    %812 = vmatpush2.msra.mxu0 0.0
    %813 = vmatprep.subr.mxu0 0.0
    %814 = vmatpush2.msra.mxu0 0.0
    %815 = vmatprep.subr.mxu0 0.0
    %816 = vmatpush2.msra.mxu0 0.0
    %817 = vmatprep.mubr.f32.mxu0 0.0
    %818 = vmatmul.mubr.f32.gmra.mxu0 %v658
    %v819 = vpop.f32.mrf.mxu0
    %v820 = vadd.f32 0.0, %v819
    %v821 = vpop.f32.mrf.mxu0
    %v822 = vadd.f32 0.0, %v821
    %823 = vmatprep.mubr.f32.mxu0 0.0
    %824 = vmatmul.mubr.f32.gmra.mxu0 %v661
    %v825 = vpop.f32.mrf.mxu0
    %v826 = vadd.f32 0.0, %v825
    %v827 = vpop.f32.mrf.mxu0
    %v828 = vadd.f32 0.0, %v827
    %829 = vmatprep.mubr.f32.mxu0 0.0
    %830 = vmatmul.mubr.f32.gmra.mxu0 %v664
    %v831 = vpop.f32.mrf.mxu0
    %v832 = vadd.f32 0.0, %v831
    %v833 = vpop.f32.mrf.mxu0
    %v834 = vadd.f32 0.0, %v833
    %835 = vmatprep.mubr.f32.mxu0 0.0
    %836 = vmatmul.mubr.f32.gmra.mxu0 %v667
    %v837 = vpop.f32.mrf.mxu0
    %v838 = vadd.f32 0.0, %v837
    %v839 = vpop.f32.mrf.mxu0
    %v840 = vadd.f32 0.0, %v839
    %841 = vmatprep.mubr.f32.mxu0 0.0
    %842 = vmatmul.mubr.f32.gmra.mxu0 %v670
    %v843 = vpop.f32.mrf.mxu0
    %v844 = vadd.f32 0.0, %v843
    %v845 = vpop.f32.mrf.mxu0
    %v846 = vadd.f32 0.0, %v845
    %847 = vmatprep.mubr.f32.mxu0 0.0
    %848 = vmatmul.mubr.f32.gmra.mxu0 %v673
    %v849 = vpop.f32.mrf.mxu0
    %v850 = vadd.f32 0.0, %v849
    %v851 = vpop.f32.mrf.mxu0
    %v852 = vadd.f32 0.0, %v851
    %853 = vmatprep.mubr.f32.mxu0 0.0
    %854 = vmatmul.mubr.f32.gmra.mxu0 %v676
    %v855 = vpop.f32.mrf.mxu0
    %v856 = vadd.f32 0.0, %v855
    %v857 = vpop.f32.mrf.mxu0
    %v858 = vadd.f32 0.0, %v857
    %859 = vmatprep.mubr.f32.mxu0 0.0
    %860 = vmatmul.mubr.f32.gmra.mxu0 %v679
    %v861 = vpop.f32.mrf.mxu0
    %v862 = vadd.f32 0.0, %v861
    %v863 = vpop.f32.mrf.mxu0
    %v864 = vadd.f32 0.0, %v863
    %865 = vmatprep.mubr.f32.mxu0 0.0
    %866 = vmatmul.mubr.f32.gmra.mxu0 %v682
    %v867 = vpop.f32.mrf.mxu0
    %v868 = vadd.f32 0.0, %v867
    %v869 = vpop.f32.mrf.mxu0
    %v870 = vadd.f32 0.0, %v869
    %871 = vmatprep.mubr.f32.mxu0 0.0
    %872 = vmatmul.mubr.f32.gmra.mxu0 %v685
    %v873 = vpop.f32.mrf.mxu0
    %v874 = vadd.f32 0.0, %v873
    %v875 = vpop.f32.mrf.mxu0
    %v876 = vadd.f32 0.0, %v875
    %877 = vmatprep.mubr.f32.mxu0 0.0
    %878 = vmatmul.mubr.f32.gmra.mxu0 %v688
    %v879 = vpop.f32.mrf.mxu0
    %v880 = vadd.f32 0.0, %v879
    %v881 = vpop.f32.mrf.mxu0
    %v882 = vadd.f32 0.0, %v881
    %883 = vmatprep.mubr.f32.mxu0 0.0
    %884 = vmatmul.mubr.f32.gmra.mxu0 %v691
    %v885 = vpop.f32.mrf.mxu0
    %v886 = vadd.f32 0.0, %v885
    %v887 = vpop.f32.mrf.mxu0
    %v888 = vadd.f32 0.0, %v887
    %889 = vmatprep.mubr.f32.mxu0 0.0
    %890 = vmatmul.mubr.f32.gmra.mxu0 %v694
    %v891 = vpop.f32.mrf.mxu0
    %v892 = vadd.f32 0.0, %v891
    %v893 = vpop.f32.mrf.mxu0
    %v894 = vadd.f32 0.0, %v893
    %895 = vmatprep.mubr.f32.mxu0 0.0
    %896 = vmatmul.mubr.f32.gmra.mxu0 %v697
    %v897 = vpop.f32.mrf.mxu0
    %v898 = vadd.f32 0.0, %v897
    %v899 = vpop.f32.mrf.mxu0
    %v900 = vadd.f32 0.0, %v899
    %901 = vmatprep.mubr.f32.mxu0 0.0
    %902 = vmatmul.mubr.f32.gmra.mxu0 %v700
    %v903 = vpop.f32.mrf.mxu0
    %v904 = vadd.f32 0.0, %v903
    %v905 = vpop.f32.mrf.mxu0
    %v906 = vadd.f32 0.0, %v905
    %907 = vmatprep.mubr.f32.mxu0 0.0
    %908 = vmatmul.mubr.f32.gmra.mxu0 %v703
    %v909 = vpop.f32.mrf.mxu0
    %v910 = vadd.f32 0.0, %v909
    %v911 = vpop.f32.mrf.mxu0
    %v912 = vadd.f32 0.0, %v911
    %913 = vmatprep.mubr.f32.mxu0 0.0
    %914 = vmatmul.mubr.f32.gmra.mxu0 %v706
    %v915 = vpop.f32.mrf.mxu0
    %v916 = vadd.f32 0.0, %v915
    %v917 = vpop.f32.mrf.mxu0
    %v918 = vadd.f32 0.0, %v917
    %919 = vmatprep.mubr.f32.mxu0 0.0
    %920 = vmatmul.mubr.f32.gmra.mxu0 %v709
    %v921 = vpop.f32.mrf.mxu0
    %v922 = vadd.f32 0.0, %v921
    %v923 = vpop.f32.mrf.mxu0
    %v924 = vadd.f32 0.0, %v923
    %925 = vmatprep.mubr.f32.mxu0 0.0
    %926 = vmatmul.mubr.f32.gmra.mxu0 %v712
    %v927 = vpop.f32.mrf.mxu0
    %v928 = vadd.f32 0.0, %v927
    %v929 = vpop.f32.mrf.mxu0
    %v930 = vadd.f32 0.0, %v929
    %931 = vmatprep.mubr.f32.mxu0 0.0
    %932 = vmatmul.mubr.f32.gmra.mxu0 %v715
    %v933 = vpop.f32.mrf.mxu0
    %v934 = vadd.f32 0.0, %v933
    %v935 = vpop.f32.mrf.mxu0
    %v936 = vadd.f32 0.0, %v935
    %937 = vmatprep.mubr.f32.mxu0 0.0
    %938 = vmatmul.mubr.f32.gmra.mxu0 %v718
    %v939 = vpop.f32.mrf.mxu0
    %v940 = vadd.f32 0.0, %v939
    %v941 = vpop.f32.mrf.mxu0
    %v942 = vadd.f32 0.0, %v941
    %943 = vmatprep.mubr.f32.mxu0 0.0
    %944 = vmatmul.mubr.f32.gmra.mxu0 %v721
    %v945 = vpop.f32.mrf.mxu0
    %v946 = vadd.f32 0.0, %v945
    %v947 = vpop.f32.mrf.mxu0
    %v948 = vadd.f32 0.0, %v947
    %949 = vmatprep.mubr.f32.mxu0 0.0
    %950 = vmatmul.mubr.f32.gmra.mxu0 %v724
    %v951 = vpop.f32.mrf.mxu0
    %v952 = vadd.f32 0.0, %v951
    %v953 = vpop.f32.mrf.mxu0
    %v954 = vadd.f32 0.0, %v953
    %955 = vmatprep.mubr.f32.mxu0 0.0
    %956 = vmatmul.mubr.f32.gmra.mxu0 %v727
    %v957 = vpop.f32.mrf.mxu0
    %v958 = vadd.f32 0.0, %v957
    %v959 = vpop.f32.mrf.mxu0
    %v960 = vadd.f32 0.0, %v959
    %961 = vmatprep.mubr.f32.mxu0 0.0
    %962 = vmatmul.mubr.f32.gmra.mxu0 %v730
    %v963 = vpop.f32.mrf.mxu0
    %v964 = vadd.f32 0.0, %v963
    %v965 = vpop.f32.mrf.mxu0
    %v966 = vadd.f32 0.0, %v965
    %967 = vmatprep.mubr.f32.mxu0 0.0
    %968 = vmatmul.mubr.f32.gmra.mxu0 %v733
    %v969 = vpop.f32.mrf.mxu0
    %v970 = vadd.f32 0.0, %v969
    %v971 = vpop.f32.mrf.mxu0
    %v972 = vadd.f32 0.0, %v971
    %973 = vmatprep.mubr.f32.mxu0 0.0
    %974 = vmatmul.mubr.f32.gmra.mxu0 %v736
    %v975 = vpop.f32.mrf.mxu0
    %v976 = vadd.f32 0.0, %v975
    %v977 = vpop.f32.mrf.mxu0
    %v978 = vadd.f32 0.0, %v977
    %979 = vmatprep.mubr.f32.mxu0 0.0
    %980 = vmatmul.mubr.f32.gmra.mxu0 %v739
    %v981 = vpop.f32.mrf.mxu0
    %v982 = vadd.f32 0.0, %v981
    %v983 = vpop.f32.mrf.mxu0
    %v984 = vadd.f32 0.0, %v983
    %985 = vmatprep.mubr.f32.mxu0 0.0
    %986 = vmatmul.mubr.f32.gmra.mxu0 %v742
    %v987 = vpop.f32.mrf.mxu0
    %v988 = vadd.f32 0.0, %v987
    %v989 = vpop.f32.mrf.mxu0
    %v990 = vadd.f32 0.0, %v989
    %991 = vmatprep.mubr.f32.mxu0 0.0
    %992 = vmatmul.mubr.f32.gmra.mxu0 %v745
    %v993 = vpop.f32.mrf.mxu0
    %v994 = vadd.f32 0.0, %v993
    %v995 = vpop.f32.mrf.mxu0
    %v996 = vadd.f32 0.0, %v995
    %997 = vmatprep.mubr.f32.mxu0 0.0
    %998 = vmatmul.mubr.f32.gmra.mxu0 %v748
    %v999 = vpop.f32.mrf.mxu0
    %v1000 = vadd.f32 0.0, %v999
    %v1001 = vpop.f32.mrf.mxu0
    %v1002 = vadd.f32 0.0, %v1001
    %1003 = vmatprep.mubr.f32.mxu0 0.0
    %1004 = vmatmul.mubr.f32.gmra.mxu0 %v751
    %v1005 = vpop.f32.mrf.mxu0
    %v1006 = vadd.f32 0.0, %v1005
    %v1007 = vpop.f32.mrf.mxu0
    %v1008 = vadd.f32 0.0, %v1007
    %1009 = vdwg.mxu0
    %v1010 = vadd.f32 %v552, %v820
    %v1011 = vadd.f32 %v553, %v822
    %v1012 = vadd.f32 %v554, %v826
    %v1013 = vadd.f32 %v555, %v828
    %v1014 = vadd.f32 %v556, %v832
    %v1015 = vadd.f32 %v557, %v834
    %v1016 = vadd.f32 %v558, %v838
    %v1017 = vadd.f32 %v559, %v840
    %v1018 = vadd.f32 %v560, %v844
    %v1019 = vadd.f32 %v561, %v846
    %v1020 = vadd.f32 %v562, %v850
    %v1021 = vadd.f32 %v563, %v852
    %v1022 = vadd.f32 %v564, %v856
    %v1023 = vadd.f32 %v565, %v858
    %v1024 = vadd.f32 %v566, %v862
    %v1025 = vadd.f32 %v567, %v864
    %v1026 = vadd.f32 %v568, %v868
    %v1027 = vadd.f32 %v569, %v870
    %v1028 = vadd.f32 %v570, %v874
    %v1029 = vadd.f32 %v571, %v876
    %v1030 = vadd.f32 %v572, %v880
    %v1031 = vadd.f32 %v573, %v882
    %v1032 = vadd.f32 %v574, %v886
    %v1033 = vadd.f32 %v575, %v888
    %v1034 = vadd.f32 %v576, %v892
    %v1035 = vadd.f32 %v577, %v894
    %v1036 = vadd.f32 %v578, %v898
    %v1037 = vadd.f32 %v579, %v900
    %v1038 = vadd.f32 %v580, %v904
    %v1039 = vadd.f32 %v581, %v906
    %v1040 = vadd.f32 %v582, %v910
    %v1041 = vadd.f32 %v583, %v912
    %v1042 = vadd.f32 %v584, %v916
    %v1043 = vadd.f32 %v585, %v918
    %v1044 = vadd.f32 %v586, %v922
    %v1045 = vadd.f32 %v587, %v924
    %v1046 = vadd.f32 %v588, %v928
    %v1047 = vadd.f32 %v589, %v930
    %v1048 = vadd.f32 %v590, %v934
    %v1049 = vadd.f32 %v591, %v936
    %v1050 = vadd.f32 %v592, %v940
    %v1051 = vadd.f32 %v593, %v942
    %v1052 = vadd.f32 %v594, %v946
    %v1053 = vadd.f32 %v595, %v948
    %v1054 = vadd.f32 %v596, %v952
    %v1055 = vadd.f32 %v597, %v954
    %v1056 = vadd.f32 %v598, %v958
    %v1057 = vadd.f32 %v599, %v960
    %v1058 = vadd.f32 %v600, %v964
    %v1059 = vadd.f32 %v601, %v966
    %v1060 = vadd.f32 %v602, %v970
    %v1061 = vadd.f32 %v603, %v972
    %v1062 = vadd.f32 %v604, %v976
    %v1063 = vadd.f32 %v605, %v978
    %v1064 = vadd.f32 %v606, %v982
    %v1065 = vadd.f32 %v607, %v984
    %v1066 = vadd.f32 %v608, %v988
    %v1067 = vadd.f32 %v609, %v990
    %v1068 = vadd.f32 %v610, %v994
    %v1069 = vadd.f32 %v611, %v996
    %v1070 = vadd.f32 %v612, %v1000
    %v1071 = vadd.f32 %v613, %v1002
    %v1072 = vadd.f32 %v614, %v1006
    %v1073 = vadd.f32 %v615, %v1008
    %1074 = vst [vmem:[#allocation2] sm:$0xff] %v1010
    %1075 = vst.msk [vmem:[#allocation2 + $0x8] sm:$0xff] %vm487, %v1011
    %1076 = vst [vmem:[#allocation2 + $0x10] sm:$0xff] %v1012
    %1077 = vst.msk [vmem:[#allocation2 + $0x18] sm:$0xff] %vm487, %v1013
    %1078 = vst [vmem:[#allocation2 + $0x20] sm:$0xff] %v1014
    %1079 = vst.msk [vmem:[#allocation2 + $0x28] sm:$0xff] %vm487, %v1015
    %1080 = vst [vmem:[#allocation2 + $0x30] sm:$0xff] %v1016
    %1081 = vst.msk [vmem:[#allocation2 + $0x38] sm:$0xff] %vm487, %v1017
    %1082 = vst [vmem:[#allocation2 + $0x40] sm:$0xff] %v1018
    %1083 = vst.msk [vmem:[#allocation2 + $0x48] sm:$0xff] %vm487, %v1019
    %1084 = vst [vmem:[#allocation2 + $0x50] sm:$0xff] %v1020
    %1085 = vst.msk [vmem:[#allocation2 + $0x58] sm:$0xff] %vm487, %v1021
    %1086 = vst [vmem:[#allocation2 + $0x60] sm:$0xff] %v1022
    %1087 = vst.msk [vmem:[#allocation2 + $0x68] sm:$0xff] %vm487, %v1023
    %1088 = vst [vmem:[#allocation2 + $0x70] sm:$0xff] %v1024
    %1089 = vst.msk [vmem:[#allocation2 + $0x78] sm:$0xff] %vm487, %v1025
    %1090 = vst [vmem:[#allocation2 + $0x80] sm:$0xff] %v1026
    %1091 = vst.msk [vmem:[#allocation2 + $0x88] sm:$0xff] %vm487, %v1027
    %1092 = vst [vmem:[#allocation2 + $0x90] sm:$0xff] %v1028
    %1093 = vst.msk [vmem:[#allocation2 + $0x98] sm:$0xff] %vm487, %v1029
    %1094 = vst [vmem:[#allocation2 + $0xa0] sm:$0xff] %v1030
    %1095 = vst.msk [vmem:[#allocation2 + $0xa8] sm:$0xff] %vm487, %v1031
    %1096 = vst [vmem:[#allocation2 + $0xb0] sm:$0xff] %v1032
    %1097 = vst.msk [vmem:[#allocation2 + $0xb8] sm:$0xff] %vm487, %v1033
    %1098 = vst [vmem:[#allocation2 + $0xc0] sm:$0xff] %v1034
    %1099 = vst.msk [vmem:[#allocation2 + $0xc8] sm:$0xff] %vm487, %v1035
    %1100 = vst [vmem:[#allocation2 + $0xd0] sm:$0xff] %v1036
    %1101 = vst.msk [vmem:[#allocation2 + $0xd8] sm:$0xff] %vm487, %v1037
    %1102 = vst [vmem:[#allocation2 + $0xe0] sm:$0xff] %v1038
    %1103 = vst.msk [vmem:[#allocation2 + $0xe8] sm:$0xff] %vm487, %v1039
    %1104 = vst [vmem:[#allocation2 + $0xf0] sm:$0xff] %v1040
    %1105 = vst.msk [vmem:[#allocation2 + $0xf8] sm:$0xff] %vm487, %v1041
    %1106 = vst [vmem:[#allocation2 + $0x100] sm:$0xff] %v1042
    %1107 = vst.msk [vmem:[#allocation2 + $0x108] sm:$0xff] %vm487, %v1043
    %1108 = vst [vmem:[#allocation2 + $0x110] sm:$0xff] %v1044
    %1109 = vst.msk [vmem:[#allocation2 + $0x118] sm:$0xff] %vm487, %v1045
    %1110 = vst [vmem:[#allocation2 + $0x120] sm:$0xff] %v1046
    %1111 = vst.msk [vmem:[#allocation2 + $0x128] sm:$0xff] %vm487, %v1047
    %1112 = vst [vmem:[#allocation2 + $0x130] sm:$0xff] %v1048
    %1113 = vst.msk [vmem:[#allocation2 + $0x138] sm:$0xff] %vm487, %v1049
    %1114 = vst [vmem:[#allocation2 + $0x140] sm:$0xff] %v1050
    %1115 = vst.msk [vmem:[#allocation2 + $0x148] sm:$0xff] %vm487, %v1051
    %1116 = vst [vmem:[#allocation2 + $0x150] sm:$0xff] %v1052
    %1117 = vst.msk [vmem:[#allocation2 + $0x158] sm:$0xff] %vm487, %v1053
    %1118 = vst [vmem:[#allocation2 + $0x160] sm:$0xff] %v1054
    %1119 = vst.msk [vmem:[#allocation2 + $0x168] sm:$0xff] %vm487, %v1055
    %1120 = vst [vmem:[#allocation2 + $0x170] sm:$0xff] %v1056
    %1121 = vst.msk [vmem:[#allocation2 + $0x178] sm:$0xff] %vm487, %v1057
    %1122 = vst [vmem:[#allocation2 + $0x180] sm:$0xff] %v1058
    %1123 = vst.msk [vmem:[#allocation2 + $0x188] sm:$0xff] %vm487, %v1059
    %1124 = vst [vmem:[#allocation2 + $0x190] sm:$0xff] %v1060
    %1125 = vst.msk [vmem:[#allocation2 + $0x198] sm:$0xff] %vm487, %v1061
    %1126 = vst [vmem:[#allocation2 + $0x1a0] sm:$0xff] %v1062
    %1127 = vst.msk [vmem:[#allocation2 + $0x1a8] sm:$0xff] %vm487, %v1063
    %1128 = vst [vmem:[#allocation2 + $0x1b0] sm:$0xff] %v1064
    %1129 = vst.msk [vmem:[#allocation2 + $0x1b8] sm:$0xff] %vm487, %v1065
    %1130 = vst [vmem:[#allocation2 + $0x1c0] sm:$0xff] %v1066
    %1131 = vst.msk [vmem:[#allocation2 + $0x1c8] sm:$0xff] %vm487, %v1067
    %1132 = vst [vmem:[#allocation2 + $0x1d0] sm:$0xff] %v1068
    %1133 = vst.msk [vmem:[#allocation2 + $0x1d8] sm:$0xff] %vm487, %v1069
    %1134 = vst [vmem:[#allocation2 + $0x1e0] sm:$0xff] %v1070
    %1135 = vst.msk [vmem:[#allocation2 + $0x1e8] sm:$0xff] %vm487, %v1071
    %1136 = vst [vmem:[#allocation2 + $0x1f0] sm:$0x3f] %v1072
    %1137 = vst.msk [vmem:[#allocation2 + $0x1f8] sm:$0x3f] %vm550, %v1073
    %v1138 = vld [vmem:[#allocation2] sm:$0xff]
    %v1139 = vld [vmem:[#allocation2 + $0x8] sm:$0xff]
    %v1140 = vld [vmem:[#allocation2 + $0x10] sm:$0xff]
    %v1141 = vld [vmem:[#allocation2 + $0x18] sm:$0xff]
    %v1142 = vld [vmem:[#allocation2 + $0x20] sm:$0xff]
    %v1143 = vld [vmem:[#allocation2 + $0x28] sm:$0xff]
    %v1144 = vld [vmem:[#allocation2 + $0x30] sm:$0xff]
    %v1145 = vld [vmem:[#allocation2 + $0x38] sm:$0xff]
    %v1146 = vld [vmem:[#allocation2 + $0x40] sm:$0xff]
    %v1147 = vld [vmem:[#allocation2 + $0x48] sm:$0xff]
    %v1148 = vld [vmem:[#allocation2 + $0x50] sm:$0xff]
    %v1149 = vld [vmem:[#allocation2 + $0x58] sm:$0xff]
    %v1150 = vld [vmem:[#allocation2 + $0x60] sm:$0xff]
    %v1151 = vld [vmem:[#allocation2 + $0x68] sm:$0xff]
    %v1152 = vld [vmem:[#allocation2 + $0x70] sm:$0xff]
    %v1153 = vld [vmem:[#allocation2 + $0x78] sm:$0xff]
    %v1154 = vld [vmem:[#allocation2 + $0x80] sm:$0xff]
    %v1155 = vld [vmem:[#allocation2 + $0x88] sm:$0xff]
    %v1156 = vld [vmem:[#allocation2 + $0x90] sm:$0xff]
    %v1157 = vld [vmem:[#allocation2 + $0x98] sm:$0xff]
    %v1158 = vld [vmem:[#allocation2 + $0xa0] sm:$0xff]
    %v1159 = vld [vmem:[#allocation2 + $0xa8] sm:$0xff]
    %v1160 = vld [vmem:[#allocation2 + $0xb0] sm:$0xff]
    %v1161 = vld [vmem:[#allocation2 + $0xb8] sm:$0xff]
    %v1162 = vld [vmem:[#allocation2 + $0xc0] sm:$0xff]
    %v1163 = vld [vmem:[#allocation2 + $0xc8] sm:$0xff]
    %v1164 = vld [vmem:[#allocation2 + $0xd0] sm:$0xff]
    %v1165 = vld [vmem:[#allocation2 + $0xd8] sm:$0xff]
    %v1166 = vld [vmem:[#allocation2 + $0xe0] sm:$0xff]
    %v1167 = vld [vmem:[#allocation2 + $0xe8] sm:$0xff]
    %v1168 = vld [vmem:[#allocation2 + $0xf0] sm:$0xff]
    %v1169 = vld [vmem:[#allocation2 + $0xf8] sm:$0xff]
    %v1170 = vld [vmem:[#allocation2 + $0x100] sm:$0xff]
    %v1171 = vld [vmem:[#allocation2 + $0x108] sm:$0xff]
    %v1172 = vld [vmem:[#allocation2 + $0x110] sm:$0xff]
    %v1173 = vld [vmem:[#allocation2 + $0x118] sm:$0xff]
    %v1174 = vld [vmem:[#allocation2 + $0x120] sm:$0xff]
    %v1175 = vld [vmem:[#allocation2 + $0x128] sm:$0xff]
    %v1176 = vld [vmem:[#allocation2 + $0x130] sm:$0xff]
    %v1177 = vld [vmem:[#allocation2 + $0x138] sm:$0xff]
    %v1178 = vld [vmem:[#allocation2 + $0x140] sm:$0xff]
    %v1179 = vld [vmem:[#allocation2 + $0x148] sm:$0xff]
    %v1180 = vld [vmem:[#allocation2 + $0x150] sm:$0xff]
    %v1181 = vld [vmem:[#allocation2 + $0x158] sm:$0xff]
    %v1182 = vld [vmem:[#allocation2 + $0x160] sm:$0xff]
    %v1183 = vld [vmem:[#allocation2 + $0x168] sm:$0xff]
    %v1184 = vld [vmem:[#allocation2 + $0x170] sm:$0xff]
    %v1185 = vld [vmem:[#allocation2 + $0x178] sm:$0xff]
    %v1186 = vld [vmem:[#allocation2 + $0x180] sm:$0xff]
    %v1187 = vld [vmem:[#allocation2 + $0x188] sm:$0xff]
    %v1188 = vld [vmem:[#allocation2 + $0x190] sm:$0xff]
    %v1189 = vld [vmem:[#allocation2 + $0x198] sm:$0xff]
    %v1190 = vld [vmem:[#allocation2 + $0x1a0] sm:$0xff]
    %v1191 = vld [vmem:[#allocation2 + $0x1a8] sm:$0xff]
    %v1192 = vld [vmem:[#allocation2 + $0x1b0] sm:$0xff]
    %v1193 = vld [vmem:[#allocation2 + $0x1b8] sm:$0xff]
    %v1194 = vld [vmem:[#allocation2 + $0x1c0] sm:$0xff]
    %v1195 = vld [vmem:[#allocation2 + $0x1c8] sm:$0xff]
    %v1196 = vld [vmem:[#allocation2 + $0x1d0] sm:$0xff]
    %v1197 = vld [vmem:[#allocation2 + $0x1d8] sm:$0xff]
    %v1198 = vld [vmem:[#allocation2 + $0x1e0] sm:$0xff]
    %v1199 = vld [vmem:[#allocation2 + $0x1e8] sm:$0xff]
    %v1200 = vld [vmem:[#allocation2 + $0x1f0] sm:$0x3f]
    %v1201 = vld [vmem:[#allocation2 + $0x1f8] sm:$0x3f]
    %v1202 = vld [vmem:[%s0 + $0x2] sm:$0xff]
    %v1203 = vld [vmem:[%s0 + $0xa] sm:$0xff]
    %v1204 = vld [vmem:[%s0 + $0x12] sm:$0xff]
    %v1205 = vld [vmem:[%s0 + $0x1a] sm:$0xff]
    %v1206 = vld [vmem:[%s0 + $0x22] sm:$0xff]
    %v1207 = vld [vmem:[%s0 + $0x2a] sm:$0xff]
    %v1208 = vld [vmem:[%s0 + $0x32] sm:$0xff]
    %v1209 = vld [vmem:[%s0 + $0x3a] sm:$0xff]
    %v1210 = vld [vmem:[%s0 + $0x42] sm:$0xff]
    %v1211 = vld [vmem:[%s0 + $0x4a] sm:$0xff]
    %v1212 = vld [vmem:[%s0 + $0x52] sm:$0xff]
    %v1213 = vld [vmem:[%s0 + $0x5a] sm:$0xff]
    %v1214 = vld [vmem:[%s0 + $0x62] sm:$0xff]
    %v1215 = vld [vmem:[%s0 + $0x6a] sm:$0xff]
    %v1216 = vld [vmem:[%s0 + $0x72] sm:$0xff]
    %v1217 = vld [vmem:[%s0 + $0x7a] sm:$0xff]
    %v1218 = vld [vmem:[%s0 + $0x82] sm:$0xff]
    %v1219 = vld [vmem:[%s0 + $0x8a] sm:$0xff]
    %v1220 = vld [vmem:[%s0 + $0x92] sm:$0xff]
    %v1221 = vld [vmem:[%s0 + $0x9a] sm:$0xff]
    %v1222 = vld [vmem:[%s0 + $0xa2] sm:$0xff]
    %v1223 = vld [vmem:[%s0 + $0xaa] sm:$0xff]
    %v1224 = vld [vmem:[%s0 + $0xb2] sm:$0xff]
    %v1225 = vld [vmem:[%s0 + $0xba] sm:$0xff]
    %v1226 = vld [vmem:[%s0 + $0xc2] sm:$0xff]
    %v1227 = vld [vmem:[%s0 + $0xca] sm:$0xff]
    %v1228 = vld [vmem:[%s0 + $0xd2] sm:$0xff]
    %v1229 = vld [vmem:[%s0 + $0xda] sm:$0xff]
    %v1230 = vld [vmem:[%s0 + $0xe2] sm:$0xff]
    %v1231 = vld [vmem:[%s0 + $0xea] sm:$0xff]
    %v1232 = vld [vmem:[%s0 + $0xf2] sm:$0xff]
    %v1233 = vld [vmem:[%s0 + $0xfa] sm:$0x3f]
    %s1234 = scalar_lea.vmem %s1, 128
    %v1235 = vld [vmem:[%s1234] sm:$0xff]
    %v1236 = vld [vmem:[%s1234 + $0x8] sm:$0xff]
    %v1237 = vld [vmem:[%s1234 + $0x10] sm:$0xff]
    %v1238 = vld [vmem:[%s1234 + $0x18] sm:$0xff]
    %v1239 = vld [vmem:[%s1234 + $0x20] sm:$0xff]
    %v1240 = vld [vmem:[%s1234 + $0x28] sm:$0xff]
    %v1241 = vld [vmem:[%s1234 + $0x30] sm:$0xff]
    %v1242 = vld [vmem:[%s1234 + $0x38] sm:$0xff]
    %v1244 = vsel %vm132, %v1202, 0
    %v1247 = vsel %vm132, %v1203, 0
    %v1250 = vsel %vm132, %v1204, 0
    %v1253 = vsel %vm132, %v1205, 0
    %v1256 = vsel %vm132, %v1206, 0
    %v1259 = vsel %vm132, %v1207, 0
    %v1262 = vsel %vm132, %v1208, 0
    %v1265 = vsel %vm132, %v1209, 0
    %v1268 = vsel %vm132, %v1210, 0
    %v1271 = vsel %vm132, %v1211, 0
    %v1274 = vsel %vm132, %v1212, 0
    %v1277 = vsel %vm132, %v1213, 0
    %v1280 = vsel %vm132, %v1214, 0
    %v1283 = vsel %vm132, %v1215, 0
    %v1286 = vsel %vm132, %v1216, 0
    %v1289 = vsel %vm132, %v1217, 0
    %v1292 = vsel %vm132, %v1218, 0
    %v1295 = vsel %vm132, %v1219, 0
    %v1298 = vsel %vm132, %v1220, 0
    %v1301 = vsel %vm132, %v1221, 0
    %v1304 = vsel %vm132, %v1222, 0
    %v1307 = vsel %vm132, %v1223, 0
    %v1310 = vsel %vm132, %v1224, 0
    %v1313 = vsel %vm132, %v1225, 0
    %v1316 = vsel %vm132, %v1226, 0
    %v1319 = vsel %vm132, %v1227, 0
    %v1322 = vsel %vm132, %v1228, 0
    %v1325 = vsel %vm132, %v1229, 0
    %v1328 = vsel %vm132, %v1230, 0
    %v1331 = vsel %vm132, %v1231, 0
    %v1334 = vsel %vm132, %v1232, 0
    %v1337 = vsel %vm132, %v1233, 0
    %1339 = vmatprep.subr.mxu0 0.0
    %1340 = vmatpush1.msra.mxu0 0.0
    %1341 = vmatprep.subr.mxu0 0.0
    %1342 = vmatpush1.msra.mxu0 0.0
    %1343 = vmatprep.subr.mxu0 0.0
    %1344 = vmatpush1.msra.mxu0 0.0
    %1345 = vmatprep.subr.mxu0 0.0
    %1346 = vmatpush1.msra.mxu0 0.0
    %1347 = vmatprep.subr.mxu0 0.0
    %1348 = vmatpush1.msra.mxu0 0.0
    %1349 = vmatprep.subr.mxu0 0.0
    %1350 = vmatpush1.msra.mxu0 0.0
    %1351 = vmatprep.subr.mxu0 0.0
    %1352 = vmatpush1.msra.mxu0 0.0
    %1353 = vmatprep.subr.mxu0 0.0
    %1354 = vmatpush1.msra.mxu0 0.0
    %1355 = vmatprep.subr.mxu0 0.0
    %1356 = vmatpush1.msra.mxu0 0.0
    %1357 = vmatprep.subr.mxu0 0.0
    %1358 = vmatpush1.msra.mxu0 0.0
    %1359 = vmatprep.subr.mxu0 0.0
    %1360 = vmatpush1.msra.mxu0 0.0
    %1361 = vmatprep.subr.mxu0 0.0
    %1362 = vmatpush1.msra.mxu0 0.0
    %1363 = vmatprep.subr.mxu0 %v1242
    %1364 = vmatpush1.msra.mxu0 %v1241
    %1365 = vmatprep.subr.mxu0 %v1240
    %1366 = vmatpush1.msra.mxu0 %v1239
    %1367 = vmatprep.subr.mxu0 %v1238
    %1368 = vmatpush1.msra.mxu0 %v1237
    %1369 = vmatprep.subr.mxu0 %v1236
    %1370 = vmatpush1.msra.mxu0 %v1235
    %1371 = vmatprep.subr.mxu0 0.0
    %1372 = vmatpush2.msra.mxu0 0.0
    %1373 = vmatprep.subr.mxu0 0.0
    %1374 = vmatpush2.msra.mxu0 0.0
    %1375 = vmatprep.subr.mxu0 0.0
    %1376 = vmatpush2.msra.mxu0 0.0
    %1377 = vmatprep.subr.mxu0 0.0
    %1378 = vmatpush2.msra.mxu0 0.0
    %1379 = vmatprep.subr.mxu0 0.0
    %1380 = vmatpush2.msra.mxu0 0.0
    %1381 = vmatprep.subr.mxu0 0.0
    %1382 = vmatpush2.msra.mxu0 0.0
    %1383 = vmatprep.subr.mxu0 0.0
    %1384 = vmatpush2.msra.mxu0 0.0
    %1385 = vmatprep.subr.mxu0 0.0
    %1386 = vmatpush2.msra.mxu0 0.0
    %1387 = vmatprep.subr.mxu0 0.0
    %1388 = vmatpush2.msra.mxu0 0.0
    %1389 = vmatprep.subr.mxu0 0.0
    %1390 = vmatpush2.msra.mxu0 0.0
    %1391 = vmatprep.subr.mxu0 0.0
    %1392 = vmatpush2.msra.mxu0 0.0
    %1393 = vmatprep.subr.mxu0 0.0
    %1394 = vmatpush2.msra.mxu0 0.0
    %1395 = vmatprep.subr.mxu0 0.0
    %1396 = vmatpush2.msra.mxu0 0.0
    %1397 = vmatprep.subr.mxu0 0.0
    %1398 = vmatpush2.msra.mxu0 0.0
    %1399 = vmatprep.subr.mxu0 0.0
    %1400 = vmatpush2.msra.mxu0 0.0
    %1401 = vmatprep.subr.mxu0 0.0
    %1402 = vmatpush2.msra.mxu0 0.0
    %1403 = vmatprep.mubr.f32.mxu0 0.0
    %1404 = vmatmul.mubr.f32.gmra.mxu0 %v1244
    %v1405 = vpop.f32.mrf.mxu0
    %v1406 = vadd.f32 0.0, %v1405
    %v1407 = vpop.f32.mrf.mxu0
    %v1408 = vadd.f32 0.0, %v1407
    %1409 = vmatprep.mubr.f32.mxu0 0.0
    %1410 = vmatmul.mubr.f32.gmra.mxu0 %v1247
    %v1411 = vpop.f32.mrf.mxu0
    %v1412 = vadd.f32 0.0, %v1411
    %v1413 = vpop.f32.mrf.mxu0
    %v1414 = vadd.f32 0.0, %v1413
    %1415 = vmatprep.mubr.f32.mxu0 0.0
    %1416 = vmatmul.mubr.f32.gmra.mxu0 %v1250
    %v1417 = vpop.f32.mrf.mxu0
    %v1418 = vadd.f32 0.0, %v1417
    %v1419 = vpop.f32.mrf.mxu0
    %v1420 = vadd.f32 0.0, %v1419
    %1421 = vmatprep.mubr.f32.mxu0 0.0
    %1422 = vmatmul.mubr.f32.gmra.mxu0 %v1253
    %v1423 = vpop.f32.mrf.mxu0
    %v1424 = vadd.f32 0.0, %v1423
    %v1425 = vpop.f32.mrf.mxu0
    %v1426 = vadd.f32 0.0, %v1425
    %1427 = vmatprep.mubr.f32.mxu0 0.0
    %1428 = vmatmul.mubr.f32.gmra.mxu0 %v1256
    %v1429 = vpop.f32.mrf.mxu0
    %v1430 = vadd.f32 0.0, %v1429
    %v1431 = vpop.f32.mrf.mxu0
    %v1432 = vadd.f32 0.0, %v1431
    %1433 = vmatprep.mubr.f32.mxu0 0.0
    %1434 = vmatmul.mubr.f32.gmra.mxu0 %v1259
    %v1435 = vpop.f32.mrf.mxu0
    %v1436 = vadd.f32 0.0, %v1435
    %v1437 = vpop.f32.mrf.mxu0
    %v1438 = vadd.f32 0.0, %v1437
    %1439 = vmatprep.mubr.f32.mxu0 0.0
    %1440 = vmatmul.mubr.f32.gmra.mxu0 %v1262
    %v1441 = vpop.f32.mrf.mxu0
    %v1442 = vadd.f32 0.0, %v1441
    %v1443 = vpop.f32.mrf.mxu0
    %v1444 = vadd.f32 0.0, %v1443
    %1445 = vmatprep.mubr.f32.mxu0 0.0
    %1446 = vmatmul.mubr.f32.gmra.mxu0 %v1265
    %v1447 = vpop.f32.mrf.mxu0
    %v1448 = vadd.f32 0.0, %v1447
    %v1449 = vpop.f32.mrf.mxu0
    %v1450 = vadd.f32 0.0, %v1449
    %1451 = vmatprep.mubr.f32.mxu0 0.0
    %1452 = vmatmul.mubr.f32.gmra.mxu0 %v1268
    %v1453 = vpop.f32.mrf.mxu0
    %v1454 = vadd.f32 0.0, %v1453
    %v1455 = vpop.f32.mrf.mxu0
    %v1456 = vadd.f32 0.0, %v1455
    %1457 = vmatprep.mubr.f32.mxu0 0.0
    %1458 = vmatmul.mubr.f32.gmra.mxu0 %v1271
    %v1459 = vpop.f32.mrf.mxu0
    %v1460 = vadd.f32 0.0, %v1459
    %v1461 = vpop.f32.mrf.mxu0
    %v1462 = vadd.f32 0.0, %v1461
    %1463 = vmatprep.mubr.f32.mxu0 0.0
    %1464 = vmatmul.mubr.f32.gmra.mxu0 %v1274
    %v1465 = vpop.f32.mrf.mxu0
    %v1466 = vadd.f32 0.0, %v1465
    %v1467 = vpop.f32.mrf.mxu0
    %v1468 = vadd.f32 0.0, %v1467
    %1469 = vmatprep.mubr.f32.mxu0 0.0
    %1470 = vmatmul.mubr.f32.gmra.mxu0 %v1277
    %v1471 = vpop.f32.mrf.mxu0
    %v1472 = vadd.f32 0.0, %v1471
    %v1473 = vpop.f32.mrf.mxu0
    %v1474 = vadd.f32 0.0, %v1473
    %1475 = vmatprep.mubr.f32.mxu0 0.0
    %1476 = vmatmul.mubr.f32.gmra.mxu0 %v1280
    %v1477 = vpop.f32.mrf.mxu0
    %v1478 = vadd.f32 0.0, %v1477
    %v1479 = vpop.f32.mrf.mxu0
    %v1480 = vadd.f32 0.0, %v1479
    %1481 = vmatprep.mubr.f32.mxu0 0.0
    %1482 = vmatmul.mubr.f32.gmra.mxu0 %v1283
    %v1483 = vpop.f32.mrf.mxu0
    %v1484 = vadd.f32 0.0, %v1483
    %v1485 = vpop.f32.mrf.mxu0
    %v1486 = vadd.f32 0.0, %v1485
    %1487 = vmatprep.mubr.f32.mxu0 0.0
    %1488 = vmatmul.mubr.f32.gmra.mxu0 %v1286
    %v1489 = vpop.f32.mrf.mxu0
    %v1490 = vadd.f32 0.0, %v1489
    %v1491 = vpop.f32.mrf.mxu0
    %v1492 = vadd.f32 0.0, %v1491
    %1493 = vmatprep.mubr.f32.mxu0 0.0
    %1494 = vmatmul.mubr.f32.gmra.mxu0 %v1289
    %v1495 = vpop.f32.mrf.mxu0
    %v1496 = vadd.f32 0.0, %v1495
    %v1497 = vpop.f32.mrf.mxu0
    %v1498 = vadd.f32 0.0, %v1497
    %1499 = vmatprep.mubr.f32.mxu0 0.0
    %1500 = vmatmul.mubr.f32.gmra.mxu0 %v1292
    %v1501 = vpop.f32.mrf.mxu0
    %v1502 = vadd.f32 0.0, %v1501
    %v1503 = vpop.f32.mrf.mxu0
    %v1504 = vadd.f32 0.0, %v1503
    %1505 = vmatprep.mubr.f32.mxu0 0.0
    %1506 = vmatmul.mubr.f32.gmra.mxu0 %v1295
    %v1507 = vpop.f32.mrf.mxu0
    %v1508 = vadd.f32 0.0, %v1507
    %v1509 = vpop.f32.mrf.mxu0
    %v1510 = vadd.f32 0.0, %v1509
    %1511 = vmatprep.mubr.f32.mxu0 0.0
    %1512 = vmatmul.mubr.f32.gmra.mxu0 %v1298
    %v1513 = vpop.f32.mrf.mxu0
    %v1514 = vadd.f32 0.0, %v1513
    %v1515 = vpop.f32.mrf.mxu0
    %v1516 = vadd.f32 0.0, %v1515
    %1517 = vmatprep.mubr.f32.mxu0 0.0
    %1518 = vmatmul.mubr.f32.gmra.mxu0 %v1301
    %v1519 = vpop.f32.mrf.mxu0
    %v1520 = vadd.f32 0.0, %v1519
    %v1521 = vpop.f32.mrf.mxu0
    %v1522 = vadd.f32 0.0, %v1521
    %1523 = vmatprep.mubr.f32.mxu0 0.0
    %1524 = vmatmul.mubr.f32.gmra.mxu0 %v1304
    %v1525 = vpop.f32.mrf.mxu0
    %v1526 = vadd.f32 0.0, %v1525
    %v1527 = vpop.f32.mrf.mxu0
    %v1528 = vadd.f32 0.0, %v1527
    %1529 = vmatprep.mubr.f32.mxu0 0.0
    %1530 = vmatmul.mubr.f32.gmra.mxu0 %v1307
    %v1531 = vpop.f32.mrf.mxu0
    %v1532 = vadd.f32 0.0, %v1531
    %v1533 = vpop.f32.mrf.mxu0
    %v1534 = vadd.f32 0.0, %v1533
    %1535 = vmatprep.mubr.f32.mxu0 0.0
    %1536 = vmatmul.mubr.f32.gmra.mxu0 %v1310
    %v1537 = vpop.f32.mrf.mxu0
    %v1538 = vadd.f32 0.0, %v1537
    %v1539 = vpop.f32.mrf.mxu0
    %v1540 = vadd.f32 0.0, %v1539
    %1541 = vmatprep.mubr.f32.mxu0 0.0
    %1542 = vmatmul.mubr.f32.gmra.mxu0 %v1313
    %v1543 = vpop.f32.mrf.mxu0
    %v1544 = vadd.f32 0.0, %v1543
    %v1545 = vpop.f32.mrf.mxu0
    %v1546 = vadd.f32 0.0, %v1545
    %1547 = vmatprep.mubr.f32.mxu0 0.0
    %1548 = vmatmul.mubr.f32.gmra.mxu0 %v1316
    %v1549 = vpop.f32.mrf.mxu0
    %v1550 = vadd.f32 0.0, %v1549
    %v1551 = vpop.f32.mrf.mxu0
    %v1552 = vadd.f32 0.0, %v1551
    %1553 = vmatprep.mubr.f32.mxu0 0.0
    %1554 = vmatmul.mubr.f32.gmra.mxu0 %v1319
    %v1555 = vpop.f32.mrf.mxu0
    %v1556 = vadd.f32 0.0, %v1555
    %v1557 = vpop.f32.mrf.mxu0
    %v1558 = vadd.f32 0.0, %v1557
    %1559 = vmatprep.mubr.f32.mxu0 0.0
    %1560 = vmatmul.mubr.f32.gmra.mxu0 %v1322
    %v1561 = vpop.f32.mrf.mxu0
    %v1562 = vadd.f32 0.0, %v1561
    %v1563 = vpop.f32.mrf.mxu0
    %v1564 = vadd.f32 0.0, %v1563
    %1565 = vmatprep.mubr.f32.mxu0 0.0
    %1566 = vmatmul.mubr.f32.gmra.mxu0 %v1325
    %v1567 = vpop.f32.mrf.mxu0
    %v1568 = vadd.f32 0.0, %v1567
    %v1569 = vpop.f32.mrf.mxu0
    %v1570 = vadd.f32 0.0, %v1569
    %1571 = vmatprep.mubr.f32.mxu0 0.0
    %1572 = vmatmul.mubr.f32.gmra.mxu0 %v1328
    %v1573 = vpop.f32.mrf.mxu0
    %v1574 = vadd.f32 0.0, %v1573
    %v1575 = vpop.f32.mrf.mxu0
    %v1576 = vadd.f32 0.0, %v1575
    %1577 = vmatprep.mubr.f32.mxu0 0.0
    %1578 = vmatmul.mubr.f32.gmra.mxu0 %v1331
    %v1579 = vpop.f32.mrf.mxu0
    %v1580 = vadd.f32 0.0, %v1579
    %v1581 = vpop.f32.mrf.mxu0
    %v1582 = vadd.f32 0.0, %v1581
    %1583 = vmatprep.mubr.f32.mxu0 0.0
    %1584 = vmatmul.mubr.f32.gmra.mxu0 %v1334
    %v1585 = vpop.f32.mrf.mxu0
    %v1586 = vadd.f32 0.0, %v1585
    %v1587 = vpop.f32.mrf.mxu0
    %v1588 = vadd.f32 0.0, %v1587
    %1589 = vmatprep.mubr.f32.mxu0 0.0
    %1590 = vmatmul.mubr.f32.gmra.mxu0 %v1337
    %v1591 = vpop.f32.mrf.mxu0
    %v1592 = vadd.f32 0.0, %v1591
    %v1593 = vpop.f32.mrf.mxu0
    %v1594 = vadd.f32 0.0, %v1593
    %1595 = vdwg.mxu0
    %v1596 = vadd.f32 %v1138, %v1406
    %v1597 = vadd.f32 %v1139, %v1408
    %v1598 = vadd.f32 %v1140, %v1412
    %v1599 = vadd.f32 %v1141, %v1414
    %v1600 = vadd.f32 %v1142, %v1418
    %v1601 = vadd.f32 %v1143, %v1420
    %v1602 = vadd.f32 %v1144, %v1424
    %v1603 = vadd.f32 %v1145, %v1426
    %v1604 = vadd.f32 %v1146, %v1430
    %v1605 = vadd.f32 %v1147, %v1432
    %v1606 = vadd.f32 %v1148, %v1436
    %v1607 = vadd.f32 %v1149, %v1438
    %v1608 = vadd.f32 %v1150, %v1442
    %v1609 = vadd.f32 %v1151, %v1444
    %v1610 = vadd.f32 %v1152, %v1448
    %v1611 = vadd.f32 %v1153, %v1450
    %v1612 = vadd.f32 %v1154, %v1454
    %v1613 = vadd.f32 %v1155, %v1456
    %v1614 = vadd.f32 %v1156, %v1460
    %v1615 = vadd.f32 %v1157, %v1462
    %v1616 = vadd.f32 %v1158, %v1466
    %v1617 = vadd.f32 %v1159, %v1468
    %v1618 = vadd.f32 %v1160, %v1472
    %v1619 = vadd.f32 %v1161, %v1474
    %v1620 = vadd.f32 %v1162, %v1478
    %v1621 = vadd.f32 %v1163, %v1480
    %v1622 = vadd.f32 %v1164, %v1484
    %v1623 = vadd.f32 %v1165, %v1486
    %v1624 = vadd.f32 %v1166, %v1490
    %v1625 = vadd.f32 %v1167, %v1492
    %v1626 = vadd.f32 %v1168, %v1496
    %v1627 = vadd.f32 %v1169, %v1498
    %v1628 = vadd.f32 %v1170, %v1502
    %v1629 = vadd.f32 %v1171, %v1504
    %v1630 = vadd.f32 %v1172, %v1508
    %v1631 = vadd.f32 %v1173, %v1510
    %v1632 = vadd.f32 %v1174, %v1514
    %v1633 = vadd.f32 %v1175, %v1516
    %v1634 = vadd.f32 %v1176, %v1520
    %v1635 = vadd.f32 %v1177, %v1522
    %v1636 = vadd.f32 %v1178, %v1526
    %v1637 = vadd.f32 %v1179, %v1528
    %v1638 = vadd.f32 %v1180, %v1532
    %v1639 = vadd.f32 %v1181, %v1534
    %v1640 = vadd.f32 %v1182, %v1538
    %v1641 = vadd.f32 %v1183, %v1540
    %v1642 = vadd.f32 %v1184, %v1544
    %v1643 = vadd.f32 %v1185, %v1546
    %v1644 = vadd.f32 %v1186, %v1550
    %v1645 = vadd.f32 %v1187, %v1552
    %v1646 = vadd.f32 %v1188, %v1556
    %v1647 = vadd.f32 %v1189, %v1558
    %v1648 = vadd.f32 %v1190, %v1562
    %v1649 = vadd.f32 %v1191, %v1564
    %v1650 = vadd.f32 %v1192, %v1568
    %v1651 = vadd.f32 %v1193, %v1570
    %v1652 = vadd.f32 %v1194, %v1574
    %v1653 = vadd.f32 %v1195, %v1576
    %v1654 = vadd.f32 %v1196, %v1580
    %v1655 = vadd.f32 %v1197, %v1582
    %v1656 = vadd.f32 %v1198, %v1586
    %v1657 = vadd.f32 %v1199, %v1588
    %v1658 = vadd.f32 %v1200, %v1592
    %v1659 = vadd.f32 %v1201, %v1594
    %v1660 = vld [vmem:[%s2] sm:$0x3]
    %v1662 = vlaneseq
    %v1663 = vshrl.u32 %v1662, 7
    %v1664 = vsub.s32 0, %v1663
    %v1665 = vrot.slane %v1660, %v1664
    %v1666 = vlaneseq
    %v1667 = vshrl.u32 %v1666, 7
    %v1668 = vsub.s32 1, %v1667
    %v1669 = vrot.slane %v1660, %v1668
    %v1672 = vadd.f32 %v1596, %v1665
    %v1673 = vadd.f32 %v1597, %v1669
    %v1674 = vadd.f32 %v1598, %v1665
    %v1675 = vadd.f32 %v1599, %v1669
    %v1676 = vadd.f32 %v1600, %v1665
    %v1677 = vadd.f32 %v1601, %v1669
    %v1678 = vadd.f32 %v1602, %v1665
    %v1679 = vadd.f32 %v1603, %v1669
    %v1680 = vadd.f32 %v1604, %v1665
    %v1681 = vadd.f32 %v1605, %v1669
    %v1682 = vadd.f32 %v1606, %v1665
    %v1683 = vadd.f32 %v1607, %v1669
    %v1684 = vadd.f32 %v1608, %v1665
    %v1685 = vadd.f32 %v1609, %v1669
    %v1686 = vadd.f32 %v1610, %v1665
    %v1687 = vadd.f32 %v1611, %v1669
    %v1688 = vadd.f32 %v1612, %v1665
    %v1689 = vadd.f32 %v1613, %v1669
    %v1690 = vadd.f32 %v1614, %v1665
    %v1691 = vadd.f32 %v1615, %v1669
    %v1692 = vadd.f32 %v1616, %v1665
    %v1693 = vadd.f32 %v1617, %v1669
    %v1694 = vadd.f32 %v1618, %v1665
    %v1695 = vadd.f32 %v1619, %v1669
    %v1696 = vadd.f32 %v1620, %v1665
    %v1697 = vadd.f32 %v1621, %v1669
    %v1698 = vadd.f32 %v1622, %v1665
    %v1699 = vadd.f32 %v1623, %v1669
    %v1700 = vadd.f32 %v1624, %v1665
    %v1701 = vadd.f32 %v1625, %v1669
    %v1702 = vadd.f32 %v1626, %v1665
    %v1703 = vadd.f32 %v1627, %v1669
    %v1704 = vadd.f32 %v1628, %v1665
    %v1705 = vadd.f32 %v1629, %v1669
    %v1706 = vadd.f32 %v1630, %v1665
    %v1707 = vadd.f32 %v1631, %v1669
    %v1708 = vadd.f32 %v1632, %v1665
    %v1709 = vadd.f32 %v1633, %v1669
    %v1710 = vadd.f32 %v1634, %v1665
    %v1711 = vadd.f32 %v1635, %v1669
    %v1712 = vadd.f32 %v1636, %v1665
    %v1713 = vadd.f32 %v1637, %v1669
    %v1714 = vadd.f32 %v1638, %v1665
    %v1715 = vadd.f32 %v1639, %v1669
    %v1716 = vadd.f32 %v1640, %v1665
    %v1717 = vadd.f32 %v1641, %v1669
    %v1718 = vadd.f32 %v1642, %v1665
    %v1719 = vadd.f32 %v1643, %v1669
    %v1720 = vadd.f32 %v1644, %v1665
    %v1721 = vadd.f32 %v1645, %v1669
    %v1722 = vadd.f32 %v1646, %v1665
    %v1723 = vadd.f32 %v1647, %v1669
    %v1724 = vadd.f32 %v1648, %v1665
    %v1725 = vadd.f32 %v1649, %v1669
    %v1726 = vadd.f32 %v1650, %v1665
    %v1727 = vadd.f32 %v1651, %v1669
    %v1728 = vadd.f32 %v1652, %v1665
    %v1729 = vadd.f32 %v1653, %v1669
    %v1730 = vadd.f32 %v1654, %v1665
    %v1731 = vadd.f32 %v1655, %v1669
    %v1732 = vadd.f32 %v1656, %v1665
    %v1733 = vadd.f32 %v1657, %v1669
    %v1734 = vadd.f32 %v1658, %v1665
    %v1735 = vadd.f32 %v1659, %v1669
    %v1736 = vmax.f32 %v1672, 0.0
    %v1737 = vmax.f32 %v1673, 0.0
    %v1738 = vmax.f32 %v1674, 0.0
    %v1739 = vmax.f32 %v1675, 0.0
    %v1740 = vmax.f32 %v1676, 0.0
    %v1741 = vmax.f32 %v1677, 0.0
    %v1742 = vmax.f32 %v1678, 0.0
    %v1743 = vmax.f32 %v1679, 0.0
    %v1744 = vmax.f32 %v1680, 0.0
    %v1745 = vmax.f32 %v1681, 0.0
    %v1746 = vmax.f32 %v1682, 0.0
    %v1747 = vmax.f32 %v1683, 0.0
    %v1748 = vmax.f32 %v1684, 0.0
    %v1749 = vmax.f32 %v1685, 0.0
    %v1750 = vmax.f32 %v1686, 0.0
    %v1751 = vmax.f32 %v1687, 0.0
    %v1752 = vmax.f32 %v1688, 0.0
    %v1753 = vmax.f32 %v1689, 0.0
    %v1754 = vmax.f32 %v1690, 0.0
    %v1755 = vmax.f32 %v1691, 0.0
    %v1756 = vmax.f32 %v1692, 0.0
    %v1757 = vmax.f32 %v1693, 0.0
    %v1758 = vmax.f32 %v1694, 0.0
    %v1759 = vmax.f32 %v1695, 0.0
    %v1760 = vmax.f32 %v1696, 0.0
    %v1761 = vmax.f32 %v1697, 0.0
    %v1762 = vmax.f32 %v1698, 0.0
    %v1763 = vmax.f32 %v1699, 0.0
    %v1764 = vmax.f32 %v1700, 0.0
    %v1765 = vmax.f32 %v1701, 0.0
    %v1766 = vmax.f32 %v1702, 0.0
    %v1767 = vmax.f32 %v1703, 0.0
    %v1768 = vmax.f32 %v1704, 0.0
    %v1769 = vmax.f32 %v1705, 0.0
    %v1770 = vmax.f32 %v1706, 0.0
    %v1771 = vmax.f32 %v1707, 0.0
    %v1772 = vmax.f32 %v1708, 0.0
    %v1773 = vmax.f32 %v1709, 0.0
    %v1774 = vmax.f32 %v1710, 0.0
    %v1775 = vmax.f32 %v1711, 0.0
    %v1776 = vmax.f32 %v1712, 0.0
    %v1777 = vmax.f32 %v1713, 0.0
    %v1778 = vmax.f32 %v1714, 0.0
    %v1779 = vmax.f32 %v1715, 0.0
    %v1780 = vmax.f32 %v1716, 0.0
    %v1781 = vmax.f32 %v1717, 0.0
    %v1782 = vmax.f32 %v1718, 0.0
    %v1783 = vmax.f32 %v1719, 0.0
    %v1784 = vmax.f32 %v1720, 0.0
    %v1785 = vmax.f32 %v1721, 0.0
    %v1786 = vmax.f32 %v1722, 0.0
    %v1787 = vmax.f32 %v1723, 0.0
    %v1788 = vmax.f32 %v1724, 0.0
    %v1789 = vmax.f32 %v1725, 0.0
    %v1790 = vmax.f32 %v1726, 0.0
    %v1791 = vmax.f32 %v1727, 0.0
    %v1792 = vmax.f32 %v1728, 0.0
    %v1793 = vmax.f32 %v1729, 0.0
    %v1794 = vmax.f32 %v1730, 0.0
    %v1795 = vmax.f32 %v1731, 0.0
    %v1796 = vmax.f32 %v1732, 0.0
    %v1797 = vmax.f32 %v1733, 0.0
    %v1798 = vmax.f32 %v1734, 0.0
    %v1799 = vmax.f32 %v1735, 0.0
    %1800 = vst [vmem:[#allocation2] sm:$0xff] %v1736
    %1801 = vst.msk [vmem:[#allocation2 + $0x8] sm:$0xff] %vm487, %v1737
    %1802 = vst [vmem:[#allocation2 + $0x10] sm:$0xff] %v1738
    %1803 = vst.msk [vmem:[#allocation2 + $0x18] sm:$0xff] %vm487, %v1739
    %1804 = vst [vmem:[#allocation2 + $0x20] sm:$0xff] %v1740
    %1805 = vst.msk [vmem:[#allocation2 + $0x28] sm:$0xff] %vm487, %v1741
    %1806 = vst [vmem:[#allocation2 + $0x30] sm:$0xff] %v1742
    %1807 = vst.msk [vmem:[#allocation2 + $0x38] sm:$0xff] %vm487, %v1743
    %1808 = vst [vmem:[#allocation2 + $0x40] sm:$0xff] %v1744
    %1809 = vst.msk [vmem:[#allocation2 + $0x48] sm:$0xff] %vm487, %v1745
    %1810 = vst [vmem:[#allocation2 + $0x50] sm:$0xff] %v1746
    %1811 = vst.msk [vmem:[#allocation2 + $0x58] sm:$0xff] %vm487, %v1747
    %1812 = vst [vmem:[#allocation2 + $0x60] sm:$0xff] %v1748
    %1813 = vst.msk [vmem:[#allocation2 + $0x68] sm:$0xff] %vm487, %v1749
    %1814 = vst [vmem:[#allocation2 + $0x70] sm:$0xff] %v1750
    %1815 = vst.msk [vmem:[#allocation2 + $0x78] sm:$0xff] %vm487, %v1751
    %1816 = vst [vmem:[#allocation2 + $0x80] sm:$0xff] %v1752
    %1817 = vst.msk [vmem:[#allocation2 + $0x88] sm:$0xff] %vm487, %v1753
    %1818 = vst [vmem:[#allocation2 + $0x90] sm:$0xff] %v1754
    %1819 = vst.msk [vmem:[#allocation2 + $0x98] sm:$0xff] %vm487, %v1755
    %1820 = vst [vmem:[#allocation2 + $0xa0] sm:$0xff] %v1756
    %1821 = vst.msk [vmem:[#allocation2 + $0xa8] sm:$0xff] %vm487, %v1757
    %1822 = vst [vmem:[#allocation2 + $0xb0] sm:$0xff] %v1758
    %1823 = vst.msk [vmem:[#allocation2 + $0xb8] sm:$0xff] %vm487, %v1759
    %1824 = vst [vmem:[#allocation2 + $0xc0] sm:$0xff] %v1760
    %1825 = vst.msk [vmem:[#allocation2 + $0xc8] sm:$0xff] %vm487, %v1761
    %1826 = vst [vmem:[#allocation2 + $0xd0] sm:$0xff] %v1762
    %1827 = vst.msk [vmem:[#allocation2 + $0xd8] sm:$0xff] %vm487, %v1763
    %1828 = vst [vmem:[#allocation2 + $0xe0] sm:$0xff] %v1764
    %1829 = vst.msk [vmem:[#allocation2 + $0xe8] sm:$0xff] %vm487, %v1765
    %1830 = vst [vmem:[#allocation2 + $0xf0] sm:$0xff] %v1766
    %1831 = vst.msk [vmem:[#allocation2 + $0xf8] sm:$0xff] %vm487, %v1767
    %1832 = vst [vmem:[#allocation2 + $0x100] sm:$0xff] %v1768
    %1833 = vst.msk [vmem:[#allocation2 + $0x108] sm:$0xff] %vm487, %v1769
    %1834 = vst [vmem:[#allocation2 + $0x110] sm:$0xff] %v1770
    %1835 = vst.msk [vmem:[#allocation2 + $0x118] sm:$0xff] %vm487, %v1771
    %1836 = vst [vmem:[#allocation2 + $0x120] sm:$0xff] %v1772
    %1837 = vst.msk [vmem:[#allocation2 + $0x128] sm:$0xff] %vm487, %v1773
    %1838 = vst [vmem:[#allocation2 + $0x130] sm:$0xff] %v1774
    %1839 = vst.msk [vmem:[#allocation2 + $0x138] sm:$0xff] %vm487, %v1775
    %1840 = vst [vmem:[#allocation2 + $0x140] sm:$0xff] %v1776
    %1841 = vst.msk [vmem:[#allocation2 + $0x148] sm:$0xff] %vm487, %v1777
    %1842 = vst [vmem:[#allocation2 + $0x150] sm:$0xff] %v1778
    %1843 = vst.msk [vmem:[#allocation2 + $0x158] sm:$0xff] %vm487, %v1779
    %1844 = vst [vmem:[#allocation2 + $0x160] sm:$0xff] %v1780
    %1845 = vst.msk [vmem:[#allocation2 + $0x168] sm:$0xff] %vm487, %v1781
    %1846 = vst [vmem:[#allocation2 + $0x170] sm:$0xff] %v1782
    %1847 = vst.msk [vmem:[#allocation2 + $0x178] sm:$0xff] %vm487, %v1783
    %1848 = vst [vmem:[#allocation2 + $0x180] sm:$0xff] %v1784
    %1849 = vst.msk [vmem:[#allocation2 + $0x188] sm:$0xff] %vm487, %v1785
    %1850 = vst [vmem:[#allocation2 + $0x190] sm:$0xff] %v1786
    %1851 = vst.msk [vmem:[#allocation2 + $0x198] sm:$0xff] %vm487, %v1787
    %1852 = vst [vmem:[#allocation2 + $0x1a0] sm:$0xff] %v1788
    %1853 = vst.msk [vmem:[#allocation2 + $0x1a8] sm:$0xff] %vm487, %v1789
    %1854 = vst [vmem:[#allocation2 + $0x1b0] sm:$0xff] %v1790
    %1855 = vst.msk [vmem:[#allocation2 + $0x1b8] sm:$0xff] %vm487, %v1791
    %1856 = vst [vmem:[#allocation2 + $0x1c0] sm:$0xff] %v1792
    %1857 = vst.msk [vmem:[#allocation2 + $0x1c8] sm:$0xff] %vm487, %v1793
    %1858 = vst [vmem:[#allocation2 + $0x1d0] sm:$0xff] %v1794
    %1859 = vst.msk [vmem:[#allocation2 + $0x1d8] sm:$0xff] %vm487, %v1795
    %1860 = vst [vmem:[#allocation2 + $0x1e0] sm:$0xff] %v1796
    %1861 = vst.msk [vmem:[#allocation2 + $0x1e8] sm:$0xff] %vm487, %v1797
    %1862 = vst [vmem:[#allocation2 + $0x1f0] sm:$0x3f] %v1798
    %1863 = vst.msk [vmem:[#allocation2 + $0x1f8] sm:$0x3f] %vm550, %v1799
    %v1864 = vld [vmem:[#allocation2] sm:$0xff]
    %v1865 = vld [vmem:[#allocation2 + $0x8] sm:$0xff]
    %v1866 = vld [vmem:[#allocation2 + $0x10] sm:$0xff]
    %v1867 = vld [vmem:[#allocation2 + $0x18] sm:$0xff]
    %v1868 = vld [vmem:[#allocation2 + $0x20] sm:$0xff]
    %v1869 = vld [vmem:[#allocation2 + $0x28] sm:$0xff]
    %v1870 = vld [vmem:[#allocation2 + $0x30] sm:$0x3f]
    %v1871 = vld [vmem:[#allocation2 + $0x38] sm:$0x3f]
    %vm1880 = vcmask 1046528
    %v1881 = vrot.slane %v1864, 1
    %v1882 = vrot.slane %v1866, 1
    %v1883 = vsel %vm1880, %v1881, %v1882
    %v1884 = vrot.slane %v1865, 1
    %v1885 = vrot.slane %v1867, 1
    %v1886 = vsel %vm1880, %v1884, %v1885
    %v1887 = vrot.slane %v1868, 1
    %v1888 = vsel %vm1880, %v1882, %v1887
    %v1889 = vrot.slane %v1869, 1
    %v1890 = vsel %vm1880, %v1885, %v1889
    %v1891 = vrot.slane %v1870, 1
    %v1892 = vsel %vm1880, %v1887, %v1891
    %v1893 = vrot.slane %v1871, 1
    %v1894 = vsel %vm1880, %v1889, %v1893
    %v1903 = vmax.f32 %v1864, %v1883
    %v1904 = vmax.f32 %v1865, %v1886
    %v1905 = vmax.f32 %v1866, %v1888
    %v1906 = vmax.f32 %v1867, %v1890
    %v1907 = vmax.f32 %v1868, %v1892
    %v1908 = vmax.f32 %v1869, %v1894
    %v1909 = vmax.f32 %v1870, %v1891
    %v1910 = vmax.f32 %v1871, %v1893
    %1919 = vrot.lane.b32.xlu0 %v1903, 122
    %v1920 = vpop.permute.xlu0 %1919
    %1921 = vrot.lane.b32.xlu0 %v1904, 122
    %v1922 = vpop.permute.xlu0 %1921
    %1923 = vrot.lane.b32.xlu0 %v1905, 122
    %v1924 = vpop.permute.xlu0 %1923
    %1925 = vrot.lane.b32.xlu0 %v1906, 122
    %v1926 = vpop.permute.xlu0 %1925
    %1927 = vrot.lane.b32.xlu0 %v1907, 122
    %v1928 = vpop.permute.xlu0 %1927
    %1929 = vrot.lane.b32.xlu0 %v1908, 122
    %v1930 = vpop.permute.xlu0 %1929
    %1931 = vrot.lane.b32.xlu0 %v1909, 122
    %v1932 = vpop.permute.xlu0 %1931
    %1933 = vrot.lane.b32.xlu0 %v1910, 122
    %v1934 = vpop.permute.xlu0 %1933
    %vm1935 = vcmask 998400
    %v1936 = vsel %vm1935, %v1920, %v1922
    %v1937 = vsel %vm1935, %v1924, %v1926
    %v1938 = vsel %vm1935, %v1928, %v1930
    %v1939 = vsel %vm1935, %v1932, %v1934
    %v1948 = vmax.f32 %v1903, %v1936
    %v1949 = vmax.f32 %v1904, %v1922
    %v1950 = vmax.f32 %v1905, %v1937
    %v1951 = vmax.f32 %v1906, %v1926
    %v1952 = vmax.f32 %v1907, %v1938
    %v1953 = vmax.f32 %v1908, %v1930
    %v1954 = vmax.f32 %v1909, %v1939
    %v1955 = vmax.f32 %v1910, %v1934
    %v1956 = vld [vmem:[%s5] sm:$0xff]
    %v1957 = vld [vmem:[%s5 + $0x8] sm:$0x7f]
    %vm1958 = vcmask 236544
    %v1960 = vsel %vm1958, %v1956, 0
    %v1963 = vsel %vm1958, %v1957, 0
    %vm1965 = vcmask 1044480
    %v1967 = vsel %vm1965, %v1954, 0
    %v1970 = vsel %vm1965, %v1955, 0
    %1972 = vmatprep.subr.mxu0 0.0
    %1973 = vmatpush1.msra.mxu0 0.0
    %1974 = vmatprep.subr.mxu0 0.0
    %1975 = vmatpush1.msra.mxu0 0.0
    %1976 = vmatprep.subr.mxu0 0.0
    %1977 = vmatpush1.msra.mxu0 0.0
    %1978 = vmatprep.subr.mxu0 0.0
    %1979 = vmatpush1.msra.mxu0 0.0
    %1980 = vmatprep.subr.mxu0 0.0
    %1981 = vmatpush1.msra.mxu0 0.0
    %1982 = vmatprep.subr.mxu0 0.0
    %1983 = vmatpush1.msra.mxu0 0.0
    %1984 = vmatprep.subr.mxu0 0.0
    %1985 = vmatpush1.msra.mxu0 0.0
    %1986 = vmatprep.subr.mxu0 0.0
    %1987 = vmatpush1.msra.mxu0 0.0
    %1988 = vmatprep.subr.mxu0 0.0
    %1989 = vmatpush1.msra.mxu0 0.0
    %1990 = vmatprep.subr.mxu0 0.0
    %1991 = vmatpush1.msra.mxu0 0.0
    %1992 = vmatprep.subr.mxu0 0.0
    %1993 = vmatpush1.msra.mxu0 0.0
    %1994 = vmatprep.subr.mxu0 0.0
    %1995 = vmatpush1.msra.mxu0 0.0
    %1996 = vmatprep.subr.mxu0 %v1970
    %1997 = vmatpush1.msra.mxu0 %v1967
    %1998 = vmatprep.subr.mxu0 %v1953
    %1999 = vmatpush1.msra.mxu0 %v1952
    %2000 = vmatprep.subr.mxu0 %v1951
    %2001 = vmatpush1.msra.mxu0 %v1950
    %2002 = vmatprep.subr.mxu0 %v1949
    %2003 = vmatpush1.msra.mxu0 %v1948
    %2004 = vmatprep.subr.mxu0 0.0
    %2005 = vmatpush2.msra.mxu0 0.0
    %2006 = vmatprep.subr.mxu0 0.0
    %2007 = vmatpush2.msra.mxu0 0.0
    %2008 = vmatprep.subr.mxu0 0.0
    %2009 = vmatpush2.msra.mxu0 0.0
    %2010 = vmatprep.subr.mxu0 0.0
    %2011 = vmatpush2.msra.mxu0 0.0
    %2012 = vmatprep.subr.mxu0 0.0
    %2013 = vmatpush2.msra.mxu0 0.0
    %2014 = vmatprep.subr.mxu0 0.0
    %2015 = vmatpush2.msra.mxu0 0.0
    %2016 = vmatprep.subr.mxu0 0.0
    %2017 = vmatpush2.msra.mxu0 0.0
    %2018 = vmatprep.subr.mxu0 0.0
    %2019 = vmatpush2.msra.mxu0 0.0
    %2020 = vmatprep.subr.mxu0 0.0
    %2021 = vmatpush2.msra.mxu0 0.0
    %2022 = vmatprep.subr.mxu0 0.0
    %2023 = vmatpush2.msra.mxu0 0.0
    %2024 = vmatprep.subr.mxu0 0.0
    %2025 = vmatpush2.msra.mxu0 0.0
    %2026 = vmatprep.subr.mxu0 0.0
    %2027 = vmatpush2.msra.mxu0 0.0
    %2028 = vmatprep.subr.mxu0 0.0
    %2029 = vmatpush2.msra.mxu0 0.0
    %2030 = vmatprep.subr.mxu0 0.0
    %2031 = vmatpush2.msra.mxu0 0.0
    %2032 = vmatprep.subr.mxu0 0.0
    %2033 = vmatpush2.msra.mxu0 0.0
    %2034 = vmatprep.subr.mxu0 0.0
    %2035 = vmatpush2.msra.mxu0 0.0
    %2036 = vmatprep.mubr.f32.mxu0 0.0
    %2037 = vmatmul.mubr.f32.gmra.mxu0 %v1960
    %v2038 = vpop.f32.mrf.mxu0
    %v2039 = vadd.f32 0.0, %v2038
    %v2040 = vpop.f32.mrf.mxu0
    %v2041 = vadd.f32 0.0, %v2040
    %2042 = vmatprep.mubr.f32.mxu0 0.0
    %2043 = vmatmul.mubr.f32.gmra.mxu0 %v1963
    %v2044 = vpop.f32.mrf.mxu0
    %v2045 = vadd.f32 0.0, %v2044
    %v2046 = vpop.f32.mrf.mxu0
    %v2047 = vadd.f32 0.0, %v2046
    %2048 = vdwg.mxu0
    %v2049 = vld [vmem:[#allocation7] sm:$0xff]
    %v2050 = vld [vmem:[#allocation7 + $0x8] sm:$0xff]
    %v2051 = vld [vmem:[#allocation7 + $0x10] sm:$0xff]
    %v2052 = vld [vmem:[#allocation7 + $0x18] sm:$0xff]
    %v2053 = vld [vmem:[#allocation7 + $0x20] sm:$0xff]
    %v2054 = vld [vmem:[#allocation7 + $0x28] sm:$0xff]
    %v2055 = vld [vmem:[#allocation7 + $0x30] sm:$0xff]
    %v2056 = vld [vmem:[#allocation7 + $0x38] sm:$0xff]
    %v2057 = vld [vmem:[#allocation7 + $0x40] sm:$0xff]
    %v2058 = vld [vmem:[#allocation7 + $0x48] sm:$0xff]
    %v2059 = vld [vmem:[#allocation7 + $0x50] sm:$0xff]
    %v2060 = vld [vmem:[#allocation7 + $0x58] sm:$0xff]
    %v2061 = vld [vmem:[#allocation7 + $0x60] sm:$0xff]
    %v2062 = vld [vmem:[#allocation7 + $0x68] sm:$0xff]
    %v2063 = vld [vmem:[#allocation7 + $0x70] sm:$0xff]
    %v2064 = vld [vmem:[#allocation7 + $0x78] sm:$0xff]
    %v2065 = vld [vmem:[#allocation7 + $0x80] sm:$0xff]
    %v2066 = vld [vmem:[#allocation7 + $0x88] sm:$0xff]
    %v2067 = vld [vmem:[#allocation7 + $0x90] sm:$0xff]
    %v2068 = vld [vmem:[#allocation7 + $0x98] sm:$0xff]
    %v2069 = vld [vmem:[#allocation7 + $0xa0] sm:$0xff]
    %v2070 = vld [vmem:[#allocation7 + $0xa8] sm:$0x3f]
    %vm2071 = vcmask 375808
    %v2073 = vsel %vm2071, %v2041, 0
    %v2076 = vsel %vm2071, %v2047, 0
    %vm2078 = vcmask 1045504
    %v2080 = vsel %vm2078, %v2070, 0
    %2082 = vmatprep.subr.mxu0 0.0
    %2083 = vmatpush1.msra.mxu0 %v2064
    %2084 = vmatprep.subr.mxu0 0.0
    %2085 = vmatpush1.msra.mxu0 %v2063
    %2086 = vmatprep.subr.mxu0 0.0
    %2087 = vmatpush1.msra.mxu0 %v2062
    %2088 = vmatprep.subr.mxu0 0.0
    %2089 = vmatpush1.msra.mxu0 %v2061
    %2090 = vmatprep.subr.mxu0 0.0
    %2091 = vmatpush1.msra.mxu0 %v2060
    %2092 = vmatprep.subr.mxu0 0.0
    %2093 = vmatpush1.msra.mxu0 %v2059
    %2094 = vmatprep.subr.mxu0 0.0
    %2095 = vmatpush1.msra.mxu0 %v2058
    %2096 = vmatprep.subr.mxu0 0.0
    %2097 = vmatpush1.msra.mxu0 %v2057
    %2098 = vmatprep.subr.mxu0 0.0
    %2099 = vmatpush1.msra.mxu0 %v2056
    %2100 = vmatprep.subr.mxu0 0.0
    %2101 = vmatpush1.msra.mxu0 %v2055
    %2102 = vmatprep.subr.mxu0 0.0
    %2103 = vmatpush1.msra.mxu0 %v2054
    %2104 = vmatprep.subr.mxu0 0.0
    %2105 = vmatpush1.msra.mxu0 %v2053
    %2106 = vmatprep.subr.mxu0 0.0
    %2107 = vmatpush1.msra.mxu0 %v2052
    %2108 = vmatprep.subr.mxu0 0.0
    %2109 = vmatpush1.msra.mxu0 %v2051
    %2110 = vmatprep.subr.mxu0 0.0
    %2111 = vmatpush1.msra.mxu0 %v2050
    %2112 = vmatprep.subr.mxu0 0.0
    %2113 = vmatpush1.msra.mxu0 %v2049
    %2114 = vmatprep.subr.mxu0 0.0
    %2115 = vmatpush2.msra.mxu0 0.0
    %2116 = vmatprep.subr.mxu0 0.0
    %2117 = vmatpush2.msra.mxu0 0.0
    %2118 = vmatprep.subr.mxu0 0.0
    %2119 = vmatpush2.msra.mxu0 0.0
    %2120 = vmatprep.subr.mxu0 0.0
    %2121 = vmatpush2.msra.mxu0 0.0
    %2122 = vmatprep.subr.mxu0 0.0
    %2123 = vmatpush2.msra.mxu0 0.0
    %2124 = vmatprep.subr.mxu0 0.0
    %2125 = vmatpush2.msra.mxu0 0.0
    %2126 = vmatprep.subr.mxu0 0.0
    %2127 = vmatpush2.msra.mxu0 0.0
    %2128 = vmatprep.subr.mxu0 0.0
    %2129 = vmatpush2.msra.mxu0 0.0
    %2130 = vmatprep.subr.mxu0 0.0
    %2131 = vmatpush2.msra.mxu0 0.0
    %2132 = vmatprep.subr.mxu0 0.0
    %2133 = vmatpush2.msra.mxu0 0.0
    %2134 = vmatprep.subr.mxu0 0.0
    %2135 = vmatpush2.msra.mxu0 %v2080
    %2136 = vmatprep.subr.mxu0 0.0
    %2137 = vmatpush2.msra.mxu0 %v2069
    %2138 = vmatprep.subr.mxu0 0.0
    %2139 = vmatpush2.msra.mxu0 %v2068
    %2140 = vmatprep.subr.mxu0 0.0
    %2141 = vmatpush2.msra.mxu0 %v2067
    %2142 = vmatprep.subr.mxu0 0.0
    %2143 = vmatpush2.msra.mxu0 %v2066
    %2144 = vmatprep.subr.mxu0 0.0
    %2145 = vmatpush2.msra.mxu0 %v2065
    %2146 = vmatprep.mubr.f32.mxu0 %v2073
    %2147 = vmatmul.mubr.f32.gmra.mxu0 %v2039
    %v2148 = vpop.f32.mrf.mxu0
    %v2149 = vadd.f32 0.0, %v2148
    %v2150 = vpop.f32.mrf.mxu0
    %2151 = vmatprep.mubr.f32.mxu0 %v2076
    %2152 = vmatmul.mubr.f32.gmra.mxu0 %v2045
    %v2153 = vpop.f32.mrf.mxu0
    %v2154 = vadd.f32 0.0, %v2153
    %v2155 = vpop.f32.mrf.mxu0
    %2156 = vdwg.mxu0
    %v2157 = vld [vmem:[#allocation4] sm:$0xff]
    %v2158 = vld [vmem:[#allocation4 + $0x8] sm:$0xff]
    %v2159 = vld [vmem:[#allocation4 + $0x10] sm:$0xff]
    %v2160 = vld [vmem:[#allocation4 + $0x18] sm:$0xff]
    %v2161 = vld [vmem:[#allocation4 + $0x20] sm:$0xff]
    %v2162 = vld [vmem:[#allocation4 + $0x28] sm:$0xff]
    %v2163 = vld [vmem:[#allocation4 + $0x30] sm:$0xff]
    %v2164 = vld [vmem:[#allocation4 + $0x38] sm:$0xff]
    %v2165 = vld [vmem:[#allocation4 + $0x40] sm:$0xff]
    %v2166 = vld [vmem:[#allocation4 + $0x48] sm:$0xff]
    %v2167 = vld [vmem:[#allocation4 + $0x50] sm:$0xff]
    %v2168 = vld [vmem:[#allocation4 + $0x58] sm:$0xff]
    %v2169 = vld [vmem:[#allocation4 + $0x60] sm:$0xff]
    %v2170 = vld [vmem:[#allocation4 + $0x68] sm:$0xff]
    %v2171 = vld [vmem:[#allocation4 + $0x70] sm:$0xff]
    %v2172 = vld [vmem:[#allocation4 + $0x78] sm:$0xff]
    %v2173 = vld [vmem:[#allocation4 + $0x80] sm:$0xff]
    %v2174 = vld [vmem:[#allocation4 + $0x88] sm:$0xff]
    %v2175 = vld [vmem:[#allocation4 + $0x90] sm:$0xff]
    %v2176 = vld [vmem:[#allocation4 + $0x98] sm:$0xff]
    %v2177 = vld [vmem:[#allocation4 + $0xa0] sm:$0xff]
    %v2178 = vld [vmem:[#allocation4 + $0xa8] sm:$0xff]
    %v2179 = vld [vmem:[#allocation4 + $0xb0] sm:$0x3]
    %v2180 = vld [vmem:[#allocation4 + $0xb8] sm:$0x3]
    %s2181 = scalar_lea.vmem [#allocation4], 192
    %v2182 = vld [vmem:[%s2181] sm:$0xff]
    %v2183 = vld [vmem:[%s2181 + $0x8] sm:$0xff]
    %v2184 = vld [vmem:[%s2181 + $0x10] sm:$0xff]
    %v2185 = vld [vmem:[%s2181 + $0x18] sm:$0xff]
    %v2186 = vld [vmem:[%s2181 + $0x20] sm:$0xff]
    %v2187 = vld [vmem:[%s2181 + $0x28] sm:$0xff]
    %v2188 = vld [vmem:[%s2181 + $0x30] sm:$0xff]
    %v2189 = vld [vmem:[%s2181 + $0x38] sm:$0xff]
    %v2190 = vld [vmem:[%s2181 + $0x40] sm:$0xff]
    %v2191 = vld [vmem:[%s2181 + $0x48] sm:$0xff]
    %v2192 = vld [vmem:[%s2181 + $0x50] sm:$0xff]
    %v2193 = vld [vmem:[%s2181 + $0x58] sm:$0xff]
    %v2194 = vld [vmem:[%s2181 + $0x60] sm:$0xff]
    %v2195 = vld [vmem:[%s2181 + $0x68] sm:$0xff]
    %v2196 = vld [vmem:[%s2181 + $0x70] sm:$0xff]
    %v2197 = vld [vmem:[%s2181 + $0x78] sm:$0xff]
    %v2198 = vld [vmem:[%s2181 + $0x80] sm:$0xff]
    %v2199 = vld [vmem:[%s2181 + $0x88] sm:$0xff]
    %v2200 = vld [vmem:[%s2181 + $0x90] sm:$0xff]
    %v2201 = vld [vmem:[%s2181 + $0x98] sm:$0xff]
    %v2202 = vld [vmem:[%s2181 + $0xa0] sm:$0xff]
    %v2203 = vld [vmem:[%s2181 + $0xa8] sm:$0xff]
    %v2204 = vld [vmem:[%s2181 + $0xb0] sm:$0x3]
    %v2205 = vld [vmem:[%s2181 + $0xb8] sm:$0x3]
    %v2208 = vrot.slane %v2149, 1
    %v2209 = vrot.slane %v2154, 1
    %v2210 = vsel %vm1880, %v2208, %v2209
    %vm2211 = vcmask 736256
    %v2212 = vsel %vm2211, %v2210, 0
    %v2214 = vsel %vm2211, %v2209, 0
    %vm2216 = vcmask 1041408
    %v2218 = vsel %vm2216, %v2204, 0
    %v2221 = vsel %vm2216, %v2205, 0
    %2223 = vmatprep.subr.mxu0 0.0
    %2224 = vmatpush1.msra.mxu0 0.0
    %2225 = vmatprep.subr.mxu0 0.0
    %2226 = vmatpush1.msra.mxu0 0.0
    %2227 = vmatprep.subr.mxu0 0.0
    %2228 = vmatpush1.msra.mxu0 0.0
    %2229 = vmatprep.subr.mxu0 0.0
    %2230 = vmatpush1.msra.mxu0 0.0
    %2231 = vmatprep.subr.mxu0 %v2221
    %2232 = vmatpush1.msra.mxu0 %v2218
    %2233 = vmatprep.subr.mxu0 %v2203
    %2234 = vmatpush1.msra.mxu0 %v2202
    %2235 = vmatprep.subr.mxu0 %v2201
    %2236 = vmatpush1.msra.mxu0 %v2200
    %2237 = vmatprep.subr.mxu0 %v2199
    %2238 = vmatpush1.msra.mxu0 %v2198
    %2239 = vmatprep.subr.mxu0 %v2197
    %2240 = vmatpush1.msra.mxu0 %v2196
    %2241 = vmatprep.subr.mxu0 %v2195
    %2242 = vmatpush1.msra.mxu0 %v2194
    %2243 = vmatprep.subr.mxu0 %v2193
    %2244 = vmatpush1.msra.mxu0 %v2192
    %2245 = vmatprep.subr.mxu0 %v2191
    %2246 = vmatpush1.msra.mxu0 %v2190
    %2247 = vmatprep.subr.mxu0 %v2189
    %2248 = vmatpush1.msra.mxu0 %v2188
    %2249 = vmatprep.subr.mxu0 %v2187
    %2250 = vmatpush1.msra.mxu0 %v2186
    %2251 = vmatprep.subr.mxu0 %v2185
    %2252 = vmatpush1.msra.mxu0 %v2184
    %2253 = vmatprep.subr.mxu0 %v2183
    %2254 = vmatpush1.msra.mxu0 %v2182
    %2255 = vmatprep.subr.mxu0 0.0
    %2256 = vmatpush2.msra.mxu0 0.0
    %2257 = vmatprep.subr.mxu0 0.0
    %2258 = vmatpush2.msra.mxu0 0.0
    %2259 = vmatprep.subr.mxu0 0.0
    %2260 = vmatpush2.msra.mxu0 0.0
    %2261 = vmatprep.subr.mxu0 0.0
    %2262 = vmatpush2.msra.mxu0 0.0
    %2263 = vmatprep.subr.mxu0 0.0
    %2264 = vmatpush2.msra.mxu0 0.0
    %2265 = vmatprep.subr.mxu0 0.0
    %2266 = vmatpush2.msra.mxu0 0.0
    %2267 = vmatprep.subr.mxu0 0.0
    %2268 = vmatpush2.msra.mxu0 0.0
    %2269 = vmatprep.subr.mxu0 0.0
    %2270 = vmatpush2.msra.mxu0 0.0
    %2271 = vmatprep.subr.mxu0 0.0
    %2272 = vmatpush2.msra.mxu0 0.0
    %2273 = vmatprep.subr.mxu0 0.0
    %2274 = vmatpush2.msra.mxu0 0.0
    %2275 = vmatprep.subr.mxu0 0.0
    %2276 = vmatpush2.msra.mxu0 0.0
    %2277 = vmatprep.subr.mxu0 0.0
    %2278 = vmatpush2.msra.mxu0 0.0
    %2279 = vmatprep.subr.mxu0 0.0
    %2280 = vmatpush2.msra.mxu0 0.0
    %2281 = vmatprep.subr.mxu0 0.0
    %2282 = vmatpush2.msra.mxu0 0.0
    %2283 = vmatprep.subr.mxu0 0.0
    %2284 = vmatpush2.msra.mxu0 0.0
    %2285 = vmatprep.subr.mxu0 0.0
    %2286 = vmatpush2.msra.mxu0 0.0
    %2287 = vmatprep.mubr.f32.mxu0 0.0
    %2288 = vmatmul.mubr.f32.gmra.mxu0 %v2212
    %v2289 = vpop.f32.mrf.mxu0
    %v2290 = vadd.f32 0.0, %v2289
    %v2291 = vpop.f32.mrf.mxu0
    %v2292 = vadd.f32 0.0, %v2291
    %2293 = vmatprep.mubr.f32.mxu0 0.0
    %2294 = vmatmul.mubr.f32.gmra.mxu0 %v2214
    %v2295 = vpop.f32.mrf.mxu0
    %v2296 = vadd.f32 0.0, %v2295
    %v2297 = vpop.f32.mrf.mxu0
    %v2298 = vadd.f32 0.0, %v2297
    %2299 = vdwg.mxu0
    %v2300 = vsel %vm2211, %v2149, 0
    %v2302 = vsel %vm2211, %v2154, 0
    %v2305 = vsel %vm2216, %v2179, 0
    %v2308 = vsel %vm2216, %v2180, 0
    %2310 = vmatprep.subr.mxu0 0.0
    %2311 = vmatpush1.msra.mxu0 0.0
    %2312 = vmatprep.subr.mxu0 0.0
    %2313 = vmatpush1.msra.mxu0 0.0
    %2314 = vmatprep.subr.mxu0 0.0
    %2315 = vmatpush1.msra.mxu0 0.0
    %2316 = vmatprep.subr.mxu0 0.0
    %2317 = vmatpush1.msra.mxu0 0.0
    %2318 = vmatprep.subr.mxu0 %v2308
    %2319 = vmatpush1.msra.mxu0 %v2305
    %2320 = vmatprep.subr.mxu0 %v2178
    %2321 = vmatpush1.msra.mxu0 %v2177
    %2322 = vmatprep.subr.mxu0 %v2176
    %2323 = vmatpush1.msra.mxu0 %v2175
    %2324 = vmatprep.subr.mxu0 %v2174
    %2325 = vmatpush1.msra.mxu0 %v2173
    %2326 = vmatprep.subr.mxu0 %v2172
    %2327 = vmatpush1.msra.mxu0 %v2171
    %2328 = vmatprep.subr.mxu0 %v2170
    %2329 = vmatpush1.msra.mxu0 %v2169
    %2330 = vmatprep.subr.mxu0 %v2168
    %2331 = vmatpush1.msra.mxu0 %v2167
    %2332 = vmatprep.subr.mxu0 %v2166
    %2333 = vmatpush1.msra.mxu0 %v2165
    %2334 = vmatprep.subr.mxu0 %v2164
    %2335 = vmatpush1.msra.mxu0 %v2163
    %2336 = vmatprep.subr.mxu0 %v2162
    %2337 = vmatpush1.msra.mxu0 %v2161
    %2338 = vmatprep.subr.mxu0 %v2160
    %2339 = vmatpush1.msra.mxu0 %v2159
    %2340 = vmatprep.subr.mxu0 %v2158
    %2341 = vmatpush1.msra.mxu0 %v2157
    %2342 = vmatprep.subr.mxu0 0.0
    %2343 = vmatpush2.msra.mxu0 0.0
    %2344 = vmatprep.subr.mxu0 0.0
    %2345 = vmatpush2.msra.mxu0 0.0
    %2346 = vmatprep.subr.mxu0 0.0
    %2347 = vmatpush2.msra.mxu0 0.0
    %2348 = vmatprep.subr.mxu0 0.0
    %2349 = vmatpush2.msra.mxu0 0.0
    %2350 = vmatprep.subr.mxu0 0.0
    %2351 = vmatpush2.msra.mxu0 0.0
    %2352 = vmatprep.subr.mxu0 0.0
    %2353 = vmatpush2.msra.mxu0 0.0
    %2354 = vmatprep.subr.mxu0 0.0
    %2355 = vmatpush2.msra.mxu0 0.0
    %2356 = vmatprep.subr.mxu0 0.0
    %2357 = vmatpush2.msra.mxu0 0.0
    %2358 = vmatprep.subr.mxu0 0.0
    %2359 = vmatpush2.msra.mxu0 0.0
    %2360 = vmatprep.subr.mxu0 0.0
    %2361 = vmatpush2.msra.mxu0 0.0
    %2362 = vmatprep.subr.mxu0 0.0
    %2363 = vmatpush2.msra.mxu0 0.0
    %2364 = vmatprep.subr.mxu0 0.0
    %2365 = vmatpush2.msra.mxu0 0.0
    %2366 = vmatprep.subr.mxu0 0.0
    %2367 = vmatpush2.msra.mxu0 0.0
    %2368 = vmatprep.subr.mxu0 0.0
    %2369 = vmatpush2.msra.mxu0 0.0
    %2370 = vmatprep.subr.mxu0 0.0
    %2371 = vmatpush2.msra.mxu0 0.0
    %2372 = vmatprep.subr.mxu0 0.0
    %2373 = vmatpush2.msra.mxu0 0.0
    %2374 = vmatprep.mubr.f32.mxu0 0.0
    %2375 = vmatmul.mubr.f32.gmra.mxu0 %v2300
    %v2376 = vpop.f32.mrf.mxu0
    %v2377 = vadd.f32 %v2290, %v2376
    %v2378 = vpop.f32.mrf.mxu0
    %v2379 = vadd.f32 %v2292, %v2378
    %2380 = vmatprep.mubr.f32.mxu0 0.0
    %2381 = vmatmul.mubr.f32.gmra.mxu0 %v2302
    %v2382 = vpop.f32.mrf.mxu0
    %v2383 = vadd.f32 %v2296, %v2382
    %v2384 = vpop.f32.mrf.mxu0
    %v2385 = vadd.f32 %v2298, %v2384
    %2386 = vdwg.mxu0
    %s2387 = scalar_lea.vmem [#allocation4], 384
    %v2388 = vld [vmem:[%s2387] sm:$0xff]
    %v2389 = vld [vmem:[%s2387 + $0x8] sm:$0xff]
    %v2390 = vld [vmem:[%s2387 + $0x10] sm:$0xff]
    %v2391 = vld [vmem:[%s2387 + $0x18] sm:$0xff]
    %v2392 = vld [vmem:[%s2387 + $0x20] sm:$0xff]
    %v2393 = vld [vmem:[%s2387 + $0x28] sm:$0xff]
    %v2394 = vld [vmem:[%s2387 + $0x30] sm:$0xff]
    %v2395 = vld [vmem:[%s2387 + $0x38] sm:$0xff]
    %v2396 = vld [vmem:[%s2387 + $0x40] sm:$0xff]
    %v2397 = vld [vmem:[%s2387 + $0x48] sm:$0xff]
    %v2398 = vld [vmem:[%s2387 + $0x50] sm:$0xff]
    %v2399 = vld [vmem:[%s2387 + $0x58] sm:$0xff]
    %v2400 = vld [vmem:[%s2387 + $0x60] sm:$0xff]
    %v2401 = vld [vmem:[%s2387 + $0x68] sm:$0xff]
    %v2402 = vld [vmem:[%s2387 + $0x70] sm:$0xff]
    %v2403 = vld [vmem:[%s2387 + $0x78] sm:$0xff]
    %v2404 = vld [vmem:[%s2387 + $0x80] sm:$0xff]
    %v2405 = vld [vmem:[%s2387 + $0x88] sm:$0xff]
    %v2406 = vld [vmem:[%s2387 + $0x90] sm:$0xff]
    %v2407 = vld [vmem:[%s2387 + $0x98] sm:$0xff]
    %v2408 = vld [vmem:[%s2387 + $0xa0] sm:$0xff]
    %v2409 = vld [vmem:[%s2387 + $0xa8] sm:$0xff]
    %v2410 = vld [vmem:[%s2387 + $0xb0] sm:$0x3]
    %v2411 = vld [vmem:[%s2387 + $0xb8] sm:$0x3]
    %v2412 = vrot.slane %v2149, 2
    %v2413 = vrot.slane %v2154, 2
    %v2414 = vsel %vm2078, %v2412, %v2413
    %v2415 = vsel %vm2211, %v2414, 0
    %v2417 = vsel %vm2211, %v2413, 0
    %v2420 = vsel %vm2216, %v2410, 0
    %v2423 = vsel %vm2216, %v2411, 0
    %2425 = vmatprep.subr.mxu0 0.0
    %2426 = vmatpush1.msra.mxu0 0.0
    %2427 = vmatprep.subr.mxu0 0.0
    %2428 = vmatpush1.msra.mxu0 0.0
    %2429 = vmatprep.subr.mxu0 0.0
    %2430 = vmatpush1.msra.mxu0 0.0
    %2431 = vmatprep.subr.mxu0 0.0
    %2432 = vmatpush1.msra.mxu0 0.0
    %2433 = vmatprep.subr.mxu0 %v2423
    %2434 = vmatpush1.msra.mxu0 %v2420
    %2435 = vmatprep.subr.mxu0 %v2409
    %2436 = vmatpush1.msra.mxu0 %v2408
    %2437 = vmatprep.subr.mxu0 %v2407
    %2438 = vmatpush1.msra.mxu0 %v2406
    %2439 = vmatprep.subr.mxu0 %v2405
    %2440 = vmatpush1.msra.mxu0 %v2404
    %2441 = vmatprep.subr.mxu0 %v2403
    %2442 = vmatpush1.msra.mxu0 %v2402
    %2443 = vmatprep.subr.mxu0 %v2401
    %2444 = vmatpush1.msra.mxu0 %v2400
    %2445 = vmatprep.subr.mxu0 %v2399
    %2446 = vmatpush1.msra.mxu0 %v2398
    %2447 = vmatprep.subr.mxu0 %v2397
    %2448 = vmatpush1.msra.mxu0 %v2396
    %2449 = vmatprep.subr.mxu0 %v2395
    %2450 = vmatpush1.msra.mxu0 %v2394
    %2451 = vmatprep.subr.mxu0 %v2393
    %2452 = vmatpush1.msra.mxu0 %v2392
    %2453 = vmatprep.subr.mxu0 %v2391
    %2454 = vmatpush1.msra.mxu0 %v2390
    %2455 = vmatprep.subr.mxu0 %v2389
    %2456 = vmatpush1.msra.mxu0 %v2388
    %2457 = vmatprep.subr.mxu0 0.0
    %2458 = vmatpush2.msra.mxu0 0.0
    %2459 = vmatprep.subr.mxu0 0.0
    %2460 = vmatpush2.msra.mxu0 0.0
    %2461 = vmatprep.subr.mxu0 0.0
    %2462 = vmatpush2.msra.mxu0 0.0
    %2463 = vmatprep.subr.mxu0 0.0
    %2464 = vmatpush2.msra.mxu0 0.0
    %2465 = vmatprep.subr.mxu0 0.0
    %2466 = vmatpush2.msra.mxu0 0.0
    %2467 = vmatprep.subr.mxu0 0.0
    %2468 = vmatpush2.msra.mxu0 0.0
    %2469 = vmatprep.subr.mxu0 0.0
    %2470 = vmatpush2.msra.mxu0 0.0
    %2471 = vmatprep.subr.mxu0 0.0
    %2472 = vmatpush2.msra.mxu0 0.0
    %2473 = vmatprep.subr.mxu0 0.0
    %2474 = vmatpush2.msra.mxu0 0.0
    %2475 = vmatprep.subr.mxu0 0.0
    %2476 = vmatpush2.msra.mxu0 0.0
    %2477 = vmatprep.subr.mxu0 0.0
    %2478 = vmatpush2.msra.mxu0 0.0
    %2479 = vmatprep.subr.mxu0 0.0
    %2480 = vmatpush2.msra.mxu0 0.0
    %2481 = vmatprep.subr.mxu0 0.0
    %2482 = vmatpush2.msra.mxu0 0.0
    %2483 = vmatprep.subr.mxu0 0.0
    %2484 = vmatpush2.msra.mxu0 0.0
    %2485 = vmatprep.subr.mxu0 0.0
    %2486 = vmatpush2.msra.mxu0 0.0
    %2487 = vmatprep.subr.mxu0 0.0
    %2488 = vmatpush2.msra.mxu0 0.0
    %2489 = vmatprep.mubr.f32.mxu0 0.0
    %2490 = vmatmul.mubr.f32.gmra.mxu0 %v2415
    %v2491 = vpop.f32.mrf.mxu0
    %v2492 = vadd.f32 0.0, %v2491
    %v2493 = vpop.f32.mrf.mxu0
    %v2494 = vadd.f32 0.0, %v2493
    %2495 = vmatprep.mubr.f32.mxu0 0.0
    %2496 = vmatmul.mubr.f32.gmra.mxu0 %v2417
    %v2497 = vpop.f32.mrf.mxu0
    %v2498 = vadd.f32 0.0, %v2497
    %v2499 = vpop.f32.mrf.mxu0
    %v2500 = vadd.f32 0.0, %v2499
    %2501 = vdwg.mxu0
    %v2502 = vadd.f32 %v2377, %v2492
    %v2503 = vadd.f32 %v2379, %v2494
    %v2504 = vadd.f32 %v2383, %v2498
    %v2505 = vadd.f32 %v2385, %v2500
    %v2506 = vld [vmem:[%s4] sm:$0x3]
    %v2508 = vlaneseq
    %v2509 = vshrl.u32 %v2508, 7
    %v2510 = vsub.s32 0, %v2509
    %v2511 = vrot.slane %v2506, %v2510
    %v2512 = vlaneseq
    %v2513 = vshrl.u32 %v2512, 7
    %v2514 = vsub.s32 1, %v2513
    %v2515 = vrot.slane %v2506, %v2514
    %v2518 = vadd.f32 %v2502, %v2511
    %v2519 = vadd.f32 %v2503, %v2515
    %v2520 = vadd.f32 %v2504, %v2511
    %v2521 = vadd.f32 %v2505, %v2515
    %v2522 = vmax.f32 %v2518, 0.0
    %v2523 = vmax.f32 %v2519, 0.0
    %v2524 = vmax.f32 %v2520, 0.0
    %v2525 = vmax.f32 %v2521, 0.0
    %v2530 = vrot.slane %v2522, 1
    %v2531 = vrot.slane %v2524, 1
    %v2532 = vsel %vm1880, %v2530, %v2531
    %v2533 = vrot.slane %v2523, 1
    %v2534 = vrot.slane %v2525, 1
    %v2535 = vsel %vm1880, %v2533, %v2534
    %v2540 = vmax.f32 %v2522, %v2532
    %v2541 = vmax.f32 %v2523, %v2535
    %v2542 = vmax.f32 %v2524, %v2531
    %v2543 = vmax.f32 %v2525, %v2534
    %2548 = vrot.lane.b32.xlu0 %v2540, 112
    %v2549 = vpop.permute.xlu0 %2548
    %2550 = vrot.lane.b32.xlu0 %v2541, 112
    %v2551 = vpop.permute.xlu0 %2550
    %2552 = vrot.lane.b32.xlu0 %v2542, 112
    %v2553 = vpop.permute.xlu0 %2552
    %2554 = vrot.lane.b32.xlu0 %v2543, 112
    %v2555 = vpop.permute.xlu0 %2554
    %vm2556 = vcmask 916480
    %v2557 = vsel %vm2556, %v2549, %v2551
    %v2558 = vsel %vm2556, %v2553, %v2555
    %v2563 = vmax.f32 %v2540, %v2557
    %v2564 = vmax.f32 %v2541, %v2551
    %v2565 = vmax.f32 %v2542, %v2558
    %v2566 = vmax.f32 %v2543, %v2555
    %v2567 = vld [vmem:[%s7] sm:$0x3f]
    %vm2568 = vcmask 97280
    %v2570 = vsel %vm2568, %v2567, 0
    %vm2572 = vcmask 1043456
    %v2574 = vsel %vm2572, %v2565, 0
    %v2577 = vsel %vm2572, %v2566, 0
    %2579 = vmatprep.subr.mxu0 0.0
    %2580 = vmatpush1.msra.mxu0 0.0
    %2581 = vmatprep.subr.mxu0 0.0
    %2582 = vmatpush1.msra.mxu0 0.0
    %2583 = vmatprep.subr.mxu0 0.0
    %2584 = vmatpush1.msra.mxu0 0.0
    %2585 = vmatprep.subr.mxu0 0.0
    %2586 = vmatpush1.msra.mxu0 0.0
    %2587 = vmatprep.subr.mxu0 0.0
    %2588 = vmatpush1.msra.mxu0 0.0
    %2589 = vmatprep.subr.mxu0 0.0
    %2590 = vmatpush1.msra.mxu0 0.0
    %2591 = vmatprep.subr.mxu0 0.0
    %2592 = vmatpush1.msra.mxu0 0.0
    %2593 = vmatprep.subr.mxu0 0.0
    %2594 = vmatpush1.msra.mxu0 0.0
    %2595 = vmatprep.subr.mxu0 0.0
    %2596 = vmatpush1.msra.mxu0 0.0
    %2597 = vmatprep.subr.mxu0 0.0
    %2598 = vmatpush1.msra.mxu0 0.0
    %2599 = vmatprep.subr.mxu0 0.0
    %2600 = vmatpush1.msra.mxu0 0.0
    %2601 = vmatprep.subr.mxu0 0.0
    %2602 = vmatpush1.msra.mxu0 0.0
    %2603 = vmatprep.subr.mxu0 0.0
    %2604 = vmatpush1.msra.mxu0 0.0
    %2605 = vmatprep.subr.mxu0 0.0
    %2606 = vmatpush1.msra.mxu0 0.0
    %2607 = vmatprep.subr.mxu0 %v2577
    %2608 = vmatpush1.msra.mxu0 %v2574
    %2609 = vmatprep.subr.mxu0 %v2564
    %2610 = vmatpush1.msra.mxu0 %v2563
    %2611 = vmatprep.subr.mxu0 0.0
    %2612 = vmatpush2.msra.mxu0 0.0
    %2613 = vmatprep.subr.mxu0 0.0
    %2614 = vmatpush2.msra.mxu0 0.0
    %2615 = vmatprep.subr.mxu0 0.0
    %2616 = vmatpush2.msra.mxu0 0.0
    %2617 = vmatprep.subr.mxu0 0.0
    %2618 = vmatpush2.msra.mxu0 0.0
    %2619 = vmatprep.subr.mxu0 0.0
    %2620 = vmatpush2.msra.mxu0 0.0
    %2621 = vmatprep.subr.mxu0 0.0
    %2622 = vmatpush2.msra.mxu0 0.0
    %2623 = vmatprep.subr.mxu0 0.0
    %2624 = vmatpush2.msra.mxu0 0.0
    %2625 = vmatprep.subr.mxu0 0.0
    %2626 = vmatpush2.msra.mxu0 0.0
    %2627 = vmatprep.subr.mxu0 0.0
    %2628 = vmatpush2.msra.mxu0 0.0
    %2629 = vmatprep.subr.mxu0 0.0
    %2630 = vmatpush2.msra.mxu0 0.0
    %2631 = vmatprep.subr.mxu0 0.0
    %2632 = vmatpush2.msra.mxu0 0.0
    %2633 = vmatprep.subr.mxu0 0.0
    %2634 = vmatpush2.msra.mxu0 0.0
    %2635 = vmatprep.subr.mxu0 0.0
    %2636 = vmatpush2.msra.mxu0 0.0
    %2637 = vmatprep.subr.mxu0 0.0
    %2638 = vmatpush2.msra.mxu0 0.0
    %2639 = vmatprep.subr.mxu0 0.0
    %2640 = vmatpush2.msra.mxu0 0.0
    %2641 = vmatprep.subr.mxu0 0.0
    %2642 = vmatpush2.msra.mxu0 0.0
    %2643 = vmatprep.mubr.f32.mxu0 0.0
    %2644 = vmatmul.mubr.f32.gmra.mxu0 %v2570
    %v2645 = vpop.f32.mrf.mxu0
    %v2646 = vadd.f32 0.0, %v2645
    %v2647 = vpop.f32.mrf.mxu0
    %v2648 = vadd.f32 0.0, %v2647
    %2649 = vdwg.mxu0
    %v2650 = vld [vmem:[%s8] sm:$0xff]
    %v2651 = vld [vmem:[%s8 + $0x8] sm:$0xff]
    %v2652 = vld [vmem:[%s8 + $0x10] sm:$0xff]
    %v2653 = vld [vmem:[%s8 + $0x18] sm:$0xff]
    %v2654 = vld [vmem:[%s8 + $0x20] sm:$0xff]
    %v2655 = vld [vmem:[%s8 + $0x28] sm:$0xff]
    %v2656 = vld [vmem:[%s8 + $0x30] sm:$0xff]
    %v2657 = vld [vmem:[%s8 + $0x38] sm:$0xff]
    %v2658 = vld [vmem:[%s8 + $0x40] sm:$0xff]
    %v2659 = vld [vmem:[%s8 + $0x48] sm:$0xff]
    %v2660 = vld [vmem:[%s8 + $0x50] sm:$0xff]
    %v2661 = vld [vmem:[%s8 + $0x58] sm:$0xff]
    %v2662 = vld [vmem:[%s8 + $0x60] sm:$0xff]
    %v2663 = vld [vmem:[%s8 + $0x68] sm:$0xff]
    %v2664 = vld [vmem:[%s8 + $0x70] sm:$0xff]
    %v2665 = vld [vmem:[%s8 + $0x78] sm:$0xff]
    %v2666 = vld [vmem:[%s8 + $0x80] sm:$0xff]
    %v2667 = vld [vmem:[%s8 + $0x88] sm:$0xff]
    %v2668 = vld [vmem:[%s8 + $0x90] sm:$0xff]
    %v2669 = vld [vmem:[%s8 + $0x98] sm:$0xff]
    %v2670 = vld [vmem:[%s8 + $0xa0] sm:$0xff]
    %v2671 = vld [vmem:[%s8 + $0xa8] sm:$0xff]
    %v2672 = vld [vmem:[%s8 + $0xb0] sm:$0xff]
    %v2673 = vld [vmem:[%s8 + $0xb8] sm:$0xff]
    %vm2674 = vcmask 523264
    %v2676 = vsel %vm2674, %v2648, 0
    %2678 = vmatprep.subr.mxu0 0.0
    %2679 = vmatpush1.msra.mxu0 %v2665
    %2680 = vmatprep.subr.mxu0 0.0
    %2681 = vmatpush1.msra.mxu0 %v2664
    %2682 = vmatprep.subr.mxu0 0.0
    %2683 = vmatpush1.msra.mxu0 %v2663
    %2684 = vmatprep.subr.mxu0 0.0
    %2685 = vmatpush1.msra.mxu0 %v2662
    %2686 = vmatprep.subr.mxu0 0.0
    %2687 = vmatpush1.msra.mxu0 %v2661
    %2688 = vmatprep.subr.mxu0 0.0
    %2689 = vmatpush1.msra.mxu0 %v2660
    %2690 = vmatprep.subr.mxu0 0.0
    %2691 = vmatpush1.msra.mxu0 %v2659
    %2692 = vmatprep.subr.mxu0 0.0
    %2693 = vmatpush1.msra.mxu0 %v2658
    %2694 = vmatprep.subr.mxu0 0.0
    %2695 = vmatpush1.msra.mxu0 %v2657
    %2696 = vmatprep.subr.mxu0 0.0
    %2697 = vmatpush1.msra.mxu0 %v2656
    %2698 = vmatprep.subr.mxu0 0.0
    %2699 = vmatpush1.msra.mxu0 %v2655
    %2700 = vmatprep.subr.mxu0 0.0
    %2701 = vmatpush1.msra.mxu0 %v2654
    %2702 = vmatprep.subr.mxu0 0.0
    %2703 = vmatpush1.msra.mxu0 %v2653
    %2704 = vmatprep.subr.mxu0 0.0
    %2705 = vmatpush1.msra.mxu0 %v2652
    %2706 = vmatprep.subr.mxu0 0.0
    %2707 = vmatpush1.msra.mxu0 %v2651
    %2708 = vmatprep.subr.mxu0 0.0
    %2709 = vmatpush1.msra.mxu0 %v2650
    %2710 = vmatprep.subr.mxu0 0.0
    %2711 = vmatpush2.msra.mxu0 0.0
    %2712 = vmatprep.subr.mxu0 0.0
    %2713 = vmatpush2.msra.mxu0 0.0
    %2714 = vmatprep.subr.mxu0 0.0
    %2715 = vmatpush2.msra.mxu0 0.0
    %2716 = vmatprep.subr.mxu0 0.0
    %2717 = vmatpush2.msra.mxu0 0.0
    %2718 = vmatprep.subr.mxu0 0.0
    %2719 = vmatpush2.msra.mxu0 0.0
    %2720 = vmatprep.subr.mxu0 0.0
    %2721 = vmatpush2.msra.mxu0 0.0
    %2722 = vmatprep.subr.mxu0 0.0
    %2723 = vmatpush2.msra.mxu0 0.0
    %2724 = vmatprep.subr.mxu0 0.0
    %2725 = vmatpush2.msra.mxu0 0.0
    %2726 = vmatprep.subr.mxu0 0.0
    %2727 = vmatpush2.msra.mxu0 %v2673
    %2728 = vmatprep.subr.mxu0 0.0
    %2729 = vmatpush2.msra.mxu0 %v2672
    %2730 = vmatprep.subr.mxu0 0.0
    %2731 = vmatpush2.msra.mxu0 %v2671
    %2732 = vmatprep.subr.mxu0 0.0
    %2733 = vmatpush2.msra.mxu0 %v2670
    %2734 = vmatprep.subr.mxu0 0.0
    %2735 = vmatpush2.msra.mxu0 %v2669
    %2736 = vmatprep.subr.mxu0 0.0
    %2737 = vmatpush2.msra.mxu0 %v2668
    %2738 = vmatprep.subr.mxu0 0.0
    %2739 = vmatpush2.msra.mxu0 %v2667
    %2740 = vmatprep.subr.mxu0 0.0
    %2741 = vmatpush2.msra.mxu0 %v2666
    %2742 = vmatprep.mubr.f32.mxu0 %v2676
    %2743 = vmatmul.mubr.f32.gmra.mxu0 %v2646
    %v2744 = vpop.f32.mrf.mxu0
    %v2745 = vadd.f32 0.0, %v2744
    %v2746 = vpop.f32.mrf.mxu0
    %2747 = vdwg.mxu0
    %vm2748 = vcmask 783360
    %2749 = vst.msk [vmem:[#allocation3] sm:$0x3f] %vm2748, %v2745
    %v2750 = vld [vmem:[#allocation2 + $0x40] sm:$0xff]
    %v2751 = vld [vmem:[#allocation2 + $0x48] sm:$0xff]
    %v2752 = vld [vmem:[#allocation2 + $0x50] sm:$0xff]
    %v2753 = vld [vmem:[#allocation2 + $0x58] sm:$0xff]
    %v2754 = vld [vmem:[#allocation2 + $0x60] sm:$0xff]
    %v2755 = vld [vmem:[#allocation2 + $0x68] sm:$0xff]
    %v2756 = vld [vmem:[#allocation2 + $0x70] sm:$0x3f]
    %v2757 = vld [vmem:[#allocation2 + $0x78] sm:$0x3f]
    %v2766 = vrot.slane %v2750, 1
    %v2767 = vrot.slane %v2752, 1
    %v2768 = vsel %vm1880, %v2766, %v2767
    %v2769 = vrot.slane %v2751, 1
    %v2770 = vrot.slane %v2753, 1
    %v2771 = vsel %vm1880, %v2769, %v2770
    %v2772 = vrot.slane %v2754, 1
    %v2773 = vsel %vm1880, %v2767, %v2772
    %v2774 = vrot.slane %v2755, 1
    %v2775 = vsel %vm1880, %v2770, %v2774
    %v2776 = vrot.slane %v2756, 1
    %v2777 = vsel %vm1880, %v2772, %v2776
    %v2778 = vrot.slane %v2757, 1
    %v2779 = vsel %vm1880, %v2774, %v2778
    %v2788 = vmax.f32 %v2750, %v2768
    %v2789 = vmax.f32 %v2751, %v2771
    %v2790 = vmax.f32 %v2752, %v2773
    %v2791 = vmax.f32 %v2753, %v2775
    %v2792 = vmax.f32 %v2754, %v2777
    %v2793 = vmax.f32 %v2755, %v2779
    %v2794 = vmax.f32 %v2756, %v2776
    %v2795 = vmax.f32 %v2757, %v2778
    %2804 = vrot.lane.b32.xlu0 %v2788, 122
    %v2805 = vpop.permute.xlu0 %2804
    %2806 = vrot.lane.b32.xlu0 %v2789, 122
    %v2807 = vpop.permute.xlu0 %2806
    %2808 = vrot.lane.b32.xlu0 %v2790, 122
    %v2809 = vpop.permute.xlu0 %2808
    %2810 = vrot.lane.b32.xlu0 %v2791, 122
    %v2811 = vpop.permute.xlu0 %2810
    %2812 = vrot.lane.b32.xlu0 %v2792, 122
    %v2813 = vpop.permute.xlu0 %2812
    %2814 = vrot.lane.b32.xlu0 %v2793, 122
    %v2815 = vpop.permute.xlu0 %2814
    %2816 = vrot.lane.b32.xlu0 %v2794, 122
    %v2817 = vpop.permute.xlu0 %2816
    %2818 = vrot.lane.b32.xlu0 %v2795, 122
    %v2819 = vpop.permute.xlu0 %2818
    %v2820 = vsel %vm1935, %v2805, %v2807
    %v2821 = vsel %vm1935, %v2809, %v2811
    %v2822 = vsel %vm1935, %v2813, %v2815
    %v2823 = vsel %vm1935, %v2817, %v2819
    %v2832 = vmax.f32 %v2788, %v2820
    %v2833 = vmax.f32 %v2789, %v2807
    %v2834 = vmax.f32 %v2790, %v2821
    %v2835 = vmax.f32 %v2791, %v2811
    %v2836 = vmax.f32 %v2792, %v2822
    %v2837 = vmax.f32 %v2793, %v2815
    %v2838 = vmax.f32 %v2794, %v2823
    %v2839 = vmax.f32 %v2795, %v2819
    %v2840 = vld [vmem:[%s5] sm:$0xff]
    %v2841 = vld [vmem:[%s5 + $0x8] sm:$0x7f]
    %v2843 = vsel %vm1958, %v2840, 0
    %v2846 = vsel %vm1958, %v2841, 0
    %v2849 = vsel %vm1965, %v2838, 0
    %v2852 = vsel %vm1965, %v2839, 0
    %2854 = vmatprep.subr.mxu0 0.0
    %2855 = vmatpush1.msra.mxu0 0.0
    %2856 = vmatprep.subr.mxu0 0.0
    %2857 = vmatpush1.msra.mxu0 0.0
    %2858 = vmatprep.subr.mxu0 0.0
    %2859 = vmatpush1.msra.mxu0 0.0
    %2860 = vmatprep.subr.mxu0 0.0
    %2861 = vmatpush1.msra.mxu0 0.0
    %2862 = vmatprep.subr.mxu0 0.0
    %2863 = vmatpush1.msra.mxu0 0.0
    %2864 = vmatprep.subr.mxu0 0.0
    %2865 = vmatpush1.msra.mxu0 0.0
    %2866 = vmatprep.subr.mxu0 0.0
    %2867 = vmatpush1.msra.mxu0 0.0
    %2868 = vmatprep.subr.mxu0 0.0
    %2869 = vmatpush1.msra.mxu0 0.0
    %2870 = vmatprep.subr.mxu0 0.0
    %2871 = vmatpush1.msra.mxu0 0.0
    %2872 = vmatprep.subr.mxu0 0.0
    %2873 = vmatpush1.msra.mxu0 0.0
    %2874 = vmatprep.subr.mxu0 0.0
    %2875 = vmatpush1.msra.mxu0 0.0
    %2876 = vmatprep.subr.mxu0 0.0
    %2877 = vmatpush1.msra.mxu0 0.0
    %2878 = vmatprep.subr.mxu0 %v2852
    %2879 = vmatpush1.msra.mxu0 %v2849
    %2880 = vmatprep.subr.mxu0 %v2837
    %2881 = vmatpush1.msra.mxu0 %v2836
    %2882 = vmatprep.subr.mxu0 %v2835
    %2883 = vmatpush1.msra.mxu0 %v2834
    %2884 = vmatprep.subr.mxu0 %v2833
    %2885 = vmatpush1.msra.mxu0 %v2832
    %2886 = vmatprep.subr.mxu0 0.0
    %2887 = vmatpush2.msra.mxu0 0.0
    %2888 = vmatprep.subr.mxu0 0.0
    %2889 = vmatpush2.msra.mxu0 0.0
    %2890 = vmatprep.subr.mxu0 0.0
    %2891 = vmatpush2.msra.mxu0 0.0
    %2892 = vmatprep.subr.mxu0 0.0
    %2893 = vmatpush2.msra.mxu0 0.0
    %2894 = vmatprep.subr.mxu0 0.0
    %2895 = vmatpush2.msra.mxu0 0.0
    %2896 = vmatprep.subr.mxu0 0.0
    %2897 = vmatpush2.msra.mxu0 0.0
    %2898 = vmatprep.subr.mxu0 0.0
    %2899 = vmatpush2.msra.mxu0 0.0
    %2900 = vmatprep.subr.mxu0 0.0
    %2901 = vmatpush2.msra.mxu0 0.0
    %2902 = vmatprep.subr.mxu0 0.0
    %2903 = vmatpush2.msra.mxu0 0.0
    %2904 = vmatprep.subr.mxu0 0.0
    %2905 = vmatpush2.msra.mxu0 0.0
    %2906 = vmatprep.subr.mxu0 0.0
    %2907 = vmatpush2.msra.mxu0 0.0
    %2908 = vmatprep.subr.mxu0 0.0
    %2909 = vmatpush2.msra.mxu0 0.0
    %2910 = vmatprep.subr.mxu0 0.0
    %2911 = vmatpush2.msra.mxu0 0.0
    %2912 = vmatprep.subr.mxu0 0.0
    %2913 = vmatpush2.msra.mxu0 0.0
    %2914 = vmatprep.subr.mxu0 0.0
    %2915 = vmatpush2.msra.mxu0 0.0
    %2916 = vmatprep.subr.mxu0 0.0
    %2917 = vmatpush2.msra.mxu0 0.0
    %2918 = vmatprep.mubr.f32.mxu0 0.0
    %2919 = vmatmul.mubr.f32.gmra.mxu0 %v2843
    %v2920 = vpop.f32.mrf.mxu0
    %v2921 = vadd.f32 0.0, %v2920
    %v2922 = vpop.f32.mrf.mxu0
    %v2923 = vadd.f32 0.0, %v2922
    %2924 = vmatprep.mubr.f32.mxu0 0.0
    %2925 = vmatmul.mubr.f32.gmra.mxu0 %v2846
    %v2926 = vpop.f32.mrf.mxu0
    %v2927 = vadd.f32 0.0, %v2926
    %v2928 = vpop.f32.mrf.mxu0
    %v2929 = vadd.f32 0.0, %v2928
    %2930 = vdwg.mxu0
    %v2931 = vld [vmem:[#allocation7] sm:$0xff]
    %v2932 = vld [vmem:[#allocation7 + $0x8] sm:$0xff]
    %v2933 = vld [vmem:[#allocation7 + $0x10] sm:$0xff]
    %v2934 = vld [vmem:[#allocation7 + $0x18] sm:$0xff]
    %v2935 = vld [vmem:[#allocation7 + $0x20] sm:$0xff]
    %v2936 = vld [vmem:[#allocation7 + $0x28] sm:$0xff]
    %v2937 = vld [vmem:[#allocation7 + $0x30] sm:$0xff]
    %v2938 = vld [vmem:[#allocation7 + $0x38] sm:$0xff]
    %v2939 = vld [vmem:[#allocation7 + $0x40] sm:$0xff]
    %v2940 = vld [vmem:[#allocation7 + $0x48] sm:$0xff]
    %v2941 = vld [vmem:[#allocation7 + $0x50] sm:$0xff]
    %v2942 = vld [vmem:[#allocation7 + $0x58] sm:$0xff]
    %v2943 = vld [vmem:[#allocation7 + $0x60] sm:$0xff]
    %v2944 = vld [vmem:[#allocation7 + $0x68] sm:$0xff]
    %v2945 = vld [vmem:[#allocation7 + $0x70] sm:$0xff]
    %v2946 = vld [vmem:[#allocation7 + $0x78] sm:$0xff]
    %v2947 = vld [vmem:[#allocation7 + $0x80] sm:$0xff]
    %v2948 = vld [vmem:[#allocation7 + $0x88] sm:$0xff]
    %v2949 = vld [vmem:[#allocation7 + $0x90] sm:$0xff]
    %v2950 = vld [vmem:[#allocation7 + $0x98] sm:$0xff]
    %v2951 = vld [vmem:[#allocation7 + $0xa0] sm:$0xff]
    %v2952 = vld [vmem:[#allocation7 + $0xa8] sm:$0x3f]
    %v2954 = vsel %vm2071, %v2923, 0
    %v2957 = vsel %vm2071, %v2929, 0
    %v2960 = vsel %vm2078, %v2952, 0
    %2962 = vmatprep.subr.mxu0 0.0
    %2963 = vmatpush1.msra.mxu0 %v2946
    %2964 = vmatprep.subr.mxu0 0.0
    %2965 = vmatpush1.msra.mxu0 %v2945
    %2966 = vmatprep.subr.mxu0 0.0
    %2967 = vmatpush1.msra.mxu0 %v2944
    %2968 = vmatprep.subr.mxu0 0.0
    %2969 = vmatpush1.msra.mxu0 %v2943
    %2970 = vmatprep.subr.mxu0 0.0
    %2971 = vmatpush1.msra.mxu0 %v2942
    %2972 = vmatprep.subr.mxu0 0.0
    %2973 = vmatpush1.msra.mxu0 %v2941
    %2974 = vmatprep.subr.mxu0 0.0
    %2975 = vmatpush1.msra.mxu0 %v2940
    %2976 = vmatprep.subr.mxu0 0.0
    %2977 = vmatpush1.msra.mxu0 %v2939
    %2978 = vmatprep.subr.mxu0 0.0
    %2979 = vmatpush1.msra.mxu0 %v2938
    %2980 = vmatprep.subr.mxu0 0.0
    %2981 = vmatpush1.msra.mxu0 %v2937
    %2982 = vmatprep.subr.mxu0 0.0
    %2983 = vmatpush1.msra.mxu0 %v2936
    %2984 = vmatprep.subr.mxu0 0.0
    %2985 = vmatpush1.msra.mxu0 %v2935
    %2986 = vmatprep.subr.mxu0 0.0
    %2987 = vmatpush1.msra.mxu0 %v2934
    %2988 = vmatprep.subr.mxu0 0.0
    %2989 = vmatpush1.msra.mxu0 %v2933
    %2990 = vmatprep.subr.mxu0 0.0
    %2991 = vmatpush1.msra.mxu0 %v2932
    %2992 = vmatprep.subr.mxu0 0.0
    %2993 = vmatpush1.msra.mxu0 %v2931
    %2994 = vmatprep.subr.mxu0 0.0
    %2995 = vmatpush2.msra.mxu0 0.0
    %2996 = vmatprep.subr.mxu0 0.0
    %2997 = vmatpush2.msra.mxu0 0.0
    %2998 = vmatprep.subr.mxu0 0.0
    %2999 = vmatpush2.msra.mxu0 0.0
    %3000 = vmatprep.subr.mxu0 0.0
    %3001 = vmatpush2.msra.mxu0 0.0
    %3002 = vmatprep.subr.mxu0 0.0
    %3003 = vmatpush2.msra.mxu0 0.0
    %3004 = vmatprep.subr.mxu0 0.0
    %3005 = vmatpush2.msra.mxu0 0.0
    %3006 = vmatprep.subr.mxu0 0.0
    %3007 = vmatpush2.msra.mxu0 0.0
    %3008 = vmatprep.subr.mxu0 0.0
    %3009 = vmatpush2.msra.mxu0 0.0
    %3010 = vmatprep.subr.mxu0 0.0
    %3011 = vmatpush2.msra.mxu0 0.0
    %3012 = vmatprep.subr.mxu0 0.0
    %3013 = vmatpush2.msra.mxu0 0.0
    %3014 = vmatprep.subr.mxu0 0.0
    %3015 = vmatpush2.msra.mxu0 %v2960
    %3016 = vmatprep.subr.mxu0 0.0
    %3017 = vmatpush2.msra.mxu0 %v2951
    %3018 = vmatprep.subr.mxu0 0.0
    %3019 = vmatpush2.msra.mxu0 %v2950
    %3020 = vmatprep.subr.mxu0 0.0
    %3021 = vmatpush2.msra.mxu0 %v2949
    %3022 = vmatprep.subr.mxu0 0.0
    %3023 = vmatpush2.msra.mxu0 %v2948
    %3024 = vmatprep.subr.mxu0 0.0
    %3025 = vmatpush2.msra.mxu0 %v2947
    %3026 = vmatprep.mubr.f32.mxu0 %v2954
    %3027 = vmatmul.mubr.f32.gmra.mxu0 %v2921
    %v3028 = vpop.f32.mrf.mxu0
    %v3029 = vadd.f32 0.0, %v3028
    %v3030 = vpop.f32.mrf.mxu0
    %3031 = vmatprep.mubr.f32.mxu0 %v2957
    %3032 = vmatmul.mubr.f32.gmra.mxu0 %v2927
    %v3033 = vpop.f32.mrf.mxu0
    %v3034 = vadd.f32 0.0, %v3033
    %v3035 = vpop.f32.mrf.mxu0
    %3036 = vdwg.mxu0
    %v3037 = vld [vmem:[#allocation4] sm:$0xff]
    %v3038 = vld [vmem:[#allocation4 + $0x8] sm:$0xff]
    %v3039 = vld [vmem:[#allocation4 + $0x10] sm:$0xff]
    %v3040 = vld [vmem:[#allocation4 + $0x18] sm:$0xff]
    %v3041 = vld [vmem:[#allocation4 + $0x20] sm:$0xff]
    %v3042 = vld [vmem:[#allocation4 + $0x28] sm:$0xff]
    %v3043 = vld [vmem:[#allocation4 + $0x30] sm:$0xff]
    %v3044 = vld [vmem:[#allocation4 + $0x38] sm:$0xff]
    %v3045 = vld [vmem:[#allocation4 + $0x40] sm:$0xff]
    %v3046 = vld [vmem:[#allocation4 + $0x48] sm:$0xff]
    %v3047 = vld [vmem:[#allocation4 + $0x50] sm:$0xff]
    %v3048 = vld [vmem:[#allocation4 + $0x58] sm:$0xff]
    %v3049 = vld [vmem:[#allocation4 + $0x60] sm:$0xff]
    %v3050 = vld [vmem:[#allocation4 + $0x68] sm:$0xff]
    %v3051 = vld [vmem:[#allocation4 + $0x70] sm:$0xff]
    %v3052 = vld [vmem:[#allocation4 + $0x78] sm:$0xff]
    %v3053 = vld [vmem:[#allocation4 + $0x80] sm:$0xff]
    %v3054 = vld [vmem:[#allocation4 + $0x88] sm:$0xff]
    %v3055 = vld [vmem:[#allocation4 + $0x90] sm:$0xff]
    %v3056 = vld [vmem:[#allocation4 + $0x98] sm:$0xff]
    %v3057 = vld [vmem:[#allocation4 + $0xa0] sm:$0xff]
    %v3058 = vld [vmem:[#allocation4 + $0xa8] sm:$0xff]
    %v3059 = vld [vmem:[#allocation4 + $0xb0] sm:$0x3]
    %v3060 = vld [vmem:[#allocation4 + $0xb8] sm:$0x3]
    %v3061 = vld [vmem:[%s2181] sm:$0xff]
    %v3062 = vld [vmem:[%s2181 + $0x8] sm:$0xff]
    %v3063 = vld [vmem:[%s2181 + $0x10] sm:$0xff]
    %v3064 = vld [vmem:[%s2181 + $0x18] sm:$0xff]
    %v3065 = vld [vmem:[%s2181 + $0x20] sm:$0xff]
    %v3066 = vld [vmem:[%s2181 + $0x28] sm:$0xff]
    %v3067 = vld [vmem:[%s2181 + $0x30] sm:$0xff]
    %v3068 = vld [vmem:[%s2181 + $0x38] sm:$0xff]
    %v3069 = vld [vmem:[%s2181 + $0x40] sm:$0xff]
    %v3070 = vld [vmem:[%s2181 + $0x48] sm:$0xff]
    %v3071 = vld [vmem:[%s2181 + $0x50] sm:$0xff]
    %v3072 = vld [vmem:[%s2181 + $0x58] sm:$0xff]
    %v3073 = vld [vmem:[%s2181 + $0x60] sm:$0xff]
    %v3074 = vld [vmem:[%s2181 + $0x68] sm:$0xff]
    %v3075 = vld [vmem:[%s2181 + $0x70] sm:$0xff]
    %v3076 = vld [vmem:[%s2181 + $0x78] sm:$0xff]
    %v3077 = vld [vmem:[%s2181 + $0x80] sm:$0xff]
    %v3078 = vld [vmem:[%s2181 + $0x88] sm:$0xff]
    %v3079 = vld [vmem:[%s2181 + $0x90] sm:$0xff]
    %v3080 = vld [vmem:[%s2181 + $0x98] sm:$0xff]
    %v3081 = vld [vmem:[%s2181 + $0xa0] sm:$0xff]
    %v3082 = vld [vmem:[%s2181 + $0xa8] sm:$0xff]
    %v3083 = vld [vmem:[%s2181 + $0xb0] sm:$0x3]
    %v3084 = vld [vmem:[%s2181 + $0xb8] sm:$0x3]
    %v3087 = vrot.slane %v3029, 1
    %v3088 = vrot.slane %v3034, 1
    %v3089 = vsel %vm1880, %v3087, %v3088
    %v3090 = vsel %vm2211, %v3089, 0
    %v3092 = vsel %vm2211, %v3088, 0
    %v3095 = vsel %vm2216, %v3083, 0
    %v3098 = vsel %vm2216, %v3084, 0
    %3100 = vmatprep.subr.mxu0 0.0
    %3101 = vmatpush1.msra.mxu0 0.0
    %3102 = vmatprep.subr.mxu0 0.0
    %3103 = vmatpush1.msra.mxu0 0.0
    %3104 = vmatprep.subr.mxu0 0.0
    %3105 = vmatpush1.msra.mxu0 0.0
    %3106 = vmatprep.subr.mxu0 0.0
    %3107 = vmatpush1.msra.mxu0 0.0
    %3108 = vmatprep.subr.mxu0 %v3098
    %3109 = vmatpush1.msra.mxu0 %v3095
    %3110 = vmatprep.subr.mxu0 %v3082
    %3111 = vmatpush1.msra.mxu0 %v3081
    %3112 = vmatprep.subr.mxu0 %v3080
    %3113 = vmatpush1.msra.mxu0 %v3079
    %3114 = vmatprep.subr.mxu0 %v3078
    %3115 = vmatpush1.msra.mxu0 %v3077
    %3116 = vmatprep.subr.mxu0 %v3076
    %3117 = vmatpush1.msra.mxu0 %v3075
    %3118 = vmatprep.subr.mxu0 %v3074
    %3119 = vmatpush1.msra.mxu0 %v3073
    %3120 = vmatprep.subr.mxu0 %v3072
    %3121 = vmatpush1.msra.mxu0 %v3071
    %3122 = vmatprep.subr.mxu0 %v3070
    %3123 = vmatpush1.msra.mxu0 %v3069
    %3124 = vmatprep.subr.mxu0 %v3068
    %3125 = vmatpush1.msra.mxu0 %v3067
    %3126 = vmatprep.subr.mxu0 %v3066
    %3127 = vmatpush1.msra.mxu0 %v3065
    %3128 = vmatprep.subr.mxu0 %v3064
    %3129 = vmatpush1.msra.mxu0 %v3063
    %3130 = vmatprep.subr.mxu0 %v3062
    %3131 = vmatpush1.msra.mxu0 %v3061
    %3132 = vmatprep.subr.mxu0 0.0
    %3133 = vmatpush2.msra.mxu0 0.0
    %3134 = vmatprep.subr.mxu0 0.0
    %3135 = vmatpush2.msra.mxu0 0.0
    %3136 = vmatprep.subr.mxu0 0.0
    %3137 = vmatpush2.msra.mxu0 0.0
    %3138 = vmatprep.subr.mxu0 0.0
    %3139 = vmatpush2.msra.mxu0 0.0
    %3140 = vmatprep.subr.mxu0 0.0
    %3141 = vmatpush2.msra.mxu0 0.0
    %3142 = vmatprep.subr.mxu0 0.0
    %3143 = vmatpush2.msra.mxu0 0.0
    %3144 = vmatprep.subr.mxu0 0.0
    %3145 = vmatpush2.msra.mxu0 0.0
    %3146 = vmatprep.subr.mxu0 0.0
    %3147 = vmatpush2.msra.mxu0 0.0
    %3148 = vmatprep.subr.mxu0 0.0
    %3149 = vmatpush2.msra.mxu0 0.0
    %3150 = vmatprep.subr.mxu0 0.0
    %3151 = vmatpush2.msra.mxu0 0.0
    %3152 = vmatprep.subr.mxu0 0.0
    %3153 = vmatpush2.msra.mxu0 0.0
    %3154 = vmatprep.subr.mxu0 0.0
    %3155 = vmatpush2.msra.mxu0 0.0
    %3156 = vmatprep.subr.mxu0 0.0
    %3157 = vmatpush2.msra.mxu0 0.0
    %3158 = vmatprep.subr.mxu0 0.0
    %3159 = vmatpush2.msra.mxu0 0.0
    %3160 = vmatprep.subr.mxu0 0.0
    %3161 = vmatpush2.msra.mxu0 0.0
    %3162 = vmatprep.subr.mxu0 0.0
    %3163 = vmatpush2.msra.mxu0 0.0
    %3164 = vmatprep.mubr.f32.mxu0 0.0
    %3165 = vmatmul.mubr.f32.gmra.mxu0 %v3090
    %v3166 = vpop.f32.mrf.mxu0
    %v3167 = vadd.f32 0.0, %v3166
    %v3168 = vpop.f32.mrf.mxu0
    %v3169 = vadd.f32 0.0, %v3168
    %3170 = vmatprep.mubr.f32.mxu0 0.0
    %3171 = vmatmul.mubr.f32.gmra.mxu0 %v3092
    %v3172 = vpop.f32.mrf.mxu0
    %v3173 = vadd.f32 0.0, %v3172
    %v3174 = vpop.f32.mrf.mxu0
    %v3175 = vadd.f32 0.0, %v3174
    %3176 = vdwg.mxu0
    %v3177 = vsel %vm2211, %v3029, 0
    %v3179 = vsel %vm2211, %v3034, 0
    %v3182 = vsel %vm2216, %v3059, 0
    %v3185 = vsel %vm2216, %v3060, 0
    %3187 = vmatprep.subr.mxu0 0.0
    %3188 = vmatpush1.msra.mxu0 0.0
    %3189 = vmatprep.subr.mxu0 0.0
    %3190 = vmatpush1.msra.mxu0 0.0
    %3191 = vmatprep.subr.mxu0 0.0
    %3192 = vmatpush1.msra.mxu0 0.0
    %3193 = vmatprep.subr.mxu0 0.0
    %3194 = vmatpush1.msra.mxu0 0.0
    %3195 = vmatprep.subr.mxu0 %v3185
    %3196 = vmatpush1.msra.mxu0 %v3182
    %3197 = vmatprep.subr.mxu0 %v3058
    %3198 = vmatpush1.msra.mxu0 %v3057
    %3199 = vmatprep.subr.mxu0 %v3056
    %3200 = vmatpush1.msra.mxu0 %v3055
    %3201 = vmatprep.subr.mxu0 %v3054
    %3202 = vmatpush1.msra.mxu0 %v3053
    %3203 = vmatprep.subr.mxu0 %v3052
    %3204 = vmatpush1.msra.mxu0 %v3051
    %3205 = vmatprep.subr.mxu0 %v3050
    %3206 = vmatpush1.msra.mxu0 %v3049
    %3207 = vmatprep.subr.mxu0 %v3048
    %3208 = vmatpush1.msra.mxu0 %v3047
    %3209 = vmatprep.subr.mxu0 %v3046
    %3210 = vmatpush1.msra.mxu0 %v3045
    %3211 = vmatprep.subr.mxu0 %v3044
    %3212 = vmatpush1.msra.mxu0 %v3043
    %3213 = vmatprep.subr.mxu0 %v3042
    %3214 = vmatpush1.msra.mxu0 %v3041
    %3215 = vmatprep.subr.mxu0 %v3040
    %3216 = vmatpush1.msra.mxu0 %v3039
    %3217 = vmatprep.subr.mxu0 %v3038
    %3218 = vmatpush1.msra.mxu0 %v3037
    %3219 = vmatprep.subr.mxu0 0.0
    %3220 = vmatpush2.msra.mxu0 0.0
    %3221 = vmatprep.subr.mxu0 0.0
    %3222 = vmatpush2.msra.mxu0 0.0
    %3223 = vmatprep.subr.mxu0 0.0
    %3224 = vmatpush2.msra.mxu0 0.0
    %3225 = vmatprep.subr.mxu0 0.0
    %3226 = vmatpush2.msra.mxu0 0.0
    %3227 = vmatprep.subr.mxu0 0.0
    %3228 = vmatpush2.msra.mxu0 0.0
    %3229 = vmatprep.subr.mxu0 0.0
    %3230 = vmatpush2.msra.mxu0 0.0
    %3231 = vmatprep.subr.mxu0 0.0
    %3232 = vmatpush2.msra.mxu0 0.0
    %3233 = vmatprep.subr.mxu0 0.0
    %3234 = vmatpush2.msra.mxu0 0.0
    %3235 = vmatprep.subr.mxu0 0.0
    %3236 = vmatpush2.msra.mxu0 0.0
    %3237 = vmatprep.subr.mxu0 0.0
    %3238 = vmatpush2.msra.mxu0 0.0
    %3239 = vmatprep.subr.mxu0 0.0
    %3240 = vmatpush2.msra.mxu0 0.0
    %3241 = vmatprep.subr.mxu0 0.0
    %3242 = vmatpush2.msra.mxu0 0.0
    %3243 = vmatprep.subr.mxu0 0.0
    %3244 = vmatpush2.msra.mxu0 0.0
    %3245 = vmatprep.subr.mxu0 0.0
    %3246 = vmatpush2.msra.mxu0 0.0
    %3247 = vmatprep.subr.mxu0 0.0
    %3248 = vmatpush2.msra.mxu0 0.0
    %3249 = vmatprep.subr.mxu0 0.0
    %3250 = vmatpush2.msra.mxu0 0.0
    %3251 = vmatprep.mubr.f32.mxu0 0.0
    %3252 = vmatmul.mubr.f32.gmra.mxu0 %v3177
    %v3253 = vpop.f32.mrf.mxu0
    %v3254 = vadd.f32 %v3167, %v3253
    %v3255 = vpop.f32.mrf.mxu0
    %v3256 = vadd.f32 %v3169, %v3255
    %3257 = vmatprep.mubr.f32.mxu0 0.0
    %3258 = vmatmul.mubr.f32.gmra.mxu0 %v3179
    %v3259 = vpop.f32.mrf.mxu0
    %v3260 = vadd.f32 %v3173, %v3259
    %v3261 = vpop.f32.mrf.mxu0
    %v3262 = vadd.f32 %v3175, %v3261
    %3263 = vdwg.mxu0
    %v3264 = vld [vmem:[%s2387] sm:$0xff]
    %v3265 = vld [vmem:[%s2387 + $0x8] sm:$0xff]
    %v3266 = vld [vmem:[%s2387 + $0x10] sm:$0xff]
    %v3267 = vld [vmem:[%s2387 + $0x18] sm:$0xff]
    %v3268 = vld [vmem:[%s2387 + $0x20] sm:$0xff]
    %v3269 = vld [vmem:[%s2387 + $0x28] sm:$0xff]
    %v3270 = vld [vmem:[%s2387 + $0x30] sm:$0xff]
    %v3271 = vld [vmem:[%s2387 + $0x38] sm:$0xff]
    %v3272 = vld [vmem:[%s2387 + $0x40] sm:$0xff]
    %v3273 = vld [vmem:[%s2387 + $0x48] sm:$0xff]
    %v3274 = vld [vmem:[%s2387 + $0x50] sm:$0xff]
    %v3275 = vld [vmem:[%s2387 + $0x58] sm:$0xff]
    %v3276 = vld [vmem:[%s2387 + $0x60] sm:$0xff]
    %v3277 = vld [vmem:[%s2387 + $0x68] sm:$0xff]
    %v3278 = vld [vmem:[%s2387 + $0x70] sm:$0xff]
    %v3279 = vld [vmem:[%s2387 + $0x78] sm:$0xff]
    %v3280 = vld [vmem:[%s2387 + $0x80] sm:$0xff]
    %v3281 = vld [vmem:[%s2387 + $0x88] sm:$0xff]
    %v3282 = vld [vmem:[%s2387 + $0x90] sm:$0xff]
    %v3283 = vld [vmem:[%s2387 + $0x98] sm:$0xff]
    %v3284 = vld [vmem:[%s2387 + $0xa0] sm:$0xff]
    %v3285 = vld [vmem:[%s2387 + $0xa8] sm:$0xff]
    %v3286 = vld [vmem:[%s2387 + $0xb0] sm:$0x3]
    %v3287 = vld [vmem:[%s2387 + $0xb8] sm:$0x3]
    %v3288 = vrot.slane %v3029, 2
    %v3289 = vrot.slane %v3034, 2
    %v3290 = vsel %vm2078, %v3288, %v3289
    %v3291 = vsel %vm2211, %v3290, 0
    %v3293 = vsel %vm2211, %v3289, 0
    %v3296 = vsel %vm2216, %v3286, 0
    %v3299 = vsel %vm2216, %v3287, 0
    %3301 = vmatprep.subr.mxu0 0.0
    %3302 = vmatpush1.msra.mxu0 0.0
    %3303 = vmatprep.subr.mxu0 0.0
    %3304 = vmatpush1.msra.mxu0 0.0
    %3305 = vmatprep.subr.mxu0 0.0
    %3306 = vmatpush1.msra.mxu0 0.0
    %3307 = vmatprep.subr.mxu0 0.0
    %3308 = vmatpush1.msra.mxu0 0.0
    %3309 = vmatprep.subr.mxu0 %v3299
    %3310 = vmatpush1.msra.mxu0 %v3296
    %3311 = vmatprep.subr.mxu0 %v3285
    %3312 = vmatpush1.msra.mxu0 %v3284
    %3313 = vmatprep.subr.mxu0 %v3283
    %3314 = vmatpush1.msra.mxu0 %v3282
    %3315 = vmatprep.subr.mxu0 %v3281
    %3316 = vmatpush1.msra.mxu0 %v3280
    %3317 = vmatprep.subr.mxu0 %v3279
    %3318 = vmatpush1.msra.mxu0 %v3278
    %3319 = vmatprep.subr.mxu0 %v3277
    %3320 = vmatpush1.msra.mxu0 %v3276
    %3321 = vmatprep.subr.mxu0 %v3275
    %3322 = vmatpush1.msra.mxu0 %v3274
    %3323 = vmatprep.subr.mxu0 %v3273
    %3324 = vmatpush1.msra.mxu0 %v3272
    %3325 = vmatprep.subr.mxu0 %v3271
    %3326 = vmatpush1.msra.mxu0 %v3270
    %3327 = vmatprep.subr.mxu0 %v3269
    %3328 = vmatpush1.msra.mxu0 %v3268
    %3329 = vmatprep.subr.mxu0 %v3267
    %3330 = vmatpush1.msra.mxu0 %v3266
    %3331 = vmatprep.subr.mxu0 %v3265
    %3332 = vmatpush1.msra.mxu0 %v3264
    %3333 = vmatprep.subr.mxu0 0.0
    %3334 = vmatpush2.msra.mxu0 0.0
    %3335 = vmatprep.subr.mxu0 0.0
    %3336 = vmatpush2.msra.mxu0 0.0
    %3337 = vmatprep.subr.mxu0 0.0
    %3338 = vmatpush2.msra.mxu0 0.0
    %3339 = vmatprep.subr.mxu0 0.0
    %3340 = vmatpush2.msra.mxu0 0.0
    %3341 = vmatprep.subr.mxu0 0.0
    %3342 = vmatpush2.msra.mxu0 0.0
    %3343 = vmatprep.subr.mxu0 0.0
    %3344 = vmatpush2.msra.mxu0 0.0
    %3345 = vmatprep.subr.mxu0 0.0
    %3346 = vmatpush2.msra.mxu0 0.0
    %3347 = vmatprep.subr.mxu0 0.0
    %3348 = vmatpush2.msra.mxu0 0.0
    %3349 = vmatprep.subr.mxu0 0.0
    %3350 = vmatpush2.msra.mxu0 0.0
    %3351 = vmatprep.subr.mxu0 0.0
    %3352 = vmatpush2.msra.mxu0 0.0
    %3353 = vmatprep.subr.mxu0 0.0
    %3354 = vmatpush2.msra.mxu0 0.0
    %3355 = vmatprep.subr.mxu0 0.0
    %3356 = vmatpush2.msra.mxu0 0.0
    %3357 = vmatprep.subr.mxu0 0.0
    %3358 = vmatpush2.msra.mxu0 0.0
    %3359 = vmatprep.subr.mxu0 0.0
    %3360 = vmatpush2.msra.mxu0 0.0
    %3361 = vmatprep.subr.mxu0 0.0
    %3362 = vmatpush2.msra.mxu0 0.0
    %3363 = vmatprep.subr.mxu0 0.0
    %3364 = vmatpush2.msra.mxu0 0.0
    %3365 = vmatprep.mubr.f32.mxu0 0.0
    %3366 = vmatmul.mubr.f32.gmra.mxu0 %v3291
    %v3367 = vpop.f32.mrf.mxu0
    %v3368 = vadd.f32 0.0, %v3367
    %v3369 = vpop.f32.mrf.mxu0
    %v3370 = vadd.f32 0.0, %v3369
    %3371 = vmatprep.mubr.f32.mxu0 0.0
    %3372 = vmatmul.mubr.f32.gmra.mxu0 %v3293
    %v3373 = vpop.f32.mrf.mxu0
    %v3374 = vadd.f32 0.0, %v3373
    %v3375 = vpop.f32.mrf.mxu0
    %v3376 = vadd.f32 0.0, %v3375
    %3377 = vdwg.mxu0
    %v3378 = vadd.f32 %v3254, %v3368
    %v3379 = vadd.f32 %v3256, %v3370
    %v3380 = vadd.f32 %v3260, %v3374
    %v3381 = vadd.f32 %v3262, %v3376
    %v3382 = vld [vmem:[%s4] sm:$0x3]
    %v3384 = vlaneseq
    %v3385 = vshrl.u32 %v3384, 7
    %v3386 = vsub.s32 0, %v3385
    %v3387 = vrot.slane %v3382, %v3386
    %v3388 = vlaneseq
    %v3389 = vshrl.u32 %v3388, 7
    %v3390 = vsub.s32 1, %v3389
    %v3391 = vrot.slane %v3382, %v3390
    %v3394 = vadd.f32 %v3378, %v3387
    %v3395 = vadd.f32 %v3379, %v3391
    %v3396 = vadd.f32 %v3380, %v3387
    %v3397 = vadd.f32 %v3381, %v3391
    %v3398 = vmax.f32 %v3394, 0.0
    %v3399 = vmax.f32 %v3395, 0.0
    %v3400 = vmax.f32 %v3396, 0.0
    %v3401 = vmax.f32 %v3397, 0.0
    %v3406 = vrot.slane %v3398, 1
    %v3407 = vrot.slane %v3400, 1
    %v3408 = vsel %vm1880, %v3406, %v3407
    %v3409 = vrot.slane %v3399, 1
    %v3410 = vrot.slane %v3401, 1
    %v3411 = vsel %vm1880, %v3409, %v3410
    %v3416 = vmax.f32 %v3398, %v3408
    %v3417 = vmax.f32 %v3399, %v3411
    %v3418 = vmax.f32 %v3400, %v3407
    %v3419 = vmax.f32 %v3401, %v3410
    %3424 = vrot.lane.b32.xlu0 %v3416, 112
    %v3425 = vpop.permute.xlu0 %3424
    %3426 = vrot.lane.b32.xlu0 %v3417, 112
    %v3427 = vpop.permute.xlu0 %3426
    %3428 = vrot.lane.b32.xlu0 %v3418, 112
    %v3429 = vpop.permute.xlu0 %3428
    %3430 = vrot.lane.b32.xlu0 %v3419, 112
    %v3431 = vpop.permute.xlu0 %3430
    %v3432 = vsel %vm2556, %v3425, %v3427
    %v3433 = vsel %vm2556, %v3429, %v3431
    %v3438 = vmax.f32 %v3416, %v3432
    %v3439 = vmax.f32 %v3417, %v3427
    %v3440 = vmax.f32 %v3418, %v3433
    %v3441 = vmax.f32 %v3419, %v3431
    %v3442 = vld [vmem:[%s7] sm:$0x3f]
    %v3444 = vsel %vm2568, %v3442, 0
    %v3447 = vsel %vm2572, %v3440, 0
    %v3450 = vsel %vm2572, %v3441, 0
    %3452 = vmatprep.subr.mxu0 0.0
    %3453 = vmatpush1.msra.mxu0 0.0
    %3454 = vmatprep.subr.mxu0 0.0
    %3455 = vmatpush1.msra.mxu0 0.0
    %3456 = vmatprep.subr.mxu0 0.0
    %3457 = vmatpush1.msra.mxu0 0.0
    %3458 = vmatprep.subr.mxu0 0.0
    %3459 = vmatpush1.msra.mxu0 0.0
    %3460 = vmatprep.subr.mxu0 0.0
    %3461 = vmatpush1.msra.mxu0 0.0
    %3462 = vmatprep.subr.mxu0 0.0
    %3463 = vmatpush1.msra.mxu0 0.0
    %3464 = vmatprep.subr.mxu0 0.0
    %3465 = vmatpush1.msra.mxu0 0.0
    %3466 = vmatprep.subr.mxu0 0.0
    %3467 = vmatpush1.msra.mxu0 0.0
    %3468 = vmatprep.subr.mxu0 0.0
    %3469 = vmatpush1.msra.mxu0 0.0
    %3470 = vmatprep.subr.mxu0 0.0
    %3471 = vmatpush1.msra.mxu0 0.0
    %3472 = vmatprep.subr.mxu0 0.0
    %3473 = vmatpush1.msra.mxu0 0.0
    %3474 = vmatprep.subr.mxu0 0.0
    %3475 = vmatpush1.msra.mxu0 0.0
    %3476 = vmatprep.subr.mxu0 0.0
    %3477 = vmatpush1.msra.mxu0 0.0
    %3478 = vmatprep.subr.mxu0 0.0
    %3479 = vmatpush1.msra.mxu0 0.0
    %3480 = vmatprep.subr.mxu0 %v3450
    %3481 = vmatpush1.msra.mxu0 %v3447
    %3482 = vmatprep.subr.mxu0 %v3439
    %3483 = vmatpush1.msra.mxu0 %v3438
    %3484 = vmatprep.subr.mxu0 0.0
    %3485 = vmatpush2.msra.mxu0 0.0
    %3486 = vmatprep.subr.mxu0 0.0
    %3487 = vmatpush2.msra.mxu0 0.0
    %3488 = vmatprep.subr.mxu0 0.0
    %3489 = vmatpush2.msra.mxu0 0.0
    %3490 = vmatprep.subr.mxu0 0.0
    %3491 = vmatpush2.msra.mxu0 0.0
    %3492 = vmatprep.subr.mxu0 0.0
    %3493 = vmatpush2.msra.mxu0 0.0
    %3494 = vmatprep.subr.mxu0 0.0
    %3495 = vmatpush2.msra.mxu0 0.0
    %3496 = vmatprep.subr.mxu0 0.0
    %3497 = vmatpush2.msra.mxu0 0.0
    %3498 = vmatprep.subr.mxu0 0.0
    %3499 = vmatpush2.msra.mxu0 0.0
    %3500 = vmatprep.subr.mxu0 0.0
    %3501 = vmatpush2.msra.mxu0 0.0
    %3502 = vmatprep.subr.mxu0 0.0
    %3503 = vmatpush2.msra.mxu0 0.0
    %3504 = vmatprep.subr.mxu0 0.0
    %3505 = vmatpush2.msra.mxu0 0.0
    %3506 = vmatprep.subr.mxu0 0.0
    %3507 = vmatpush2.msra.mxu0 0.0
    %3508 = vmatprep.subr.mxu0 0.0
    %3509 = vmatpush2.msra.mxu0 0.0
    %3510 = vmatprep.subr.mxu0 0.0
    %3511 = vmatpush2.msra.mxu0 0.0
    %3512 = vmatprep.subr.mxu0 0.0
    %3513 = vmatpush2.msra.mxu0 0.0
    %3514 = vmatprep.subr.mxu0 0.0
    %3515 = vmatpush2.msra.mxu0 0.0
    %3516 = vmatprep.mubr.f32.mxu0 0.0
    %3517 = vmatmul.mubr.f32.gmra.mxu0 %v3444
    %v3518 = vpop.f32.mrf.mxu0
    %v3519 = vadd.f32 0.0, %v3518
    %v3520 = vpop.f32.mrf.mxu0
    %v3521 = vadd.f32 0.0, %v3520
    %3522 = vdwg.mxu0
    %v3523 = vld [vmem:[%s8] sm:$0xff]
    %v3524 = vld [vmem:[%s8 + $0x8] sm:$0xff]
    %v3525 = vld [vmem:[%s8 + $0x10] sm:$0xff]
    %v3526 = vld [vmem:[%s8 + $0x18] sm:$0xff]
    %v3527 = vld [vmem:[%s8 + $0x20] sm:$0xff]
    %v3528 = vld [vmem:[%s8 + $0x28] sm:$0xff]
    %v3529 = vld [vmem:[%s8 + $0x30] sm:$0xff]
    %v3530 = vld [vmem:[%s8 + $0x38] sm:$0xff]
    %v3531 = vld [vmem:[%s8 + $0x40] sm:$0xff]
    %v3532 = vld [vmem:[%s8 + $0x48] sm:$0xff]
    %v3533 = vld [vmem:[%s8 + $0x50] sm:$0xff]
    %v3534 = vld [vmem:[%s8 + $0x58] sm:$0xff]
    %v3535 = vld [vmem:[%s8 + $0x60] sm:$0xff]
    %v3536 = vld [vmem:[%s8 + $0x68] sm:$0xff]
    %v3537 = vld [vmem:[%s8 + $0x70] sm:$0xff]
    %v3538 = vld [vmem:[%s8 + $0x78] sm:$0xff]
    %v3539 = vld [vmem:[%s8 + $0x80] sm:$0xff]
    %v3540 = vld [vmem:[%s8 + $0x88] sm:$0xff]
    %v3541 = vld [vmem:[%s8 + $0x90] sm:$0xff]
    %v3542 = vld [vmem:[%s8 + $0x98] sm:$0xff]
    %v3543 = vld [vmem:[%s8 + $0xa0] sm:$0xff]
    %v3544 = vld [vmem:[%s8 + $0xa8] sm:$0xff]
    %v3545 = vld [vmem:[%s8 + $0xb0] sm:$0xff]
    %v3546 = vld [vmem:[%s8 + $0xb8] sm:$0xff]
    %v3548 = vsel %vm2674, %v3521, 0
    %3550 = vmatprep.subr.mxu0 0.0
    %3551 = vmatpush1.msra.mxu0 %v3538
    %3552 = vmatprep.subr.mxu0 0.0
    %3553 = vmatpush1.msra.mxu0 %v3537
    %3554 = vmatprep.subr.mxu0 0.0
    %3555 = vmatpush1.msra.mxu0 %v3536
    %3556 = vmatprep.subr.mxu0 0.0
    %3557 = vmatpush1.msra.mxu0 %v3535
    %3558 = vmatprep.subr.mxu0 0.0
    %3559 = vmatpush1.msra.mxu0 %v3534
    %3560 = vmatprep.subr.mxu0 0.0
    %3561 = vmatpush1.msra.mxu0 %v3533
    %3562 = vmatprep.subr.mxu0 0.0
    %3563 = vmatpush1.msra.mxu0 %v3532
    %3564 = vmatprep.subr.mxu0 0.0
    %3565 = vmatpush1.msra.mxu0 %v3531
    %3566 = vmatprep.subr.mxu0 0.0
    %3567 = vmatpush1.msra.mxu0 %v3530
    %3568 = vmatprep.subr.mxu0 0.0
    %3569 = vmatpush1.msra.mxu0 %v3529
    %3570 = vmatprep.subr.mxu0 0.0
    %3571 = vmatpush1.msra.mxu0 %v3528
    %3572 = vmatprep.subr.mxu0 0.0
    %3573 = vmatpush1.msra.mxu0 %v3527
    %3574 = vmatprep.subr.mxu0 0.0
    %3575 = vmatpush1.msra.mxu0 %v3526
    %3576 = vmatprep.subr.mxu0 0.0
    %3577 = vmatpush1.msra.mxu0 %v3525
    %3578 = vmatprep.subr.mxu0 0.0
    %3579 = vmatpush1.msra.mxu0 %v3524
    %3580 = vmatprep.subr.mxu0 0.0
    %3581 = vmatpush1.msra.mxu0 %v3523
    %3582 = vmatprep.subr.mxu0 0.0
    %3583 = vmatpush2.msra.mxu0 0.0
    %3584 = vmatprep.subr.mxu0 0.0
    %3585 = vmatpush2.msra.mxu0 0.0
    %3586 = vmatprep.subr.mxu0 0.0
    %3587 = vmatpush2.msra.mxu0 0.0
    %3588 = vmatprep.subr.mxu0 0.0
    %3589 = vmatpush2.msra.mxu0 0.0
    %3590 = vmatprep.subr.mxu0 0.0
    %3591 = vmatpush2.msra.mxu0 0.0
    %3592 = vmatprep.subr.mxu0 0.0
    %3593 = vmatpush2.msra.mxu0 0.0
    %3594 = vmatprep.subr.mxu0 0.0
    %3595 = vmatpush2.msra.mxu0 0.0
    %3596 = vmatprep.subr.mxu0 0.0
    %3597 = vmatpush2.msra.mxu0 0.0
    %3598 = vmatprep.subr.mxu0 0.0
    %3599 = vmatpush2.msra.mxu0 %v3546
    %3600 = vmatprep.subr.mxu0 0.0
    %3601 = vmatpush2.msra.mxu0 %v3545
    %3602 = vmatprep.subr.mxu0 0.0
    %3603 = vmatpush2.msra.mxu0 %v3544
    %3604 = vmatprep.subr.mxu0 0.0
    %3605 = vmatpush2.msra.mxu0 %v3543
    %3606 = vmatprep.subr.mxu0 0.0
    %3607 = vmatpush2.msra.mxu0 %v3542
    %3608 = vmatprep.subr.mxu0 0.0
    %3609 = vmatpush2.msra.mxu0 %v3541
    %3610 = vmatprep.subr.mxu0 0.0
    %3611 = vmatpush2.msra.mxu0 %v3540
    %3612 = vmatprep.subr.mxu0 0.0
    %3613 = vmatpush2.msra.mxu0 %v3539
    %3614 = vmatprep.mubr.f32.mxu0 %v3548
    %3615 = vmatmul.mubr.f32.gmra.mxu0 %v3519
    %v3616 = vpop.f32.mrf.mxu0
    %v3617 = vadd.f32 0.0, %v3616
    %v3618 = vpop.f32.mrf.mxu0
    %3619 = vdwg.mxu0
    %s3620 = scalar_lea.vmem [#allocation3], 8
    %3621 = vst.msk [vmem:[%s3620] sm:$0x3f] %vm2748, %v3617
    %v3622 = vld [vmem:[#allocation2 + $0x80] sm:$0xff]
    %v3623 = vld [vmem:[#allocation2 + $0x88] sm:$0xff]
    %v3624 = vld [vmem:[#allocation2 + $0x90] sm:$0xff]
    %v3625 = vld [vmem:[#allocation2 + $0x98] sm:$0xff]
    %v3626 = vld [vmem:[#allocation2 + $0xa0] sm:$0xff]
    %v3627 = vld [vmem:[#allocation2 + $0xa8] sm:$0xff]
    %v3628 = vld [vmem:[#allocation2 + $0xb0] sm:$0x3f]
    %v3629 = vld [vmem:[#allocation2 + $0xb8] sm:$0x3f]
    %v3638 = vrot.slane %v3622, 1
    %v3639 = vrot.slane %v3624, 1
    %v3640 = vsel %vm1880, %v3638, %v3639
    %v3641 = vrot.slane %v3623, 1
    %v3642 = vrot.slane %v3625, 1
    %v3643 = vsel %vm1880, %v3641, %v3642
    %v3644 = vrot.slane %v3626, 1
    %v3645 = vsel %vm1880, %v3639, %v3644
    %v3646 = vrot.slane %v3627, 1
    %v3647 = vsel %vm1880, %v3642, %v3646
    %v3648 = vrot.slane %v3628, 1
    %v3649 = vsel %vm1880, %v3644, %v3648
    %v3650 = vrot.slane %v3629, 1
    %v3651 = vsel %vm1880, %v3646, %v3650
    %v3660 = vmax.f32 %v3622, %v3640
    %v3661 = vmax.f32 %v3623, %v3643
    %v3662 = vmax.f32 %v3624, %v3645
    %v3663 = vmax.f32 %v3625, %v3647
    %v3664 = vmax.f32 %v3626, %v3649
    %v3665 = vmax.f32 %v3627, %v3651
    %v3666 = vmax.f32 %v3628, %v3648
    %v3667 = vmax.f32 %v3629, %v3650
    %3676 = vrot.lane.b32.xlu0 %v3660, 122
    %v3677 = vpop.permute.xlu0 %3676
    %3678 = vrot.lane.b32.xlu0 %v3661, 122
    %v3679 = vpop.permute.xlu0 %3678
    %3680 = vrot.lane.b32.xlu0 %v3662, 122
    %v3681 = vpop.permute.xlu0 %3680
    %3682 = vrot.lane.b32.xlu0 %v3663, 122
    %v3683 = vpop.permute.xlu0 %3682
    %3684 = vrot.lane.b32.xlu0 %v3664, 122
    %v3685 = vpop.permute.xlu0 %3684
    %3686 = vrot.lane.b32.xlu0 %v3665, 122
    %v3687 = vpop.permute.xlu0 %3686
    %3688 = vrot.lane.b32.xlu0 %v3666, 122
    %v3689 = vpop.permute.xlu0 %3688
    %3690 = vrot.lane.b32.xlu0 %v3667, 122
    %v3691 = vpop.permute.xlu0 %3690
    %v3692 = vsel %vm1935, %v3677, %v3679
    %v3693 = vsel %vm1935, %v3681, %v3683
    %v3694 = vsel %vm1935, %v3685, %v3687
    %v3695 = vsel %vm1935, %v3689, %v3691
    %v3704 = vmax.f32 %v3660, %v3692
    %v3705 = vmax.f32 %v3661, %v3679
    %v3706 = vmax.f32 %v3662, %v3693
    %v3707 = vmax.f32 %v3663, %v3683
    %v3708 = vmax.f32 %v3664, %v3694
    %v3709 = vmax.f32 %v3665, %v3687
    %v3710 = vmax.f32 %v3666, %v3695
    %v3711 = vmax.f32 %v3667, %v3691
    %v3712 = vld [vmem:[%s5] sm:$0xff]
    %v3713 = vld [vmem:[%s5 + $0x8] sm:$0x7f]
    %v3715 = vsel %vm1958, %v3712, 0
    %v3718 = vsel %vm1958, %v3713, 0
    %v3721 = vsel %vm1965, %v3710, 0
    %v3724 = vsel %vm1965, %v3711, 0
    %3726 = vmatprep.subr.mxu0 0.0
    %3727 = vmatpush1.msra.mxu0 0.0
    %3728 = vmatprep.subr.mxu0 0.0
    %3729 = vmatpush1.msra.mxu0 0.0
    %3730 = vmatprep.subr.mxu0 0.0
    %3731 = vmatpush1.msra.mxu0 0.0
    %3732 = vmatprep.subr.mxu0 0.0
    %3733 = vmatpush1.msra.mxu0 0.0
    %3734 = vmatprep.subr.mxu0 0.0
    %3735 = vmatpush1.msra.mxu0 0.0
    %3736 = vmatprep.subr.mxu0 0.0
    %3737 = vmatpush1.msra.mxu0 0.0
    %3738 = vmatprep.subr.mxu0 0.0
    %3739 = vmatpush1.msra.mxu0 0.0
    %3740 = vmatprep.subr.mxu0 0.0
    %3741 = vmatpush1.msra.mxu0 0.0
    %3742 = vmatprep.subr.mxu0 0.0
    %3743 = vmatpush1.msra.mxu0 0.0
    %3744 = vmatprep.subr.mxu0 0.0
    %3745 = vmatpush1.msra.mxu0 0.0
    %3746 = vmatprep.subr.mxu0 0.0
    %3747 = vmatpush1.msra.mxu0 0.0
    %3748 = vmatprep.subr.mxu0 0.0
    %3749 = vmatpush1.msra.mxu0 0.0
    %3750 = vmatprep.subr.mxu0 %v3724
    %3751 = vmatpush1.msra.mxu0 %v3721
    %3752 = vmatprep.subr.mxu0 %v3709
    %3753 = vmatpush1.msra.mxu0 %v3708
    %3754 = vmatprep.subr.mxu0 %v3707
    %3755 = vmatpush1.msra.mxu0 %v3706
    %3756 = vmatprep.subr.mxu0 %v3705
    %3757 = vmatpush1.msra.mxu0 %v3704
    %3758 = vmatprep.subr.mxu0 0.0
    %3759 = vmatpush2.msra.mxu0 0.0
    %3760 = vmatprep.subr.mxu0 0.0
    %3761 = vmatpush2.msra.mxu0 0.0
    %3762 = vmatprep.subr.mxu0 0.0
    %3763 = vmatpush2.msra.mxu0 0.0
    %3764 = vmatprep.subr.mxu0 0.0
    %3765 = vmatpush2.msra.mxu0 0.0
    %3766 = vmatprep.subr.mxu0 0.0
    %3767 = vmatpush2.msra.mxu0 0.0
    %3768 = vmatprep.subr.mxu0 0.0
    %3769 = vmatpush2.msra.mxu0 0.0
    %3770 = vmatprep.subr.mxu0 0.0
    %3771 = vmatpush2.msra.mxu0 0.0
    %3772 = vmatprep.subr.mxu0 0.0
    %3773 = vmatpush2.msra.mxu0 0.0
    %3774 = vmatprep.subr.mxu0 0.0
    %3775 = vmatpush2.msra.mxu0 0.0
    %3776 = vmatprep.subr.mxu0 0.0
    %3777 = vmatpush2.msra.mxu0 0.0
    %3778 = vmatprep.subr.mxu0 0.0
    %3779 = vmatpush2.msra.mxu0 0.0
    %3780 = vmatprep.subr.mxu0 0.0
    %3781 = vmatpush2.msra.mxu0 0.0
    %3782 = vmatprep.subr.mxu0 0.0
    %3783 = vmatpush2.msra.mxu0 0.0
    %3784 = vmatprep.subr.mxu0 0.0
    %3785 = vmatpush2.msra.mxu0 0.0
    %3786 = vmatprep.subr.mxu0 0.0
    %3787 = vmatpush2.msra.mxu0 0.0
    %3788 = vmatprep.subr.mxu0 0.0
    %3789 = vmatpush2.msra.mxu0 0.0
    %3790 = vmatprep.mubr.f32.mxu0 0.0
    %3791 = vmatmul.mubr.f32.gmra.mxu0 %v3715
    %v3792 = vpop.f32.mrf.mxu0
    %v3793 = vadd.f32 0.0, %v3792
    %v3794 = vpop.f32.mrf.mxu0
    %v3795 = vadd.f32 0.0, %v3794
    %3796 = vmatprep.mubr.f32.mxu0 0.0
    %3797 = vmatmul.mubr.f32.gmra.mxu0 %v3718
    %v3798 = vpop.f32.mrf.mxu0
    %v3799 = vadd.f32 0.0, %v3798
    %v3800 = vpop.f32.mrf.mxu0
    %v3801 = vadd.f32 0.0, %v3800
    %3802 = vdwg.mxu0
    %v3803 = vld [vmem:[#allocation7] sm:$0xff]
    %v3804 = vld [vmem:[#allocation7 + $0x8] sm:$0xff]
    %v3805 = vld [vmem:[#allocation7 + $0x10] sm:$0xff]
    %v3806 = vld [vmem:[#allocation7 + $0x18] sm:$0xff]
    %v3807 = vld [vmem:[#allocation7 + $0x20] sm:$0xff]
    %v3808 = vld [vmem:[#allocation7 + $0x28] sm:$0xff]
    %v3809 = vld [vmem:[#allocation7 + $0x30] sm:$0xff]
    %v3810 = vld [vmem:[#allocation7 + $0x38] sm:$0xff]
    %v3811 = vld [vmem:[#allocation7 + $0x40] sm:$0xff]
    %v3812 = vld [vmem:[#allocation7 + $0x48] sm:$0xff]
    %v3813 = vld [vmem:[#allocation7 + $0x50] sm:$0xff]
    %v3814 = vld [vmem:[#allocation7 + $0x58] sm:$0xff]
    %v3815 = vld [vmem:[#allocation7 + $0x60] sm:$0xff]
    %v3816 = vld [vmem:[#allocation7 + $0x68] sm:$0xff]
    %v3817 = vld [vmem:[#allocation7 + $0x70] sm:$0xff]
    %v3818 = vld [vmem:[#allocation7 + $0x78] sm:$0xff]
    %v3819 = vld [vmem:[#allocation7 + $0x80] sm:$0xff]
    %v3820 = vld [vmem:[#allocation7 + $0x88] sm:$0xff]
    %v3821 = vld [vmem:[#allocation7 + $0x90] sm:$0xff]
    %v3822 = vld [vmem:[#allocation7 + $0x98] sm:$0xff]
    %v3823 = vld [vmem:[#allocation7 + $0xa0] sm:$0xff]
    %v3824 = vld [vmem:[#allocation7 + $0xa8] sm:$0x3f]
    %v3826 = vsel %vm2071, %v3795, 0
    %v3829 = vsel %vm2071, %v3801, 0
    %v3832 = vsel %vm2078, %v3824, 0
    %3834 = vmatprep.subr.mxu0 0.0
    %3835 = vmatpush1.msra.mxu0 %v3818
    %3836 = vmatprep.subr.mxu0 0.0
    %3837 = vmatpush1.msra.mxu0 %v3817
    %3838 = vmatprep.subr.mxu0 0.0
    %3839 = vmatpush1.msra.mxu0 %v3816
    %3840 = vmatprep.subr.mxu0 0.0
    %3841 = vmatpush1.msra.mxu0 %v3815
    %3842 = vmatprep.subr.mxu0 0.0
    %3843 = vmatpush1.msra.mxu0 %v3814
    %3844 = vmatprep.subr.mxu0 0.0
    %3845 = vmatpush1.msra.mxu0 %v3813
    %3846 = vmatprep.subr.mxu0 0.0
    %3847 = vmatpush1.msra.mxu0 %v3812
    %3848 = vmatprep.subr.mxu0 0.0
    %3849 = vmatpush1.msra.mxu0 %v3811
    %3850 = vmatprep.subr.mxu0 0.0
    %3851 = vmatpush1.msra.mxu0 %v3810
    %3852 = vmatprep.subr.mxu0 0.0
    %3853 = vmatpush1.msra.mxu0 %v3809
    %3854 = vmatprep.subr.mxu0 0.0
    %3855 = vmatpush1.msra.mxu0 %v3808
    %3856 = vmatprep.subr.mxu0 0.0
    %3857 = vmatpush1.msra.mxu0 %v3807
    %3858 = vmatprep.subr.mxu0 0.0
    %3859 = vmatpush1.msra.mxu0 %v3806
    %3860 = vmatprep.subr.mxu0 0.0
    %3861 = vmatpush1.msra.mxu0 %v3805
    %3862 = vmatprep.subr.mxu0 0.0
    %3863 = vmatpush1.msra.mxu0 %v3804
    %3864 = vmatprep.subr.mxu0 0.0
    %3865 = vmatpush1.msra.mxu0 %v3803
    %3866 = vmatprep.subr.mxu0 0.0
    %3867 = vmatpush2.msra.mxu0 0.0
    %3868 = vmatprep.subr.mxu0 0.0
    %3869 = vmatpush2.msra.mxu0 0.0
    %3870 = vmatprep.subr.mxu0 0.0
    %3871 = vmatpush2.msra.mxu0 0.0
    %3872 = vmatprep.subr.mxu0 0.0
    %3873 = vmatpush2.msra.mxu0 0.0
    %3874 = vmatprep.subr.mxu0 0.0
    %3875 = vmatpush2.msra.mxu0 0.0
    %3876 = vmatprep.subr.mxu0 0.0
    %3877 = vmatpush2.msra.mxu0 0.0
    %3878 = vmatprep.subr.mxu0 0.0
    %3879 = vmatpush2.msra.mxu0 0.0
    %3880 = vmatprep.subr.mxu0 0.0
    %3881 = vmatpush2.msra.mxu0 0.0
    %3882 = vmatprep.subr.mxu0 0.0
    %3883 = vmatpush2.msra.mxu0 0.0
    %3884 = vmatprep.subr.mxu0 0.0
    %3885 = vmatpush2.msra.mxu0 0.0
    %3886 = vmatprep.subr.mxu0 0.0
    %3887 = vmatpush2.msra.mxu0 %v3832
    %3888 = vmatprep.subr.mxu0 0.0
    %3889 = vmatpush2.msra.mxu0 %v3823
    %3890 = vmatprep.subr.mxu0 0.0
    %3891 = vmatpush2.msra.mxu0 %v3822
    %3892 = vmatprep.subr.mxu0 0.0
    %3893 = vmatpush2.msra.mxu0 %v3821
    %3894 = vmatprep.subr.mxu0 0.0
    %3895 = vmatpush2.msra.mxu0 %v3820
    %3896 = vmatprep.subr.mxu0 0.0
    %3897 = vmatpush2.msra.mxu0 %v3819
    %3898 = vmatprep.mubr.f32.mxu0 %v3826
    %3899 = vmatmul.mubr.f32.gmra.mxu0 %v3793
    %v3900 = vpop.f32.mrf.mxu0
    %v3901 = vadd.f32 0.0, %v3900
    %v3902 = vpop.f32.mrf.mxu0
    %3903 = vmatprep.mubr.f32.mxu0 %v3829
    %3904 = vmatmul.mubr.f32.gmra.mxu0 %v3799
    %v3905 = vpop.f32.mrf.mxu0
    %v3906 = vadd.f32 0.0, %v3905
    %v3907 = vpop.f32.mrf.mxu0
    %3908 = vdwg.mxu0
    %v3909 = vld [vmem:[#allocation4] sm:$0xff]
    %v3910 = vld [vmem:[#allocation4 + $0x8] sm:$0xff]
    %v3911 = vld [vmem:[#allocation4 + $0x10] sm:$0xff]
    %v3912 = vld [vmem:[#allocation4 + $0x18] sm:$0xff]
    %v3913 = vld [vmem:[#allocation4 + $0x20] sm:$0xff]
    %v3914 = vld [vmem:[#allocation4 + $0x28] sm:$0xff]
    %v3915 = vld [vmem:[#allocation4 + $0x30] sm:$0xff]
    %v3916 = vld [vmem:[#allocation4 + $0x38] sm:$0xff]
    %v3917 = vld [vmem:[#allocation4 + $0x40] sm:$0xff]
    %v3918 = vld [vmem:[#allocation4 + $0x48] sm:$0xff]
    %v3919 = vld [vmem:[#allocation4 + $0x50] sm:$0xff]
    %v3920 = vld [vmem:[#allocation4 + $0x58] sm:$0xff]
    %v3921 = vld [vmem:[#allocation4 + $0x60] sm:$0xff]
    %v3922 = vld [vmem:[#allocation4 + $0x68] sm:$0xff]
    %v3923 = vld [vmem:[#allocation4 + $0x70] sm:$0xff]
    %v3924 = vld [vmem:[#allocation4 + $0x78] sm:$0xff]
    %v3925 = vld [vmem:[#allocation4 + $0x80] sm:$0xff]
    %v3926 = vld [vmem:[#allocation4 + $0x88] sm:$0xff]
    %v3927 = vld [vmem:[#allocation4 + $0x90] sm:$0xff]
    %v3928 = vld [vmem:[#allocation4 + $0x98] sm:$0xff]
    %v3929 = vld [vmem:[#allocation4 + $0xa0] sm:$0xff]
    %v3930 = vld [vmem:[#allocation4 + $0xa8] sm:$0xff]
    %v3931 = vld [vmem:[#allocation4 + $0xb0] sm:$0x3]
    %v3932 = vld [vmem:[#allocation4 + $0xb8] sm:$0x3]
    %v3933 = vld [vmem:[%s2181] sm:$0xff]
    %v3934 = vld [vmem:[%s2181 + $0x8] sm:$0xff]
    %v3935 = vld [vmem:[%s2181 + $0x10] sm:$0xff]
    %v3936 = vld [vmem:[%s2181 + $0x18] sm:$0xff]
    %v3937 = vld [vmem:[%s2181 + $0x20] sm:$0xff]
    %v3938 = vld [vmem:[%s2181 + $0x28] sm:$0xff]
    %v3939 = vld [vmem:[%s2181 + $0x30] sm:$0xff]
    %v3940 = vld [vmem:[%s2181 + $0x38] sm:$0xff]
    %v3941 = vld [vmem:[%s2181 + $0x40] sm:$0xff]
    %v3942 = vld [vmem:[%s2181 + $0x48] sm:$0xff]
    %v3943 = vld [vmem:[%s2181 + $0x50] sm:$0xff]
    %v3944 = vld [vmem:[%s2181 + $0x58] sm:$0xff]
    %v3945 = vld [vmem:[%s2181 + $0x60] sm:$0xff]
    %v3946 = vld [vmem:[%s2181 + $0x68] sm:$0xff]
    %v3947 = vld [vmem:[%s2181 + $0x70] sm:$0xff]
    %v3948 = vld [vmem:[%s2181 + $0x78] sm:$0xff]
    %v3949 = vld [vmem:[%s2181 + $0x80] sm:$0xff]
    %v3950 = vld [vmem:[%s2181 + $0x88] sm:$0xff]
    %v3951 = vld [vmem:[%s2181 + $0x90] sm:$0xff]
    %v3952 = vld [vmem:[%s2181 + $0x98] sm:$0xff]
    %v3953 = vld [vmem:[%s2181 + $0xa0] sm:$0xff]
    %v3954 = vld [vmem:[%s2181 + $0xa8] sm:$0xff]
    %v3955 = vld [vmem:[%s2181 + $0xb0] sm:$0x3]
    %v3956 = vld [vmem:[%s2181 + $0xb8] sm:$0x3]
    %v3959 = vrot.slane %v3901, 1
    %v3960 = vrot.slane %v3906, 1
    %v3961 = vsel %vm1880, %v3959, %v3960
    %v3962 = vsel %vm2211, %v3961, 0
    %v3964 = vsel %vm2211, %v3960, 0
    %v3967 = vsel %vm2216, %v3955, 0
    %v3970 = vsel %vm2216, %v3956, 0
    %3972 = vmatprep.subr.mxu0 0.0
    %3973 = vmatpush1.msra.mxu0 0.0
    %3974 = vmatprep.subr.mxu0 0.0
    %3975 = vmatpush1.msra.mxu0 0.0
    %3976 = vmatprep.subr.mxu0 0.0
    %3977 = vmatpush1.msra.mxu0 0.0
    %3978 = vmatprep.subr.mxu0 0.0
    %3979 = vmatpush1.msra.mxu0 0.0
    %3980 = vmatprep.subr.mxu0 %v3970
    %3981 = vmatpush1.msra.mxu0 %v3967
    %3982 = vmatprep.subr.mxu0 %v3954
    %3983 = vmatpush1.msra.mxu0 %v3953
    %3984 = vmatprep.subr.mxu0 %v3952
    %3985 = vmatpush1.msra.mxu0 %v3951
    %3986 = vmatprep.subr.mxu0 %v3950
    %3987 = vmatpush1.msra.mxu0 %v3949
    %3988 = vmatprep.subr.mxu0 %v3948
    %3989 = vmatpush1.msra.mxu0 %v3947
    %3990 = vmatprep.subr.mxu0 %v3946
    %3991 = vmatpush1.msra.mxu0 %v3945
    %3992 = vmatprep.subr.mxu0 %v3944
    %3993 = vmatpush1.msra.mxu0 %v3943
    %3994 = vmatprep.subr.mxu0 %v3942
    %3995 = vmatpush1.msra.mxu0 %v3941
    %3996 = vmatprep.subr.mxu0 %v3940
    %3997 = vmatpush1.msra.mxu0 %v3939
    %3998 = vmatprep.subr.mxu0 %v3938
    %3999 = vmatpush1.msra.mxu0 %v3937
    %4000 = vmatprep.subr.mxu0 %v3936
    %4001 = vmatpush1.msra.mxu0 %v3935
    %4002 = vmatprep.subr.mxu0 %v3934
    %4003 = vmatpush1.msra.mxu0 %v3933
    %4004 = vmatprep.subr.mxu0 0.0
    %4005 = vmatpush2.msra.mxu0 0.0
    %4006 = vmatprep.subr.mxu0 0.0
    %4007 = vmatpush2.msra.mxu0 0.0
    %4008 = vmatprep.subr.mxu0 0.0
    %4009 = vmatpush2.msra.mxu0 0.0
    %4010 = vmatprep.subr.mxu0 0.0
    %4011 = vmatpush2.msra.mxu0 0.0
    %4012 = vmatprep.subr.mxu0 0.0
    %4013 = vmatpush2.msra.mxu0 0.0
    %4014 = vmatprep.subr.mxu0 0.0
    %4015 = vmatpush2.msra.mxu0 0.0
    %4016 = vmatprep.subr.mxu0 0.0
    %4017 = vmatpush2.msra.mxu0 0.0
    %4018 = vmatprep.subr.mxu0 0.0
    %4019 = vmatpush2.msra.mxu0 0.0
    %4020 = vmatprep.subr.mxu0 0.0
    %4021 = vmatpush2.msra.mxu0 0.0
    %4022 = vmatprep.subr.mxu0 0.0
    %4023 = vmatpush2.msra.mxu0 0.0
    %4024 = vmatprep.subr.mxu0 0.0
    %4025 = vmatpush2.msra.mxu0 0.0
    %4026 = vmatprep.subr.mxu0 0.0
    %4027 = vmatpush2.msra.mxu0 0.0
    %4028 = vmatprep.subr.mxu0 0.0
    %4029 = vmatpush2.msra.mxu0 0.0
    %4030 = vmatprep.subr.mxu0 0.0
    %4031 = vmatpush2.msra.mxu0 0.0
    %4032 = vmatprep.subr.mxu0 0.0
    %4033 = vmatpush2.msra.mxu0 0.0
    %4034 = vmatprep.subr.mxu0 0.0
    %4035 = vmatpush2.msra.mxu0 0.0
    %4036 = vmatprep.mubr.f32.mxu0 0.0
    %4037 = vmatmul.mubr.f32.gmra.mxu0 %v3962
    %v4038 = vpop.f32.mrf.mxu0
    %v4039 = vadd.f32 0.0, %v4038
    %v4040 = vpop.f32.mrf.mxu0
    %v4041 = vadd.f32 0.0, %v4040
    %4042 = vmatprep.mubr.f32.mxu0 0.0
    %4043 = vmatmul.mubr.f32.gmra.mxu0 %v3964
    %v4044 = vpop.f32.mrf.mxu0
    %v4045 = vadd.f32 0.0, %v4044
    %v4046 = vpop.f32.mrf.mxu0
    %v4047 = vadd.f32 0.0, %v4046
    %4048 = vdwg.mxu0
    %v4049 = vsel %vm2211, %v3901, 0
    %v4051 = vsel %vm2211, %v3906, 0
    %v4054 = vsel %vm2216, %v3931, 0
    %v4057 = vsel %vm2216, %v3932, 0
    %4059 = vmatprep.subr.mxu0 0.0
    %4060 = vmatpush1.msra.mxu0 0.0
    %4061 = vmatprep.subr.mxu0 0.0
    %4062 = vmatpush1.msra.mxu0 0.0
    %4063 = vmatprep.subr.mxu0 0.0
    %4064 = vmatpush1.msra.mxu0 0.0
    %4065 = vmatprep.subr.mxu0 0.0
    %4066 = vmatpush1.msra.mxu0 0.0
    %4067 = vmatprep.subr.mxu0 %v4057
    %4068 = vmatpush1.msra.mxu0 %v4054
    %4069 = vmatprep.subr.mxu0 %v3930
    %4070 = vmatpush1.msra.mxu0 %v3929
    %4071 = vmatprep.subr.mxu0 %v3928
    %4072 = vmatpush1.msra.mxu0 %v3927
    %4073 = vmatprep.subr.mxu0 %v3926
    %4074 = vmatpush1.msra.mxu0 %v3925
    %4075 = vmatprep.subr.mxu0 %v3924
    %4076 = vmatpush1.msra.mxu0 %v3923
    %4077 = vmatprep.subr.mxu0 %v3922
    %4078 = vmatpush1.msra.mxu0 %v3921
    %4079 = vmatprep.subr.mxu0 %v3920
    %4080 = vmatpush1.msra.mxu0 %v3919
    %4081 = vmatprep.subr.mxu0 %v3918
    %4082 = vmatpush1.msra.mxu0 %v3917
    %4083 = vmatprep.subr.mxu0 %v3916
    %4084 = vmatpush1.msra.mxu0 %v3915
    %4085 = vmatprep.subr.mxu0 %v3914
    %4086 = vmatpush1.msra.mxu0 %v3913
    %4087 = vmatprep.subr.mxu0 %v3912
    %4088 = vmatpush1.msra.mxu0 %v3911
    %4089 = vmatprep.subr.mxu0 %v3910
    %4090 = vmatpush1.msra.mxu0 %v3909
    %4091 = vmatprep.subr.mxu0 0.0
    %4092 = vmatpush2.msra.mxu0 0.0
    %4093 = vmatprep.subr.mxu0 0.0
    %4094 = vmatpush2.msra.mxu0 0.0
    %4095 = vmatprep.subr.mxu0 0.0
    %4096 = vmatpush2.msra.mxu0 0.0
    %4097 = vmatprep.subr.mxu0 0.0
    %4098 = vmatpush2.msra.mxu0 0.0
    %4099 = vmatprep.subr.mxu0 0.0
    %4100 = vmatpush2.msra.mxu0 0.0
    %4101 = vmatprep.subr.mxu0 0.0
    %4102 = vmatpush2.msra.mxu0 0.0
    %4103 = vmatprep.subr.mxu0 0.0
    %4104 = vmatpush2.msra.mxu0 0.0
    %4105 = vmatprep.subr.mxu0 0.0
    %4106 = vmatpush2.msra.mxu0 0.0
    %4107 = vmatprep.subr.mxu0 0.0
    %4108 = vmatpush2.msra.mxu0 0.0
    %4109 = vmatprep.subr.mxu0 0.0
    %4110 = vmatpush2.msra.mxu0 0.0
    %4111 = vmatprep.subr.mxu0 0.0
    %4112 = vmatpush2.msra.mxu0 0.0
    %4113 = vmatprep.subr.mxu0 0.0
    %4114 = vmatpush2.msra.mxu0 0.0
    %4115 = vmatprep.subr.mxu0 0.0
    %4116 = vmatpush2.msra.mxu0 0.0
    %4117 = vmatprep.subr.mxu0 0.0
    %4118 = vmatpush2.msra.mxu0 0.0
    %4119 = vmatprep.subr.mxu0 0.0
    %4120 = vmatpush2.msra.mxu0 0.0
    %4121 = vmatprep.subr.mxu0 0.0
    %4122 = vmatpush2.msra.mxu0 0.0
    %4123 = vmatprep.mubr.f32.mxu0 0.0
    %4124 = vmatmul.mubr.f32.gmra.mxu0 %v4049
    %v4125 = vpop.f32.mrf.mxu0
    %v4126 = vadd.f32 %v4039, %v4125
    %v4127 = vpop.f32.mrf.mxu0
    %v4128 = vadd.f32 %v4041, %v4127
    %4129 = vmatprep.mubr.f32.mxu0 0.0
    %4130 = vmatmul.mubr.f32.gmra.mxu0 %v4051
    %v4131 = vpop.f32.mrf.mxu0
    %v4132 = vadd.f32 %v4045, %v4131
    %v4133 = vpop.f32.mrf.mxu0
    %v4134 = vadd.f32 %v4047, %v4133
    %4135 = vdwg.mxu0
    %v4136 = vld [vmem:[%s2387] sm:$0xff]
    %v4137 = vld [vmem:[%s2387 + $0x8] sm:$0xff]
    %v4138 = vld [vmem:[%s2387 + $0x10] sm:$0xff]
    %v4139 = vld [vmem:[%s2387 + $0x18] sm:$0xff]
    %v4140 = vld [vmem:[%s2387 + $0x20] sm:$0xff]
    %v4141 = vld [vmem:[%s2387 + $0x28] sm:$0xff]
    %v4142 = vld [vmem:[%s2387 + $0x30] sm:$0xff]
    %v4143 = vld [vmem:[%s2387 + $0x38] sm:$0xff]
    %v4144 = vld [vmem:[%s2387 + $0x40] sm:$0xff]
    %v4145 = vld [vmem:[%s2387 + $0x48] sm:$0xff]
    %v4146 = vld [vmem:[%s2387 + $0x50] sm:$0xff]
    %v4147 = vld [vmem:[%s2387 + $0x58] sm:$0xff]
    %v4148 = vld [vmem:[%s2387 + $0x60] sm:$0xff]
    %v4149 = vld [vmem:[%s2387 + $0x68] sm:$0xff]
    %v4150 = vld [vmem:[%s2387 + $0x70] sm:$0xff]
    %v4151 = vld [vmem:[%s2387 + $0x78] sm:$0xff]
    %v4152 = vld [vmem:[%s2387 + $0x80] sm:$0xff]
    %v4153 = vld [vmem:[%s2387 + $0x88] sm:$0xff]
    %v4154 = vld [vmem:[%s2387 + $0x90] sm:$0xff]
    %v4155 = vld [vmem:[%s2387 + $0x98] sm:$0xff]
    %v4156 = vld [vmem:[%s2387 + $0xa0] sm:$0xff]
    %v4157 = vld [vmem:[%s2387 + $0xa8] sm:$0xff]
    %v4158 = vld [vmem:[%s2387 + $0xb0] sm:$0x3]
    %v4159 = vld [vmem:[%s2387 + $0xb8] sm:$0x3]
    %v4160 = vrot.slane %v3901, 2
    %v4161 = vrot.slane %v3906, 2
    %v4162 = vsel %vm2078, %v4160, %v4161
    %v4163 = vsel %vm2211, %v4162, 0
    %v4165 = vsel %vm2211, %v4161, 0
    %v4168 = vsel %vm2216, %v4158, 0
    %v4171 = vsel %vm2216, %v4159, 0
    %4173 = vmatprep.subr.mxu0 0.0
    %4174 = vmatpush1.msra.mxu0 0.0
    %4175 = vmatprep.subr.mxu0 0.0
    %4176 = vmatpush1.msra.mxu0 0.0
    %4177 = vmatprep.subr.mxu0 0.0
    %4178 = vmatpush1.msra.mxu0 0.0
    %4179 = vmatprep.subr.mxu0 0.0
    %4180 = vmatpush1.msra.mxu0 0.0
    %4181 = vmatprep.subr.mxu0 %v4171
    %4182 = vmatpush1.msra.mxu0 %v4168
    %4183 = vmatprep.subr.mxu0 %v4157
    %4184 = vmatpush1.msra.mxu0 %v4156
    %4185 = vmatprep.subr.mxu0 %v4155
    %4186 = vmatpush1.msra.mxu0 %v4154
    %4187 = vmatprep.subr.mxu0 %v4153
    %4188 = vmatpush1.msra.mxu0 %v4152
    %4189 = vmatprep.subr.mxu0 %v4151
    %4190 = vmatpush1.msra.mxu0 %v4150
    %4191 = vmatprep.subr.mxu0 %v4149
    %4192 = vmatpush1.msra.mxu0 %v4148
    %4193 = vmatprep.subr.mxu0 %v4147
    %4194 = vmatpush1.msra.mxu0 %v4146
    %4195 = vmatprep.subr.mxu0 %v4145
    %4196 = vmatpush1.msra.mxu0 %v4144
    %4197 = vmatprep.subr.mxu0 %v4143
    %4198 = vmatpush1.msra.mxu0 %v4142
    %4199 = vmatprep.subr.mxu0 %v4141
    %4200 = vmatpush1.msra.mxu0 %v4140
    %4201 = vmatprep.subr.mxu0 %v4139
    %4202 = vmatpush1.msra.mxu0 %v4138
    %4203 = vmatprep.subr.mxu0 %v4137
    %4204 = vmatpush1.msra.mxu0 %v4136
    %4205 = vmatprep.subr.mxu0 0.0
    %4206 = vmatpush2.msra.mxu0 0.0
    %4207 = vmatprep.subr.mxu0 0.0
    %4208 = vmatpush2.msra.mxu0 0.0
    %4209 = vmatprep.subr.mxu0 0.0
    %4210 = vmatpush2.msra.mxu0 0.0
    %4211 = vmatprep.subr.mxu0 0.0
    %4212 = vmatpush2.msra.mxu0 0.0
    %4213 = vmatprep.subr.mxu0 0.0
    %4214 = vmatpush2.msra.mxu0 0.0
    %4215 = vmatprep.subr.mxu0 0.0
    %4216 = vmatpush2.msra.mxu0 0.0
    %4217 = vmatprep.subr.mxu0 0.0
    %4218 = vmatpush2.msra.mxu0 0.0
    %4219 = vmatprep.subr.mxu0 0.0
    %4220 = vmatpush2.msra.mxu0 0.0
    %4221 = vmatprep.subr.mxu0 0.0
    %4222 = vmatpush2.msra.mxu0 0.0
    %4223 = vmatprep.subr.mxu0 0.0
    %4224 = vmatpush2.msra.mxu0 0.0
    %4225 = vmatprep.subr.mxu0 0.0
    %4226 = vmatpush2.msra.mxu0 0.0
    %4227 = vmatprep.subr.mxu0 0.0
    %4228 = vmatpush2.msra.mxu0 0.0
    %4229 = vmatprep.subr.mxu0 0.0
    %4230 = vmatpush2.msra.mxu0 0.0
    %4231 = vmatprep.subr.mxu0 0.0
    %4232 = vmatpush2.msra.mxu0 0.0
    %4233 = vmatprep.subr.mxu0 0.0
    %4234 = vmatpush2.msra.mxu0 0.0
    %4235 = vmatprep.subr.mxu0 0.0
    %4236 = vmatpush2.msra.mxu0 0.0
    %4237 = vmatprep.mubr.f32.mxu0 0.0
    %4238 = vmatmul.mubr.f32.gmra.mxu0 %v4163
    %v4239 = vpop.f32.mrf.mxu0
    %v4240 = vadd.f32 0.0, %v4239
    %v4241 = vpop.f32.mrf.mxu0
    %v4242 = vadd.f32 0.0, %v4241
    %4243 = vmatprep.mubr.f32.mxu0 0.0
    %4244 = vmatmul.mubr.f32.gmra.mxu0 %v4165
    %v4245 = vpop.f32.mrf.mxu0
    %v4246 = vadd.f32 0.0, %v4245
    %v4247 = vpop.f32.mrf.mxu0
    %v4248 = vadd.f32 0.0, %v4247
    %4249 = vdwg.mxu0
    %v4250 = vadd.f32 %v4126, %v4240
    %v4251 = vadd.f32 %v4128, %v4242
    %v4252 = vadd.f32 %v4132, %v4246
    %v4253 = vadd.f32 %v4134, %v4248
    %v4254 = vld [vmem:[%s4] sm:$0x3]
    %v4256 = vlaneseq
    %v4257 = vshrl.u32 %v4256, 7
    %v4258 = vsub.s32 0, %v4257
    %v4259 = vrot.slane %v4254, %v4258
    %v4260 = vlaneseq
    %v4261 = vshrl.u32 %v4260, 7
    %v4262 = vsub.s32 1, %v4261
    %v4263 = vrot.slane %v4254, %v4262
    %v4266 = vadd.f32 %v4250, %v4259
    %v4267 = vadd.f32 %v4251, %v4263
    %v4268 = vadd.f32 %v4252, %v4259
    %v4269 = vadd.f32 %v4253, %v4263
    %v4270 = vmax.f32 %v4266, 0.0
    %v4271 = vmax.f32 %v4267, 0.0
    %v4272 = vmax.f32 %v4268, 0.0
    %v4273 = vmax.f32 %v4269, 0.0
    %v4278 = vrot.slane %v4270, 1
    %v4279 = vrot.slane %v4272, 1
    %v4280 = vsel %vm1880, %v4278, %v4279
    %v4281 = vrot.slane %v4271, 1
    %v4282 = vrot.slane %v4273, 1
    %v4283 = vsel %vm1880, %v4281, %v4282
    %v4288 = vmax.f32 %v4270, %v4280
    %v4289 = vmax.f32 %v4271, %v4283
    %v4290 = vmax.f32 %v4272, %v4279
    %v4291 = vmax.f32 %v4273, %v4282
    %4296 = vrot.lane.b32.xlu0 %v4288, 112
    %v4297 = vpop.permute.xlu0 %4296
    %4298 = vrot.lane.b32.xlu0 %v4289, 112
    %v4299 = vpop.permute.xlu0 %4298
    %4300 = vrot.lane.b32.xlu0 %v4290, 112
    %v4301 = vpop.permute.xlu0 %4300
    %4302 = vrot.lane.b32.xlu0 %v4291, 112
    %v4303 = vpop.permute.xlu0 %4302
    %v4304 = vsel %vm2556, %v4297, %v4299
    %v4305 = vsel %vm2556, %v4301, %v4303
    %v4310 = vmax.f32 %v4288, %v4304
    %v4311 = vmax.f32 %v4289, %v4299
    %v4312 = vmax.f32 %v4290, %v4305
    %v4313 = vmax.f32 %v4291, %v4303
    %v4314 = vld [vmem:[%s7] sm:$0x3f]
    %v4316 = vsel %vm2568, %v4314, 0
    %v4319 = vsel %vm2572, %v4312, 0
    %v4322 = vsel %vm2572, %v4313, 0
    %4324 = vmatprep.subr.mxu0 0.0
    %4325 = vmatpush1.msra.mxu0 0.0
    %4326 = vmatprep.subr.mxu0 0.0
    %4327 = vmatpush1.msra.mxu0 0.0
    %4328 = vmatprep.subr.mxu0 0.0
    %4329 = vmatpush1.msra.mxu0 0.0
    %4330 = vmatprep.subr.mxu0 0.0
    %4331 = vmatpush1.msra.mxu0 0.0
    %4332 = vmatprep.subr.mxu0 0.0
    %4333 = vmatpush1.msra.mxu0 0.0
    %4334 = vmatprep.subr.mxu0 0.0
    %4335 = vmatpush1.msra.mxu0 0.0
    %4336 = vmatprep.subr.mxu0 0.0
    %4337 = vmatpush1.msra.mxu0 0.0
    %4338 = vmatprep.subr.mxu0 0.0
    %4339 = vmatpush1.msra.mxu0 0.0
    %4340 = vmatprep.subr.mxu0 0.0
    %4341 = vmatpush1.msra.mxu0 0.0
    %4342 = vmatprep.subr.mxu0 0.0
    %4343 = vmatpush1.msra.mxu0 0.0
    %4344 = vmatprep.subr.mxu0 0.0
    %4345 = vmatpush1.msra.mxu0 0.0
    %4346 = vmatprep.subr.mxu0 0.0
    %4347 = vmatpush1.msra.mxu0 0.0
    %4348 = vmatprep.subr.mxu0 0.0
    %4349 = vmatpush1.msra.mxu0 0.0
    %4350 = vmatprep.subr.mxu0 0.0
    %4351 = vmatpush1.msra.mxu0 0.0
    %4352 = vmatprep.subr.mxu0 %v4322
    %4353 = vmatpush1.msra.mxu0 %v4319
    %4354 = vmatprep.subr.mxu0 %v4311
    %4355 = vmatpush1.msra.mxu0 %v4310
    %4356 = vmatprep.subr.mxu0 0.0
    %4357 = vmatpush2.msra.mxu0 0.0
    %4358 = vmatprep.subr.mxu0 0.0
    %4359 = vmatpush2.msra.mxu0 0.0
    %4360 = vmatprep.subr.mxu0 0.0
    %4361 = vmatpush2.msra.mxu0 0.0
    %4362 = vmatprep.subr.mxu0 0.0
    %4363 = vmatpush2.msra.mxu0 0.0
    %4364 = vmatprep.subr.mxu0 0.0
    %4365 = vmatpush2.msra.mxu0 0.0
    %4366 = vmatprep.subr.mxu0 0.0
    %4367 = vmatpush2.msra.mxu0 0.0
    %4368 = vmatprep.subr.mxu0 0.0
    %4369 = vmatpush2.msra.mxu0 0.0
    %4370 = vmatprep.subr.mxu0 0.0
    %4371 = vmatpush2.msra.mxu0 0.0
    %4372 = vmatprep.subr.mxu0 0.0
    %4373 = vmatpush2.msra.mxu0 0.0
    %4374 = vmatprep.subr.mxu0 0.0
    %4375 = vmatpush2.msra.mxu0 0.0
    %4376 = vmatprep.subr.mxu0 0.0
    %4377 = vmatpush2.msra.mxu0 0.0
    %4378 = vmatprep.subr.mxu0 0.0
    %4379 = vmatpush2.msra.mxu0 0.0
    %4380 = vmatprep.subr.mxu0 0.0
    %4381 = vmatpush2.msra.mxu0 0.0
    %4382 = vmatprep.subr.mxu0 0.0
    %4383 = vmatpush2.msra.mxu0 0.0
    %4384 = vmatprep.subr.mxu0 0.0
    %4385 = vmatpush2.msra.mxu0 0.0
    %4386 = vmatprep.subr.mxu0 0.0
    %4387 = vmatpush2.msra.mxu0 0.0
    %4388 = vmatprep.mubr.f32.mxu0 0.0
    %4389 = vmatmul.mubr.f32.gmra.mxu0 %v4316
    %v4390 = vpop.f32.mrf.mxu0
    %v4391 = vadd.f32 0.0, %v4390
    %v4392 = vpop.f32.mrf.mxu0
    %v4393 = vadd.f32 0.0, %v4392
    %4394 = vdwg.mxu0
    %v4395 = vld [vmem:[%s8] sm:$0xff]
    %v4396 = vld [vmem:[%s8 + $0x8] sm:$0xff]
    %v4397 = vld [vmem:[%s8 + $0x10] sm:$0xff]
    %v4398 = vld [vmem:[%s8 + $0x18] sm:$0xff]
    %v4399 = vld [vmem:[%s8 + $0x20] sm:$0xff]
    %v4400 = vld [vmem:[%s8 + $0x28] sm:$0xff]
    %v4401 = vld [vmem:[%s8 + $0x30] sm:$0xff]
    %v4402 = vld [vmem:[%s8 + $0x38] sm:$0xff]
    %v4403 = vld [vmem:[%s8 + $0x40] sm:$0xff]
    %v4404 = vld [vmem:[%s8 + $0x48] sm:$0xff]
    %v4405 = vld [vmem:[%s8 + $0x50] sm:$0xff]
    %v4406 = vld [vmem:[%s8 + $0x58] sm:$0xff]
    %v4407 = vld [vmem:[%s8 + $0x60] sm:$0xff]
    %v4408 = vld [vmem:[%s8 + $0x68] sm:$0xff]
    %v4409 = vld [vmem:[%s8 + $0x70] sm:$0xff]
    %v4410 = vld [vmem:[%s8 + $0x78] sm:$0xff]
    %v4411 = vld [vmem:[%s8 + $0x80] sm:$0xff]
    %v4412 = vld [vmem:[%s8 + $0x88] sm:$0xff]
    %v4413 = vld [vmem:[%s8 + $0x90] sm:$0xff]
    %v4414 = vld [vmem:[%s8 + $0x98] sm:$0xff]
    %v4415 = vld [vmem:[%s8 + $0xa0] sm:$0xff]
    %v4416 = vld [vmem:[%s8 + $0xa8] sm:$0xff]
    %v4417 = vld [vmem:[%s8 + $0xb0] sm:$0xff]
    %v4418 = vld [vmem:[%s8 + $0xb8] sm:$0xff]
    %v4420 = vsel %vm2674, %v4393, 0
    %4422 = vmatprep.subr.mxu0 0.0
    %4423 = vmatpush1.msra.mxu0 %v4410
    %4424 = vmatprep.subr.mxu0 0.0
    %4425 = vmatpush1.msra.mxu0 %v4409
    %4426 = vmatprep.subr.mxu0 0.0
    %4427 = vmatpush1.msra.mxu0 %v4408
    %4428 = vmatprep.subr.mxu0 0.0
    %4429 = vmatpush1.msra.mxu0 %v4407
    %4430 = vmatprep.subr.mxu0 0.0
    %4431 = vmatpush1.msra.mxu0 %v4406
    %4432 = vmatprep.subr.mxu0 0.0
    %4433 = vmatpush1.msra.mxu0 %v4405
    %4434 = vmatprep.subr.mxu0 0.0
    %4435 = vmatpush1.msra.mxu0 %v4404
    %4436 = vmatprep.subr.mxu0 0.0
    %4437 = vmatpush1.msra.mxu0 %v4403
    %4438 = vmatprep.subr.mxu0 0.0
    %4439 = vmatpush1.msra.mxu0 %v4402
    %4440 = vmatprep.subr.mxu0 0.0
    %4441 = vmatpush1.msra.mxu0 %v4401
    %4442 = vmatprep.subr.mxu0 0.0
    %4443 = vmatpush1.msra.mxu0 %v4400
    %4444 = vmatprep.subr.mxu0 0.0
    %4445 = vmatpush1.msra.mxu0 %v4399
    %4446 = vmatprep.subr.mxu0 0.0
    %4447 = vmatpush1.msra.mxu0 %v4398
    %4448 = vmatprep.subr.mxu0 0.0
    %4449 = vmatpush1.msra.mxu0 %v4397
    %4450 = vmatprep.subr.mxu0 0.0
    %4451 = vmatpush1.msra.mxu0 %v4396
    %4452 = vmatprep.subr.mxu0 0.0
    %4453 = vmatpush1.msra.mxu0 %v4395
    %4454 = vmatprep.subr.mxu0 0.0
    %4455 = vmatpush2.msra.mxu0 0.0
    %4456 = vmatprep.subr.mxu0 0.0
    %4457 = vmatpush2.msra.mxu0 0.0
    %4458 = vmatprep.subr.mxu0 0.0
    %4459 = vmatpush2.msra.mxu0 0.0
    %4460 = vmatprep.subr.mxu0 0.0
    %4461 = vmatpush2.msra.mxu0 0.0
    %4462 = vmatprep.subr.mxu0 0.0
    %4463 = vmatpush2.msra.mxu0 0.0
    %4464 = vmatprep.subr.mxu0 0.0
    %4465 = vmatpush2.msra.mxu0 0.0
    %4466 = vmatprep.subr.mxu0 0.0
    %4467 = vmatpush2.msra.mxu0 0.0
    %4468 = vmatprep.subr.mxu0 0.0
    %4469 = vmatpush2.msra.mxu0 0.0
    %4470 = vmatprep.subr.mxu0 0.0
    %4471 = vmatpush2.msra.mxu0 %v4418
    %4472 = vmatprep.subr.mxu0 0.0
    %4473 = vmatpush2.msra.mxu0 %v4417
    %4474 = vmatprep.subr.mxu0 0.0
    %4475 = vmatpush2.msra.mxu0 %v4416
    %4476 = vmatprep.subr.mxu0 0.0
    %4477 = vmatpush2.msra.mxu0 %v4415
    %4478 = vmatprep.subr.mxu0 0.0
    %4479 = vmatpush2.msra.mxu0 %v4414
    %4480 = vmatprep.subr.mxu0 0.0
    %4481 = vmatpush2.msra.mxu0 %v4413
    %4482 = vmatprep.subr.mxu0 0.0
    %4483 = vmatpush2.msra.mxu0 %v4412
    %4484 = vmatprep.subr.mxu0 0.0
    %4485 = vmatpush2.msra.mxu0 %v4411
    %4486 = vmatprep.mubr.f32.mxu0 %v4420
    %4487 = vmatmul.mubr.f32.gmra.mxu0 %v4391
    %v4488 = vpop.f32.mrf.mxu0
    %v4489 = vadd.f32 0.0, %v4488
    %v4490 = vpop.f32.mrf.mxu0
    %4491 = vdwg.mxu0
    %s4492 = scalar_lea.vmem [#allocation3], 16
    %4493 = vst.msk [vmem:[%s4492] sm:$0x3f] %vm2748, %v4489
    %v4494 = vld [vmem:[#allocation2 + $0xc0] sm:$0xff]
    %v4495 = vld [vmem:[#allocation2 + $0xc8] sm:$0xff]
    %v4496 = vld [vmem:[#allocation2 + $0xd0] sm:$0xff]
    %v4497 = vld [vmem:[#allocation2 + $0xd8] sm:$0xff]
    %v4498 = vld [vmem:[#allocation2 + $0xe0] sm:$0xff]
    %v4499 = vld [vmem:[#allocation2 + $0xe8] sm:$0xff]
    %v4500 = vld [vmem:[#allocation2 + $0xf0] sm:$0x3f]
    %v4501 = vld [vmem:[#allocation2 + $0xf8] sm:$0x3f]
    %v4510 = vrot.slane %v4494, 1
    %v4511 = vrot.slane %v4496, 1
    %v4512 = vsel %vm1880, %v4510, %v4511
    %v4513 = vrot.slane %v4495, 1
    %v4514 = vrot.slane %v4497, 1
    %v4515 = vsel %vm1880, %v4513, %v4514
    %v4516 = vrot.slane %v4498, 1
    %v4517 = vsel %vm1880, %v4511, %v4516
    %v4518 = vrot.slane %v4499, 1
    %v4519 = vsel %vm1880, %v4514, %v4518
    %v4520 = vrot.slane %v4500, 1
    %v4521 = vsel %vm1880, %v4516, %v4520
    %v4522 = vrot.slane %v4501, 1
    %v4523 = vsel %vm1880, %v4518, %v4522
    %v4532 = vmax.f32 %v4494, %v4512
    %v4533 = vmax.f32 %v4495, %v4515
    %v4534 = vmax.f32 %v4496, %v4517
    %v4535 = vmax.f32 %v4497, %v4519
    %v4536 = vmax.f32 %v4498, %v4521
    %v4537 = vmax.f32 %v4499, %v4523
    %v4538 = vmax.f32 %v4500, %v4520
    %v4539 = vmax.f32 %v4501, %v4522
    %4548 = vrot.lane.b32.xlu0 %v4532, 122
    %v4549 = vpop.permute.xlu0 %4548
    %4550 = vrot.lane.b32.xlu0 %v4533, 122
    %v4551 = vpop.permute.xlu0 %4550
    %4552 = vrot.lane.b32.xlu0 %v4534, 122
    %v4553 = vpop.permute.xlu0 %4552
    %4554 = vrot.lane.b32.xlu0 %v4535, 122
    %v4555 = vpop.permute.xlu0 %4554
    %4556 = vrot.lane.b32.xlu0 %v4536, 122
    %v4557 = vpop.permute.xlu0 %4556
    %4558 = vrot.lane.b32.xlu0 %v4537, 122
    %v4559 = vpop.permute.xlu0 %4558
    %4560 = vrot.lane.b32.xlu0 %v4538, 122
    %v4561 = vpop.permute.xlu0 %4560
    %4562 = vrot.lane.b32.xlu0 %v4539, 122
    %v4563 = vpop.permute.xlu0 %4562
    %v4564 = vsel %vm1935, %v4549, %v4551
    %v4565 = vsel %vm1935, %v4553, %v4555
    %v4566 = vsel %vm1935, %v4557, %v4559
    %v4567 = vsel %vm1935, %v4561, %v4563
    %v4576 = vmax.f32 %v4532, %v4564
    %v4577 = vmax.f32 %v4533, %v4551
    %v4578 = vmax.f32 %v4534, %v4565
    %v4579 = vmax.f32 %v4535, %v4555
    %v4580 = vmax.f32 %v4536, %v4566
    %v4581 = vmax.f32 %v4537, %v4559
    %v4582 = vmax.f32 %v4538, %v4567
    %v4583 = vmax.f32 %v4539, %v4563
    %v4584 = vld [vmem:[%s5] sm:$0xff]
    %v4585 = vld [vmem:[%s5 + $0x8] sm:$0x7f]
    %v4587 = vsel %vm1958, %v4584, 0
    %v4590 = vsel %vm1958, %v4585, 0
    %v4593 = vsel %vm1965, %v4582, 0
    %v4596 = vsel %vm1965, %v4583, 0
    %4598 = vmatprep.subr.mxu0 0.0
    %4599 = vmatpush1.msra.mxu0 0.0
    %4600 = vmatprep.subr.mxu0 0.0
    %4601 = vmatpush1.msra.mxu0 0.0
    %4602 = vmatprep.subr.mxu0 0.0
    %4603 = vmatpush1.msra.mxu0 0.0
    %4604 = vmatprep.subr.mxu0 0.0
    %4605 = vmatpush1.msra.mxu0 0.0
    %4606 = vmatprep.subr.mxu0 0.0
    %4607 = vmatpush1.msra.mxu0 0.0
    %4608 = vmatprep.subr.mxu0 0.0
    %4609 = vmatpush1.msra.mxu0 0.0
    %4610 = vmatprep.subr.mxu0 0.0
    %4611 = vmatpush1.msra.mxu0 0.0
    %4612 = vmatprep.subr.mxu0 0.0
    %4613 = vmatpush1.msra.mxu0 0.0
    %4614 = vmatprep.subr.mxu0 0.0
    %4615 = vmatpush1.msra.mxu0 0.0
    %4616 = vmatprep.subr.mxu0 0.0
    %4617 = vmatpush1.msra.mxu0 0.0
    %4618 = vmatprep.subr.mxu0 0.0
    %4619 = vmatpush1.msra.mxu0 0.0
    %4620 = vmatprep.subr.mxu0 0.0
    %4621 = vmatpush1.msra.mxu0 0.0
    %4622 = vmatprep.subr.mxu0 %v4596
    %4623 = vmatpush1.msra.mxu0 %v4593
    %4624 = vmatprep.subr.mxu0 %v4581
    %4625 = vmatpush1.msra.mxu0 %v4580
    %4626 = vmatprep.subr.mxu0 %v4579
    %4627 = vmatpush1.msra.mxu0 %v4578
    %4628 = vmatprep.subr.mxu0 %v4577
    %4629 = vmatpush1.msra.mxu0 %v4576
    %4630 = vmatprep.subr.mxu0 0.0
    %4631 = vmatpush2.msra.mxu0 0.0
    %4632 = vmatprep.subr.mxu0 0.0
    %4633 = vmatpush2.msra.mxu0 0.0
    %4634 = vmatprep.subr.mxu0 0.0
    %4635 = vmatpush2.msra.mxu0 0.0
    %4636 = vmatprep.subr.mxu0 0.0
    %4637 = vmatpush2.msra.mxu0 0.0
    %4638 = vmatprep.subr.mxu0 0.0
    %4639 = vmatpush2.msra.mxu0 0.0
    %4640 = vmatprep.subr.mxu0 0.0
    %4641 = vmatpush2.msra.mxu0 0.0
    %4642 = vmatprep.subr.mxu0 0.0
    %4643 = vmatpush2.msra.mxu0 0.0
    %4644 = vmatprep.subr.mxu0 0.0
    %4645 = vmatpush2.msra.mxu0 0.0
    %4646 = vmatprep.subr.mxu0 0.0
    %4647 = vmatpush2.msra.mxu0 0.0
    %4648 = vmatprep.subr.mxu0 0.0
    %4649 = vmatpush2.msra.mxu0 0.0
    %4650 = vmatprep.subr.mxu0 0.0
    %4651 = vmatpush2.msra.mxu0 0.0
    %4652 = vmatprep.subr.mxu0 0.0
    %4653 = vmatpush2.msra.mxu0 0.0
    %4654 = vmatprep.subr.mxu0 0.0
    %4655 = vmatpush2.msra.mxu0 0.0
    %4656 = vmatprep.subr.mxu0 0.0
    %4657 = vmatpush2.msra.mxu0 0.0
    %4658 = vmatprep.subr.mxu0 0.0
    %4659 = vmatpush2.msra.mxu0 0.0
    %4660 = vmatprep.subr.mxu0 0.0
    %4661 = vmatpush2.msra.mxu0 0.0
    %4662 = vmatprep.mubr.f32.mxu0 0.0
    %4663 = vmatmul.mubr.f32.gmra.mxu0 %v4587
    %v4664 = vpop.f32.mrf.mxu0
    %v4665 = vadd.f32 0.0, %v4664
    %v4666 = vpop.f32.mrf.mxu0
    %v4667 = vadd.f32 0.0, %v4666
    %4668 = vmatprep.mubr.f32.mxu0 0.0
    %4669 = vmatmul.mubr.f32.gmra.mxu0 %v4590
    %v4670 = vpop.f32.mrf.mxu0
    %v4671 = vadd.f32 0.0, %v4670
    %v4672 = vpop.f32.mrf.mxu0
    %v4673 = vadd.f32 0.0, %v4672
    %4674 = vdwg.mxu0
    %v4675 = vld [vmem:[#allocation7] sm:$0xff]
    %v4676 = vld [vmem:[#allocation7 + $0x8] sm:$0xff]
    %v4677 = vld [vmem:[#allocation7 + $0x10] sm:$0xff]
    %v4678 = vld [vmem:[#allocation7 + $0x18] sm:$0xff]
    %v4679 = vld [vmem:[#allocation7 + $0x20] sm:$0xff]
    %v4680 = vld [vmem:[#allocation7 + $0x28] sm:$0xff]
    %v4681 = vld [vmem:[#allocation7 + $0x30] sm:$0xff]
    %v4682 = vld [vmem:[#allocation7 + $0x38] sm:$0xff]
    %v4683 = vld [vmem:[#allocation7 + $0x40] sm:$0xff]
    %v4684 = vld [vmem:[#allocation7 + $0x48] sm:$0xff]
    %v4685 = vld [vmem:[#allocation7 + $0x50] sm:$0xff]
    %v4686 = vld [vmem:[#allocation7 + $0x58] sm:$0xff]
    %v4687 = vld [vmem:[#allocation7 + $0x60] sm:$0xff]
    %v4688 = vld [vmem:[#allocation7 + $0x68] sm:$0xff]
    %v4689 = vld [vmem:[#allocation7 + $0x70] sm:$0xff]
    %v4690 = vld [vmem:[#allocation7 + $0x78] sm:$0xff]
    %v4691 = vld [vmem:[#allocation7 + $0x80] sm:$0xff]
    %v4692 = vld [vmem:[#allocation7 + $0x88] sm:$0xff]
    %v4693 = vld [vmem:[#allocation7 + $0x90] sm:$0xff]
    %v4694 = vld [vmem:[#allocation7 + $0x98] sm:$0xff]
    %v4695 = vld [vmem:[#allocation7 + $0xa0] sm:$0xff]
    %v4696 = vld [vmem:[#allocation7 + $0xa8] sm:$0x3f]
    %v4698 = vsel %vm2071, %v4667, 0
    %v4701 = vsel %vm2071, %v4673, 0
    %v4704 = vsel %vm2078, %v4696, 0
    %4706 = vmatprep.subr.mxu0 0.0
    %4707 = vmatpush1.msra.mxu0 %v4690
    %4708 = vmatprep.subr.mxu0 0.0
    %4709 = vmatpush1.msra.mxu0 %v4689
    %4710 = vmatprep.subr.mxu0 0.0
    %4711 = vmatpush1.msra.mxu0 %v4688
    %4712 = vmatprep.subr.mxu0 0.0
    %4713 = vmatpush1.msra.mxu0 %v4687
    %4714 = vmatprep.subr.mxu0 0.0
    %4715 = vmatpush1.msra.mxu0 %v4686
    %4716 = vmatprep.subr.mxu0 0.0
    %4717 = vmatpush1.msra.mxu0 %v4685
    %4718 = vmatprep.subr.mxu0 0.0
    %4719 = vmatpush1.msra.mxu0 %v4684
    %4720 = vmatprep.subr.mxu0 0.0
    %4721 = vmatpush1.msra.mxu0 %v4683
    %4722 = vmatprep.subr.mxu0 0.0
    %4723 = vmatpush1.msra.mxu0 %v4682
    %4724 = vmatprep.subr.mxu0 0.0
    %4725 = vmatpush1.msra.mxu0 %v4681
    %4726 = vmatprep.subr.mxu0 0.0
    %4727 = vmatpush1.msra.mxu0 %v4680
    %4728 = vmatprep.subr.mxu0 0.0
    %4729 = vmatpush1.msra.mxu0 %v4679
    %4730 = vmatprep.subr.mxu0 0.0
    %4731 = vmatpush1.msra.mxu0 %v4678
    %4732 = vmatprep.subr.mxu0 0.0
    %4733 = vmatpush1.msra.mxu0 %v4677
    %4734 = vmatprep.subr.mxu0 0.0
    %4735 = vmatpush1.msra.mxu0 %v4676
    %4736 = vmatprep.subr.mxu0 0.0
    %4737 = vmatpush1.msra.mxu0 %v4675
    %4738 = vmatprep.subr.mxu0 0.0
    %4739 = vmatpush2.msra.mxu0 0.0
    %4740 = vmatprep.subr.mxu0 0.0
    %4741 = vmatpush2.msra.mxu0 0.0
    %4742 = vmatprep.subr.mxu0 0.0
    %4743 = vmatpush2.msra.mxu0 0.0
    %4744 = vmatprep.subr.mxu0 0.0
    %4745 = vmatpush2.msra.mxu0 0.0
    %4746 = vmatprep.subr.mxu0 0.0
    %4747 = vmatpush2.msra.mxu0 0.0
    %4748 = vmatprep.subr.mxu0 0.0
    %4749 = vmatpush2.msra.mxu0 0.0
    %4750 = vmatprep.subr.mxu0 0.0
    %4751 = vmatpush2.msra.mxu0 0.0
    %4752 = vmatprep.subr.mxu0 0.0
    %4753 = vmatpush2.msra.mxu0 0.0
    %4754 = vmatprep.subr.mxu0 0.0
    %4755 = vmatpush2.msra.mxu0 0.0
    %4756 = vmatprep.subr.mxu0 0.0
    %4757 = vmatpush2.msra.mxu0 0.0
    %4758 = vmatprep.subr.mxu0 0.0
    %4759 = vmatpush2.msra.mxu0 %v4704
    %4760 = vmatprep.subr.mxu0 0.0
    %4761 = vmatpush2.msra.mxu0 %v4695
    %4762 = vmatprep.subr.mxu0 0.0
    %4763 = vmatpush2.msra.mxu0 %v4694
    %4764 = vmatprep.subr.mxu0 0.0
    %4765 = vmatpush2.msra.mxu0 %v4693
    %4766 = vmatprep.subr.mxu0 0.0
    %4767 = vmatpush2.msra.mxu0 %v4692
    %4768 = vmatprep.subr.mxu0 0.0
    %4769 = vmatpush2.msra.mxu0 %v4691
    %4770 = vmatprep.mubr.f32.mxu0 %v4698
    %4771 = vmatmul.mubr.f32.gmra.mxu0 %v4665
    %v4772 = vpop.f32.mrf.mxu0
    %v4773 = vadd.f32 0.0, %v4772
    %v4774 = vpop.f32.mrf.mxu0
    %4775 = vmatprep.mubr.f32.mxu0 %v4701
    %4776 = vmatmul.mubr.f32.gmra.mxu0 %v4671
    %v4777 = vpop.f32.mrf.mxu0
    %v4778 = vadd.f32 0.0, %v4777
    %v4779 = vpop.f32.mrf.mxu0
    %4780 = vdwg.mxu0
    %v4781 = vld [vmem:[#allocation4] sm:$0xff]
    %v4782 = vld [vmem:[#allocation4 + $0x8] sm:$0xff]
    %v4783 = vld [vmem:[#allocation4 + $0x10] sm:$0xff]
    %v4784 = vld [vmem:[#allocation4 + $0x18] sm:$0xff]
    %v4785 = vld [vmem:[#allocation4 + $0x20] sm:$0xff]
    %v4786 = vld [vmem:[#allocation4 + $0x28] sm:$0xff]
    %v4787 = vld [vmem:[#allocation4 + $0x30] sm:$0xff]
    %v4788 = vld [vmem:[#allocation4 + $0x38] sm:$0xff]
    %v4789 = vld [vmem:[#allocation4 + $0x40] sm:$0xff]
    %v4790 = vld [vmem:[#allocation4 + $0x48] sm:$0xff]
    %v4791 = vld [vmem:[#allocation4 + $0x50] sm:$0xff]
    %v4792 = vld [vmem:[#allocation4 + $0x58] sm:$0xff]
    %v4793 = vld [vmem:[#allocation4 + $0x60] sm:$0xff]
    %v4794 = vld [vmem:[#allocation4 + $0x68] sm:$0xff]
    %v4795 = vld [vmem:[#allocation4 + $0x70] sm:$0xff]
    %v4796 = vld [vmem:[#allocation4 + $0x78] sm:$0xff]
    %v4797 = vld [vmem:[#allocation4 + $0x80] sm:$0xff]
    %v4798 = vld [vmem:[#allocation4 + $0x88] sm:$0xff]
    %v4799 = vld [vmem:[#allocation4 + $0x90] sm:$0xff]
    %v4800 = vld [vmem:[#allocation4 + $0x98] sm:$0xff]
    %v4801 = vld [vmem:[#allocation4 + $0xa0] sm:$0xff]
    %v4802 = vld [vmem:[#allocation4 + $0xa8] sm:$0xff]
    %v4803 = vld [vmem:[#allocation4 + $0xb0] sm:$0x3]
    %v4804 = vld [vmem:[#allocation4 + $0xb8] sm:$0x3]
    %v4805 = vld [vmem:[%s2181] sm:$0xff]
    %v4806 = vld [vmem:[%s2181 + $0x8] sm:$0xff]
    %v4807 = vld [vmem:[%s2181 + $0x10] sm:$0xff]
    %v4808 = vld [vmem:[%s2181 + $0x18] sm:$0xff]
    %v4809 = vld [vmem:[%s2181 + $0x20] sm:$0xff]
    %v4810 = vld [vmem:[%s2181 + $0x28] sm:$0xff]
    %v4811 = vld [vmem:[%s2181 + $0x30] sm:$0xff]
    %v4812 = vld [vmem:[%s2181 + $0x38] sm:$0xff]
    %v4813 = vld [vmem:[%s2181 + $0x40] sm:$0xff]
    %v4814 = vld [vmem:[%s2181 + $0x48] sm:$0xff]
    %v4815 = vld [vmem:[%s2181 + $0x50] sm:$0xff]
    %v4816 = vld [vmem:[%s2181 + $0x58] sm:$0xff]
    %v4817 = vld [vmem:[%s2181 + $0x60] sm:$0xff]
    %v4818 = vld [vmem:[%s2181 + $0x68] sm:$0xff]
    %v4819 = vld [vmem:[%s2181 + $0x70] sm:$0xff]
    %v4820 = vld [vmem:[%s2181 + $0x78] sm:$0xff]
    %v4821 = vld [vmem:[%s2181 + $0x80] sm:$0xff]
    %v4822 = vld [vmem:[%s2181 + $0x88] sm:$0xff]
    %v4823 = vld [vmem:[%s2181 + $0x90] sm:$0xff]
    %v4824 = vld [vmem:[%s2181 + $0x98] sm:$0xff]
    %v4825 = vld [vmem:[%s2181 + $0xa0] sm:$0xff]
    %v4826 = vld [vmem:[%s2181 + $0xa8] sm:$0xff]
    %v4827 = vld [vmem:[%s2181 + $0xb0] sm:$0x3]
    %v4828 = vld [vmem:[%s2181 + $0xb8] sm:$0x3]
    %v4831 = vrot.slane %v4773, 1
    %v4832 = vrot.slane %v4778, 1
    %v4833 = vsel %vm1880, %v4831, %v4832
    %v4834 = vsel %vm2211, %v4833, 0
    %v4836 = vsel %vm2211, %v4832, 0
    %v4839 = vsel %vm2216, %v4827, 0
    %v4842 = vsel %vm2216, %v4828, 0
    %4844 = vmatprep.subr.mxu0 0.0
    %4845 = vmatpush1.msra.mxu0 0.0
    %4846 = vmatprep.subr.mxu0 0.0
    %4847 = vmatpush1.msra.mxu0 0.0
    %4848 = vmatprep.subr.mxu0 0.0
    %4849 = vmatpush1.msra.mxu0 0.0
    %4850 = vmatprep.subr.mxu0 0.0
    %4851 = vmatpush1.msra.mxu0 0.0
    %4852 = vmatprep.subr.mxu0 %v4842
    %4853 = vmatpush1.msra.mxu0 %v4839
    %4854 = vmatprep.subr.mxu0 %v4826
    %4855 = vmatpush1.msra.mxu0 %v4825
    %4856 = vmatprep.subr.mxu0 %v4824
    %4857 = vmatpush1.msra.mxu0 %v4823
    %4858 = vmatprep.subr.mxu0 %v4822
    %4859 = vmatpush1.msra.mxu0 %v4821
    %4860 = vmatprep.subr.mxu0 %v4820
    %4861 = vmatpush1.msra.mxu0 %v4819
    %4862 = vmatprep.subr.mxu0 %v4818
    %4863 = vmatpush1.msra.mxu0 %v4817
    %4864 = vmatprep.subr.mxu0 %v4816
    %4865 = vmatpush1.msra.mxu0 %v4815
    %4866 = vmatprep.subr.mxu0 %v4814
    %4867 = vmatpush1.msra.mxu0 %v4813
    %4868 = vmatprep.subr.mxu0 %v4812
    %4869 = vmatpush1.msra.mxu0 %v4811
    %4870 = vmatprep.subr.mxu0 %v4810
    %4871 = vmatpush1.msra.mxu0 %v4809
    %4872 = vmatprep.subr.mxu0 %v4808
    %4873 = vmatpush1.msra.mxu0 %v4807
    %4874 = vmatprep.subr.mxu0 %v4806
    %4875 = vmatpush1.msra.mxu0 %v4805
    %4876 = vmatprep.subr.mxu0 0.0
    %4877 = vmatpush2.msra.mxu0 0.0
    %4878 = vmatprep.subr.mxu0 0.0
    %4879 = vmatpush2.msra.mxu0 0.0
    %4880 = vmatprep.subr.mxu0 0.0
    %4881 = vmatpush2.msra.mxu0 0.0
    %4882 = vmatprep.subr.mxu0 0.0
    %4883 = vmatpush2.msra.mxu0 0.0
    %4884 = vmatprep.subr.mxu0 0.0
    %4885 = vmatpush2.msra.mxu0 0.0
    %4886 = vmatprep.subr.mxu0 0.0
    %4887 = vmatpush2.msra.mxu0 0.0
    %4888 = vmatprep.subr.mxu0 0.0
    %4889 = vmatpush2.msra.mxu0 0.0
    %4890 = vmatprep.subr.mxu0 0.0
    %4891 = vmatpush2.msra.mxu0 0.0
    %4892 = vmatprep.subr.mxu0 0.0
    %4893 = vmatpush2.msra.mxu0 0.0
    %4894 = vmatprep.subr.mxu0 0.0
    %4895 = vmatpush2.msra.mxu0 0.0
    %4896 = vmatprep.subr.mxu0 0.0
    %4897 = vmatpush2.msra.mxu0 0.0
    %4898 = vmatprep.subr.mxu0 0.0
    %4899 = vmatpush2.msra.mxu0 0.0
    %4900 = vmatprep.subr.mxu0 0.0
    %4901 = vmatpush2.msra.mxu0 0.0
    %4902 = vmatprep.subr.mxu0 0.0
    %4903 = vmatpush2.msra.mxu0 0.0
    %4904 = vmatprep.subr.mxu0 0.0
    %4905 = vmatpush2.msra.mxu0 0.0
    %4906 = vmatprep.subr.mxu0 0.0
    %4907 = vmatpush2.msra.mxu0 0.0
    %4908 = vmatprep.mubr.f32.mxu0 0.0
    %4909 = vmatmul.mubr.f32.gmra.mxu0 %v4834
    %v4910 = vpop.f32.mrf.mxu0
    %v4911 = vadd.f32 0.0, %v4910
    %v4912 = vpop.f32.mrf.mxu0
    %v4913 = vadd.f32 0.0, %v4912
    %4914 = vmatprep.mubr.f32.mxu0 0.0
    %4915 = vmatmul.mubr.f32.gmra.mxu0 %v4836
    %v4916 = vpop.f32.mrf.mxu0
    %v4917 = vadd.f32 0.0, %v4916
    %v4918 = vpop.f32.mrf.mxu0
    %v4919 = vadd.f32 0.0, %v4918
    %4920 = vdwg.mxu0
    %v4921 = vsel %vm2211, %v4773, 0
    %v4923 = vsel %vm2211, %v4778, 0
    %v4926 = vsel %vm2216, %v4803, 0
    %v4929 = vsel %vm2216, %v4804, 0
    %4931 = vmatprep.subr.mxu0 0.0
    %4932 = vmatpush1.msra.mxu0 0.0
    %4933 = vmatprep.subr.mxu0 0.0
    %4934 = vmatpush1.msra.mxu0 0.0
    %4935 = vmatprep.subr.mxu0 0.0
    %4936 = vmatpush1.msra.mxu0 0.0
    %4937 = vmatprep.subr.mxu0 0.0
    %4938 = vmatpush1.msra.mxu0 0.0
    %4939 = vmatprep.subr.mxu0 %v4929
    %4940 = vmatpush1.msra.mxu0 %v4926
    %4941 = vmatprep.subr.mxu0 %v4802
    %4942 = vmatpush1.msra.mxu0 %v4801
    %4943 = vmatprep.subr.mxu0 %v4800
    %4944 = vmatpush1.msra.mxu0 %v4799
    %4945 = vmatprep.subr.mxu0 %v4798
    %4946 = vmatpush1.msra.mxu0 %v4797
    %4947 = vmatprep.subr.mxu0 %v4796
    %4948 = vmatpush1.msra.mxu0 %v4795
    %4949 = vmatprep.subr.mxu0 %v4794
    %4950 = vmatpush1.msra.mxu0 %v4793
    %4951 = vmatprep.subr.mxu0 %v4792
    %4952 = vmatpush1.msra.mxu0 %v4791
    %4953 = vmatprep.subr.mxu0 %v4790
    %4954 = vmatpush1.msra.mxu0 %v4789
    %4955 = vmatprep.subr.mxu0 %v4788
    %4956 = vmatpush1.msra.mxu0 %v4787
    %4957 = vmatprep.subr.mxu0 %v4786
    %4958 = vmatpush1.msra.mxu0 %v4785
    %4959 = vmatprep.subr.mxu0 %v4784
    %4960 = vmatpush1.msra.mxu0 %v4783
    %4961 = vmatprep.subr.mxu0 %v4782
    %4962 = vmatpush1.msra.mxu0 %v4781
    %4963 = vmatprep.subr.mxu0 0.0
    %4964 = vmatpush2.msra.mxu0 0.0
    %4965 = vmatprep.subr.mxu0 0.0
    %4966 = vmatpush2.msra.mxu0 0.0
    %4967 = vmatprep.subr.mxu0 0.0
    %4968 = vmatpush2.msra.mxu0 0.0
    %4969 = vmatprep.subr.mxu0 0.0
    %4970 = vmatpush2.msra.mxu0 0.0
    %4971 = vmatprep.subr.mxu0 0.0
    %4972 = vmatpush2.msra.mxu0 0.0
    %4973 = vmatprep.subr.mxu0 0.0
    %4974 = vmatpush2.msra.mxu0 0.0
    %4975 = vmatprep.subr.mxu0 0.0
    %4976 = vmatpush2.msra.mxu0 0.0
    %4977 = vmatprep.subr.mxu0 0.0
    %4978 = vmatpush2.msra.mxu0 0.0
    %4979 = vmatprep.subr.mxu0 0.0
    %4980 = vmatpush2.msra.mxu0 0.0
    %4981 = vmatprep.subr.mxu0 0.0
    %4982 = vmatpush2.msra.mxu0 0.0
    %4983 = vmatprep.subr.mxu0 0.0
    %4984 = vmatpush2.msra.mxu0 0.0
    %4985 = vmatprep.subr.mxu0 0.0
    %4986 = vmatpush2.msra.mxu0 0.0
    %4987 = vmatprep.subr.mxu0 0.0
    %4988 = vmatpush2.msra.mxu0 0.0
    %4989 = vmatprep.subr.mxu0 0.0
    %4990 = vmatpush2.msra.mxu0 0.0
    %4991 = vmatprep.subr.mxu0 0.0
    %4992 = vmatpush2.msra.mxu0 0.0
    %4993 = vmatprep.subr.mxu0 0.0
    %4994 = vmatpush2.msra.mxu0 0.0
    %4995 = vmatprep.mubr.f32.mxu0 0.0
    %4996 = vmatmul.mubr.f32.gmra.mxu0 %v4921
    %v4997 = vpop.f32.mrf.mxu0
    %v4998 = vadd.f32 %v4911, %v4997
    %v4999 = vpop.f32.mrf.mxu0
    %v5000 = vadd.f32 %v4913, %v4999
    %5001 = vmatprep.mubr.f32.mxu0 0.0
    %5002 = vmatmul.mubr.f32.gmra.mxu0 %v4923
    %v5003 = vpop.f32.mrf.mxu0
    %v5004 = vadd.f32 %v4917, %v5003
    %v5005 = vpop.f32.mrf.mxu0
    %v5006 = vadd.f32 %v4919, %v5005
    %5007 = vdwg.mxu0
    %v5008 = vld [vmem:[%s2387] sm:$0xff]
    %v5009 = vld [vmem:[%s2387 + $0x8] sm:$0xff]
    %v5010 = vld [vmem:[%s2387 + $0x10] sm:$0xff]
    %v5011 = vld [vmem:[%s2387 + $0x18] sm:$0xff]
    %v5012 = vld [vmem:[%s2387 + $0x20] sm:$0xff]
    %v5013 = vld [vmem:[%s2387 + $0x28] sm:$0xff]
    %v5014 = vld [vmem:[%s2387 + $0x30] sm:$0xff]
    %v5015 = vld [vmem:[%s2387 + $0x38] sm:$0xff]
    %v5016 = vld [vmem:[%s2387 + $0x40] sm:$0xff]
    %v5017 = vld [vmem:[%s2387 + $0x48] sm:$0xff]
    %v5018 = vld [vmem:[%s2387 + $0x50] sm:$0xff]
    %v5019 = vld [vmem:[%s2387 + $0x58] sm:$0xff]
    %v5020 = vld [vmem:[%s2387 + $0x60] sm:$0xff]
    %v5021 = vld [vmem:[%s2387 + $0x68] sm:$0xff]
    %v5022 = vld [vmem:[%s2387 + $0x70] sm:$0xff]
    %v5023 = vld [vmem:[%s2387 + $0x78] sm:$0xff]
    %v5024 = vld [vmem:[%s2387 + $0x80] sm:$0xff]
    %v5025 = vld [vmem:[%s2387 + $0x88] sm:$0xff]
    %v5026 = vld [vmem:[%s2387 + $0x90] sm:$0xff]
    %v5027 = vld [vmem:[%s2387 + $0x98] sm:$0xff]
    %v5028 = vld [vmem:[%s2387 + $0xa0] sm:$0xff]
    %v5029 = vld [vmem:[%s2387 + $0xa8] sm:$0xff]
    %v5030 = vld [vmem:[%s2387 + $0xb0] sm:$0x3]
    %v5031 = vld [vmem:[%s2387 + $0xb8] sm:$0x3]
    %v5032 = vrot.slane %v4773, 2
    %v5033 = vrot.slane %v4778, 2
    %v5034 = vsel %vm2078, %v5032, %v5033
    %v5035 = vsel %vm2211, %v5034, 0
    %v5037 = vsel %vm2211, %v5033, 0
    %v5040 = vsel %vm2216, %v5030, 0
    %v5043 = vsel %vm2216, %v5031, 0
    %5045 = vmatprep.subr.mxu0 0.0
    %5046 = vmatpush1.msra.mxu0 0.0
    %5047 = vmatprep.subr.mxu0 0.0
    %5048 = vmatpush1.msra.mxu0 0.0
    %5049 = vmatprep.subr.mxu0 0.0
    %5050 = vmatpush1.msra.mxu0 0.0
    %5051 = vmatprep.subr.mxu0 0.0
    %5052 = vmatpush1.msra.mxu0 0.0
    %5053 = vmatprep.subr.mxu0 %v5043
    %5054 = vmatpush1.msra.mxu0 %v5040
    %5055 = vmatprep.subr.mxu0 %v5029
    %5056 = vmatpush1.msra.mxu0 %v5028
    %5057 = vmatprep.subr.mxu0 %v5027
    %5058 = vmatpush1.msra.mxu0 %v5026
    %5059 = vmatprep.subr.mxu0 %v5025
    %5060 = vmatpush1.msra.mxu0 %v5024
    %5061 = vmatprep.subr.mxu0 %v5023
    %5062 = vmatpush1.msra.mxu0 %v5022
    %5063 = vmatprep.subr.mxu0 %v5021
    %5064 = vmatpush1.msra.mxu0 %v5020
    %5065 = vmatprep.subr.mxu0 %v5019
    %5066 = vmatpush1.msra.mxu0 %v5018
    %5067 = vmatprep.subr.mxu0 %v5017
    %5068 = vmatpush1.msra.mxu0 %v5016
    %5069 = vmatprep.subr.mxu0 %v5015
    %5070 = vmatpush1.msra.mxu0 %v5014
    %5071 = vmatprep.subr.mxu0 %v5013
    %5072 = vmatpush1.msra.mxu0 %v5012
    %5073 = vmatprep.subr.mxu0 %v5011
    %5074 = vmatpush1.msra.mxu0 %v5010
    %5075 = vmatprep.subr.mxu0 %v5009
    %5076 = vmatpush1.msra.mxu0 %v5008
    %5077 = vmatprep.subr.mxu0 0.0
    %5078 = vmatpush2.msra.mxu0 0.0
    %5079 = vmatprep.subr.mxu0 0.0
    %5080 = vmatpush2.msra.mxu0 0.0
    %5081 = vmatprep.subr.mxu0 0.0
    %5082 = vmatpush2.msra.mxu0 0.0
    %5083 = vmatprep.subr.mxu0 0.0
    %5084 = vmatpush2.msra.mxu0 0.0
    %5085 = vmatprep.subr.mxu0 0.0
    %5086 = vmatpush2.msra.mxu0 0.0
    %5087 = vmatprep.subr.mxu0 0.0
    %5088 = vmatpush2.msra.mxu0 0.0
    %5089 = vmatprep.subr.mxu0 0.0
    %5090 = vmatpush2.msra.mxu0 0.0
    %5091 = vmatprep.subr.mxu0 0.0
    %5092 = vmatpush2.msra.mxu0 0.0
    %5093 = vmatprep.subr.mxu0 0.0
    %5094 = vmatpush2.msra.mxu0 0.0
    %5095 = vmatprep.subr.mxu0 0.0
    %5096 = vmatpush2.msra.mxu0 0.0
    %5097 = vmatprep.subr.mxu0 0.0
    %5098 = vmatpush2.msra.mxu0 0.0
    %5099 = vmatprep.subr.mxu0 0.0
    %5100 = vmatpush2.msra.mxu0 0.0
    %5101 = vmatprep.subr.mxu0 0.0
    %5102 = vmatpush2.msra.mxu0 0.0
    %5103 = vmatprep.subr.mxu0 0.0
    %5104 = vmatpush2.msra.mxu0 0.0
    %5105 = vmatprep.subr.mxu0 0.0
    %5106 = vmatpush2.msra.mxu0 0.0
    %5107 = vmatprep.subr.mxu0 0.0
    %5108 = vmatpush2.msra.mxu0 0.0
    %5109 = vmatprep.mubr.f32.mxu0 0.0
    %5110 = vmatmul.mubr.f32.gmra.mxu0 %v5035
    %v5111 = vpop.f32.mrf.mxu0
    %v5112 = vadd.f32 0.0, %v5111
    %v5113 = vpop.f32.mrf.mxu0
    %v5114 = vadd.f32 0.0, %v5113
    %5115 = vmatprep.mubr.f32.mxu0 0.0
    %5116 = vmatmul.mubr.f32.gmra.mxu0 %v5037
    %v5117 = vpop.f32.mrf.mxu0
    %v5118 = vadd.f32 0.0, %v5117
    %v5119 = vpop.f32.mrf.mxu0
    %v5120 = vadd.f32 0.0, %v5119
    %5121 = vdwg.mxu0
    %v5122 = vadd.f32 %v4998, %v5112
    %v5123 = vadd.f32 %v5000, %v5114
    %v5124 = vadd.f32 %v5004, %v5118
    %v5125 = vadd.f32 %v5006, %v5120
    %v5126 = vld [vmem:[%s4] sm:$0x3]
    %v5128 = vlaneseq
    %v5129 = vshrl.u32 %v5128, 7
    %v5130 = vsub.s32 0, %v5129
    %v5131 = vrot.slane %v5126, %v5130
    %v5132 = vlaneseq
    %v5133 = vshrl.u32 %v5132, 7
    %v5134 = vsub.s32 1, %v5133
    %v5135 = vrot.slane %v5126, %v5134
    %v5138 = vadd.f32 %v5122, %v5131
    %v5139 = vadd.f32 %v5123, %v5135
    %v5140 = vadd.f32 %v5124, %v5131
    %v5141 = vadd.f32 %v5125, %v5135
    %v5142 = vmax.f32 %v5138, 0.0
    %v5143 = vmax.f32 %v5139, 0.0
    %v5144 = vmax.f32 %v5140, 0.0
    %v5145 = vmax.f32 %v5141, 0.0
    %v5150 = vrot.slane %v5142, 1
    %v5151 = vrot.slane %v5144, 1
    %v5152 = vsel %vm1880, %v5150, %v5151
    %v5153 = vrot.slane %v5143, 1
    %v5154 = vrot.slane %v5145, 1
    %v5155 = vsel %vm1880, %v5153, %v5154
    %v5160 = vmax.f32 %v5142, %v5152
    %v5161 = vmax.f32 %v5143, %v5155
    %v5162 = vmax.f32 %v5144, %v5151
    %v5163 = vmax.f32 %v5145, %v5154
    %5168 = vrot.lane.b32.xlu0 %v5160, 112
    %v5169 = vpop.permute.xlu0 %5168
    %5170 = vrot.lane.b32.xlu0 %v5161, 112
    %v5171 = vpop.permute.xlu0 %5170
    %5172 = vrot.lane.b32.xlu0 %v5162, 112
    %v5173 = vpop.permute.xlu0 %5172
    %5174 = vrot.lane.b32.xlu0 %v5163, 112
    %v5175 = vpop.permute.xlu0 %5174
    %v5176 = vsel %vm2556, %v5169, %v5171
    %v5177 = vsel %vm2556, %v5173, %v5175
    %v5182 = vmax.f32 %v5160, %v5176
    %v5183 = vmax.f32 %v5161, %v5171
    %v5184 = vmax.f32 %v5162, %v5177
    %v5185 = vmax.f32 %v5163, %v5175
    %v5186 = vld [vmem:[%s7] sm:$0x3f]
    %v5188 = vsel %vm2568, %v5186, 0
    %v5191 = vsel %vm2572, %v5184, 0
    %v5194 = vsel %vm2572, %v5185, 0
    %5196 = vmatprep.subr.mxu0 0.0
    %5197 = vmatpush1.msra.mxu0 0.0
    %5198 = vmatprep.subr.mxu0 0.0
    %5199 = vmatpush1.msra.mxu0 0.0
    %5200 = vmatprep.subr.mxu0 0.0
    %5201 = vmatpush1.msra.mxu0 0.0
    %5202 = vmatprep.subr.mxu0 0.0
    %5203 = vmatpush1.msra.mxu0 0.0
    %5204 = vmatprep.subr.mxu0 0.0
    %5205 = vmatpush1.msra.mxu0 0.0
    %5206 = vmatprep.subr.mxu0 0.0
    %5207 = vmatpush1.msra.mxu0 0.0
    %5208 = vmatprep.subr.mxu0 0.0
    %5209 = vmatpush1.msra.mxu0 0.0
    %5210 = vmatprep.subr.mxu0 0.0
    %5211 = vmatpush1.msra.mxu0 0.0
    %5212 = vmatprep.subr.mxu0 0.0
    %5213 = vmatpush1.msra.mxu0 0.0
    %5214 = vmatprep.subr.mxu0 0.0
    %5215 = vmatpush1.msra.mxu0 0.0
    %5216 = vmatprep.subr.mxu0 0.0
    %5217 = vmatpush1.msra.mxu0 0.0
    %5218 = vmatprep.subr.mxu0 0.0
    %5219 = vmatpush1.msra.mxu0 0.0
    %5220 = vmatprep.subr.mxu0 0.0
    %5221 = vmatpush1.msra.mxu0 0.0
    %5222 = vmatprep.subr.mxu0 0.0
    %5223 = vmatpush1.msra.mxu0 0.0
    %5224 = vmatprep.subr.mxu0 %v5194
    %5225 = vmatpush1.msra.mxu0 %v5191
    %5226 = vmatprep.subr.mxu0 %v5183
    %5227 = vmatpush1.msra.mxu0 %v5182
    %5228 = vmatprep.subr.mxu0 0.0
    %5229 = vmatpush2.msra.mxu0 0.0
    %5230 = vmatprep.subr.mxu0 0.0
    %5231 = vmatpush2.msra.mxu0 0.0
    %5232 = vmatprep.subr.mxu0 0.0
    %5233 = vmatpush2.msra.mxu0 0.0
    %5234 = vmatprep.subr.mxu0 0.0
    %5235 = vmatpush2.msra.mxu0 0.0
    %5236 = vmatprep.subr.mxu0 0.0
    %5237 = vmatpush2.msra.mxu0 0.0
    %5238 = vmatprep.subr.mxu0 0.0
    %5239 = vmatpush2.msra.mxu0 0.0
    %5240 = vmatprep.subr.mxu0 0.0
    %5241 = vmatpush2.msra.mxu0 0.0
    %5242 = vmatprep.subr.mxu0 0.0
    %5243 = vmatpush2.msra.mxu0 0.0
    %5244 = vmatprep.subr.mxu0 0.0
    %5245 = vmatpush2.msra.mxu0 0.0
    %5246 = vmatprep.subr.mxu0 0.0
    %5247 = vmatpush2.msra.mxu0 0.0
    %5248 = vmatprep.subr.mxu0 0.0
    %5249 = vmatpush2.msra.mxu0 0.0
    %5250 = vmatprep.subr.mxu0 0.0
    %5251 = vmatpush2.msra.mxu0 0.0
    %5252 = vmatprep.subr.mxu0 0.0
    %5253 = vmatpush2.msra.mxu0 0.0
    %5254 = vmatprep.subr.mxu0 0.0
    %5255 = vmatpush2.msra.mxu0 0.0
    %5256 = vmatprep.subr.mxu0 0.0
    %5257 = vmatpush2.msra.mxu0 0.0
    %5258 = vmatprep.subr.mxu0 0.0
    %5259 = vmatpush2.msra.mxu0 0.0
    %5260 = vmatprep.mubr.f32.mxu0 0.0
    %5261 = vmatmul.mubr.f32.gmra.mxu0 %v5188
    %v5262 = vpop.f32.mrf.mxu0
    %v5263 = vadd.f32 0.0, %v5262
    %v5264 = vpop.f32.mrf.mxu0
    %v5265 = vadd.f32 0.0, %v5264
    %5266 = vdwg.mxu0
    %v5267 = vld [vmem:[%s8] sm:$0xff]
    %v5268 = vld [vmem:[%s8 + $0x8] sm:$0xff]
    %v5269 = vld [vmem:[%s8 + $0x10] sm:$0xff]
    %v5270 = vld [vmem:[%s8 + $0x18] sm:$0xff]
    %v5271 = vld [vmem:[%s8 + $0x20] sm:$0xff]
    %v5272 = vld [vmem:[%s8 + $0x28] sm:$0xff]
    %v5273 = vld [vmem:[%s8 + $0x30] sm:$0xff]
    %v5274 = vld [vmem:[%s8 + $0x38] sm:$0xff]
    %v5275 = vld [vmem:[%s8 + $0x40] sm:$0xff]
    %v5276 = vld [vmem:[%s8 + $0x48] sm:$0xff]
    %v5277 = vld [vmem:[%s8 + $0x50] sm:$0xff]
    %v5278 = vld [vmem:[%s8 + $0x58] sm:$0xff]
    %v5279 = vld [vmem:[%s8 + $0x60] sm:$0xff]
    %v5280 = vld [vmem:[%s8 + $0x68] sm:$0xff]
    %v5281 = vld [vmem:[%s8 + $0x70] sm:$0xff]
    %v5282 = vld [vmem:[%s8 + $0x78] sm:$0xff]
    %v5283 = vld [vmem:[%s8 + $0x80] sm:$0xff]
    %v5284 = vld [vmem:[%s8 + $0x88] sm:$0xff]
    %v5285 = vld [vmem:[%s8 + $0x90] sm:$0xff]
    %v5286 = vld [vmem:[%s8 + $0x98] sm:$0xff]
    %v5287 = vld [vmem:[%s8 + $0xa0] sm:$0xff]
    %v5288 = vld [vmem:[%s8 + $0xa8] sm:$0xff]
    %v5289 = vld [vmem:[%s8 + $0xb0] sm:$0xff]
    %v5290 = vld [vmem:[%s8 + $0xb8] sm:$0xff]
    %v5292 = vsel %vm2674, %v5265, 0
    %5294 = vmatprep.subr.mxu0 0.0
    %5295 = vmatpush1.msra.mxu0 %v5282
    %5296 = vmatprep.subr.mxu0 0.0
    %5297 = vmatpush1.msra.mxu0 %v5281
    %5298 = vmatprep.subr.mxu0 0.0
    %5299 = vmatpush1.msra.mxu0 %v5280
    %5300 = vmatprep.subr.mxu0 0.0
    %5301 = vmatpush1.msra.mxu0 %v5279
    %5302 = vmatprep.subr.mxu0 0.0
    %5303 = vmatpush1.msra.mxu0 %v5278
    %5304 = vmatprep.subr.mxu0 0.0
    %5305 = vmatpush1.msra.mxu0 %v5277
    %5306 = vmatprep.subr.mxu0 0.0
    %5307 = vmatpush1.msra.mxu0 %v5276
    %5308 = vmatprep.subr.mxu0 0.0
    %5309 = vmatpush1.msra.mxu0 %v5275
    %5310 = vmatprep.subr.mxu0 0.0
    %5311 = vmatpush1.msra.mxu0 %v5274
    %5312 = vmatprep.subr.mxu0 0.0
    %5313 = vmatpush1.msra.mxu0 %v5273
    %5314 = vmatprep.subr.mxu0 0.0
    %5315 = vmatpush1.msra.mxu0 %v5272
    %5316 = vmatprep.subr.mxu0 0.0
    %5317 = vmatpush1.msra.mxu0 %v5271
    %5318 = vmatprep.subr.mxu0 0.0
    %5319 = vmatpush1.msra.mxu0 %v5270
    %5320 = vmatprep.subr.mxu0 0.0
    %5321 = vmatpush1.msra.mxu0 %v5269
    %5322 = vmatprep.subr.mxu0 0.0
    %5323 = vmatpush1.msra.mxu0 %v5268
    %5324 = vmatprep.subr.mxu0 0.0
    %5325 = vmatpush1.msra.mxu0 %v5267
    %5326 = vmatprep.subr.mxu0 0.0
    %5327 = vmatpush2.msra.mxu0 0.0
    %5328 = vmatprep.subr.mxu0 0.0
    %5329 = vmatpush2.msra.mxu0 0.0
    %5330 = vmatprep.subr.mxu0 0.0
    %5331 = vmatpush2.msra.mxu0 0.0
    %5332 = vmatprep.subr.mxu0 0.0
    %5333 = vmatpush2.msra.mxu0 0.0
    %5334 = vmatprep.subr.mxu0 0.0
    %5335 = vmatpush2.msra.mxu0 0.0
    %5336 = vmatprep.subr.mxu0 0.0
    %5337 = vmatpush2.msra.mxu0 0.0
    %5338 = vmatprep.subr.mxu0 0.0
    %5339 = vmatpush2.msra.mxu0 0.0
    %5340 = vmatprep.subr.mxu0 0.0
    %5341 = vmatpush2.msra.mxu0 0.0
    %5342 = vmatprep.subr.mxu0 0.0
    %5343 = vmatpush2.msra.mxu0 %v5290
    %5344 = vmatprep.subr.mxu0 0.0
    %5345 = vmatpush2.msra.mxu0 %v5289
    %5346 = vmatprep.subr.mxu0 0.0
    %5347 = vmatpush2.msra.mxu0 %v5288
    %5348 = vmatprep.subr.mxu0 0.0
    %5349 = vmatpush2.msra.mxu0 %v5287
    %5350 = vmatprep.subr.mxu0 0.0
    %5351 = vmatpush2.msra.mxu0 %v5286
    %5352 = vmatprep.subr.mxu0 0.0
    %5353 = vmatpush2.msra.mxu0 %v5285
    %5354 = vmatprep.subr.mxu0 0.0
    %5355 = vmatpush2.msra.mxu0 %v5284
    %5356 = vmatprep.subr.mxu0 0.0
    %5357 = vmatpush2.msra.mxu0 %v5283
    %5358 = vmatprep.mubr.f32.mxu0 %v5292
    %5359 = vmatmul.mubr.f32.gmra.mxu0 %v5263
    %v5360 = vpop.f32.mrf.mxu0
    %v5361 = vadd.f32 0.0, %v5360
    %v5362 = vpop.f32.mrf.mxu0
    %5363 = vdwg.mxu0
    %s5364 = scalar_lea.vmem [#allocation3], 24
    %5365 = vst.msk [vmem:[%s5364] sm:$0x3f] %vm2748, %v5361
    %v5366 = vld [vmem:[#allocation2 + $0x100] sm:$0xff]
    %v5367 = vld [vmem:[#allocation2 + $0x108] sm:$0xff]
    %v5368 = vld [vmem:[#allocation2 + $0x110] sm:$0xff]
    %v5369 = vld [vmem:[#allocation2 + $0x118] sm:$0xff]
    %v5370 = vld [vmem:[#allocation2 + $0x120] sm:$0xff]
    %v5371 = vld [vmem:[#allocation2 + $0x128] sm:$0xff]
    %v5372 = vld [vmem:[#allocation2 + $0x130] sm:$0x3f]
    %v5373 = vld [vmem:[#allocation2 + $0x138] sm:$0x3f]
    %v5382 = vrot.slane %v5366, 1
    %v5383 = vrot.slane %v5368, 1
    %v5384 = vsel %vm1880, %v5382, %v5383
    %v5385 = vrot.slane %v5367, 1
    %v5386 = vrot.slane %v5369, 1
    %v5387 = vsel %vm1880, %v5385, %v5386
    %v5388 = vrot.slane %v5370, 1
    %v5389 = vsel %vm1880, %v5383, %v5388
    %v5390 = vrot.slane %v5371, 1
    %v5391 = vsel %vm1880, %v5386, %v5390
    %v5392 = vrot.slane %v5372, 1
    %v5393 = vsel %vm1880, %v5388, %v5392
    %v5394 = vrot.slane %v5373, 1
    %v5395 = vsel %vm1880, %v5390, %v5394
    %v5404 = vmax.f32 %v5366, %v5384
    %v5405 = vmax.f32 %v5367, %v5387
    %v5406 = vmax.f32 %v5368, %v5389
    %v5407 = vmax.f32 %v5369, %v5391
    %v5408 = vmax.f32 %v5370, %v5393
    %v5409 = vmax.f32 %v5371, %v5395
    %v5410 = vmax.f32 %v5372, %v5392
    %v5411 = vmax.f32 %v5373, %v5394
    %5420 = vrot.lane.b32.xlu0 %v5404, 122
    %v5421 = vpop.permute.xlu0 %5420
    %5422 = vrot.lane.b32.xlu0 %v5405, 122
    %v5423 = vpop.permute.xlu0 %5422
    %5424 = vrot.lane.b32.xlu0 %v5406, 122
    %v5425 = vpop.permute.xlu0 %5424
    %5426 = vrot.lane.b32.xlu0 %v5407, 122
    %v5427 = vpop.permute.xlu0 %5426
    %5428 = vrot.lane.b32.xlu0 %v5408, 122
    %v5429 = vpop.permute.xlu0 %5428
    %5430 = vrot.lane.b32.xlu0 %v5409, 122
    %v5431 = vpop.permute.xlu0 %5430
    %5432 = vrot.lane.b32.xlu0 %v5410, 122
    %v5433 = vpop.permute.xlu0 %5432
    %5434 = vrot.lane.b32.xlu0 %v5411, 122
    %v5435 = vpop.permute.xlu0 %5434
    %v5436 = vsel %vm1935, %v5421, %v5423
    %v5437 = vsel %vm1935, %v5425, %v5427
    %v5438 = vsel %vm1935, %v5429, %v5431
    %v5439 = vsel %vm1935, %v5433, %v5435
    %v5448 = vmax.f32 %v5404, %v5436
    %v5449 = vmax.f32 %v5405, %v5423
    %v5450 = vmax.f32 %v5406, %v5437
    %v5451 = vmax.f32 %v5407, %v5427
    %v5452 = vmax.f32 %v5408, %v5438
    %v5453 = vmax.f32 %v5409, %v5431
    %v5454 = vmax.f32 %v5410, %v5439
    %v5455 = vmax.f32 %v5411, %v5435
    %v5456 = vld [vmem:[%s5] sm:$0xff]
    %v5457 = vld [vmem:[%s5 + $0x8] sm:$0x7f]
    %v5459 = vsel %vm1958, %v5456, 0
    %v5462 = vsel %vm1958, %v5457, 0
    %v5465 = vsel %vm1965, %v5454, 0
    %v5468 = vsel %vm1965, %v5455, 0
    %5470 = vmatprep.subr.mxu0 0.0
    %5471 = vmatpush1.msra.mxu0 0.0
    %5472 = vmatprep.subr.mxu0 0.0
    %5473 = vmatpush1.msra.mxu0 0.0
    %5474 = vmatprep.subr.mxu0 0.0
    %5475 = vmatpush1.msra.mxu0 0.0
    %5476 = vmatprep.subr.mxu0 0.0
    %5477 = vmatpush1.msra.mxu0 0.0
    %5478 = vmatprep.subr.mxu0 0.0
    %5479 = vmatpush1.msra.mxu0 0.0
    %5480 = vmatprep.subr.mxu0 0.0
    %5481 = vmatpush1.msra.mxu0 0.0
    %5482 = vmatprep.subr.mxu0 0.0
    %5483 = vmatpush1.msra.mxu0 0.0
    %5484 = vmatprep.subr.mxu0 0.0
    %5485 = vmatpush1.msra.mxu0 0.0
    %5486 = vmatprep.subr.mxu0 0.0
    %5487 = vmatpush1.msra.mxu0 0.0
    %5488 = vmatprep.subr.mxu0 0.0
    %5489 = vmatpush1.msra.mxu0 0.0
    %5490 = vmatprep.subr.mxu0 0.0
    %5491 = vmatpush1.msra.mxu0 0.0
    %5492 = vmatprep.subr.mxu0 0.0
    %5493 = vmatpush1.msra.mxu0 0.0
    %5494 = vmatprep.subr.mxu0 %v5468
    %5495 = vmatpush1.msra.mxu0 %v5465
    %5496 = vmatprep.subr.mxu0 %v5453
    %5497 = vmatpush1.msra.mxu0 %v5452
    %5498 = vmatprep.subr.mxu0 %v5451
    %5499 = vmatpush1.msra.mxu0 %v5450
    %5500 = vmatprep.subr.mxu0 %v5449
    %5501 = vmatpush1.msra.mxu0 %v5448
    %5502 = vmatprep.subr.mxu0 0.0
    %5503 = vmatpush2.msra.mxu0 0.0
    %5504 = vmatprep.subr.mxu0 0.0
    %5505 = vmatpush2.msra.mxu0 0.0
    %5506 = vmatprep.subr.mxu0 0.0
    %5507 = vmatpush2.msra.mxu0 0.0
    %5508 = vmatprep.subr.mxu0 0.0
    %5509 = vmatpush2.msra.mxu0 0.0
    %5510 = vmatprep.subr.mxu0 0.0
    %5511 = vmatpush2.msra.mxu0 0.0
    %5512 = vmatprep.subr.mxu0 0.0
    %5513 = vmatpush2.msra.mxu0 0.0
    %5514 = vmatprep.subr.mxu0 0.0
    %5515 = vmatpush2.msra.mxu0 0.0
    %5516 = vmatprep.subr.mxu0 0.0
    %5517 = vmatpush2.msra.mxu0 0.0
    %5518 = vmatprep.subr.mxu0 0.0
    %5519 = vmatpush2.msra.mxu0 0.0
    %5520 = vmatprep.subr.mxu0 0.0
    %5521 = vmatpush2.msra.mxu0 0.0
    %5522 = vmatprep.subr.mxu0 0.0
    %5523 = vmatpush2.msra.mxu0 0.0
    %5524 = vmatprep.subr.mxu0 0.0
    %5525 = vmatpush2.msra.mxu0 0.0
    %5526 = vmatprep.subr.mxu0 0.0
    %5527 = vmatpush2.msra.mxu0 0.0
    %5528 = vmatprep.subr.mxu0 0.0
    %5529 = vmatpush2.msra.mxu0 0.0
    %5530 = vmatprep.subr.mxu0 0.0
    %5531 = vmatpush2.msra.mxu0 0.0
    %5532 = vmatprep.subr.mxu0 0.0
    %5533 = vmatpush2.msra.mxu0 0.0
    %5534 = vmatprep.mubr.f32.mxu0 0.0
    %5535 = vmatmul.mubr.f32.gmra.mxu0 %v5459
    %v5536 = vpop.f32.mrf.mxu0
    %v5537 = vadd.f32 0.0, %v5536
    %v5538 = vpop.f32.mrf.mxu0
    %v5539 = vadd.f32 0.0, %v5538
    %5540 = vmatprep.mubr.f32.mxu0 0.0
    %5541 = vmatmul.mubr.f32.gmra.mxu0 %v5462
    %v5542 = vpop.f32.mrf.mxu0
    %v5543 = vadd.f32 0.0, %v5542
    %v5544 = vpop.f32.mrf.mxu0
    %v5545 = vadd.f32 0.0, %v5544
    %5546 = vdwg.mxu0
    %v5547 = vld [vmem:[#allocation7] sm:$0xff]
    %v5548 = vld [vmem:[#allocation7 + $0x8] sm:$0xff]
    %v5549 = vld [vmem:[#allocation7 + $0x10] sm:$0xff]
    %v5550 = vld [vmem:[#allocation7 + $0x18] sm:$0xff]
    %v5551 = vld [vmem:[#allocation7 + $0x20] sm:$0xff]
    %v5552 = vld [vmem:[#allocation7 + $0x28] sm:$0xff]
    %v5553 = vld [vmem:[#allocation7 + $0x30] sm:$0xff]
    %v5554 = vld [vmem:[#allocation7 + $0x38] sm:$0xff]
    %v5555 = vld [vmem:[#allocation7 + $0x40] sm:$0xff]
    %v5556 = vld [vmem:[#allocation7 + $0x48] sm:$0xff]
    %v5557 = vld [vmem:[#allocation7 + $0x50] sm:$0xff]
    %v5558 = vld [vmem:[#allocation7 + $0x58] sm:$0xff]
    %v5559 = vld [vmem:[#allocation7 + $0x60] sm:$0xff]
    %v5560 = vld [vmem:[#allocation7 + $0x68] sm:$0xff]
    %v5561 = vld [vmem:[#allocation7 + $0x70] sm:$0xff]
    %v5562 = vld [vmem:[#allocation7 + $0x78] sm:$0xff]
    %v5563 = vld [vmem:[#allocation7 + $0x80] sm:$0xff]
    %v5564 = vld [vmem:[#allocation7 + $0x88] sm:$0xff]
    %v5565 = vld [vmem:[#allocation7 + $0x90] sm:$0xff]
    %v5566 = vld [vmem:[#allocation7 + $0x98] sm:$0xff]
    %v5567 = vld [vmem:[#allocation7 + $0xa0] sm:$0xff]
    %v5568 = vld [vmem:[#allocation7 + $0xa8] sm:$0x3f]
    %v5570 = vsel %vm2071, %v5539, 0
    %v5573 = vsel %vm2071, %v5545, 0
    %v5576 = vsel %vm2078, %v5568, 0
    %5578 = vmatprep.subr.mxu0 0.0
    %5579 = vmatpush1.msra.mxu0 %v5562
    %5580 = vmatprep.subr.mxu0 0.0
    %5581 = vmatpush1.msra.mxu0 %v5561
    %5582 = vmatprep.subr.mxu0 0.0
    %5583 = vmatpush1.msra.mxu0 %v5560
    %5584 = vmatprep.subr.mxu0 0.0
    %5585 = vmatpush1.msra.mxu0 %v5559
    %5586 = vmatprep.subr.mxu0 0.0
    %5587 = vmatpush1.msra.mxu0 %v5558
    %5588 = vmatprep.subr.mxu0 0.0
    %5589 = vmatpush1.msra.mxu0 %v5557
    %5590 = vmatprep.subr.mxu0 0.0
    %5591 = vmatpush1.msra.mxu0 %v5556
    %5592 = vmatprep.subr.mxu0 0.0
    %5593 = vmatpush1.msra.mxu0 %v5555
    %5594 = vmatprep.subr.mxu0 0.0
    %5595 = vmatpush1.msra.mxu0 %v5554
    %5596 = vmatprep.subr.mxu0 0.0
    %5597 = vmatpush1.msra.mxu0 %v5553
    %5598 = vmatprep.subr.mxu0 0.0
    %5599 = vmatpush1.msra.mxu0 %v5552
    %5600 = vmatprep.subr.mxu0 0.0
    %5601 = vmatpush1.msra.mxu0 %v5551
    %5602 = vmatprep.subr.mxu0 0.0
    %5603 = vmatpush1.msra.mxu0 %v5550
    %5604 = vmatprep.subr.mxu0 0.0
    %5605 = vmatpush1.msra.mxu0 %v5549
    %5606 = vmatprep.subr.mxu0 0.0
    %5607 = vmatpush1.msra.mxu0 %v5548
    %5608 = vmatprep.subr.mxu0 0.0
    %5609 = vmatpush1.msra.mxu0 %v5547
    %5610 = vmatprep.subr.mxu0 0.0
    %5611 = vmatpush2.msra.mxu0 0.0
    %5612 = vmatprep.subr.mxu0 0.0
    %5613 = vmatpush2.msra.mxu0 0.0
    %5614 = vmatprep.subr.mxu0 0.0
    %5615 = vmatpush2.msra.mxu0 0.0
    %5616 = vmatprep.subr.mxu0 0.0
    %5617 = vmatpush2.msra.mxu0 0.0
    %5618 = vmatprep.subr.mxu0 0.0
    %5619 = vmatpush2.msra.mxu0 0.0
    %5620 = vmatprep.subr.mxu0 0.0
    %5621 = vmatpush2.msra.mxu0 0.0
    %5622 = vmatprep.subr.mxu0 0.0
    %5623 = vmatpush2.msra.mxu0 0.0
    %5624 = vmatprep.subr.mxu0 0.0
    %5625 = vmatpush2.msra.mxu0 0.0
    %5626 = vmatprep.subr.mxu0 0.0
    %5627 = vmatpush2.msra.mxu0 0.0
    %5628 = vmatprep.subr.mxu0 0.0
    %5629 = vmatpush2.msra.mxu0 0.0
    %5630 = vmatprep.subr.mxu0 0.0
    %5631 = vmatpush2.msra.mxu0 %v5576
    %5632 = vmatprep.subr.mxu0 0.0
    %5633 = vmatpush2.msra.mxu0 %v5567
    %5634 = vmatprep.subr.mxu0 0.0
    %5635 = vmatpush2.msra.mxu0 %v5566
    %5636 = vmatprep.subr.mxu0 0.0
    %5637 = vmatpush2.msra.mxu0 %v5565
    %5638 = vmatprep.subr.mxu0 0.0
    %5639 = vmatpush2.msra.mxu0 %v5564
    %5640 = vmatprep.subr.mxu0 0.0
    %5641 = vmatpush2.msra.mxu0 %v5563
    %5642 = vmatprep.mubr.f32.mxu0 %v5570
    %5643 = vmatmul.mubr.f32.gmra.mxu0 %v5537
    %v5644 = vpop.f32.mrf.mxu0
    %v5645 = vadd.f32 0.0, %v5644
    %v5646 = vpop.f32.mrf.mxu0
    %5647 = vmatprep.mubr.f32.mxu0 %v5573
    %5648 = vmatmul.mubr.f32.gmra.mxu0 %v5543
    %v5649 = vpop.f32.mrf.mxu0
    %v5650 = vadd.f32 0.0, %v5649
    %v5651 = vpop.f32.mrf.mxu0
    %5652 = vdwg.mxu0
    %v5653 = vld [vmem:[#allocation4] sm:$0xff]
    %v5654 = vld [vmem:[#allocation4 + $0x8] sm:$0xff]
    %v5655 = vld [vmem:[#allocation4 + $0x10] sm:$0xff]
    %v5656 = vld [vmem:[#allocation4 + $0x18] sm:$0xff]
    %v5657 = vld [vmem:[#allocation4 + $0x20] sm:$0xff]
    %v5658 = vld [vmem:[#allocation4 + $0x28] sm:$0xff]
    %v5659 = vld [vmem:[#allocation4 + $0x30] sm:$0xff]
    %v5660 = vld [vmem:[#allocation4 + $0x38] sm:$0xff]
    %v5661 = vld [vmem:[#allocation4 + $0x40] sm:$0xff]
    %v5662 = vld [vmem:[#allocation4 + $0x48] sm:$0xff]
    %v5663 = vld [vmem:[#allocation4 + $0x50] sm:$0xff]
    %v5664 = vld [vmem:[#allocation4 + $0x58] sm:$0xff]
    %v5665 = vld [vmem:[#allocation4 + $0x60] sm:$0xff]
    %v5666 = vld [vmem:[#allocation4 + $0x68] sm:$0xff]
    %v5667 = vld [vmem:[#allocation4 + $0x70] sm:$0xff]
    %v5668 = vld [vmem:[#allocation4 + $0x78] sm:$0xff]
    %v5669 = vld [vmem:[#allocation4 + $0x80] sm:$0xff]
    %v5670 = vld [vmem:[#allocation4 + $0x88] sm:$0xff]
    %v5671 = vld [vmem:[#allocation4 + $0x90] sm:$0xff]
    %v5672 = vld [vmem:[#allocation4 + $0x98] sm:$0xff]
    %v5673 = vld [vmem:[#allocation4 + $0xa0] sm:$0xff]
    %v5674 = vld [vmem:[#allocation4 + $0xa8] sm:$0xff]
    %v5675 = vld [vmem:[#allocation4 + $0xb0] sm:$0x3]
    %v5676 = vld [vmem:[#allocation4 + $0xb8] sm:$0x3]
    %v5677 = vld [vmem:[%s2181] sm:$0xff]
    %v5678 = vld [vmem:[%s2181 + $0x8] sm:$0xff]
    %v5679 = vld [vmem:[%s2181 + $0x10] sm:$0xff]
    %v5680 = vld [vmem:[%s2181 + $0x18] sm:$0xff]
    %v5681 = vld [vmem:[%s2181 + $0x20] sm:$0xff]
    %v5682 = vld [vmem:[%s2181 + $0x28] sm:$0xff]
    %v5683 = vld [vmem:[%s2181 + $0x30] sm:$0xff]
    %v5684 = vld [vmem:[%s2181 + $0x38] sm:$0xff]
    %v5685 = vld [vmem:[%s2181 + $0x40] sm:$0xff]
    %v5686 = vld [vmem:[%s2181 + $0x48] sm:$0xff]
    %v5687 = vld [vmem:[%s2181 + $0x50] sm:$0xff]
    %v5688 = vld [vmem:[%s2181 + $0x58] sm:$0xff]
    %v5689 = vld [vmem:[%s2181 + $0x60] sm:$0xff]
    %v5690 = vld [vmem:[%s2181 + $0x68] sm:$0xff]
    %v5691 = vld [vmem:[%s2181 + $0x70] sm:$0xff]
    %v5692 = vld [vmem:[%s2181 + $0x78] sm:$0xff]
    %v5693 = vld [vmem:[%s2181 + $0x80] sm:$0xff]
    %v5694 = vld [vmem:[%s2181 + $0x88] sm:$0xff]
    %v5695 = vld [vmem:[%s2181 + $0x90] sm:$0xff]
    %v5696 = vld [vmem:[%s2181 + $0x98] sm:$0xff]
    %v5697 = vld [vmem:[%s2181 + $0xa0] sm:$0xff]
    %v5698 = vld [vmem:[%s2181 + $0xa8] sm:$0xff]
    %v5699 = vld [vmem:[%s2181 + $0xb0] sm:$0x3]
    %v5700 = vld [vmem:[%s2181 + $0xb8] sm:$0x3]
    %v5703 = vrot.slane %v5645, 1
    %v5704 = vrot.slane %v5650, 1
    %v5705 = vsel %vm1880, %v5703, %v5704
    %v5706 = vsel %vm2211, %v5705, 0
    %v5708 = vsel %vm2211, %v5704, 0
    %v5711 = vsel %vm2216, %v5699, 0
    %v5714 = vsel %vm2216, %v5700, 0
    %5716 = vmatprep.subr.mxu0 0.0
    %5717 = vmatpush1.msra.mxu0 0.0
    %5718 = vmatprep.subr.mxu0 0.0
    %5719 = vmatpush1.msra.mxu0 0.0
    %5720 = vmatprep.subr.mxu0 0.0
    %5721 = vmatpush1.msra.mxu0 0.0
    %5722 = vmatprep.subr.mxu0 0.0
    %5723 = vmatpush1.msra.mxu0 0.0
    %5724 = vmatprep.subr.mxu0 %v5714
    %5725 = vmatpush1.msra.mxu0 %v5711
    %5726 = vmatprep.subr.mxu0 %v5698
    %5727 = vmatpush1.msra.mxu0 %v5697
    %5728 = vmatprep.subr.mxu0 %v5696
    %5729 = vmatpush1.msra.mxu0 %v5695
    %5730 = vmatprep.subr.mxu0 %v5694
    %5731 = vmatpush1.msra.mxu0 %v5693
    %5732 = vmatprep.subr.mxu0 %v5692
    %5733 = vmatpush1.msra.mxu0 %v5691
    %5734 = vmatprep.subr.mxu0 %v5690
    %5735 = vmatpush1.msra.mxu0 %v5689
    %5736 = vmatprep.subr.mxu0 %v5688
    %5737 = vmatpush1.msra.mxu0 %v5687
    %5738 = vmatprep.subr.mxu0 %v5686
    %5739 = vmatpush1.msra.mxu0 %v5685
    %5740 = vmatprep.subr.mxu0 %v5684
    %5741 = vmatpush1.msra.mxu0 %v5683
    %5742 = vmatprep.subr.mxu0 %v5682
    %5743 = vmatpush1.msra.mxu0 %v5681
    %5744 = vmatprep.subr.mxu0 %v5680
    %5745 = vmatpush1.msra.mxu0 %v5679
    %5746 = vmatprep.subr.mxu0 %v5678
    %5747 = vmatpush1.msra.mxu0 %v5677
    %5748 = vmatprep.subr.mxu0 0.0
    %5749 = vmatpush2.msra.mxu0 0.0
    %5750 = vmatprep.subr.mxu0 0.0
    %5751 = vmatpush2.msra.mxu0 0.0
    %5752 = vmatprep.subr.mxu0 0.0
    %5753 = vmatpush2.msra.mxu0 0.0
    %5754 = vmatprep.subr.mxu0 0.0
    %5755 = vmatpush2.msra.mxu0 0.0
    %5756 = vmatprep.subr.mxu0 0.0
    %5757 = vmatpush2.msra.mxu0 0.0
    %5758 = vmatprep.subr.mxu0 0.0
    %5759 = vmatpush2.msra.mxu0 0.0
    %5760 = vmatprep.subr.mxu0 0.0
    %5761 = vmatpush2.msra.mxu0 0.0
    %5762 = vmatprep.subr.mxu0 0.0
    %5763 = vmatpush2.msra.mxu0 0.0
    %5764 = vmatprep.subr.mxu0 0.0
    %5765 = vmatpush2.msra.mxu0 0.0
    %5766 = vmatprep.subr.mxu0 0.0
    %5767 = vmatpush2.msra.mxu0 0.0
    %5768 = vmatprep.subr.mxu0 0.0
    %5769 = vmatpush2.msra.mxu0 0.0
    %5770 = vmatprep.subr.mxu0 0.0
    %5771 = vmatpush2.msra.mxu0 0.0
    %5772 = vmatprep.subr.mxu0 0.0
    %5773 = vmatpush2.msra.mxu0 0.0
    %5774 = vmatprep.subr.mxu0 0.0
    %5775 = vmatpush2.msra.mxu0 0.0
    %5776 = vmatprep.subr.mxu0 0.0
    %5777 = vmatpush2.msra.mxu0 0.0
    %5778 = vmatprep.subr.mxu0 0.0
    %5779 = vmatpush2.msra.mxu0 0.0
    %5780 = vmatprep.mubr.f32.mxu0 0.0
    %5781 = vmatmul.mubr.f32.gmra.mxu0 %v5706
    %v5782 = vpop.f32.mrf.mxu0
    %v5783 = vadd.f32 0.0, %v5782
    %v5784 = vpop.f32.mrf.mxu0
    %v5785 = vadd.f32 0.0, %v5784
    %5786 = vmatprep.mubr.f32.mxu0 0.0
    %5787 = vmatmul.mubr.f32.gmra.mxu0 %v5708
    %v5788 = vpop.f32.mrf.mxu0
    %v5789 = vadd.f32 0.0, %v5788
    %v5790 = vpop.f32.mrf.mxu0
    %v5791 = vadd.f32 0.0, %v5790
    %5792 = vdwg.mxu0
    %v5793 = vsel %vm2211, %v5645, 0
    %v5795 = vsel %vm2211, %v5650, 0
    %v5798 = vsel %vm2216, %v5675, 0
    %v5801 = vsel %vm2216, %v5676, 0
    %5803 = vmatprep.subr.mxu0 0.0
    %5804 = vmatpush1.msra.mxu0 0.0
    %5805 = vmatprep.subr.mxu0 0.0
    %5806 = vmatpush1.msra.mxu0 0.0
    %5807 = vmatprep.subr.mxu0 0.0
    %5808 = vmatpush1.msra.mxu0 0.0
    %5809 = vmatprep.subr.mxu0 0.0
    %5810 = vmatpush1.msra.mxu0 0.0
    %5811 = vmatprep.subr.mxu0 %v5801
    %5812 = vmatpush1.msra.mxu0 %v5798
    %5813 = vmatprep.subr.mxu0 %v5674
    %5814 = vmatpush1.msra.mxu0 %v5673
    %5815 = vmatprep.subr.mxu0 %v5672
    %5816 = vmatpush1.msra.mxu0 %v5671
    %5817 = vmatprep.subr.mxu0 %v5670
    %5818 = vmatpush1.msra.mxu0 %v5669
    %5819 = vmatprep.subr.mxu0 %v5668
    %5820 = vmatpush1.msra.mxu0 %v5667
    %5821 = vmatprep.subr.mxu0 %v5666
    %5822 = vmatpush1.msra.mxu0 %v5665
    %5823 = vmatprep.subr.mxu0 %v5664
    %5824 = vmatpush1.msra.mxu0 %v5663
    %5825 = vmatprep.subr.mxu0 %v5662
    %5826 = vmatpush1.msra.mxu0 %v5661
    %5827 = vmatprep.subr.mxu0 %v5660
    %5828 = vmatpush1.msra.mxu0 %v5659
    %5829 = vmatprep.subr.mxu0 %v5658
    %5830 = vmatpush1.msra.mxu0 %v5657
    %5831 = vmatprep.subr.mxu0 %v5656
    %5832 = vmatpush1.msra.mxu0 %v5655
    %5833 = vmatprep.subr.mxu0 %v5654
    %5834 = vmatpush1.msra.mxu0 %v5653
    %5835 = vmatprep.subr.mxu0 0.0
    %5836 = vmatpush2.msra.mxu0 0.0
    %5837 = vmatprep.subr.mxu0 0.0
    %5838 = vmatpush2.msra.mxu0 0.0
    %5839 = vmatprep.subr.mxu0 0.0
    %5840 = vmatpush2.msra.mxu0 0.0
    %5841 = vmatprep.subr.mxu0 0.0
    %5842 = vmatpush2.msra.mxu0 0.0
    %5843 = vmatprep.subr.mxu0 0.0
    %5844 = vmatpush2.msra.mxu0 0.0
    %5845 = vmatprep.subr.mxu0 0.0
    %5846 = vmatpush2.msra.mxu0 0.0
    %5847 = vmatprep.subr.mxu0 0.0
    %5848 = vmatpush2.msra.mxu0 0.0
    %5849 = vmatprep.subr.mxu0 0.0
    %5850 = vmatpush2.msra.mxu0 0.0
    %5851 = vmatprep.subr.mxu0 0.0
    %5852 = vmatpush2.msra.mxu0 0.0
    %5853 = vmatprep.subr.mxu0 0.0
    %5854 = vmatpush2.msra.mxu0 0.0
    %5855 = vmatprep.subr.mxu0 0.0
    %5856 = vmatpush2.msra.mxu0 0.0
    %5857 = vmatprep.subr.mxu0 0.0
    %5858 = vmatpush2.msra.mxu0 0.0
    %5859 = vmatprep.subr.mxu0 0.0
    %5860 = vmatpush2.msra.mxu0 0.0
    %5861 = vmatprep.subr.mxu0 0.0
    %5862 = vmatpush2.msra.mxu0 0.0
    %5863 = vmatprep.subr.mxu0 0.0
    %5864 = vmatpush2.msra.mxu0 0.0
    %5865 = vmatprep.subr.mxu0 0.0
    %5866 = vmatpush2.msra.mxu0 0.0
    %5867 = vmatprep.mubr.f32.mxu0 0.0
    %5868 = vmatmul.mubr.f32.gmra.mxu0 %v5793
    %v5869 = vpop.f32.mrf.mxu0
    %v5870 = vadd.f32 %v5783, %v5869
    %v5871 = vpop.f32.mrf.mxu0
    %v5872 = vadd.f32 %v5785, %v5871
    %5873 = vmatprep.mubr.f32.mxu0 0.0
    %5874 = vmatmul.mubr.f32.gmra.mxu0 %v5795
    %v5875 = vpop.f32.mrf.mxu0
    %v5876 = vadd.f32 %v5789, %v5875
    %v5877 = vpop.f32.mrf.mxu0
    %v5878 = vadd.f32 %v5791, %v5877
    %5879 = vdwg.mxu0
    %v5880 = vld [vmem:[%s2387] sm:$0xff]
    %v5881 = vld [vmem:[%s2387 + $0x8] sm:$0xff]
    %v5882 = vld [vmem:[%s2387 + $0x10] sm:$0xff]
    %v5883 = vld [vmem:[%s2387 + $0x18] sm:$0xff]
    %v5884 = vld [vmem:[%s2387 + $0x20] sm:$0xff]
    %v5885 = vld [vmem:[%s2387 + $0x28] sm:$0xff]
    %v5886 = vld [vmem:[%s2387 + $0x30] sm:$0xff]
    %v5887 = vld [vmem:[%s2387 + $0x38] sm:$0xff]
    %v5888 = vld [vmem:[%s2387 + $0x40] sm:$0xff]
    %v5889 = vld [vmem:[%s2387 + $0x48] sm:$0xff]
    %v5890 = vld [vmem:[%s2387 + $0x50] sm:$0xff]
    %v5891 = vld [vmem:[%s2387 + $0x58] sm:$0xff]
    %v5892 = vld [vmem:[%s2387 + $0x60] sm:$0xff]
    %v5893 = vld [vmem:[%s2387 + $0x68] sm:$0xff]
    %v5894 = vld [vmem:[%s2387 + $0x70] sm:$0xff]
    %v5895 = vld [vmem:[%s2387 + $0x78] sm:$0xff]
    %v5896 = vld [vmem:[%s2387 + $0x80] sm:$0xff]
    %v5897 = vld [vmem:[%s2387 + $0x88] sm:$0xff]
    %v5898 = vld [vmem:[%s2387 + $0x90] sm:$0xff]
    %v5899 = vld [vmem:[%s2387 + $0x98] sm:$0xff]
    %v5900 = vld [vmem:[%s2387 + $0xa0] sm:$0xff]
    %v5901 = vld [vmem:[%s2387 + $0xa8] sm:$0xff]
    %v5902 = vld [vmem:[%s2387 + $0xb0] sm:$0x3]
    %v5903 = vld [vmem:[%s2387 + $0xb8] sm:$0x3]
    %v5904 = vrot.slane %v5645, 2
    %v5905 = vrot.slane %v5650, 2
    %v5906 = vsel %vm2078, %v5904, %v5905
    %v5907 = vsel %vm2211, %v5906, 0
    %v5909 = vsel %vm2211, %v5905, 0
    %v5912 = vsel %vm2216, %v5902, 0
    %v5915 = vsel %vm2216, %v5903, 0
    %5917 = vmatprep.subr.mxu0 0.0
    %5918 = vmatpush1.msra.mxu0 0.0
    %5919 = vmatprep.subr.mxu0 0.0
    %5920 = vmatpush1.msra.mxu0 0.0
    %5921 = vmatprep.subr.mxu0 0.0
    %5922 = vmatpush1.msra.mxu0 0.0
    %5923 = vmatprep.subr.mxu0 0.0
    %5924 = vmatpush1.msra.mxu0 0.0
    %5925 = vmatprep.subr.mxu0 %v5915
    %5926 = vmatpush1.msra.mxu0 %v5912
    %5927 = vmatprep.subr.mxu0 %v5901
    %5928 = vmatpush1.msra.mxu0 %v5900
    %5929 = vmatprep.subr.mxu0 %v5899
    %5930 = vmatpush1.msra.mxu0 %v5898
    %5931 = vmatprep.subr.mxu0 %v5897
    %5932 = vmatpush1.msra.mxu0 %v5896
    %5933 = vmatprep.subr.mxu0 %v5895
    %5934 = vmatpush1.msra.mxu0 %v5894
    %5935 = vmatprep.subr.mxu0 %v5893
    %5936 = vmatpush1.msra.mxu0 %v5892
    %5937 = vmatprep.subr.mxu0 %v5891
    %5938 = vmatpush1.msra.mxu0 %v5890
    %5939 = vmatprep.subr.mxu0 %v5889
    %5940 = vmatpush1.msra.mxu0 %v5888
    %5941 = vmatprep.subr.mxu0 %v5887
    %5942 = vmatpush1.msra.mxu0 %v5886
    %5943 = vmatprep.subr.mxu0 %v5885
    %5944 = vmatpush1.msra.mxu0 %v5884
    %5945 = vmatprep.subr.mxu0 %v5883
    %5946 = vmatpush1.msra.mxu0 %v5882
    %5947 = vmatprep.subr.mxu0 %v5881
    %5948 = vmatpush1.msra.mxu0 %v5880
    %5949 = vmatprep.subr.mxu0 0.0
    %5950 = vmatpush2.msra.mxu0 0.0
    %5951 = vmatprep.subr.mxu0 0.0
    %5952 = vmatpush2.msra.mxu0 0.0
    %5953 = vmatprep.subr.mxu0 0.0
    %5954 = vmatpush2.msra.mxu0 0.0
    %5955 = vmatprep.subr.mxu0 0.0
    %5956 = vmatpush2.msra.mxu0 0.0
    %5957 = vmatprep.subr.mxu0 0.0
    %5958 = vmatpush2.msra.mxu0 0.0
    %5959 = vmatprep.subr.mxu0 0.0
    %5960 = vmatpush2.msra.mxu0 0.0
    %5961 = vmatprep.subr.mxu0 0.0
    %5962 = vmatpush2.msra.mxu0 0.0
    %5963 = vmatprep.subr.mxu0 0.0
    %5964 = vmatpush2.msra.mxu0 0.0
    %5965 = vmatprep.subr.mxu0 0.0
    %5966 = vmatpush2.msra.mxu0 0.0
    %5967 = vmatprep.subr.mxu0 0.0
    %5968 = vmatpush2.msra.mxu0 0.0
    %5969 = vmatprep.subr.mxu0 0.0
    %5970 = vmatpush2.msra.mxu0 0.0
    %5971 = vmatprep.subr.mxu0 0.0
    %5972 = vmatpush2.msra.mxu0 0.0
    %5973 = vmatprep.subr.mxu0 0.0
    %5974 = vmatpush2.msra.mxu0 0.0
    %5975 = vmatprep.subr.mxu0 0.0
    %5976 = vmatpush2.msra.mxu0 0.0
    %5977 = vmatprep.subr.mxu0 0.0
    %5978 = vmatpush2.msra.mxu0 0.0
    %5979 = vmatprep.subr.mxu0 0.0
    %5980 = vmatpush2.msra.mxu0 0.0
    %5981 = vmatprep.mubr.f32.mxu0 0.0
    %5982 = vmatmul.mubr.f32.gmra.mxu0 %v5907
    %v5983 = vpop.f32.mrf.mxu0
    %v5984 = vadd.f32 0.0, %v5983
    %v5985 = vpop.f32.mrf.mxu0
    %v5986 = vadd.f32 0.0, %v5985
    %5987 = vmatprep.mubr.f32.mxu0 0.0
    %5988 = vmatmul.mubr.f32.gmra.mxu0 %v5909
    %v5989 = vpop.f32.mrf.mxu0
    %v5990 = vadd.f32 0.0, %v5989
    %v5991 = vpop.f32.mrf.mxu0
    %v5992 = vadd.f32 0.0, %v5991
    %5993 = vdwg.mxu0
    %v5994 = vadd.f32 %v5870, %v5984
    %v5995 = vadd.f32 %v5872, %v5986
    %v5996 = vadd.f32 %v5876, %v5990
    %v5997 = vadd.f32 %v5878, %v5992
    %v5998 = vld [vmem:[%s4] sm:$0x3]
    %v6000 = vlaneseq
    %v6001 = vshrl.u32 %v6000, 7
    %v6002 = vsub.s32 0, %v6001
    %v6003 = vrot.slane %v5998, %v6002
    %v6004 = vlaneseq
    %v6005 = vshrl.u32 %v6004, 7
    %v6006 = vsub.s32 1, %v6005
    %v6007 = vrot.slane %v5998, %v6006
    %v6010 = vadd.f32 %v5994, %v6003
    %v6011 = vadd.f32 %v5995, %v6007
    %v6012 = vadd.f32 %v5996, %v6003
    %v6013 = vadd.f32 %v5997, %v6007
    %v6014 = vmax.f32 %v6010, 0.0
    %v6015 = vmax.f32 %v6011, 0.0
    %v6016 = vmax.f32 %v6012, 0.0
    %v6017 = vmax.f32 %v6013, 0.0
    %v6022 = vrot.slane %v6014, 1
    %v6023 = vrot.slane %v6016, 1
    %v6024 = vsel %vm1880, %v6022, %v6023
    %v6025 = vrot.slane %v6015, 1
    %v6026 = vrot.slane %v6017, 1
    %v6027 = vsel %vm1880, %v6025, %v6026
    %v6032 = vmax.f32 %v6014, %v6024
    %v6033 = vmax.f32 %v6015, %v6027
    %v6034 = vmax.f32 %v6016, %v6023
    %v6035 = vmax.f32 %v6017, %v6026
    %6040 = vrot.lane.b32.xlu0 %v6032, 112
    %v6041 = vpop.permute.xlu0 %6040
    %6042 = vrot.lane.b32.xlu0 %v6033, 112
    %v6043 = vpop.permute.xlu0 %6042
    %6044 = vrot.lane.b32.xlu0 %v6034, 112
    %v6045 = vpop.permute.xlu0 %6044
    %6046 = vrot.lane.b32.xlu0 %v6035, 112
    %v6047 = vpop.permute.xlu0 %6046
    %v6048 = vsel %vm2556, %v6041, %v6043
    %v6049 = vsel %vm2556, %v6045, %v6047
    %v6054 = vmax.f32 %v6032, %v6048
    %v6055 = vmax.f32 %v6033, %v6043
    %v6056 = vmax.f32 %v6034, %v6049
    %v6057 = vmax.f32 %v6035, %v6047
    %v6058 = vld [vmem:[%s7] sm:$0x3f]
    %v6060 = vsel %vm2568, %v6058, 0
    %v6063 = vsel %vm2572, %v6056, 0
    %v6066 = vsel %vm2572, %v6057, 0
    %6068 = vmatprep.subr.mxu0 0.0
    %6069 = vmatpush1.msra.mxu0 0.0
    %6070 = vmatprep.subr.mxu0 0.0
    %6071 = vmatpush1.msra.mxu0 0.0
    %6072 = vmatprep.subr.mxu0 0.0
    %6073 = vmatpush1.msra.mxu0 0.0
    %6074 = vmatprep.subr.mxu0 0.0
    %6075 = vmatpush1.msra.mxu0 0.0
    %6076 = vmatprep.subr.mxu0 0.0
    %6077 = vmatpush1.msra.mxu0 0.0
    %6078 = vmatprep.subr.mxu0 0.0
    %6079 = vmatpush1.msra.mxu0 0.0
    %6080 = vmatprep.subr.mxu0 0.0
    %6081 = vmatpush1.msra.mxu0 0.0
    %6082 = vmatprep.subr.mxu0 0.0
    %6083 = vmatpush1.msra.mxu0 0.0
    %6084 = vmatprep.subr.mxu0 0.0
    %6085 = vmatpush1.msra.mxu0 0.0
    %6086 = vmatprep.subr.mxu0 0.0
    %6087 = vmatpush1.msra.mxu0 0.0
    %6088 = vmatprep.subr.mxu0 0.0
    %6089 = vmatpush1.msra.mxu0 0.0
    %6090 = vmatprep.subr.mxu0 0.0
    %6091 = vmatpush1.msra.mxu0 0.0
    %6092 = vmatprep.subr.mxu0 0.0
    %6093 = vmatpush1.msra.mxu0 0.0
    %6094 = vmatprep.subr.mxu0 0.0
    %6095 = vmatpush1.msra.mxu0 0.0
    %6096 = vmatprep.subr.mxu0 %v6066
    %6097 = vmatpush1.msra.mxu0 %v6063
    %6098 = vmatprep.subr.mxu0 %v6055
    %6099 = vmatpush1.msra.mxu0 %v6054
    %6100 = vmatprep.subr.mxu0 0.0
    %6101 = vmatpush2.msra.mxu0 0.0
    %6102 = vmatprep.subr.mxu0 0.0
    %6103 = vmatpush2.msra.mxu0 0.0
    %6104 = vmatprep.subr.mxu0 0.0
    %6105 = vmatpush2.msra.mxu0 0.0
    %6106 = vmatprep.subr.mxu0 0.0
    %6107 = vmatpush2.msra.mxu0 0.0
    %6108 = vmatprep.subr.mxu0 0.0
    %6109 = vmatpush2.msra.mxu0 0.0
    %6110 = vmatprep.subr.mxu0 0.0
    %6111 = vmatpush2.msra.mxu0 0.0
    %6112 = vmatprep.subr.mxu0 0.0
    %6113 = vmatpush2.msra.mxu0 0.0
    %6114 = vmatprep.subr.mxu0 0.0
    %6115 = vmatpush2.msra.mxu0 0.0
    %6116 = vmatprep.subr.mxu0 0.0
    %6117 = vmatpush2.msra.mxu0 0.0
    %6118 = vmatprep.subr.mxu0 0.0
    %6119 = vmatpush2.msra.mxu0 0.0
    %6120 = vmatprep.subr.mxu0 0.0
    %6121 = vmatpush2.msra.mxu0 0.0
    %6122 = vmatprep.subr.mxu0 0.0
    %6123 = vmatpush2.msra.mxu0 0.0
    %6124 = vmatprep.subr.mxu0 0.0
    %6125 = vmatpush2.msra.mxu0 0.0
    %6126 = vmatprep.subr.mxu0 0.0
    %6127 = vmatpush2.msra.mxu0 0.0
    %6128 = vmatprep.subr.mxu0 0.0
    %6129 = vmatpush2.msra.mxu0 0.0
    %6130 = vmatprep.subr.mxu0 0.0
    %6131 = vmatpush2.msra.mxu0 0.0
    %6132 = vmatprep.mubr.f32.mxu0 0.0
    %6133 = vmatmul.mubr.f32.gmra.mxu0 %v6060
    %v6134 = vpop.f32.mrf.mxu0
    %v6135 = vadd.f32 0.0, %v6134
    %v6136 = vpop.f32.mrf.mxu0
    %v6137 = vadd.f32 0.0, %v6136
    %6138 = vdwg.mxu0
    %v6139 = vld [vmem:[%s8] sm:$0xff]
    %v6140 = vld [vmem:[%s8 + $0x8] sm:$0xff]
    %v6141 = vld [vmem:[%s8 + $0x10] sm:$0xff]
    %v6142 = vld [vmem:[%s8 + $0x18] sm:$0xff]
    %v6143 = vld [vmem:[%s8 + $0x20] sm:$0xff]
    %v6144 = vld [vmem:[%s8 + $0x28] sm:$0xff]
    %v6145 = vld [vmem:[%s8 + $0x30] sm:$0xff]
    %v6146 = vld [vmem:[%s8 + $0x38] sm:$0xff]
    %v6147 = vld [vmem:[%s8 + $0x40] sm:$0xff]
    %v6148 = vld [vmem:[%s8 + $0x48] sm:$0xff]
    %v6149 = vld [vmem:[%s8 + $0x50] sm:$0xff]
    %v6150 = vld [vmem:[%s8 + $0x58] sm:$0xff]
    %v6151 = vld [vmem:[%s8 + $0x60] sm:$0xff]
    %v6152 = vld [vmem:[%s8 + $0x68] sm:$0xff]
    %v6153 = vld [vmem:[%s8 + $0x70] sm:$0xff]
    %v6154 = vld [vmem:[%s8 + $0x78] sm:$0xff]
    %v6155 = vld [vmem:[%s8 + $0x80] sm:$0xff]
    %v6156 = vld [vmem:[%s8 + $0x88] sm:$0xff]
    %v6157 = vld [vmem:[%s8 + $0x90] sm:$0xff]
    %v6158 = vld [vmem:[%s8 + $0x98] sm:$0xff]
    %v6159 = vld [vmem:[%s8 + $0xa0] sm:$0xff]
    %v6160 = vld [vmem:[%s8 + $0xa8] sm:$0xff]
    %v6161 = vld [vmem:[%s8 + $0xb0] sm:$0xff]
    %v6162 = vld [vmem:[%s8 + $0xb8] sm:$0xff]
    %v6164 = vsel %vm2674, %v6137, 0
    %6166 = vmatprep.subr.mxu0 0.0
    %6167 = vmatpush1.msra.mxu0 %v6154
    %6168 = vmatprep.subr.mxu0 0.0
    %6169 = vmatpush1.msra.mxu0 %v6153
    %6170 = vmatprep.subr.mxu0 0.0
    %6171 = vmatpush1.msra.mxu0 %v6152
    %6172 = vmatprep.subr.mxu0 0.0
    %6173 = vmatpush1.msra.mxu0 %v6151
    %6174 = vmatprep.subr.mxu0 0.0
    %6175 = vmatpush1.msra.mxu0 %v6150
    %6176 = vmatprep.subr.mxu0 0.0
    %6177 = vmatpush1.msra.mxu0 %v6149
    %6178 = vmatprep.subr.mxu0 0.0
    %6179 = vmatpush1.msra.mxu0 %v6148
    %6180 = vmatprep.subr.mxu0 0.0
    %6181 = vmatpush1.msra.mxu0 %v6147
    %6182 = vmatprep.subr.mxu0 0.0
    %6183 = vmatpush1.msra.mxu0 %v6146
    %6184 = vmatprep.subr.mxu0 0.0
    %6185 = vmatpush1.msra.mxu0 %v6145
    %6186 = vmatprep.subr.mxu0 0.0
    %6187 = vmatpush1.msra.mxu0 %v6144
    %6188 = vmatprep.subr.mxu0 0.0
    %6189 = vmatpush1.msra.mxu0 %v6143
    %6190 = vmatprep.subr.mxu0 0.0
    %6191 = vmatpush1.msra.mxu0 %v6142
    %6192 = vmatprep.subr.mxu0 0.0
    %6193 = vmatpush1.msra.mxu0 %v6141
    %6194 = vmatprep.subr.mxu0 0.0
    %6195 = vmatpush1.msra.mxu0 %v6140
    %6196 = vmatprep.subr.mxu0 0.0
    %6197 = vmatpush1.msra.mxu0 %v6139
    %6198 = vmatprep.subr.mxu0 0.0
    %6199 = vmatpush2.msra.mxu0 0.0
    %6200 = vmatprep.subr.mxu0 0.0
    %6201 = vmatpush2.msra.mxu0 0.0
    %6202 = vmatprep.subr.mxu0 0.0
    %6203 = vmatpush2.msra.mxu0 0.0
    %6204 = vmatprep.subr.mxu0 0.0
    %6205 = vmatpush2.msra.mxu0 0.0
    %6206 = vmatprep.subr.mxu0 0.0
    %6207 = vmatpush2.msra.mxu0 0.0
    %6208 = vmatprep.subr.mxu0 0.0
    %6209 = vmatpush2.msra.mxu0 0.0
    %6210 = vmatprep.subr.mxu0 0.0
    %6211 = vmatpush2.msra.mxu0 0.0
    %6212 = vmatprep.subr.mxu0 0.0
    %6213 = vmatpush2.msra.mxu0 0.0
    %6214 = vmatprep.subr.mxu0 0.0
    %6215 = vmatpush2.msra.mxu0 %v6162
    %6216 = vmatprep.subr.mxu0 0.0
    %6217 = vmatpush2.msra.mxu0 %v6161
    %6218 = vmatprep.subr.mxu0 0.0
    %6219 = vmatpush2.msra.mxu0 %v6160
    %6220 = vmatprep.subr.mxu0 0.0
    %6221 = vmatpush2.msra.mxu0 %v6159
    %6222 = vmatprep.subr.mxu0 0.0
    %6223 = vmatpush2.msra.mxu0 %v6158
    %6224 = vmatprep.subr.mxu0 0.0
    %6225 = vmatpush2.msra.mxu0 %v6157
    %6226 = vmatprep.subr.mxu0 0.0
    %6227 = vmatpush2.msra.mxu0 %v6156
    %6228 = vmatprep.subr.mxu0 0.0
    %6229 = vmatpush2.msra.mxu0 %v6155
    %6230 = vmatprep.mubr.f32.mxu0 %v6164
    %6231 = vmatmul.mubr.f32.gmra.mxu0 %v6135
    %v6232 = vpop.f32.mrf.mxu0
    %v6233 = vadd.f32 0.0, %v6232
    %v6234 = vpop.f32.mrf.mxu0
    %6235 = vdwg.mxu0
    %s6236 = scalar_lea.vmem [#allocation3], 32
    %6237 = vst.msk [vmem:[%s6236] sm:$0x3f] %vm2748, %v6233
    %v6238 = vld [vmem:[#allocation2 + $0x140] sm:$0xff]
    %v6239 = vld [vmem:[#allocation2 + $0x148] sm:$0xff]
    %v6240 = vld [vmem:[#allocation2 + $0x150] sm:$0xff]
    %v6241 = vld [vmem:[#allocation2 + $0x158] sm:$0xff]
    %v6242 = vld [vmem:[#allocation2 + $0x160] sm:$0xff]
    %v6243 = vld [vmem:[#allocation2 + $0x168] sm:$0xff]
    %v6244 = vld [vmem:[#allocation2 + $0x170] sm:$0x3f]
    %v6245 = vld [vmem:[#allocation2 + $0x178] sm:$0x3f]
    %v6254 = vrot.slane %v6238, 1
    %v6255 = vrot.slane %v6240, 1
    %v6256 = vsel %vm1880, %v6254, %v6255
    %v6257 = vrot.slane %v6239, 1
    %v6258 = vrot.slane %v6241, 1
    %v6259 = vsel %vm1880, %v6257, %v6258
    %v6260 = vrot.slane %v6242, 1
    %v6261 = vsel %vm1880, %v6255, %v6260
    %v6262 = vrot.slane %v6243, 1
    %v6263 = vsel %vm1880, %v6258, %v6262
    %v6264 = vrot.slane %v6244, 1
    %v6265 = vsel %vm1880, %v6260, %v6264
    %v6266 = vrot.slane %v6245, 1
    %v6267 = vsel %vm1880, %v6262, %v6266
    %v6276 = vmax.f32 %v6238, %v6256
    %v6277 = vmax.f32 %v6239, %v6259
    %v6278 = vmax.f32 %v6240, %v6261
    %v6279 = vmax.f32 %v6241, %v6263
    %v6280 = vmax.f32 %v6242, %v6265
    %v6281 = vmax.f32 %v6243, %v6267
    %v6282 = vmax.f32 %v6244, %v6264
    %v6283 = vmax.f32 %v6245, %v6266
    %6292 = vrot.lane.b32.xlu0 %v6276, 122
    %v6293 = vpop.permute.xlu0 %6292
    %6294 = vrot.lane.b32.xlu0 %v6277, 122
    %v6295 = vpop.permute.xlu0 %6294
    %6296 = vrot.lane.b32.xlu0 %v6278, 122
    %v6297 = vpop.permute.xlu0 %6296
    %6298 = vrot.lane.b32.xlu0 %v6279, 122
    %v6299 = vpop.permute.xlu0 %6298
    %6300 = vrot.lane.b32.xlu0 %v6280, 122
    %v6301 = vpop.permute.xlu0 %6300
    %6302 = vrot.lane.b32.xlu0 %v6281, 122
    %v6303 = vpop.permute.xlu0 %6302
    %6304 = vrot.lane.b32.xlu0 %v6282, 122
    %v6305 = vpop.permute.xlu0 %6304
    %6306 = vrot.lane.b32.xlu0 %v6283, 122
    %v6307 = vpop.permute.xlu0 %6306
    %v6308 = vsel %vm1935, %v6293, %v6295
    %v6309 = vsel %vm1935, %v6297, %v6299
    %v6310 = vsel %vm1935, %v6301, %v6303
    %v6311 = vsel %vm1935, %v6305, %v6307
    %v6320 = vmax.f32 %v6276, %v6308
    %v6321 = vmax.f32 %v6277, %v6295
    %v6322 = vmax.f32 %v6278, %v6309
    %v6323 = vmax.f32 %v6279, %v6299
    %v6324 = vmax.f32 %v6280, %v6310
    %v6325 = vmax.f32 %v6281, %v6303
    %v6326 = vmax.f32 %v6282, %v6311
    %v6327 = vmax.f32 %v6283, %v6307
    %v6328 = vld [vmem:[%s5] sm:$0xff]
    %v6329 = vld [vmem:[%s5 + $0x8] sm:$0x7f]
    %v6331 = vsel %vm1958, %v6328, 0
    %v6334 = vsel %vm1958, %v6329, 0
    %v6337 = vsel %vm1965, %v6326, 0
    %v6340 = vsel %vm1965, %v6327, 0
    %6342 = vmatprep.subr.mxu0 0.0
    %6343 = vmatpush1.msra.mxu0 0.0
    %6344 = vmatprep.subr.mxu0 0.0
    %6345 = vmatpush1.msra.mxu0 0.0
    %6346 = vmatprep.subr.mxu0 0.0
    %6347 = vmatpush1.msra.mxu0 0.0
    %6348 = vmatprep.subr.mxu0 0.0
    %6349 = vmatpush1.msra.mxu0 0.0
    %6350 = vmatprep.subr.mxu0 0.0
    %6351 = vmatpush1.msra.mxu0 0.0
    %6352 = vmatprep.subr.mxu0 0.0
    %6353 = vmatpush1.msra.mxu0 0.0
    %6354 = vmatprep.subr.mxu0 0.0
    %6355 = vmatpush1.msra.mxu0 0.0
    %6356 = vmatprep.subr.mxu0 0.0
    %6357 = vmatpush1.msra.mxu0 0.0
    %6358 = vmatprep.subr.mxu0 0.0
    %6359 = vmatpush1.msra.mxu0 0.0
    %6360 = vmatprep.subr.mxu0 0.0
    %6361 = vmatpush1.msra.mxu0 0.0
    %6362 = vmatprep.subr.mxu0 0.0
    %6363 = vmatpush1.msra.mxu0 0.0
    %6364 = vmatprep.subr.mxu0 0.0
    %6365 = vmatpush1.msra.mxu0 0.0
    %6366 = vmatprep.subr.mxu0 %v6340
    %6367 = vmatpush1.msra.mxu0 %v6337
    %6368 = vmatprep.subr.mxu0 %v6325
    %6369 = vmatpush1.msra.mxu0 %v6324
    %6370 = vmatprep.subr.mxu0 %v6323
    %6371 = vmatpush1.msra.mxu0 %v6322
    %6372 = vmatprep.subr.mxu0 %v6321
    %6373 = vmatpush1.msra.mxu0 %v6320
    %6374 = vmatprep.subr.mxu0 0.0
    %6375 = vmatpush2.msra.mxu0 0.0
    %6376 = vmatprep.subr.mxu0 0.0
    %6377 = vmatpush2.msra.mxu0 0.0
    %6378 = vmatprep.subr.mxu0 0.0
    %6379 = vmatpush2.msra.mxu0 0.0
    %6380 = vmatprep.subr.mxu0 0.0
    %6381 = vmatpush2.msra.mxu0 0.0
    %6382 = vmatprep.subr.mxu0 0.0
    %6383 = vmatpush2.msra.mxu0 0.0
    %6384 = vmatprep.subr.mxu0 0.0
    %6385 = vmatpush2.msra.mxu0 0.0
    %6386 = vmatprep.subr.mxu0 0.0
    %6387 = vmatpush2.msra.mxu0 0.0
    %6388 = vmatprep.subr.mxu0 0.0
    %6389 = vmatpush2.msra.mxu0 0.0
    %6390 = vmatprep.subr.mxu0 0.0
    %6391 = vmatpush2.msra.mxu0 0.0
    %6392 = vmatprep.subr.mxu0 0.0
    %6393 = vmatpush2.msra.mxu0 0.0
    %6394 = vmatprep.subr.mxu0 0.0
    %6395 = vmatpush2.msra.mxu0 0.0
    %6396 = vmatprep.subr.mxu0 0.0
    %6397 = vmatpush2.msra.mxu0 0.0
    %6398 = vmatprep.subr.mxu0 0.0
    %6399 = vmatpush2.msra.mxu0 0.0
    %6400 = vmatprep.subr.mxu0 0.0
    %6401 = vmatpush2.msra.mxu0 0.0
    %6402 = vmatprep.subr.mxu0 0.0
    %6403 = vmatpush2.msra.mxu0 0.0
    %6404 = vmatprep.subr.mxu0 0.0
    %6405 = vmatpush2.msra.mxu0 0.0
    %6406 = vmatprep.mubr.f32.mxu0 0.0
    %6407 = vmatmul.mubr.f32.gmra.mxu0 %v6331
    %v6408 = vpop.f32.mrf.mxu0
    %v6409 = vadd.f32 0.0, %v6408
    %v6410 = vpop.f32.mrf.mxu0
    %v6411 = vadd.f32 0.0, %v6410
    %6412 = vmatprep.mubr.f32.mxu0 0.0
    %6413 = vmatmul.mubr.f32.gmra.mxu0 %v6334
    %v6414 = vpop.f32.mrf.mxu0
    %v6415 = vadd.f32 0.0, %v6414
    %v6416 = vpop.f32.mrf.mxu0
    %v6417 = vadd.f32 0.0, %v6416
    %6418 = vdwg.mxu0
    %v6419 = vld [vmem:[#allocation7] sm:$0xff]
    %v6420 = vld [vmem:[#allocation7 + $0x8] sm:$0xff]
    %v6421 = vld [vmem:[#allocation7 + $0x10] sm:$0xff]
    %v6422 = vld [vmem:[#allocation7 + $0x18] sm:$0xff]
    %v6423 = vld [vmem:[#allocation7 + $0x20] sm:$0xff]
    %v6424 = vld [vmem:[#allocation7 + $0x28] sm:$0xff]
    %v6425 = vld [vmem:[#allocation7 + $0x30] sm:$0xff]
    %v6426 = vld [vmem:[#allocation7 + $0x38] sm:$0xff]
    %v6427 = vld [vmem:[#allocation7 + $0x40] sm:$0xff]
    %v6428 = vld [vmem:[#allocation7 + $0x48] sm:$0xff]
    %v6429 = vld [vmem:[#allocation7 + $0x50] sm:$0xff]
    %v6430 = vld [vmem:[#allocation7 + $0x58] sm:$0xff]
    %v6431 = vld [vmem:[#allocation7 + $0x60] sm:$0xff]
    %v6432 = vld [vmem:[#allocation7 + $0x68] sm:$0xff]
    %v6433 = vld [vmem:[#allocation7 + $0x70] sm:$0xff]
    %v6434 = vld [vmem:[#allocation7 + $0x78] sm:$0xff]
    %v6435 = vld [vmem:[#allocation7 + $0x80] sm:$0xff]
    %v6436 = vld [vmem:[#allocation7 + $0x88] sm:$0xff]
    %v6437 = vld [vmem:[#allocation7 + $0x90] sm:$0xff]
    %v6438 = vld [vmem:[#allocation7 + $0x98] sm:$0xff]
    %v6439 = vld [vmem:[#allocation7 + $0xa0] sm:$0xff]
    %v6440 = vld [vmem:[#allocation7 + $0xa8] sm:$0x3f]
    %v6442 = vsel %vm2071, %v6411, 0
    %v6445 = vsel %vm2071, %v6417, 0
    %v6448 = vsel %vm2078, %v6440, 0
    %6450 = vmatprep.subr.mxu0 0.0
    %6451 = vmatpush1.msra.mxu0 %v6434
    %6452 = vmatprep.subr.mxu0 0.0
    %6453 = vmatpush1.msra.mxu0 %v6433
    %6454 = vmatprep.subr.mxu0 0.0
    %6455 = vmatpush1.msra.mxu0 %v6432
    %6456 = vmatprep.subr.mxu0 0.0
    %6457 = vmatpush1.msra.mxu0 %v6431
    %6458 = vmatprep.subr.mxu0 0.0
    %6459 = vmatpush1.msra.mxu0 %v6430
    %6460 = vmatprep.subr.mxu0 0.0
    %6461 = vmatpush1.msra.mxu0 %v6429
    %6462 = vmatprep.subr.mxu0 0.0
    %6463 = vmatpush1.msra.mxu0 %v6428
    %6464 = vmatprep.subr.mxu0 0.0
    %6465 = vmatpush1.msra.mxu0 %v6427
    %6466 = vmatprep.subr.mxu0 0.0
    %6467 = vmatpush1.msra.mxu0 %v6426
    %6468 = vmatprep.subr.mxu0 0.0
    %6469 = vmatpush1.msra.mxu0 %v6425
    %6470 = vmatprep.subr.mxu0 0.0
    %6471 = vmatpush1.msra.mxu0 %v6424
    %6472 = vmatprep.subr.mxu0 0.0
    %6473 = vmatpush1.msra.mxu0 %v6423
    %6474 = vmatprep.subr.mxu0 0.0
    %6475 = vmatpush1.msra.mxu0 %v6422
    %6476 = vmatprep.subr.mxu0 0.0
    %6477 = vmatpush1.msra.mxu0 %v6421
    %6478 = vmatprep.subr.mxu0 0.0
    %6479 = vmatpush1.msra.mxu0 %v6420
    %6480 = vmatprep.subr.mxu0 0.0
    %6481 = vmatpush1.msra.mxu0 %v6419
    %6482 = vmatprep.subr.mxu0 0.0
    %6483 = vmatpush2.msra.mxu0 0.0
    %6484 = vmatprep.subr.mxu0 0.0
    %6485 = vmatpush2.msra.mxu0 0.0
    %6486 = vmatprep.subr.mxu0 0.0
    %6487 = vmatpush2.msra.mxu0 0.0
    %6488 = vmatprep.subr.mxu0 0.0
    %6489 = vmatpush2.msra.mxu0 0.0
    %6490 = vmatprep.subr.mxu0 0.0
    %6491 = vmatpush2.msra.mxu0 0.0
    %6492 = vmatprep.subr.mxu0 0.0
    %6493 = vmatpush2.msra.mxu0 0.0
    %6494 = vmatprep.subr.mxu0 0.0
    %6495 = vmatpush2.msra.mxu0 0.0
    %6496 = vmatprep.subr.mxu0 0.0
    %6497 = vmatpush2.msra.mxu0 0.0
    %6498 = vmatprep.subr.mxu0 0.0
    %6499 = vmatpush2.msra.mxu0 0.0
    %6500 = vmatprep.subr.mxu0 0.0
    %6501 = vmatpush2.msra.mxu0 0.0
    %6502 = vmatprep.subr.mxu0 0.0
    %6503 = vmatpush2.msra.mxu0 %v6448
    %6504 = vmatprep.subr.mxu0 0.0
    %6505 = vmatpush2.msra.mxu0 %v6439
    %6506 = vmatprep.subr.mxu0 0.0
    %6507 = vmatpush2.msra.mxu0 %v6438
    %6508 = vmatprep.subr.mxu0 0.0
    %6509 = vmatpush2.msra.mxu0 %v6437
    %6510 = vmatprep.subr.mxu0 0.0
    %6511 = vmatpush2.msra.mxu0 %v6436
    %6512 = vmatprep.subr.mxu0 0.0
    %6513 = vmatpush2.msra.mxu0 %v6435
    %6514 = vmatprep.mubr.f32.mxu0 %v6442
    %6515 = vmatmul.mubr.f32.gmra.mxu0 %v6409
    %v6516 = vpop.f32.mrf.mxu0
    %v6517 = vadd.f32 0.0, %v6516
    %v6518 = vpop.f32.mrf.mxu0
    %6519 = vmatprep.mubr.f32.mxu0 %v6445
    %6520 = vmatmul.mubr.f32.gmra.mxu0 %v6415
    %v6521 = vpop.f32.mrf.mxu0
    %v6522 = vadd.f32 0.0, %v6521
    %v6523 = vpop.f32.mrf.mxu0
    %6524 = vdwg.mxu0
    %v6525 = vld [vmem:[#allocation4] sm:$0xff]
    %v6526 = vld [vmem:[#allocation4 + $0x8] sm:$0xff]
    %v6527 = vld [vmem:[#allocation4 + $0x10] sm:$0xff]
    %v6528 = vld [vmem:[#allocation4 + $0x18] sm:$0xff]
    %v6529 = vld [vmem:[#allocation4 + $0x20] sm:$0xff]
    %v6530 = vld [vmem:[#allocation4 + $0x28] sm:$0xff]
    %v6531 = vld [vmem:[#allocation4 + $0x30] sm:$0xff]
    %v6532 = vld [vmem:[#allocation4 + $0x38] sm:$0xff]
    %v6533 = vld [vmem:[#allocation4 + $0x40] sm:$0xff]
    %v6534 = vld [vmem:[#allocation4 + $0x48] sm:$0xff]
    %v6535 = vld [vmem:[#allocation4 + $0x50] sm:$0xff]
    %v6536 = vld [vmem:[#allocation4 + $0x58] sm:$0xff]
    %v6537 = vld [vmem:[#allocation4 + $0x60] sm:$0xff]
    %v6538 = vld [vmem:[#allocation4 + $0x68] sm:$0xff]
    %v6539 = vld [vmem:[#allocation4 + $0x70] sm:$0xff]
    %v6540 = vld [vmem:[#allocation4 + $0x78] sm:$0xff]
    %v6541 = vld [vmem:[#allocation4 + $0x80] sm:$0xff]
    %v6542 = vld [vmem:[#allocation4 + $0x88] sm:$0xff]
    %v6543 = vld [vmem:[#allocation4 + $0x90] sm:$0xff]
    %v6544 = vld [vmem:[#allocation4 + $0x98] sm:$0xff]
    %v6545 = vld [vmem:[#allocation4 + $0xa0] sm:$0xff]
    %v6546 = vld [vmem:[#allocation4 + $0xa8] sm:$0xff]
    %v6547 = vld [vmem:[#allocation4 + $0xb0] sm:$0x3]
    %v6548 = vld [vmem:[#allocation4 + $0xb8] sm:$0x3]
    %v6549 = vld [vmem:[%s2181] sm:$0xff]
    %v6550 = vld [vmem:[%s2181 + $0x8] sm:$0xff]
    %v6551 = vld [vmem:[%s2181 + $0x10] sm:$0xff]
    %v6552 = vld [vmem:[%s2181 + $0x18] sm:$0xff]
    %v6553 = vld [vmem:[%s2181 + $0x20] sm:$0xff]
    %v6554 = vld [vmem:[%s2181 + $0x28] sm:$0xff]
    %v6555 = vld [vmem:[%s2181 + $0x30] sm:$0xff]
    %v6556 = vld [vmem:[%s2181 + $0x38] sm:$0xff]
    %v6557 = vld [vmem:[%s2181 + $0x40] sm:$0xff]
    %v6558 = vld [vmem:[%s2181 + $0x48] sm:$0xff]
    %v6559 = vld [vmem:[%s2181 + $0x50] sm:$0xff]
    %v6560 = vld [vmem:[%s2181 + $0x58] sm:$0xff]
    %v6561 = vld [vmem:[%s2181 + $0x60] sm:$0xff]
    %v6562 = vld [vmem:[%s2181 + $0x68] sm:$0xff]
    %v6563 = vld [vmem:[%s2181 + $0x70] sm:$0xff]
    %v6564 = vld [vmem:[%s2181 + $0x78] sm:$0xff]
    %v6565 = vld [vmem:[%s2181 + $0x80] sm:$0xff]
    %v6566 = vld [vmem:[%s2181 + $0x88] sm:$0xff]
    %v6567 = vld [vmem:[%s2181 + $0x90] sm:$0xff]
    %v6568 = vld [vmem:[%s2181 + $0x98] sm:$0xff]
    %v6569 = vld [vmem:[%s2181 + $0xa0] sm:$0xff]
    %v6570 = vld [vmem:[%s2181 + $0xa8] sm:$0xff]
    %v6571 = vld [vmem:[%s2181 + $0xb0] sm:$0x3]
    %v6572 = vld [vmem:[%s2181 + $0xb8] sm:$0x3]
    %v6575 = vrot.slane %v6517, 1
    %v6576 = vrot.slane %v6522, 1
    %v6577 = vsel %vm1880, %v6575, %v6576
    %v6578 = vsel %vm2211, %v6577, 0
    %v6580 = vsel %vm2211, %v6576, 0
    %v6583 = vsel %vm2216, %v6571, 0
    %v6586 = vsel %vm2216, %v6572, 0
    %6588 = vmatprep.subr.mxu0 0.0
    %6589 = vmatpush1.msra.mxu0 0.0
    %6590 = vmatprep.subr.mxu0 0.0
    %6591 = vmatpush1.msra.mxu0 0.0
    %6592 = vmatprep.subr.mxu0 0.0
    %6593 = vmatpush1.msra.mxu0 0.0
    %6594 = vmatprep.subr.mxu0 0.0
    %6595 = vmatpush1.msra.mxu0 0.0
    %6596 = vmatprep.subr.mxu0 %v6586
    %6597 = vmatpush1.msra.mxu0 %v6583
    %6598 = vmatprep.subr.mxu0 %v6570
    %6599 = vmatpush1.msra.mxu0 %v6569
    %6600 = vmatprep.subr.mxu0 %v6568
    %6601 = vmatpush1.msra.mxu0 %v6567
    %6602 = vmatprep.subr.mxu0 %v6566
    %6603 = vmatpush1.msra.mxu0 %v6565
    %6604 = vmatprep.subr.mxu0 %v6564
    %6605 = vmatpush1.msra.mxu0 %v6563
    %6606 = vmatprep.subr.mxu0 %v6562
    %6607 = vmatpush1.msra.mxu0 %v6561
    %6608 = vmatprep.subr.mxu0 %v6560
    %6609 = vmatpush1.msra.mxu0 %v6559
    %6610 = vmatprep.subr.mxu0 %v6558
    %6611 = vmatpush1.msra.mxu0 %v6557
    %6612 = vmatprep.subr.mxu0 %v6556
    %6613 = vmatpush1.msra.mxu0 %v6555
    %6614 = vmatprep.subr.mxu0 %v6554
    %6615 = vmatpush1.msra.mxu0 %v6553
    %6616 = vmatprep.subr.mxu0 %v6552
    %6617 = vmatpush1.msra.mxu0 %v6551
    %6618 = vmatprep.subr.mxu0 %v6550
    %6619 = vmatpush1.msra.mxu0 %v6549
    %6620 = vmatprep.subr.mxu0 0.0
    %6621 = vmatpush2.msra.mxu0 0.0
    %6622 = vmatprep.subr.mxu0 0.0
    %6623 = vmatpush2.msra.mxu0 0.0
    %6624 = vmatprep.subr.mxu0 0.0
    %6625 = vmatpush2.msra.mxu0 0.0
    %6626 = vmatprep.subr.mxu0 0.0
    %6627 = vmatpush2.msra.mxu0 0.0
    %6628 = vmatprep.subr.mxu0 0.0
    %6629 = vmatpush2.msra.mxu0 0.0
    %6630 = vmatprep.subr.mxu0 0.0
    %6631 = vmatpush2.msra.mxu0 0.0
    %6632 = vmatprep.subr.mxu0 0.0
    %6633 = vmatpush2.msra.mxu0 0.0
    %6634 = vmatprep.subr.mxu0 0.0
    %6635 = vmatpush2.msra.mxu0 0.0
    %6636 = vmatprep.subr.mxu0 0.0
    %6637 = vmatpush2.msra.mxu0 0.0
    %6638 = vmatprep.subr.mxu0 0.0
    %6639 = vmatpush2.msra.mxu0 0.0
    %6640 = vmatprep.subr.mxu0 0.0
    %6641 = vmatpush2.msra.mxu0 0.0
    %6642 = vmatprep.subr.mxu0 0.0
    %6643 = vmatpush2.msra.mxu0 0.0
    %6644 = vmatprep.subr.mxu0 0.0
    %6645 = vmatpush2.msra.mxu0 0.0
    %6646 = vmatprep.subr.mxu0 0.0
    %6647 = vmatpush2.msra.mxu0 0.0
    %6648 = vmatprep.subr.mxu0 0.0
    %6649 = vmatpush2.msra.mxu0 0.0
    %6650 = vmatprep.subr.mxu0 0.0
    %6651 = vmatpush2.msra.mxu0 0.0
    %6652 = vmatprep.mubr.f32.mxu0 0.0
    %6653 = vmatmul.mubr.f32.gmra.mxu0 %v6578
    %v6654 = vpop.f32.mrf.mxu0
    %v6655 = vadd.f32 0.0, %v6654
    %v6656 = vpop.f32.mrf.mxu0
    %v6657 = vadd.f32 0.0, %v6656
    %6658 = vmatprep.mubr.f32.mxu0 0.0
    %6659 = vmatmul.mubr.f32.gmra.mxu0 %v6580
    %v6660 = vpop.f32.mrf.mxu0
    %v6661 = vadd.f32 0.0, %v6660
    %v6662 = vpop.f32.mrf.mxu0
    %v6663 = vadd.f32 0.0, %v6662
    %6664 = vdwg.mxu0
    %v6665 = vsel %vm2211, %v6517, 0
    %v6667 = vsel %vm2211, %v6522, 0
    %v6670 = vsel %vm2216, %v6547, 0
    %v6673 = vsel %vm2216, %v6548, 0
    %6675 = vmatprep.subr.mxu0 0.0
    %6676 = vmatpush1.msra.mxu0 0.0
    %6677 = vmatprep.subr.mxu0 0.0
    %6678 = vmatpush1.msra.mxu0 0.0
    %6679 = vmatprep.subr.mxu0 0.0
    %6680 = vmatpush1.msra.mxu0 0.0
    %6681 = vmatprep.subr.mxu0 0.0
    %6682 = vmatpush1.msra.mxu0 0.0
    %6683 = vmatprep.subr.mxu0 %v6673
    %6684 = vmatpush1.msra.mxu0 %v6670
    %6685 = vmatprep.subr.mxu0 %v6546
    %6686 = vmatpush1.msra.mxu0 %v6545
    %6687 = vmatprep.subr.mxu0 %v6544
    %6688 = vmatpush1.msra.mxu0 %v6543
    %6689 = vmatprep.subr.mxu0 %v6542
    %6690 = vmatpush1.msra.mxu0 %v6541
    %6691 = vmatprep.subr.mxu0 %v6540
    %6692 = vmatpush1.msra.mxu0 %v6539
    %6693 = vmatprep.subr.mxu0 %v6538
    %6694 = vmatpush1.msra.mxu0 %v6537
    %6695 = vmatprep.subr.mxu0 %v6536
    %6696 = vmatpush1.msra.mxu0 %v6535
    %6697 = vmatprep.subr.mxu0 %v6534
    %6698 = vmatpush1.msra.mxu0 %v6533
    %6699 = vmatprep.subr.mxu0 %v6532
    %6700 = vmatpush1.msra.mxu0 %v6531
    %6701 = vmatprep.subr.mxu0 %v6530
    %6702 = vmatpush1.msra.mxu0 %v6529
    %6703 = vmatprep.subr.mxu0 %v6528
    %6704 = vmatpush1.msra.mxu0 %v6527
    %6705 = vmatprep.subr.mxu0 %v6526
    %6706 = vmatpush1.msra.mxu0 %v6525
    %6707 = vmatprep.subr.mxu0 0.0
    %6708 = vmatpush2.msra.mxu0 0.0
    %6709 = vmatprep.subr.mxu0 0.0
    %6710 = vmatpush2.msra.mxu0 0.0
    %6711 = vmatprep.subr.mxu0 0.0
    %6712 = vmatpush2.msra.mxu0 0.0
    %6713 = vmatprep.subr.mxu0 0.0
    %6714 = vmatpush2.msra.mxu0 0.0
    %6715 = vmatprep.subr.mxu0 0.0
    %6716 = vmatpush2.msra.mxu0 0.0
    %6717 = vmatprep.subr.mxu0 0.0
    %6718 = vmatpush2.msra.mxu0 0.0
    %6719 = vmatprep.subr.mxu0 0.0
    %6720 = vmatpush2.msra.mxu0 0.0
    %6721 = vmatprep.subr.mxu0 0.0
    %6722 = vmatpush2.msra.mxu0 0.0
    %6723 = vmatprep.subr.mxu0 0.0
    %6724 = vmatpush2.msra.mxu0 0.0
    %6725 = vmatprep.subr.mxu0 0.0
    %6726 = vmatpush2.msra.mxu0 0.0
    %6727 = vmatprep.subr.mxu0 0.0
    %6728 = vmatpush2.msra.mxu0 0.0
    %6729 = vmatprep.subr.mxu0 0.0
    %6730 = vmatpush2.msra.mxu0 0.0
    %6731 = vmatprep.subr.mxu0 0.0
    %6732 = vmatpush2.msra.mxu0 0.0
    %6733 = vmatprep.subr.mxu0 0.0
    %6734 = vmatpush2.msra.mxu0 0.0
    %6735 = vmatprep.subr.mxu0 0.0
    %6736 = vmatpush2.msra.mxu0 0.0
    %6737 = vmatprep.subr.mxu0 0.0
    %6738 = vmatpush2.msra.mxu0 0.0
    %6739 = vmatprep.mubr.f32.mxu0 0.0
    %6740 = vmatmul.mubr.f32.gmra.mxu0 %v6665
    %v6741 = vpop.f32.mrf.mxu0
    %v6742 = vadd.f32 %v6655, %v6741
    %v6743 = vpop.f32.mrf.mxu0
    %v6744 = vadd.f32 %v6657, %v6743
    %6745 = vmatprep.mubr.f32.mxu0 0.0
    %6746 = vmatmul.mubr.f32.gmra.mxu0 %v6667
    %v6747 = vpop.f32.mrf.mxu0
    %v6748 = vadd.f32 %v6661, %v6747
    %v6749 = vpop.f32.mrf.mxu0
    %v6750 = vadd.f32 %v6663, %v6749
    %6751 = vdwg.mxu0
    %v6752 = vld [vmem:[%s2387] sm:$0xff]
    %v6753 = vld [vmem:[%s2387 + $0x8] sm:$0xff]
    %v6754 = vld [vmem:[%s2387 + $0x10] sm:$0xff]
    %v6755 = vld [vmem:[%s2387 + $0x18] sm:$0xff]
    %v6756 = vld [vmem:[%s2387 + $0x20] sm:$0xff]
    %v6757 = vld [vmem:[%s2387 + $0x28] sm:$0xff]
    %v6758 = vld [vmem:[%s2387 + $0x30] sm:$0xff]
    %v6759 = vld [vmem:[%s2387 + $0x38] sm:$0xff]
    %v6760 = vld [vmem:[%s2387 + $0x40] sm:$0xff]
    %v6761 = vld [vmem:[%s2387 + $0x48] sm:$0xff]
    %v6762 = vld [vmem:[%s2387 + $0x50] sm:$0xff]
    %v6763 = vld [vmem:[%s2387 + $0x58] sm:$0xff]
    %v6764 = vld [vmem:[%s2387 + $0x60] sm:$0xff]
    %v6765 = vld [vmem:[%s2387 + $0x68] sm:$0xff]
    %v6766 = vld [vmem:[%s2387 + $0x70] sm:$0xff]
    %v6767 = vld [vmem:[%s2387 + $0x78] sm:$0xff]
    %v6768 = vld [vmem:[%s2387 + $0x80] sm:$0xff]
    %v6769 = vld [vmem:[%s2387 + $0x88] sm:$0xff]
    %v6770 = vld [vmem:[%s2387 + $0x90] sm:$0xff]
    %v6771 = vld [vmem:[%s2387 + $0x98] sm:$0xff]
    %v6772 = vld [vmem:[%s2387 + $0xa0] sm:$0xff]
    %v6773 = vld [vmem:[%s2387 + $0xa8] sm:$0xff]
    %v6774 = vld [vmem:[%s2387 + $0xb0] sm:$0x3]
    %v6775 = vld [vmem:[%s2387 + $0xb8] sm:$0x3]
    %v6776 = vrot.slane %v6517, 2
    %v6777 = vrot.slane %v6522, 2
    %v6778 = vsel %vm2078, %v6776, %v6777
    %v6779 = vsel %vm2211, %v6778, 0
    %v6781 = vsel %vm2211, %v6777, 0
    %v6784 = vsel %vm2216, %v6774, 0
    %v6787 = vsel %vm2216, %v6775, 0
    %6789 = vmatprep.subr.mxu0 0.0
    %6790 = vmatpush1.msra.mxu0 0.0
    %6791 = vmatprep.subr.mxu0 0.0
    %6792 = vmatpush1.msra.mxu0 0.0
    %6793 = vmatprep.subr.mxu0 0.0
    %6794 = vmatpush1.msra.mxu0 0.0
    %6795 = vmatprep.subr.mxu0 0.0
    %6796 = vmatpush1.msra.mxu0 0.0
    %6797 = vmatprep.subr.mxu0 %v6787
    %6798 = vmatpush1.msra.mxu0 %v6784
    %6799 = vmatprep.subr.mxu0 %v6773
    %6800 = vmatpush1.msra.mxu0 %v6772
    %6801 = vmatprep.subr.mxu0 %v6771
    %6802 = vmatpush1.msra.mxu0 %v6770
    %6803 = vmatprep.subr.mxu0 %v6769
    %6804 = vmatpush1.msra.mxu0 %v6768
    %6805 = vmatprep.subr.mxu0 %v6767
    %6806 = vmatpush1.msra.mxu0 %v6766
    %6807 = vmatprep.subr.mxu0 %v6765
    %6808 = vmatpush1.msra.mxu0 %v6764
    %6809 = vmatprep.subr.mxu0 %v6763
    %6810 = vmatpush1.msra.mxu0 %v6762
    %6811 = vmatprep.subr.mxu0 %v6761
    %6812 = vmatpush1.msra.mxu0 %v6760
    %6813 = vmatprep.subr.mxu0 %v6759
    %6814 = vmatpush1.msra.mxu0 %v6758
    %6815 = vmatprep.subr.mxu0 %v6757
    %6816 = vmatpush1.msra.mxu0 %v6756
    %6817 = vmatprep.subr.mxu0 %v6755
    %6818 = vmatpush1.msra.mxu0 %v6754
    %6819 = vmatprep.subr.mxu0 %v6753
    %6820 = vmatpush1.msra.mxu0 %v6752
    %6821 = vmatprep.subr.mxu0 0.0
    %6822 = vmatpush2.msra.mxu0 0.0
    %6823 = vmatprep.subr.mxu0 0.0
    %6824 = vmatpush2.msra.mxu0 0.0
    %6825 = vmatprep.subr.mxu0 0.0
    %6826 = vmatpush2.msra.mxu0 0.0
    %6827 = vmatprep.subr.mxu0 0.0
    %6828 = vmatpush2.msra.mxu0 0.0
    %6829 = vmatprep.subr.mxu0 0.0
    %6830 = vmatpush2.msra.mxu0 0.0
    %6831 = vmatprep.subr.mxu0 0.0
    %6832 = vmatpush2.msra.mxu0 0.0
    %6833 = vmatprep.subr.mxu0 0.0
    %6834 = vmatpush2.msra.mxu0 0.0
    %6835 = vmatprep.subr.mxu0 0.0
    %6836 = vmatpush2.msra.mxu0 0.0
    %6837 = vmatprep.subr.mxu0 0.0
    %6838 = vmatpush2.msra.mxu0 0.0
    %6839 = vmatprep.subr.mxu0 0.0
    %6840 = vmatpush2.msra.mxu0 0.0
    %6841 = vmatprep.subr.mxu0 0.0
    %6842 = vmatpush2.msra.mxu0 0.0
    %6843 = vmatprep.subr.mxu0 0.0
    %6844 = vmatpush2.msra.mxu0 0.0
    %6845 = vmatprep.subr.mxu0 0.0
    %6846 = vmatpush2.msra.mxu0 0.0
    %6847 = vmatprep.subr.mxu0 0.0
    %6848 = vmatpush2.msra.mxu0 0.0
    %6849 = vmatprep.subr.mxu0 0.0
    %6850 = vmatpush2.msra.mxu0 0.0
    %6851 = vmatprep.subr.mxu0 0.0
    %6852 = vmatpush2.msra.mxu0 0.0
    %6853 = vmatprep.mubr.f32.mxu0 0.0
    %6854 = vmatmul.mubr.f32.gmra.mxu0 %v6779
    %v6855 = vpop.f32.mrf.mxu0
    %v6856 = vadd.f32 0.0, %v6855
    %v6857 = vpop.f32.mrf.mxu0
    %v6858 = vadd.f32 0.0, %v6857
    %6859 = vmatprep.mubr.f32.mxu0 0.0
    %6860 = vmatmul.mubr.f32.gmra.mxu0 %v6781
    %v6861 = vpop.f32.mrf.mxu0
    %v6862 = vadd.f32 0.0, %v6861
    %v6863 = vpop.f32.mrf.mxu0
    %v6864 = vadd.f32 0.0, %v6863
    %6865 = vdwg.mxu0
    %v6866 = vadd.f32 %v6742, %v6856
    %v6867 = vadd.f32 %v6744, %v6858
    %v6868 = vadd.f32 %v6748, %v6862
    %v6869 = vadd.f32 %v6750, %v6864
    %v6870 = vld [vmem:[%s4] sm:$0x3]
    %v6872 = vlaneseq
    %v6873 = vshrl.u32 %v6872, 7
    %v6874 = vsub.s32 0, %v6873
    %v6875 = vrot.slane %v6870, %v6874
    %v6876 = vlaneseq
    %v6877 = vshrl.u32 %v6876, 7
    %v6878 = vsub.s32 1, %v6877
    %v6879 = vrot.slane %v6870, %v6878
    %v6882 = vadd.f32 %v6866, %v6875
    %v6883 = vadd.f32 %v6867, %v6879
    %v6884 = vadd.f32 %v6868, %v6875
    %v6885 = vadd.f32 %v6869, %v6879
    %v6886 = vmax.f32 %v6882, 0.0
    %v6887 = vmax.f32 %v6883, 0.0
    %v6888 = vmax.f32 %v6884, 0.0
    %v6889 = vmax.f32 %v6885, 0.0
    %v6894 = vrot.slane %v6886, 1
    %v6895 = vrot.slane %v6888, 1
    %v6896 = vsel %vm1880, %v6894, %v6895
    %v6897 = vrot.slane %v6887, 1
    %v6898 = vrot.slane %v6889, 1
    %v6899 = vsel %vm1880, %v6897, %v6898
    %v6904 = vmax.f32 %v6886, %v6896
    %v6905 = vmax.f32 %v6887, %v6899
    %v6906 = vmax.f32 %v6888, %v6895
    %v6907 = vmax.f32 %v6889, %v6898
    %6912 = vrot.lane.b32.xlu0 %v6904, 112
    %v6913 = vpop.permute.xlu0 %6912
    %6914 = vrot.lane.b32.xlu0 %v6905, 112
    %v6915 = vpop.permute.xlu0 %6914
    %6916 = vrot.lane.b32.xlu0 %v6906, 112
    %v6917 = vpop.permute.xlu0 %6916
    %6918 = vrot.lane.b32.xlu0 %v6907, 112
    %v6919 = vpop.permute.xlu0 %6918
    %v6920 = vsel %vm2556, %v6913, %v6915
    %v6921 = vsel %vm2556, %v6917, %v6919
    %v6926 = vmax.f32 %v6904, %v6920
    %v6927 = vmax.f32 %v6905, %v6915
    %v6928 = vmax.f32 %v6906, %v6921
    %v6929 = vmax.f32 %v6907, %v6919
    %v6930 = vld [vmem:[%s7] sm:$0x3f]
    %v6932 = vsel %vm2568, %v6930, 0
    %v6935 = vsel %vm2572, %v6928, 0
    %v6938 = vsel %vm2572, %v6929, 0
    %6940 = vmatprep.subr.mxu0 0.0
    %6941 = vmatpush1.msra.mxu0 0.0
    %6942 = vmatprep.subr.mxu0 0.0
    %6943 = vmatpush1.msra.mxu0 0.0
    %6944 = vmatprep.subr.mxu0 0.0
    %6945 = vmatpush1.msra.mxu0 0.0
    %6946 = vmatprep.subr.mxu0 0.0
    %6947 = vmatpush1.msra.mxu0 0.0
    %6948 = vmatprep.subr.mxu0 0.0
    %6949 = vmatpush1.msra.mxu0 0.0
    %6950 = vmatprep.subr.mxu0 0.0
    %6951 = vmatpush1.msra.mxu0 0.0
    %6952 = vmatprep.subr.mxu0 0.0
    %6953 = vmatpush1.msra.mxu0 0.0
    %6954 = vmatprep.subr.mxu0 0.0
    %6955 = vmatpush1.msra.mxu0 0.0
    %6956 = vmatprep.subr.mxu0 0.0
    %6957 = vmatpush1.msra.mxu0 0.0
    %6958 = vmatprep.subr.mxu0 0.0
    %6959 = vmatpush1.msra.mxu0 0.0
    %6960 = vmatprep.subr.mxu0 0.0
    %6961 = vmatpush1.msra.mxu0 0.0
    %6962 = vmatprep.subr.mxu0 0.0
    %6963 = vmatpush1.msra.mxu0 0.0
    %6964 = vmatprep.subr.mxu0 0.0
    %6965 = vmatpush1.msra.mxu0 0.0
    %6966 = vmatprep.subr.mxu0 0.0
    %6967 = vmatpush1.msra.mxu0 0.0
    %6968 = vmatprep.subr.mxu0 %v6938
    %6969 = vmatpush1.msra.mxu0 %v6935
    %6970 = vmatprep.subr.mxu0 %v6927
    %6971 = vmatpush1.msra.mxu0 %v6926
    %6972 = vmatprep.subr.mxu0 0.0
    %6973 = vmatpush2.msra.mxu0 0.0
    %6974 = vmatprep.subr.mxu0 0.0
    %6975 = vmatpush2.msra.mxu0 0.0
    %6976 = vmatprep.subr.mxu0 0.0
    %6977 = vmatpush2.msra.mxu0 0.0
    %6978 = vmatprep.subr.mxu0 0.0
    %6979 = vmatpush2.msra.mxu0 0.0
    %6980 = vmatprep.subr.mxu0 0.0
    %6981 = vmatpush2.msra.mxu0 0.0
    %6982 = vmatprep.subr.mxu0 0.0
    %6983 = vmatpush2.msra.mxu0 0.0
    %6984 = vmatprep.subr.mxu0 0.0
    %6985 = vmatpush2.msra.mxu0 0.0
    %6986 = vmatprep.subr.mxu0 0.0
    %6987 = vmatpush2.msra.mxu0 0.0
    %6988 = vmatprep.subr.mxu0 0.0
    %6989 = vmatpush2.msra.mxu0 0.0
    %6990 = vmatprep.subr.mxu0 0.0
    %6991 = vmatpush2.msra.mxu0 0.0
    %6992 = vmatprep.subr.mxu0 0.0
    %6993 = vmatpush2.msra.mxu0 0.0
    %6994 = vmatprep.subr.mxu0 0.0
    %6995 = vmatpush2.msra.mxu0 0.0
    %6996 = vmatprep.subr.mxu0 0.0
    %6997 = vmatpush2.msra.mxu0 0.0
    %6998 = vmatprep.subr.mxu0 0.0
    %6999 = vmatpush2.msra.mxu0 0.0
    %7000 = vmatprep.subr.mxu0 0.0
    %7001 = vmatpush2.msra.mxu0 0.0
    %7002 = vmatprep.subr.mxu0 0.0
    %7003 = vmatpush2.msra.mxu0 0.0
    %7004 = vmatprep.mubr.f32.mxu0 0.0
    %7005 = vmatmul.mubr.f32.gmra.mxu0 %v6932
    %v7006 = vpop.f32.mrf.mxu0
    %v7007 = vadd.f32 0.0, %v7006
    %v7008 = vpop.f32.mrf.mxu0
    %v7009 = vadd.f32 0.0, %v7008
    %7010 = vdwg.mxu0
    %v7011 = vld [vmem:[%s8] sm:$0xff]
    %v7012 = vld [vmem:[%s8 + $0x8] sm:$0xff]
    %v7013 = vld [vmem:[%s8 + $0x10] sm:$0xff]
    %v7014 = vld [vmem:[%s8 + $0x18] sm:$0xff]
    %v7015 = vld [vmem:[%s8 + $0x20] sm:$0xff]
    %v7016 = vld [vmem:[%s8 + $0x28] sm:$0xff]
    %v7017 = vld [vmem:[%s8 + $0x30] sm:$0xff]
    %v7018 = vld [vmem:[%s8 + $0x38] sm:$0xff]
    %v7019 = vld [vmem:[%s8 + $0x40] sm:$0xff]
    %v7020 = vld [vmem:[%s8 + $0x48] sm:$0xff]
    %v7021 = vld [vmem:[%s8 + $0x50] sm:$0xff]
    %v7022 = vld [vmem:[%s8 + $0x58] sm:$0xff]
    %v7023 = vld [vmem:[%s8 + $0x60] sm:$0xff]
    %v7024 = vld [vmem:[%s8 + $0x68] sm:$0xff]
    %v7025 = vld [vmem:[%s8 + $0x70] sm:$0xff]
    %v7026 = vld [vmem:[%s8 + $0x78] sm:$0xff]
    %v7027 = vld [vmem:[%s8 + $0x80] sm:$0xff]
    %v7028 = vld [vmem:[%s8 + $0x88] sm:$0xff]
    %v7029 = vld [vmem:[%s8 + $0x90] sm:$0xff]
    %v7030 = vld [vmem:[%s8 + $0x98] sm:$0xff]
    %v7031 = vld [vmem:[%s8 + $0xa0] sm:$0xff]
    %v7032 = vld [vmem:[%s8 + $0xa8] sm:$0xff]
    %v7033 = vld [vmem:[%s8 + $0xb0] sm:$0xff]
    %v7034 = vld [vmem:[%s8 + $0xb8] sm:$0xff]
    %v7036 = vsel %vm2674, %v7009, 0
    %7038 = vmatprep.subr.mxu0 0.0
    %7039 = vmatpush1.msra.mxu0 %v7026
    %7040 = vmatprep.subr.mxu0 0.0
    %7041 = vmatpush1.msra.mxu0 %v7025
    %7042 = vmatprep.subr.mxu0 0.0
    %7043 = vmatpush1.msra.mxu0 %v7024
    %7044 = vmatprep.subr.mxu0 0.0
    %7045 = vmatpush1.msra.mxu0 %v7023
    %7046 = vmatprep.subr.mxu0 0.0
    %7047 = vmatpush1.msra.mxu0 %v7022
    %7048 = vmatprep.subr.mxu0 0.0
    %7049 = vmatpush1.msra.mxu0 %v7021
    %7050 = vmatprep.subr.mxu0 0.0
    %7051 = vmatpush1.msra.mxu0 %v7020
    %7052 = vmatprep.subr.mxu0 0.0
    %7053 = vmatpush1.msra.mxu0 %v7019
    %7054 = vmatprep.subr.mxu0 0.0
    %7055 = vmatpush1.msra.mxu0 %v7018
    %7056 = vmatprep.subr.mxu0 0.0
    %7057 = vmatpush1.msra.mxu0 %v7017
    %7058 = vmatprep.subr.mxu0 0.0
    %7059 = vmatpush1.msra.mxu0 %v7016
    %7060 = vmatprep.subr.mxu0 0.0
    %7061 = vmatpush1.msra.mxu0 %v7015
    %7062 = vmatprep.subr.mxu0 0.0
    %7063 = vmatpush1.msra.mxu0 %v7014
    %7064 = vmatprep.subr.mxu0 0.0
    %7065 = vmatpush1.msra.mxu0 %v7013
    %7066 = vmatprep.subr.mxu0 0.0
    %7067 = vmatpush1.msra.mxu0 %v7012
    %7068 = vmatprep.subr.mxu0 0.0
    %7069 = vmatpush1.msra.mxu0 %v7011
    %7070 = vmatprep.subr.mxu0 0.0
    %7071 = vmatpush2.msra.mxu0 0.0
    %7072 = vmatprep.subr.mxu0 0.0
    %7073 = vmatpush2.msra.mxu0 0.0
    %7074 = vmatprep.subr.mxu0 0.0
    %7075 = vmatpush2.msra.mxu0 0.0
    %7076 = vmatprep.subr.mxu0 0.0
    %7077 = vmatpush2.msra.mxu0 0.0
    %7078 = vmatprep.subr.mxu0 0.0
    %7079 = vmatpush2.msra.mxu0 0.0
    %7080 = vmatprep.subr.mxu0 0.0
    %7081 = vmatpush2.msra.mxu0 0.0
    %7082 = vmatprep.subr.mxu0 0.0
    %7083 = vmatpush2.msra.mxu0 0.0
    %7084 = vmatprep.subr.mxu0 0.0
    %7085 = vmatpush2.msra.mxu0 0.0
    %7086 = vmatprep.subr.mxu0 0.0
    %7087 = vmatpush2.msra.mxu0 %v7034
    %7088 = vmatprep.subr.mxu0 0.0
    %7089 = vmatpush2.msra.mxu0 %v7033
    %7090 = vmatprep.subr.mxu0 0.0
    %7091 = vmatpush2.msra.mxu0 %v7032
    %7092 = vmatprep.subr.mxu0 0.0
    %7093 = vmatpush2.msra.mxu0 %v7031
    %7094 = vmatprep.subr.mxu0 0.0
    %7095 = vmatpush2.msra.mxu0 %v7030
    %7096 = vmatprep.subr.mxu0 0.0
    %7097 = vmatpush2.msra.mxu0 %v7029
    %7098 = vmatprep.subr.mxu0 0.0
    %7099 = vmatpush2.msra.mxu0 %v7028
    %7100 = vmatprep.subr.mxu0 0.0
    %7101 = vmatpush2.msra.mxu0 %v7027
    %7102 = vmatprep.mubr.f32.mxu0 %v7036
    %7103 = vmatmul.mubr.f32.gmra.mxu0 %v7007
    %v7104 = vpop.f32.mrf.mxu0
    %v7105 = vadd.f32 0.0, %v7104
    %v7106 = vpop.f32.mrf.mxu0
    %7107 = vdwg.mxu0
    %s7108 = scalar_lea.vmem [#allocation3], 40
    %7109 = vst.msk [vmem:[%s7108] sm:$0x3f] %vm2748, %v7105
    %v7110 = vld [vmem:[#allocation2 + $0x180] sm:$0xff]
    %v7111 = vld [vmem:[#allocation2 + $0x188] sm:$0xff]
    %v7112 = vld [vmem:[#allocation2 + $0x190] sm:$0xff]
    %v7113 = vld [vmem:[#allocation2 + $0x198] sm:$0xff]
    %v7114 = vld [vmem:[#allocation2 + $0x1a0] sm:$0xff]
    %v7115 = vld [vmem:[#allocation2 + $0x1a8] sm:$0xff]
    %v7116 = vld [vmem:[#allocation2 + $0x1b0] sm:$0x3f]
    %v7117 = vld [vmem:[#allocation2 + $0x1b8] sm:$0x3f]
    %v7126 = vrot.slane %v7110, 1
    %v7127 = vrot.slane %v7112, 1
    %v7128 = vsel %vm1880, %v7126, %v7127
    %v7129 = vrot.slane %v7111, 1
    %v7130 = vrot.slane %v7113, 1
    %v7131 = vsel %vm1880, %v7129, %v7130
    %v7132 = vrot.slane %v7114, 1
    %v7133 = vsel %vm1880, %v7127, %v7132
    %v7134 = vrot.slane %v7115, 1
    %v7135 = vsel %vm1880, %v7130, %v7134
    %v7136 = vrot.slane %v7116, 1
    %v7137 = vsel %vm1880, %v7132, %v7136
    %v7138 = vrot.slane %v7117, 1
    %v7139 = vsel %vm1880, %v7134, %v7138
    %v7148 = vmax.f32 %v7110, %v7128
    %v7149 = vmax.f32 %v7111, %v7131
    %v7150 = vmax.f32 %v7112, %v7133
    %v7151 = vmax.f32 %v7113, %v7135
    %v7152 = vmax.f32 %v7114, %v7137
    %v7153 = vmax.f32 %v7115, %v7139
    %v7154 = vmax.f32 %v7116, %v7136
    %v7155 = vmax.f32 %v7117, %v7138
    %7164 = vrot.lane.b32.xlu0 %v7148, 122
    %v7165 = vpop.permute.xlu0 %7164
    %7166 = vrot.lane.b32.xlu0 %v7149, 122
    %v7167 = vpop.permute.xlu0 %7166
    %7168 = vrot.lane.b32.xlu0 %v7150, 122
    %v7169 = vpop.permute.xlu0 %7168
    %7170 = vrot.lane.b32.xlu0 %v7151, 122
    %v7171 = vpop.permute.xlu0 %7170
    %7172 = vrot.lane.b32.xlu0 %v7152, 122
    %v7173 = vpop.permute.xlu0 %7172
    %7174 = vrot.lane.b32.xlu0 %v7153, 122
    %v7175 = vpop.permute.xlu0 %7174
    %7176 = vrot.lane.b32.xlu0 %v7154, 122
    %v7177 = vpop.permute.xlu0 %7176
    %7178 = vrot.lane.b32.xlu0 %v7155, 122
    %v7179 = vpop.permute.xlu0 %7178
    %v7180 = vsel %vm1935, %v7165, %v7167
    %v7181 = vsel %vm1935, %v7169, %v7171
    %v7182 = vsel %vm1935, %v7173, %v7175
    %v7183 = vsel %vm1935, %v7177, %v7179
    %v7192 = vmax.f32 %v7148, %v7180
    %v7193 = vmax.f32 %v7149, %v7167
    %v7194 = vmax.f32 %v7150, %v7181
    %v7195 = vmax.f32 %v7151, %v7171
    %v7196 = vmax.f32 %v7152, %v7182
    %v7197 = vmax.f32 %v7153, %v7175
    %v7198 = vmax.f32 %v7154, %v7183
    %v7199 = vmax.f32 %v7155, %v7179
    %v7200 = vld [vmem:[%s5] sm:$0xff]
    %v7201 = vld [vmem:[%s5 + $0x8] sm:$0x7f]
    %v7203 = vsel %vm1958, %v7200, 0
    %v7206 = vsel %vm1958, %v7201, 0
    %v7209 = vsel %vm1965, %v7198, 0
    %v7212 = vsel %vm1965, %v7199, 0
    %7214 = vmatprep.subr.mxu0 0.0
    %7215 = vmatpush1.msra.mxu0 0.0
    %7216 = vmatprep.subr.mxu0 0.0
    %7217 = vmatpush1.msra.mxu0 0.0
    %7218 = vmatprep.subr.mxu0 0.0
    %7219 = vmatpush1.msra.mxu0 0.0
    %7220 = vmatprep.subr.mxu0 0.0
    %7221 = vmatpush1.msra.mxu0 0.0
    %7222 = vmatprep.subr.mxu0 0.0
    %7223 = vmatpush1.msra.mxu0 0.0
    %7224 = vmatprep.subr.mxu0 0.0
    %7225 = vmatpush1.msra.mxu0 0.0
    %7226 = vmatprep.subr.mxu0 0.0
    %7227 = vmatpush1.msra.mxu0 0.0
    %7228 = vmatprep.subr.mxu0 0.0
    %7229 = vmatpush1.msra.mxu0 0.0
    %7230 = vmatprep.subr.mxu0 0.0
    %7231 = vmatpush1.msra.mxu0 0.0
    %7232 = vmatprep.subr.mxu0 0.0
    %7233 = vmatpush1.msra.mxu0 0.0
    %7234 = vmatprep.subr.mxu0 0.0
    %7235 = vmatpush1.msra.mxu0 0.0
    %7236 = vmatprep.subr.mxu0 0.0
    %7237 = vmatpush1.msra.mxu0 0.0
    %7238 = vmatprep.subr.mxu0 %v7212
    %7239 = vmatpush1.msra.mxu0 %v7209
    %7240 = vmatprep.subr.mxu0 %v7197
    %7241 = vmatpush1.msra.mxu0 %v7196
    %7242 = vmatprep.subr.mxu0 %v7195
    %7243 = vmatpush1.msra.mxu0 %v7194
    %7244 = vmatprep.subr.mxu0 %v7193
    %7245 = vmatpush1.msra.mxu0 %v7192
    %7246 = vmatprep.subr.mxu0 0.0
    %7247 = vmatpush2.msra.mxu0 0.0
    %7248 = vmatprep.subr.mxu0 0.0
    %7249 = vmatpush2.msra.mxu0 0.0
    %7250 = vmatprep.subr.mxu0 0.0
    %7251 = vmatpush2.msra.mxu0 0.0
    %7252 = vmatprep.subr.mxu0 0.0
    %7253 = vmatpush2.msra.mxu0 0.0
    %7254 = vmatprep.subr.mxu0 0.0
    %7255 = vmatpush2.msra.mxu0 0.0
    %7256 = vmatprep.subr.mxu0 0.0
    %7257 = vmatpush2.msra.mxu0 0.0
    %7258 = vmatprep.subr.mxu0 0.0
    %7259 = vmatpush2.msra.mxu0 0.0
    %7260 = vmatprep.subr.mxu0 0.0
    %7261 = vmatpush2.msra.mxu0 0.0
    %7262 = vmatprep.subr.mxu0 0.0
    %7263 = vmatpush2.msra.mxu0 0.0
    %7264 = vmatprep.subr.mxu0 0.0
    %7265 = vmatpush2.msra.mxu0 0.0
    %7266 = vmatprep.subr.mxu0 0.0
    %7267 = vmatpush2.msra.mxu0 0.0
    %7268 = vmatprep.subr.mxu0 0.0
    %7269 = vmatpush2.msra.mxu0 0.0
    %7270 = vmatprep.subr.mxu0 0.0
    %7271 = vmatpush2.msra.mxu0 0.0
    %7272 = vmatprep.subr.mxu0 0.0
    %7273 = vmatpush2.msra.mxu0 0.0
    %7274 = vmatprep.subr.mxu0 0.0
    %7275 = vmatpush2.msra.mxu0 0.0
    %7276 = vmatprep.subr.mxu0 0.0
    %7277 = vmatpush2.msra.mxu0 0.0
    %7278 = vmatprep.mubr.f32.mxu0 0.0
    %7279 = vmatmul.mubr.f32.gmra.mxu0 %v7203
    %v7280 = vpop.f32.mrf.mxu0
    %v7281 = vadd.f32 0.0, %v7280
    %v7282 = vpop.f32.mrf.mxu0
    %v7283 = vadd.f32 0.0, %v7282
    %7284 = vmatprep.mubr.f32.mxu0 0.0
    %7285 = vmatmul.mubr.f32.gmra.mxu0 %v7206
    %v7286 = vpop.f32.mrf.mxu0
    %v7287 = vadd.f32 0.0, %v7286
    %v7288 = vpop.f32.mrf.mxu0
    %v7289 = vadd.f32 0.0, %v7288
    %7290 = vdwg.mxu0
    %v7291 = vld [vmem:[#allocation7] sm:$0xff]
    %v7292 = vld [vmem:[#allocation7 + $0x8] sm:$0xff]
    %v7293 = vld [vmem:[#allocation7 + $0x10] sm:$0xff]
    %v7294 = vld [vmem:[#allocation7 + $0x18] sm:$0xff]
    %v7295 = vld [vmem:[#allocation7 + $0x20] sm:$0xff]
    %v7296 = vld [vmem:[#allocation7 + $0x28] sm:$0xff]
    %v7297 = vld [vmem:[#allocation7 + $0x30] sm:$0xff]
    %v7298 = vld [vmem:[#allocation7 + $0x38] sm:$0xff]
    %v7299 = vld [vmem:[#allocation7 + $0x40] sm:$0xff]
    %v7300 = vld [vmem:[#allocation7 + $0x48] sm:$0xff]
    %v7301 = vld [vmem:[#allocation7 + $0x50] sm:$0xff]
    %v7302 = vld [vmem:[#allocation7 + $0x58] sm:$0xff]
    %v7303 = vld [vmem:[#allocation7 + $0x60] sm:$0xff]
    %v7304 = vld [vmem:[#allocation7 + $0x68] sm:$0xff]
    %v7305 = vld [vmem:[#allocation7 + $0x70] sm:$0xff]
    %v7306 = vld [vmem:[#allocation7 + $0x78] sm:$0xff]
    %v7307 = vld [vmem:[#allocation7 + $0x80] sm:$0xff]
    %v7308 = vld [vmem:[#allocation7 + $0x88] sm:$0xff]
    %v7309 = vld [vmem:[#allocation7 + $0x90] sm:$0xff]
    %v7310 = vld [vmem:[#allocation7 + $0x98] sm:$0xff]
    %v7311 = vld [vmem:[#allocation7 + $0xa0] sm:$0xff]
    %v7312 = vld [vmem:[#allocation7 + $0xa8] sm:$0x3f]
    %v7314 = vsel %vm2071, %v7283, 0
    %v7317 = vsel %vm2071, %v7289, 0
    %v7320 = vsel %vm2078, %v7312, 0
    %7322 = vmatprep.subr.mxu0 0.0
    %7323 = vmatpush1.msra.mxu0 %v7306
    %7324 = vmatprep.subr.mxu0 0.0
    %7325 = vmatpush1.msra.mxu0 %v7305
    %7326 = vmatprep.subr.mxu0 0.0
    %7327 = vmatpush1.msra.mxu0 %v7304
    %7328 = vmatprep.subr.mxu0 0.0
    %7329 = vmatpush1.msra.mxu0 %v7303
    %7330 = vmatprep.subr.mxu0 0.0
    %7331 = vmatpush1.msra.mxu0 %v7302
    %7332 = vmatprep.subr.mxu0 0.0
    %7333 = vmatpush1.msra.mxu0 %v7301
    %7334 = vmatprep.subr.mxu0 0.0
    %7335 = vmatpush1.msra.mxu0 %v7300
    %7336 = vmatprep.subr.mxu0 0.0
    %7337 = vmatpush1.msra.mxu0 %v7299
    %7338 = vmatprep.subr.mxu0 0.0
    %7339 = vmatpush1.msra.mxu0 %v7298
    %7340 = vmatprep.subr.mxu0 0.0
    %7341 = vmatpush1.msra.mxu0 %v7297
    %7342 = vmatprep.subr.mxu0 0.0
    %7343 = vmatpush1.msra.mxu0 %v7296
    %7344 = vmatprep.subr.mxu0 0.0
    %7345 = vmatpush1.msra.mxu0 %v7295
    %7346 = vmatprep.subr.mxu0 0.0
    %7347 = vmatpush1.msra.mxu0 %v7294
    %7348 = vmatprep.subr.mxu0 0.0
    %7349 = vmatpush1.msra.mxu0 %v7293
    %7350 = vmatprep.subr.mxu0 0.0
    %7351 = vmatpush1.msra.mxu0 %v7292
    %7352 = vmatprep.subr.mxu0 0.0
    %7353 = vmatpush1.msra.mxu0 %v7291
    %7354 = vmatprep.subr.mxu0 0.0
    %7355 = vmatpush2.msra.mxu0 0.0
    %7356 = vmatprep.subr.mxu0 0.0
    %7357 = vmatpush2.msra.mxu0 0.0
    %7358 = vmatprep.subr.mxu0 0.0
    %7359 = vmatpush2.msra.mxu0 0.0
    %7360 = vmatprep.subr.mxu0 0.0
    %7361 = vmatpush2.msra.mxu0 0.0
    %7362 = vmatprep.subr.mxu0 0.0
    %7363 = vmatpush2.msra.mxu0 0.0
    %7364 = vmatprep.subr.mxu0 0.0
    %7365 = vmatpush2.msra.mxu0 0.0
    %7366 = vmatprep.subr.mxu0 0.0
    %7367 = vmatpush2.msra.mxu0 0.0
    %7368 = vmatprep.subr.mxu0 0.0
    %7369 = vmatpush2.msra.mxu0 0.0
    %7370 = vmatprep.subr.mxu0 0.0
    %7371 = vmatpush2.msra.mxu0 0.0
    %7372 = vmatprep.subr.mxu0 0.0
    %7373 = vmatpush2.msra.mxu0 0.0
    %7374 = vmatprep.subr.mxu0 0.0
    %7375 = vmatpush2.msra.mxu0 %v7320
    %7376 = vmatprep.subr.mxu0 0.0
    %7377 = vmatpush2.msra.mxu0 %v7311
    %7378 = vmatprep.subr.mxu0 0.0
    %7379 = vmatpush2.msra.mxu0 %v7310
    %7380 = vmatprep.subr.mxu0 0.0
    %7381 = vmatpush2.msra.mxu0 %v7309
    %7382 = vmatprep.subr.mxu0 0.0
    %7383 = vmatpush2.msra.mxu0 %v7308
    %7384 = vmatprep.subr.mxu0 0.0
    %7385 = vmatpush2.msra.mxu0 %v7307
    %7386 = vmatprep.mubr.f32.mxu0 %v7314
    %7387 = vmatmul.mubr.f32.gmra.mxu0 %v7281
    %v7388 = vpop.f32.mrf.mxu0
    %v7389 = vadd.f32 0.0, %v7388
    %v7390 = vpop.f32.mrf.mxu0
    %7391 = vmatprep.mubr.f32.mxu0 %v7317
    %7392 = vmatmul.mubr.f32.gmra.mxu0 %v7287
    %v7393 = vpop.f32.mrf.mxu0
    %v7394 = vadd.f32 0.0, %v7393
    %v7395 = vpop.f32.mrf.mxu0
    %7396 = vdwg.mxu0
    %v7397 = vld [vmem:[#allocation4] sm:$0xff]
    %v7398 = vld [vmem:[#allocation4 + $0x8] sm:$0xff]
    %v7399 = vld [vmem:[#allocation4 + $0x10] sm:$0xff]
    %v7400 = vld [vmem:[#allocation4 + $0x18] sm:$0xff]
    %v7401 = vld [vmem:[#allocation4 + $0x20] sm:$0xff]
    %v7402 = vld [vmem:[#allocation4 + $0x28] sm:$0xff]
    %v7403 = vld [vmem:[#allocation4 + $0x30] sm:$0xff]
    %v7404 = vld [vmem:[#allocation4 + $0x38] sm:$0xff]
    %v7405 = vld [vmem:[#allocation4 + $0x40] sm:$0xff]
    %v7406 = vld [vmem:[#allocation4 + $0x48] sm:$0xff]
    %v7407 = vld [vmem:[#allocation4 + $0x50] sm:$0xff]
    %v7408 = vld [vmem:[#allocation4 + $0x58] sm:$0xff]
    %v7409 = vld [vmem:[#allocation4 + $0x60] sm:$0xff]
    %v7410 = vld [vmem:[#allocation4 + $0x68] sm:$0xff]
    %v7411 = vld [vmem:[#allocation4 + $0x70] sm:$0xff]
    %v7412 = vld [vmem:[#allocation4 + $0x78] sm:$0xff]
    %v7413 = vld [vmem:[#allocation4 + $0x80] sm:$0xff]
    %v7414 = vld [vmem:[#allocation4 + $0x88] sm:$0xff]
    %v7415 = vld [vmem:[#allocation4 + $0x90] sm:$0xff]
    %v7416 = vld [vmem:[#allocation4 + $0x98] sm:$0xff]
    %v7417 = vld [vmem:[#allocation4 + $0xa0] sm:$0xff]
    %v7418 = vld [vmem:[#allocation4 + $0xa8] sm:$0xff]
    %v7419 = vld [vmem:[#allocation4 + $0xb0] sm:$0x3]
    %v7420 = vld [vmem:[#allocation4 + $0xb8] sm:$0x3]
    %v7421 = vld [vmem:[%s2181] sm:$0xff]
    %v7422 = vld [vmem:[%s2181 + $0x8] sm:$0xff]
    %v7423 = vld [vmem:[%s2181 + $0x10] sm:$0xff]
    %v7424 = vld [vmem:[%s2181 + $0x18] sm:$0xff]
    %v7425 = vld [vmem:[%s2181 + $0x20] sm:$0xff]
    %v7426 = vld [vmem:[%s2181 + $0x28] sm:$0xff]
    %v7427 = vld [vmem:[%s2181 + $0x30] sm:$0xff]
    %v7428 = vld [vmem:[%s2181 + $0x38] sm:$0xff]
    %v7429 = vld [vmem:[%s2181 + $0x40] sm:$0xff]
    %v7430 = vld [vmem:[%s2181 + $0x48] sm:$0xff]
    %v7431 = vld [vmem:[%s2181 + $0x50] sm:$0xff]
    %v7432 = vld [vmem:[%s2181 + $0x58] sm:$0xff]
    %v7433 = vld [vmem:[%s2181 + $0x60] sm:$0xff]
    %v7434 = vld [vmem:[%s2181 + $0x68] sm:$0xff]
    %v7435 = vld [vmem:[%s2181 + $0x70] sm:$0xff]
    %v7436 = vld [vmem:[%s2181 + $0x78] sm:$0xff]
    %v7437 = vld [vmem:[%s2181 + $0x80] sm:$0xff]
    %v7438 = vld [vmem:[%s2181 + $0x88] sm:$0xff]
    %v7439 = vld [vmem:[%s2181 + $0x90] sm:$0xff]
    %v7440 = vld [vmem:[%s2181 + $0x98] sm:$0xff]
    %v7441 = vld [vmem:[%s2181 + $0xa0] sm:$0xff]
    %v7442 = vld [vmem:[%s2181 + $0xa8] sm:$0xff]
    %v7443 = vld [vmem:[%s2181 + $0xb0] sm:$0x3]
    %v7444 = vld [vmem:[%s2181 + $0xb8] sm:$0x3]
    %v7447 = vrot.slane %v7389, 1
    %v7448 = vrot.slane %v7394, 1
    %v7449 = vsel %vm1880, %v7447, %v7448
    %v7450 = vsel %vm2211, %v7449, 0
    %v7452 = vsel %vm2211, %v7448, 0
    %v7455 = vsel %vm2216, %v7443, 0
    %v7458 = vsel %vm2216, %v7444, 0
    %7460 = vmatprep.subr.mxu0 0.0
    %7461 = vmatpush1.msra.mxu0 0.0
    %7462 = vmatprep.subr.mxu0 0.0
    %7463 = vmatpush1.msra.mxu0 0.0
    %7464 = vmatprep.subr.mxu0 0.0
    %7465 = vmatpush1.msra.mxu0 0.0
    %7466 = vmatprep.subr.mxu0 0.0
    %7467 = vmatpush1.msra.mxu0 0.0
    %7468 = vmatprep.subr.mxu0 %v7458
    %7469 = vmatpush1.msra.mxu0 %v7455
    %7470 = vmatprep.subr.mxu0 %v7442
    %7471 = vmatpush1.msra.mxu0 %v7441
    %7472 = vmatprep.subr.mxu0 %v7440
    %7473 = vmatpush1.msra.mxu0 %v7439
    %7474 = vmatprep.subr.mxu0 %v7438
    %7475 = vmatpush1.msra.mxu0 %v7437
    %7476 = vmatprep.subr.mxu0 %v7436
    %7477 = vmatpush1.msra.mxu0 %v7435
    %7478 = vmatprep.subr.mxu0 %v7434
    %7479 = vmatpush1.msra.mxu0 %v7433
    %7480 = vmatprep.subr.mxu0 %v7432
    %7481 = vmatpush1.msra.mxu0 %v7431
    %7482 = vmatprep.subr.mxu0 %v7430
    %7483 = vmatpush1.msra.mxu0 %v7429
    %7484 = vmatprep.subr.mxu0 %v7428
    %7485 = vmatpush1.msra.mxu0 %v7427
    %7486 = vmatprep.subr.mxu0 %v7426
    %7487 = vmatpush1.msra.mxu0 %v7425
    %7488 = vmatprep.subr.mxu0 %v7424
    %7489 = vmatpush1.msra.mxu0 %v7423
    %7490 = vmatprep.subr.mxu0 %v7422
    %7491 = vmatpush1.msra.mxu0 %v7421
    %7492 = vmatprep.subr.mxu0 0.0
    %7493 = vmatpush2.msra.mxu0 0.0
    %7494 = vmatprep.subr.mxu0 0.0
    %7495 = vmatpush2.msra.mxu0 0.0
    %7496 = vmatprep.subr.mxu0 0.0
    %7497 = vmatpush2.msra.mxu0 0.0
    %7498 = vmatprep.subr.mxu0 0.0
    %7499 = vmatpush2.msra.mxu0 0.0
    %7500 = vmatprep.subr.mxu0 0.0
    %7501 = vmatpush2.msra.mxu0 0.0
    %7502 = vmatprep.subr.mxu0 0.0
    %7503 = vmatpush2.msra.mxu0 0.0
    %7504 = vmatprep.subr.mxu0 0.0
    %7505 = vmatpush2.msra.mxu0 0.0
    %7506 = vmatprep.subr.mxu0 0.0
    %7507 = vmatpush2.msra.mxu0 0.0
    %7508 = vmatprep.subr.mxu0 0.0
    %7509 = vmatpush2.msra.mxu0 0.0
    %7510 = vmatprep.subr.mxu0 0.0
    %7511 = vmatpush2.msra.mxu0 0.0
    %7512 = vmatprep.subr.mxu0 0.0
    %7513 = vmatpush2.msra.mxu0 0.0
    %7514 = vmatprep.subr.mxu0 0.0
    %7515 = vmatpush2.msra.mxu0 0.0
    %7516 = vmatprep.subr.mxu0 0.0
    %7517 = vmatpush2.msra.mxu0 0.0
    %7518 = vmatprep.subr.mxu0 0.0
    %7519 = vmatpush2.msra.mxu0 0.0
    %7520 = vmatprep.subr.mxu0 0.0
    %7521 = vmatpush2.msra.mxu0 0.0
    %7522 = vmatprep.subr.mxu0 0.0
    %7523 = vmatpush2.msra.mxu0 0.0
    %7524 = vmatprep.mubr.f32.mxu0 0.0
    %7525 = vmatmul.mubr.f32.gmra.mxu0 %v7450
    %v7526 = vpop.f32.mrf.mxu0
    %v7527 = vadd.f32 0.0, %v7526
    %v7528 = vpop.f32.mrf.mxu0
    %v7529 = vadd.f32 0.0, %v7528
    %7530 = vmatprep.mubr.f32.mxu0 0.0
    %7531 = vmatmul.mubr.f32.gmra.mxu0 %v7452
    %v7532 = vpop.f32.mrf.mxu0
    %v7533 = vadd.f32 0.0, %v7532
    %v7534 = vpop.f32.mrf.mxu0
    %v7535 = vadd.f32 0.0, %v7534
    %7536 = vdwg.mxu0
    %v7537 = vsel %vm2211, %v7389, 0
    %v7539 = vsel %vm2211, %v7394, 0
    %v7542 = vsel %vm2216, %v7419, 0
    %v7545 = vsel %vm2216, %v7420, 0
    %7547 = vmatprep.subr.mxu0 0.0
    %7548 = vmatpush1.msra.mxu0 0.0
    %7549 = vmatprep.subr.mxu0 0.0
    %7550 = vmatpush1.msra.mxu0 0.0
    %7551 = vmatprep.subr.mxu0 0.0
    %7552 = vmatpush1.msra.mxu0 0.0
    %7553 = vmatprep.subr.mxu0 0.0
    %7554 = vmatpush1.msra.mxu0 0.0
    %7555 = vmatprep.subr.mxu0 %v7545
    %7556 = vmatpush1.msra.mxu0 %v7542
    %7557 = vmatprep.subr.mxu0 %v7418
    %7558 = vmatpush1.msra.mxu0 %v7417
    %7559 = vmatprep.subr.mxu0 %v7416
    %7560 = vmatpush1.msra.mxu0 %v7415
    %7561 = vmatprep.subr.mxu0 %v7414
    %7562 = vmatpush1.msra.mxu0 %v7413
    %7563 = vmatprep.subr.mxu0 %v7412
    %7564 = vmatpush1.msra.mxu0 %v7411
    %7565 = vmatprep.subr.mxu0 %v7410
    %7566 = vmatpush1.msra.mxu0 %v7409
    %7567 = vmatprep.subr.mxu0 %v7408
    %7568 = vmatpush1.msra.mxu0 %v7407
    %7569 = vmatprep.subr.mxu0 %v7406
    %7570 = vmatpush1.msra.mxu0 %v7405
    %7571 = vmatprep.subr.mxu0 %v7404
    %7572 = vmatpush1.msra.mxu0 %v7403
    %7573 = vmatprep.subr.mxu0 %v7402
    %7574 = vmatpush1.msra.mxu0 %v7401
    %7575 = vmatprep.subr.mxu0 %v7400
    %7576 = vmatpush1.msra.mxu0 %v7399
    %7577 = vmatprep.subr.mxu0 %v7398
    %7578 = vmatpush1.msra.mxu0 %v7397
    %7579 = vmatprep.subr.mxu0 0.0
    %7580 = vmatpush2.msra.mxu0 0.0
    %7581 = vmatprep.subr.mxu0 0.0
    %7582 = vmatpush2.msra.mxu0 0.0
    %7583 = vmatprep.subr.mxu0 0.0
    %7584 = vmatpush2.msra.mxu0 0.0
    %7585 = vmatprep.subr.mxu0 0.0
    %7586 = vmatpush2.msra.mxu0 0.0
    %7587 = vmatprep.subr.mxu0 0.0
    %7588 = vmatpush2.msra.mxu0 0.0
    %7589 = vmatprep.subr.mxu0 0.0
    %7590 = vmatpush2.msra.mxu0 0.0
    %7591 = vmatprep.subr.mxu0 0.0
    %7592 = vmatpush2.msra.mxu0 0.0
    %7593 = vmatprep.subr.mxu0 0.0
    %7594 = vmatpush2.msra.mxu0 0.0
    %7595 = vmatprep.subr.mxu0 0.0
    %7596 = vmatpush2.msra.mxu0 0.0
    %7597 = vmatprep.subr.mxu0 0.0
    %7598 = vmatpush2.msra.mxu0 0.0
    %7599 = vmatprep.subr.mxu0 0.0
    %7600 = vmatpush2.msra.mxu0 0.0
    %7601 = vmatprep.subr.mxu0 0.0
    %7602 = vmatpush2.msra.mxu0 0.0
    %7603 = vmatprep.subr.mxu0 0.0
    %7604 = vmatpush2.msra.mxu0 0.0
    %7605 = vmatprep.subr.mxu0 0.0
    %7606 = vmatpush2.msra.mxu0 0.0
    %7607 = vmatprep.subr.mxu0 0.0
    %7608 = vmatpush2.msra.mxu0 0.0
    %7609 = vmatprep.subr.mxu0 0.0
    %7610 = vmatpush2.msra.mxu0 0.0
    %7611 = vmatprep.mubr.f32.mxu0 0.0
    %7612 = vmatmul.mubr.f32.gmra.mxu0 %v7537
    %v7613 = vpop.f32.mrf.mxu0
    %v7614 = vadd.f32 %v7527, %v7613
    %v7615 = vpop.f32.mrf.mxu0
    %v7616 = vadd.f32 %v7529, %v7615
    %7617 = vmatprep.mubr.f32.mxu0 0.0
    %7618 = vmatmul.mubr.f32.gmra.mxu0 %v7539
    %v7619 = vpop.f32.mrf.mxu0
    %v7620 = vadd.f32 %v7533, %v7619
    %v7621 = vpop.f32.mrf.mxu0
    %v7622 = vadd.f32 %v7535, %v7621
    %7623 = vdwg.mxu0
    %v7624 = vld [vmem:[%s2387] sm:$0xff]
    %v7625 = vld [vmem:[%s2387 + $0x8] sm:$0xff]
    %v7626 = vld [vmem:[%s2387 + $0x10] sm:$0xff]
    %v7627 = vld [vmem:[%s2387 + $0x18] sm:$0xff]
    %v7628 = vld [vmem:[%s2387 + $0x20] sm:$0xff]
    %v7629 = vld [vmem:[%s2387 + $0x28] sm:$0xff]
    %v7630 = vld [vmem:[%s2387 + $0x30] sm:$0xff]
    %v7631 = vld [vmem:[%s2387 + $0x38] sm:$0xff]
    %v7632 = vld [vmem:[%s2387 + $0x40] sm:$0xff]
    %v7633 = vld [vmem:[%s2387 + $0x48] sm:$0xff]
    %v7634 = vld [vmem:[%s2387 + $0x50] sm:$0xff]
    %v7635 = vld [vmem:[%s2387 + $0x58] sm:$0xff]
    %v7636 = vld [vmem:[%s2387 + $0x60] sm:$0xff]
    %v7637 = vld [vmem:[%s2387 + $0x68] sm:$0xff]
    %v7638 = vld [vmem:[%s2387 + $0x70] sm:$0xff]
    %v7639 = vld [vmem:[%s2387 + $0x78] sm:$0xff]
    %v7640 = vld [vmem:[%s2387 + $0x80] sm:$0xff]
    %v7641 = vld [vmem:[%s2387 + $0x88] sm:$0xff]
    %v7642 = vld [vmem:[%s2387 + $0x90] sm:$0xff]
    %v7643 = vld [vmem:[%s2387 + $0x98] sm:$0xff]
    %v7644 = vld [vmem:[%s2387 + $0xa0] sm:$0xff]
    %v7645 = vld [vmem:[%s2387 + $0xa8] sm:$0xff]
    %v7646 = vld [vmem:[%s2387 + $0xb0] sm:$0x3]
    %v7647 = vld [vmem:[%s2387 + $0xb8] sm:$0x3]
    %v7648 = vrot.slane %v7389, 2
    %v7649 = vrot.slane %v7394, 2
    %v7650 = vsel %vm2078, %v7648, %v7649
    %v7651 = vsel %vm2211, %v7650, 0
    %v7653 = vsel %vm2211, %v7649, 0
    %v7656 = vsel %vm2216, %v7646, 0
    %v7659 = vsel %vm2216, %v7647, 0
    %7661 = vmatprep.subr.mxu0 0.0
    %7662 = vmatpush1.msra.mxu0 0.0
    %7663 = vmatprep.subr.mxu0 0.0
    %7664 = vmatpush1.msra.mxu0 0.0
    %7665 = vmatprep.subr.mxu0 0.0
    %7666 = vmatpush1.msra.mxu0 0.0
    %7667 = vmatprep.subr.mxu0 0.0
    %7668 = vmatpush1.msra.mxu0 0.0
    %7669 = vmatprep.subr.mxu0 %v7659
    %7670 = vmatpush1.msra.mxu0 %v7656
    %7671 = vmatprep.subr.mxu0 %v7645
    %7672 = vmatpush1.msra.mxu0 %v7644
    %7673 = vmatprep.subr.mxu0 %v7643
    %7674 = vmatpush1.msra.mxu0 %v7642
    %7675 = vmatprep.subr.mxu0 %v7641
    %7676 = vmatpush1.msra.mxu0 %v7640
    %7677 = vmatprep.subr.mxu0 %v7639
    %7678 = vmatpush1.msra.mxu0 %v7638
    %7679 = vmatprep.subr.mxu0 %v7637
    %7680 = vmatpush1.msra.mxu0 %v7636
    %7681 = vmatprep.subr.mxu0 %v7635
    %7682 = vmatpush1.msra.mxu0 %v7634
    %7683 = vmatprep.subr.mxu0 %v7633
    %7684 = vmatpush1.msra.mxu0 %v7632
    %7685 = vmatprep.subr.mxu0 %v7631
    %7686 = vmatpush1.msra.mxu0 %v7630
    %7687 = vmatprep.subr.mxu0 %v7629
    %7688 = vmatpush1.msra.mxu0 %v7628
    %7689 = vmatprep.subr.mxu0 %v7627
    %7690 = vmatpush1.msra.mxu0 %v7626
    %7691 = vmatprep.subr.mxu0 %v7625
    %7692 = vmatpush1.msra.mxu0 %v7624
    %7693 = vmatprep.subr.mxu0 0.0
    %7694 = vmatpush2.msra.mxu0 0.0
    %7695 = vmatprep.subr.mxu0 0.0
    %7696 = vmatpush2.msra.mxu0 0.0
    %7697 = vmatprep.subr.mxu0 0.0
    %7698 = vmatpush2.msra.mxu0 0.0
    %7699 = vmatprep.subr.mxu0 0.0
    %7700 = vmatpush2.msra.mxu0 0.0
    %7701 = vmatprep.subr.mxu0 0.0
    %7702 = vmatpush2.msra.mxu0 0.0
    %7703 = vmatprep.subr.mxu0 0.0
    %7704 = vmatpush2.msra.mxu0 0.0
    %7705 = vmatprep.subr.mxu0 0.0
    %7706 = vmatpush2.msra.mxu0 0.0
    %7707 = vmatprep.subr.mxu0 0.0
    %7708 = vmatpush2.msra.mxu0 0.0
    %7709 = vmatprep.subr.mxu0 0.0
    %7710 = vmatpush2.msra.mxu0 0.0
    %7711 = vmatprep.subr.mxu0 0.0
    %7712 = vmatpush2.msra.mxu0 0.0
    %7713 = vmatprep.subr.mxu0 0.0
    %7714 = vmatpush2.msra.mxu0 0.0
    %7715 = vmatprep.subr.mxu0 0.0
    %7716 = vmatpush2.msra.mxu0 0.0
    %7717 = vmatprep.subr.mxu0 0.0
    %7718 = vmatpush2.msra.mxu0 0.0
    %7719 = vmatprep.subr.mxu0 0.0
    %7720 = vmatpush2.msra.mxu0 0.0
    %7721 = vmatprep.subr.mxu0 0.0
    %7722 = vmatpush2.msra.mxu0 0.0
    %7723 = vmatprep.subr.mxu0 0.0
    %7724 = vmatpush2.msra.mxu0 0.0
    %7725 = vmatprep.mubr.f32.mxu0 0.0
    %7726 = vmatmul.mubr.f32.gmra.mxu0 %v7651
    %v7727 = vpop.f32.mrf.mxu0
    %v7728 = vadd.f32 0.0, %v7727
    %v7729 = vpop.f32.mrf.mxu0
    %v7730 = vadd.f32 0.0, %v7729
    %7731 = vmatprep.mubr.f32.mxu0 0.0
    %7732 = vmatmul.mubr.f32.gmra.mxu0 %v7653
    %v7733 = vpop.f32.mrf.mxu0
    %v7734 = vadd.f32 0.0, %v7733
    %v7735 = vpop.f32.mrf.mxu0
    %v7736 = vadd.f32 0.0, %v7735
    %7737 = vdwg.mxu0
    %v7738 = vadd.f32 %v7614, %v7728
    %v7739 = vadd.f32 %v7616, %v7730
    %v7740 = vadd.f32 %v7620, %v7734
    %v7741 = vadd.f32 %v7622, %v7736
    %v7742 = vld [vmem:[%s4] sm:$0x3]
    %v7744 = vlaneseq
    %v7745 = vshrl.u32 %v7744, 7
    %v7746 = vsub.s32 0, %v7745
    %v7747 = vrot.slane %v7742, %v7746
    %v7748 = vlaneseq
    %v7749 = vshrl.u32 %v7748, 7
    %v7750 = vsub.s32 1, %v7749
    %v7751 = vrot.slane %v7742, %v7750
    %v7754 = vadd.f32 %v7738, %v7747
    %v7755 = vadd.f32 %v7739, %v7751
    %v7756 = vadd.f32 %v7740, %v7747
    %v7757 = vadd.f32 %v7741, %v7751
    %v7758 = vmax.f32 %v7754, 0.0
    %v7759 = vmax.f32 %v7755, 0.0
    %v7760 = vmax.f32 %v7756, 0.0
    %v7761 = vmax.f32 %v7757, 0.0
    %v7766 = vrot.slane %v7758, 1
    %v7767 = vrot.slane %v7760, 1
    %v7768 = vsel %vm1880, %v7766, %v7767
    %v7769 = vrot.slane %v7759, 1
    %v7770 = vrot.slane %v7761, 1
    %v7771 = vsel %vm1880, %v7769, %v7770
    %v7776 = vmax.f32 %v7758, %v7768
    %v7777 = vmax.f32 %v7759, %v7771
    %v7778 = vmax.f32 %v7760, %v7767
    %v7779 = vmax.f32 %v7761, %v7770
    %7784 = vrot.lane.b32.xlu0 %v7776, 112
    %v7785 = vpop.permute.xlu0 %7784
    %7786 = vrot.lane.b32.xlu0 %v7777, 112
    %v7787 = vpop.permute.xlu0 %7786
    %7788 = vrot.lane.b32.xlu0 %v7778, 112
    %v7789 = vpop.permute.xlu0 %7788
    %7790 = vrot.lane.b32.xlu0 %v7779, 112
    %v7791 = vpop.permute.xlu0 %7790
    %v7792 = vsel %vm2556, %v7785, %v7787
    %v7793 = vsel %vm2556, %v7789, %v7791
    %v7798 = vmax.f32 %v7776, %v7792
    %v7799 = vmax.f32 %v7777, %v7787
    %v7800 = vmax.f32 %v7778, %v7793
    %v7801 = vmax.f32 %v7779, %v7791
    %v7802 = vld [vmem:[%s7] sm:$0x3f]
    %v7804 = vsel %vm2568, %v7802, 0
    %v7807 = vsel %vm2572, %v7800, 0
    %v7810 = vsel %vm2572, %v7801, 0
    %7812 = vmatprep.subr.mxu0 0.0
    %7813 = vmatpush1.msra.mxu0 0.0
    %7814 = vmatprep.subr.mxu0 0.0
    %7815 = vmatpush1.msra.mxu0 0.0
    %7816 = vmatprep.subr.mxu0 0.0
    %7817 = vmatpush1.msra.mxu0 0.0
    %7818 = vmatprep.subr.mxu0 0.0
    %7819 = vmatpush1.msra.mxu0 0.0
    %7820 = vmatprep.subr.mxu0 0.0
    %7821 = vmatpush1.msra.mxu0 0.0
    %7822 = vmatprep.subr.mxu0 0.0
    %7823 = vmatpush1.msra.mxu0 0.0
    %7824 = vmatprep.subr.mxu0 0.0
    %7825 = vmatpush1.msra.mxu0 0.0
    %7826 = vmatprep.subr.mxu0 0.0
    %7827 = vmatpush1.msra.mxu0 0.0
    %7828 = vmatprep.subr.mxu0 0.0
    %7829 = vmatpush1.msra.mxu0 0.0
    %7830 = vmatprep.subr.mxu0 0.0
    %7831 = vmatpush1.msra.mxu0 0.0
    %7832 = vmatprep.subr.mxu0 0.0
    %7833 = vmatpush1.msra.mxu0 0.0
    %7834 = vmatprep.subr.mxu0 0.0
    %7835 = vmatpush1.msra.mxu0 0.0
    %7836 = vmatprep.subr.mxu0 0.0
    %7837 = vmatpush1.msra.mxu0 0.0
    %7838 = vmatprep.subr.mxu0 0.0
    %7839 = vmatpush1.msra.mxu0 0.0
    %7840 = vmatprep.subr.mxu0 %v7810
    %7841 = vmatpush1.msra.mxu0 %v7807
    %7842 = vmatprep.subr.mxu0 %v7799
    %7843 = vmatpush1.msra.mxu0 %v7798
    %7844 = vmatprep.subr.mxu0 0.0
    %7845 = vmatpush2.msra.mxu0 0.0
    %7846 = vmatprep.subr.mxu0 0.0
    %7847 = vmatpush2.msra.mxu0 0.0
    %7848 = vmatprep.subr.mxu0 0.0
    %7849 = vmatpush2.msra.mxu0 0.0
    %7850 = vmatprep.subr.mxu0 0.0
    %7851 = vmatpush2.msra.mxu0 0.0
    %7852 = vmatprep.subr.mxu0 0.0
    %7853 = vmatpush2.msra.mxu0 0.0
    %7854 = vmatprep.subr.mxu0 0.0
    %7855 = vmatpush2.msra.mxu0 0.0
    %7856 = vmatprep.subr.mxu0 0.0
    %7857 = vmatpush2.msra.mxu0 0.0
    %7858 = vmatprep.subr.mxu0 0.0
    %7859 = vmatpush2.msra.mxu0 0.0
    %7860 = vmatprep.subr.mxu0 0.0
    %7861 = vmatpush2.msra.mxu0 0.0
    %7862 = vmatprep.subr.mxu0 0.0
    %7863 = vmatpush2.msra.mxu0 0.0
    %7864 = vmatprep.subr.mxu0 0.0
    %7865 = vmatpush2.msra.mxu0 0.0
    %7866 = vmatprep.subr.mxu0 0.0
    %7867 = vmatpush2.msra.mxu0 0.0
    %7868 = vmatprep.subr.mxu0 0.0
    %7869 = vmatpush2.msra.mxu0 0.0
    %7870 = vmatprep.subr.mxu0 0.0
    %7871 = vmatpush2.msra.mxu0 0.0
    %7872 = vmatprep.subr.mxu0 0.0
    %7873 = vmatpush2.msra.mxu0 0.0
    %7874 = vmatprep.subr.mxu0 0.0
    %7875 = vmatpush2.msra.mxu0 0.0
    %7876 = vmatprep.mubr.f32.mxu0 0.0
    %7877 = vmatmul.mubr.f32.gmra.mxu0 %v7804
    %v7878 = vpop.f32.mrf.mxu0
    %v7879 = vadd.f32 0.0, %v7878
    %v7880 = vpop.f32.mrf.mxu0
    %v7881 = vadd.f32 0.0, %v7880
    %7882 = vdwg.mxu0
    %v7883 = vld [vmem:[%s8] sm:$0xff]
    %v7884 = vld [vmem:[%s8 + $0x8] sm:$0xff]
    %v7885 = vld [vmem:[%s8 + $0x10] sm:$0xff]
    %v7886 = vld [vmem:[%s8 + $0x18] sm:$0xff]
    %v7887 = vld [vmem:[%s8 + $0x20] sm:$0xff]
    %v7888 = vld [vmem:[%s8 + $0x28] sm:$0xff]
    %v7889 = vld [vmem:[%s8 + $0x30] sm:$0xff]
    %v7890 = vld [vmem:[%s8 + $0x38] sm:$0xff]
    %v7891 = vld [vmem:[%s8 + $0x40] sm:$0xff]
    %v7892 = vld [vmem:[%s8 + $0x48] sm:$0xff]
    %v7893 = vld [vmem:[%s8 + $0x50] sm:$0xff]
    %v7894 = vld [vmem:[%s8 + $0x58] sm:$0xff]
    %v7895 = vld [vmem:[%s8 + $0x60] sm:$0xff]
    %v7896 = vld [vmem:[%s8 + $0x68] sm:$0xff]
    %v7897 = vld [vmem:[%s8 + $0x70] sm:$0xff]
    %v7898 = vld [vmem:[%s8 + $0x78] sm:$0xff]
    %v7899 = vld [vmem:[%s8 + $0x80] sm:$0xff]
    %v7900 = vld [vmem:[%s8 + $0x88] sm:$0xff]
    %v7901 = vld [vmem:[%s8 + $0x90] sm:$0xff]
    %v7902 = vld [vmem:[%s8 + $0x98] sm:$0xff]
    %v7903 = vld [vmem:[%s8 + $0xa0] sm:$0xff]
    %v7904 = vld [vmem:[%s8 + $0xa8] sm:$0xff]
    %v7905 = vld [vmem:[%s8 + $0xb0] sm:$0xff]
    %v7906 = vld [vmem:[%s8 + $0xb8] sm:$0xff]
    %v7908 = vsel %vm2674, %v7881, 0
    %7910 = vmatprep.subr.mxu0 0.0
    %7911 = vmatpush1.msra.mxu0 %v7898
    %7912 = vmatprep.subr.mxu0 0.0
    %7913 = vmatpush1.msra.mxu0 %v7897
    %7914 = vmatprep.subr.mxu0 0.0
    %7915 = vmatpush1.msra.mxu0 %v7896
    %7916 = vmatprep.subr.mxu0 0.0
    %7917 = vmatpush1.msra.mxu0 %v7895
    %7918 = vmatprep.subr.mxu0 0.0
    %7919 = vmatpush1.msra.mxu0 %v7894
    %7920 = vmatprep.subr.mxu0 0.0
    %7921 = vmatpush1.msra.mxu0 %v7893
    %7922 = vmatprep.subr.mxu0 0.0
    %7923 = vmatpush1.msra.mxu0 %v7892
    %7924 = vmatprep.subr.mxu0 0.0
    %7925 = vmatpush1.msra.mxu0 %v7891
    %7926 = vmatprep.subr.mxu0 0.0
    %7927 = vmatpush1.msra.mxu0 %v7890
    %7928 = vmatprep.subr.mxu0 0.0
    %7929 = vmatpush1.msra.mxu0 %v7889
    %7930 = vmatprep.subr.mxu0 0.0
    %7931 = vmatpush1.msra.mxu0 %v7888
    %7932 = vmatprep.subr.mxu0 0.0
    %7933 = vmatpush1.msra.mxu0 %v7887
    %7934 = vmatprep.subr.mxu0 0.0
    %7935 = vmatpush1.msra.mxu0 %v7886
    %7936 = vmatprep.subr.mxu0 0.0
    %7937 = vmatpush1.msra.mxu0 %v7885
    %7938 = vmatprep.subr.mxu0 0.0
    %7939 = vmatpush1.msra.mxu0 %v7884
    %7940 = vmatprep.subr.mxu0 0.0
    %7941 = vmatpush1.msra.mxu0 %v7883
    %7942 = vmatprep.subr.mxu0 0.0
    %7943 = vmatpush2.msra.mxu0 0.0
    %7944 = vmatprep.subr.mxu0 0.0
    %7945 = vmatpush2.msra.mxu0 0.0
    %7946 = vmatprep.subr.mxu0 0.0
    %7947 = vmatpush2.msra.mxu0 0.0
    %7948 = vmatprep.subr.mxu0 0.0
    %7949 = vmatpush2.msra.mxu0 0.0
    %7950 = vmatprep.subr.mxu0 0.0
    %7951 = vmatpush2.msra.mxu0 0.0
    %7952 = vmatprep.subr.mxu0 0.0
    %7953 = vmatpush2.msra.mxu0 0.0
    %7954 = vmatprep.subr.mxu0 0.0
    %7955 = vmatpush2.msra.mxu0 0.0
    %7956 = vmatprep.subr.mxu0 0.0
    %7957 = vmatpush2.msra.mxu0 0.0
    %7958 = vmatprep.subr.mxu0 0.0
    %7959 = vmatpush2.msra.mxu0 %v7906
    %7960 = vmatprep.subr.mxu0 0.0
    %7961 = vmatpush2.msra.mxu0 %v7905
    %7962 = vmatprep.subr.mxu0 0.0
    %7963 = vmatpush2.msra.mxu0 %v7904
    %7964 = vmatprep.subr.mxu0 0.0
    %7965 = vmatpush2.msra.mxu0 %v7903
    %7966 = vmatprep.subr.mxu0 0.0
    %7967 = vmatpush2.msra.mxu0 %v7902
    %7968 = vmatprep.subr.mxu0 0.0
    %7969 = vmatpush2.msra.mxu0 %v7901
    %7970 = vmatprep.subr.mxu0 0.0
    %7971 = vmatpush2.msra.mxu0 %v7900
    %7972 = vmatprep.subr.mxu0 0.0
    %7973 = vmatpush2.msra.mxu0 %v7899
    %7974 = vmatprep.mubr.f32.mxu0 %v7908
    %7975 = vmatmul.mubr.f32.gmra.mxu0 %v7879
    %v7976 = vpop.f32.mrf.mxu0
    %v7977 = vadd.f32 0.0, %v7976
    %v7978 = vpop.f32.mrf.mxu0
    %7979 = vdwg.mxu0
    %s7980 = scalar_lea.vmem [#allocation3], 48
    %7981 = vst.msk [vmem:[%s7980] sm:$0x3f] %vm2748, %v7977
    %v7982 = vld [vmem:[#allocation2 + $0x1c0] sm:$0xff]
    %v7983 = vld [vmem:[#allocation2 + $0x1c8] sm:$0xff]
    %v7984 = vld [vmem:[#allocation2 + $0x1d0] sm:$0xff]
    %v7985 = vld [vmem:[#allocation2 + $0x1d8] sm:$0xff]
    %v7986 = vld [vmem:[#allocation2 + $0x1e0] sm:$0xff]
    %v7987 = vld [vmem:[#allocation2 + $0x1e8] sm:$0xff]
    %v7988 = vld [vmem:[#allocation2 + $0x1f0] sm:$0x3f]
    %v7989 = vld [vmem:[#allocation2 + $0x1f8] sm:$0x3f]
    %v7998 = vrot.slane %v7982, 1
    %v7999 = vrot.slane %v7984, 1
    %v8000 = vsel %vm1880, %v7998, %v7999
    %v8001 = vrot.slane %v7983, 1
    %v8002 = vrot.slane %v7985, 1
    %v8003 = vsel %vm1880, %v8001, %v8002
    %v8004 = vrot.slane %v7986, 1
    %v8005 = vsel %vm1880, %v7999, %v8004
    %v8006 = vrot.slane %v7987, 1
    %v8007 = vsel %vm1880, %v8002, %v8006
    %v8008 = vrot.slane %v7988, 1
    %v8009 = vsel %vm1880, %v8004, %v8008
    %v8010 = vrot.slane %v7989, 1
    %v8011 = vsel %vm1880, %v8006, %v8010
    %v8020 = vmax.f32 %v7982, %v8000
    %v8021 = vmax.f32 %v7983, %v8003
    %v8022 = vmax.f32 %v7984, %v8005
    %v8023 = vmax.f32 %v7985, %v8007
    %v8024 = vmax.f32 %v7986, %v8009
    %v8025 = vmax.f32 %v7987, %v8011
    %v8026 = vmax.f32 %v7988, %v8008
    %v8027 = vmax.f32 %v7989, %v8010
    %8036 = vrot.lane.b32.xlu0 %v8020, 122
    %v8037 = vpop.permute.xlu0 %8036
    %8038 = vrot.lane.b32.xlu0 %v8021, 122
    %v8039 = vpop.permute.xlu0 %8038
    %8040 = vrot.lane.b32.xlu0 %v8022, 122
    %v8041 = vpop.permute.xlu0 %8040
    %8042 = vrot.lane.b32.xlu0 %v8023, 122
    %v8043 = vpop.permute.xlu0 %8042
    %8044 = vrot.lane.b32.xlu0 %v8024, 122
    %v8045 = vpop.permute.xlu0 %8044
    %8046 = vrot.lane.b32.xlu0 %v8025, 122
    %v8047 = vpop.permute.xlu0 %8046
    %8048 = vrot.lane.b32.xlu0 %v8026, 122
    %v8049 = vpop.permute.xlu0 %8048
    %8050 = vrot.lane.b32.xlu0 %v8027, 122
    %v8051 = vpop.permute.xlu0 %8050
    %v8052 = vsel %vm1935, %v8037, %v8039
    %v8053 = vsel %vm1935, %v8041, %v8043
    %v8054 = vsel %vm1935, %v8045, %v8047
    %v8055 = vsel %vm1935, %v8049, %v8051
    %v8064 = vmax.f32 %v8020, %v8052
    %v8065 = vmax.f32 %v8021, %v8039
    %v8066 = vmax.f32 %v8022, %v8053
    %v8067 = vmax.f32 %v8023, %v8043
    %v8068 = vmax.f32 %v8024, %v8054
    %v8069 = vmax.f32 %v8025, %v8047
    %v8070 = vmax.f32 %v8026, %v8055
    %v8071 = vmax.f32 %v8027, %v8051
    %v8072 = vld [vmem:[%s5] sm:$0xff]
    %v8073 = vld [vmem:[%s5 + $0x8] sm:$0x7f]
    %v8075 = vsel %vm1958, %v8072, 0
    %v8078 = vsel %vm1958, %v8073, 0
    %v8081 = vsel %vm1965, %v8070, 0
    %v8084 = vsel %vm1965, %v8071, 0
    %8086 = vmatprep.subr.mxu0 0.0
    %8087 = vmatpush1.msra.mxu0 0.0
    %8088 = vmatprep.subr.mxu0 0.0
    %8089 = vmatpush1.msra.mxu0 0.0
    %8090 = vmatprep.subr.mxu0 0.0
    %8091 = vmatpush1.msra.mxu0 0.0
    %8092 = vmatprep.subr.mxu0 0.0
    %8093 = vmatpush1.msra.mxu0 0.0
    %8094 = vmatprep.subr.mxu0 0.0
    %8095 = vmatpush1.msra.mxu0 0.0
    %8096 = vmatprep.subr.mxu0 0.0
    %8097 = vmatpush1.msra.mxu0 0.0
    %8098 = vmatprep.subr.mxu0 0.0
    %8099 = vmatpush1.msra.mxu0 0.0
    %8100 = vmatprep.subr.mxu0 0.0
    %8101 = vmatpush1.msra.mxu0 0.0
    %8102 = vmatprep.subr.mxu0 0.0
    %8103 = vmatpush1.msra.mxu0 0.0
    %8104 = vmatprep.subr.mxu0 0.0
    %8105 = vmatpush1.msra.mxu0 0.0
    %8106 = vmatprep.subr.mxu0 0.0
    %8107 = vmatpush1.msra.mxu0 0.0
    %8108 = vmatprep.subr.mxu0 0.0
    %8109 = vmatpush1.msra.mxu0 0.0
    %8110 = vmatprep.subr.mxu0 %v8084
    %8111 = vmatpush1.msra.mxu0 %v8081
    %8112 = vmatprep.subr.mxu0 %v8069
    %8113 = vmatpush1.msra.mxu0 %v8068
    %8114 = vmatprep.subr.mxu0 %v8067
    %8115 = vmatpush1.msra.mxu0 %v8066
    %8116 = vmatprep.subr.mxu0 %v8065
    %8117 = vmatpush1.msra.mxu0 %v8064
    %8118 = vmatprep.subr.mxu0 0.0
    %8119 = vmatpush2.msra.mxu0 0.0
    %8120 = vmatprep.subr.mxu0 0.0
    %8121 = vmatpush2.msra.mxu0 0.0
    %8122 = vmatprep.subr.mxu0 0.0
    %8123 = vmatpush2.msra.mxu0 0.0
    %8124 = vmatprep.subr.mxu0 0.0
    %8125 = vmatpush2.msra.mxu0 0.0
    %8126 = vmatprep.subr.mxu0 0.0
    %8127 = vmatpush2.msra.mxu0 0.0
    %8128 = vmatprep.subr.mxu0 0.0
    %8129 = vmatpush2.msra.mxu0 0.0
    %8130 = vmatprep.subr.mxu0 0.0
    %8131 = vmatpush2.msra.mxu0 0.0
    %8132 = vmatprep.subr.mxu0 0.0
    %8133 = vmatpush2.msra.mxu0 0.0
    %8134 = vmatprep.subr.mxu0 0.0
    %8135 = vmatpush2.msra.mxu0 0.0
    %8136 = vmatprep.subr.mxu0 0.0
    %8137 = vmatpush2.msra.mxu0 0.0
    %8138 = vmatprep.subr.mxu0 0.0
    %8139 = vmatpush2.msra.mxu0 0.0
    %8140 = vmatprep.subr.mxu0 0.0
    %8141 = vmatpush2.msra.mxu0 0.0
    %8142 = vmatprep.subr.mxu0 0.0
    %8143 = vmatpush2.msra.mxu0 0.0
    %8144 = vmatprep.subr.mxu0 0.0
    %8145 = vmatpush2.msra.mxu0 0.0
    %8146 = vmatprep.subr.mxu0 0.0
    %8147 = vmatpush2.msra.mxu0 0.0
    %8148 = vmatprep.subr.mxu0 0.0
    %8149 = vmatpush2.msra.mxu0 0.0
    %8150 = vmatprep.mubr.f32.mxu0 0.0
    %8151 = vmatmul.mubr.f32.gmra.mxu0 %v8075
    %v8152 = vpop.f32.mrf.mxu0
    %v8153 = vadd.f32 0.0, %v8152
    %v8154 = vpop.f32.mrf.mxu0
    %v8155 = vadd.f32 0.0, %v8154
    %8156 = vmatprep.mubr.f32.mxu0 0.0
    %8157 = vmatmul.mubr.f32.gmra.mxu0 %v8078
    %v8158 = vpop.f32.mrf.mxu0
    %v8159 = vadd.f32 0.0, %v8158
    %v8160 = vpop.f32.mrf.mxu0
    %v8161 = vadd.f32 0.0, %v8160
    %8162 = vdwg.mxu0
    %v8163 = vld [vmem:[#allocation7] sm:$0xff]
    %v8164 = vld [vmem:[#allocation7 + $0x8] sm:$0xff]
    %v8165 = vld [vmem:[#allocation7 + $0x10] sm:$0xff]
    %v8166 = vld [vmem:[#allocation7 + $0x18] sm:$0xff]
    %v8167 = vld [vmem:[#allocation7 + $0x20] sm:$0xff]
    %v8168 = vld [vmem:[#allocation7 + $0x28] sm:$0xff]
    %v8169 = vld [vmem:[#allocation7 + $0x30] sm:$0xff]
    %v8170 = vld [vmem:[#allocation7 + $0x38] sm:$0xff]
    %v8171 = vld [vmem:[#allocation7 + $0x40] sm:$0xff]
    %v8172 = vld [vmem:[#allocation7 + $0x48] sm:$0xff]
    %v8173 = vld [vmem:[#allocation7 + $0x50] sm:$0xff]
    %v8174 = vld [vmem:[#allocation7 + $0x58] sm:$0xff]
    %v8175 = vld [vmem:[#allocation7 + $0x60] sm:$0xff]
    %v8176 = vld [vmem:[#allocation7 + $0x68] sm:$0xff]
    %v8177 = vld [vmem:[#allocation7 + $0x70] sm:$0xff]
    %v8178 = vld [vmem:[#allocation7 + $0x78] sm:$0xff]
    %v8179 = vld [vmem:[#allocation7 + $0x80] sm:$0xff]
    %v8180 = vld [vmem:[#allocation7 + $0x88] sm:$0xff]
    %v8181 = vld [vmem:[#allocation7 + $0x90] sm:$0xff]
    %v8182 = vld [vmem:[#allocation7 + $0x98] sm:$0xff]
    %v8183 = vld [vmem:[#allocation7 + $0xa0] sm:$0xff]
    %v8184 = vld [vmem:[#allocation7 + $0xa8] sm:$0x3f]
    %v8186 = vsel %vm2071, %v8155, 0
    %v8189 = vsel %vm2071, %v8161, 0
    %v8192 = vsel %vm2078, %v8184, 0
    %8194 = vmatprep.subr.mxu0 0.0
    %8195 = vmatpush1.msra.mxu0 %v8178
    %8196 = vmatprep.subr.mxu0 0.0
    %8197 = vmatpush1.msra.mxu0 %v8177
    %8198 = vmatprep.subr.mxu0 0.0
    %8199 = vmatpush1.msra.mxu0 %v8176
    %8200 = vmatprep.subr.mxu0 0.0
    %8201 = vmatpush1.msra.mxu0 %v8175
    %8202 = vmatprep.subr.mxu0 0.0
    %8203 = vmatpush1.msra.mxu0 %v8174
    %8204 = vmatprep.subr.mxu0 0.0
    %8205 = vmatpush1.msra.mxu0 %v8173
    %8206 = vmatprep.subr.mxu0 0.0
    %8207 = vmatpush1.msra.mxu0 %v8172
    %8208 = vmatprep.subr.mxu0 0.0
    %8209 = vmatpush1.msra.mxu0 %v8171
    %8210 = vmatprep.subr.mxu0 0.0
    %8211 = vmatpush1.msra.mxu0 %v8170
    %8212 = vmatprep.subr.mxu0 0.0
    %8213 = vmatpush1.msra.mxu0 %v8169
    %8214 = vmatprep.subr.mxu0 0.0
    %8215 = vmatpush1.msra.mxu0 %v8168
    %8216 = vmatprep.subr.mxu0 0.0
    %8217 = vmatpush1.msra.mxu0 %v8167
    %8218 = vmatprep.subr.mxu0 0.0
    %8219 = vmatpush1.msra.mxu0 %v8166
    %8220 = vmatprep.subr.mxu0 0.0
    %8221 = vmatpush1.msra.mxu0 %v8165
    %8222 = vmatprep.subr.mxu0 0.0
    %8223 = vmatpush1.msra.mxu0 %v8164
    %8224 = vmatprep.subr.mxu0 0.0
    %8225 = vmatpush1.msra.mxu0 %v8163
    %8226 = vmatprep.subr.mxu0 0.0
    %8227 = vmatpush2.msra.mxu0 0.0
    %8228 = vmatprep.subr.mxu0 0.0
    %8229 = vmatpush2.msra.mxu0 0.0
    %8230 = vmatprep.subr.mxu0 0.0
    %8231 = vmatpush2.msra.mxu0 0.0
    %8232 = vmatprep.subr.mxu0 0.0
    %8233 = vmatpush2.msra.mxu0 0.0
    %8234 = vmatprep.subr.mxu0 0.0
    %8235 = vmatpush2.msra.mxu0 0.0
    %8236 = vmatprep.subr.mxu0 0.0
    %8237 = vmatpush2.msra.mxu0 0.0
    %8238 = vmatprep.subr.mxu0 0.0
    %8239 = vmatpush2.msra.mxu0 0.0
    %8240 = vmatprep.subr.mxu0 0.0
    %8241 = vmatpush2.msra.mxu0 0.0
    %8242 = vmatprep.subr.mxu0 0.0
    %8243 = vmatpush2.msra.mxu0 0.0
    %8244 = vmatprep.subr.mxu0 0.0
    %8245 = vmatpush2.msra.mxu0 0.0
    %8246 = vmatprep.subr.mxu0 0.0
    %8247 = vmatpush2.msra.mxu0 %v8192
    %8248 = vmatprep.subr.mxu0 0.0
    %8249 = vmatpush2.msra.mxu0 %v8183
    %8250 = vmatprep.subr.mxu0 0.0
    %8251 = vmatpush2.msra.mxu0 %v8182
    %8252 = vmatprep.subr.mxu0 0.0
    %8253 = vmatpush2.msra.mxu0 %v8181
    %8254 = vmatprep.subr.mxu0 0.0
    %8255 = vmatpush2.msra.mxu0 %v8180
    %8256 = vmatprep.subr.mxu0 0.0
    %8257 = vmatpush2.msra.mxu0 %v8179
    %8258 = vmatprep.mubr.f32.mxu0 %v8186
    %8259 = vmatmul.mubr.f32.gmra.mxu0 %v8153
    %v8260 = vpop.f32.mrf.mxu0
    %v8261 = vadd.f32 0.0, %v8260
    %v8262 = vpop.f32.mrf.mxu0
    %8263 = vmatprep.mubr.f32.mxu0 %v8189
    %8264 = vmatmul.mubr.f32.gmra.mxu0 %v8159
    %v8265 = vpop.f32.mrf.mxu0
    %v8266 = vadd.f32 0.0, %v8265
    %v8267 = vpop.f32.mrf.mxu0
    %8268 = vdwg.mxu0
    %v8269 = vld [vmem:[#allocation4] sm:$0xff]
    %v8270 = vld [vmem:[#allocation4 + $0x8] sm:$0xff]
    %v8271 = vld [vmem:[#allocation4 + $0x10] sm:$0xff]
    %v8272 = vld [vmem:[#allocation4 + $0x18] sm:$0xff]
    %v8273 = vld [vmem:[#allocation4 + $0x20] sm:$0xff]
    %v8274 = vld [vmem:[#allocation4 + $0x28] sm:$0xff]
    %v8275 = vld [vmem:[#allocation4 + $0x30] sm:$0xff]
    %v8276 = vld [vmem:[#allocation4 + $0x38] sm:$0xff]
    %v8277 = vld [vmem:[#allocation4 + $0x40] sm:$0xff]
    %v8278 = vld [vmem:[#allocation4 + $0x48] sm:$0xff]
    %v8279 = vld [vmem:[#allocation4 + $0x50] sm:$0xff]
    %v8280 = vld [vmem:[#allocation4 + $0x58] sm:$0xff]
    %v8281 = vld [vmem:[#allocation4 + $0x60] sm:$0xff]
    %v8282 = vld [vmem:[#allocation4 + $0x68] sm:$0xff]
    %v8283 = vld [vmem:[#allocation4 + $0x70] sm:$0xff]
    %v8284 = vld [vmem:[#allocation4 + $0x78] sm:$0xff]
    %v8285 = vld [vmem:[#allocation4 + $0x80] sm:$0xff]
    %v8286 = vld [vmem:[#allocation4 + $0x88] sm:$0xff]
    %v8287 = vld [vmem:[#allocation4 + $0x90] sm:$0xff]
    %v8288 = vld [vmem:[#allocation4 + $0x98] sm:$0xff]
    %v8289 = vld [vmem:[#allocation4 + $0xa0] sm:$0xff]
    %v8290 = vld [vmem:[#allocation4 + $0xa8] sm:$0xff]
    %v8291 = vld [vmem:[#allocation4 + $0xb0] sm:$0x3]
    %v8292 = vld [vmem:[#allocation4 + $0xb8] sm:$0x3]
    %v8293 = vld [vmem:[%s2181] sm:$0xff]
    %v8294 = vld [vmem:[%s2181 + $0x8] sm:$0xff]
    %v8295 = vld [vmem:[%s2181 + $0x10] sm:$0xff]
    %v8296 = vld [vmem:[%s2181 + $0x18] sm:$0xff]
    %v8297 = vld [vmem:[%s2181 + $0x20] sm:$0xff]
    %v8298 = vld [vmem:[%s2181 + $0x28] sm:$0xff]
    %v8299 = vld [vmem:[%s2181 + $0x30] sm:$0xff]
    %v8300 = vld [vmem:[%s2181 + $0x38] sm:$0xff]
    %v8301 = vld [vmem:[%s2181 + $0x40] sm:$0xff]
    %v8302 = vld [vmem:[%s2181 + $0x48] sm:$0xff]
    %v8303 = vld [vmem:[%s2181 + $0x50] sm:$0xff]
    %v8304 = vld [vmem:[%s2181 + $0x58] sm:$0xff]
    %v8305 = vld [vmem:[%s2181 + $0x60] sm:$0xff]
    %v8306 = vld [vmem:[%s2181 + $0x68] sm:$0xff]
    %v8307 = vld [vmem:[%s2181 + $0x70] sm:$0xff]
    %v8308 = vld [vmem:[%s2181 + $0x78] sm:$0xff]
    %v8309 = vld [vmem:[%s2181 + $0x80] sm:$0xff]
    %v8310 = vld [vmem:[%s2181 + $0x88] sm:$0xff]
    %v8311 = vld [vmem:[%s2181 + $0x90] sm:$0xff]
    %v8312 = vld [vmem:[%s2181 + $0x98] sm:$0xff]
    %v8313 = vld [vmem:[%s2181 + $0xa0] sm:$0xff]
    %v8314 = vld [vmem:[%s2181 + $0xa8] sm:$0xff]
    %v8315 = vld [vmem:[%s2181 + $0xb0] sm:$0x3]
    %v8316 = vld [vmem:[%s2181 + $0xb8] sm:$0x3]
    %v8319 = vrot.slane %v8261, 1
    %v8320 = vrot.slane %v8266, 1
    %v8321 = vsel %vm1880, %v8319, %v8320
    %v8322 = vsel %vm2211, %v8321, 0
    %v8324 = vsel %vm2211, %v8320, 0
    %v8327 = vsel %vm2216, %v8315, 0
    %v8330 = vsel %vm2216, %v8316, 0
    %8332 = vmatprep.subr.mxu0 0.0
    %8333 = vmatpush1.msra.mxu0 0.0
    %8334 = vmatprep.subr.mxu0 0.0
    %8335 = vmatpush1.msra.mxu0 0.0
    %8336 = vmatprep.subr.mxu0 0.0
    %8337 = vmatpush1.msra.mxu0 0.0
    %8338 = vmatprep.subr.mxu0 0.0
    %8339 = vmatpush1.msra.mxu0 0.0
    %8340 = vmatprep.subr.mxu0 %v8330
    %8341 = vmatpush1.msra.mxu0 %v8327
    %8342 = vmatprep.subr.mxu0 %v8314
    %8343 = vmatpush1.msra.mxu0 %v8313
    %8344 = vmatprep.subr.mxu0 %v8312
    %8345 = vmatpush1.msra.mxu0 %v8311
    %8346 = vmatprep.subr.mxu0 %v8310
    %8347 = vmatpush1.msra.mxu0 %v8309
    %8348 = vmatprep.subr.mxu0 %v8308
    %8349 = vmatpush1.msra.mxu0 %v8307
    %8350 = vmatprep.subr.mxu0 %v8306
    %8351 = vmatpush1.msra.mxu0 %v8305
    %8352 = vmatprep.subr.mxu0 %v8304
    %8353 = vmatpush1.msra.mxu0 %v8303
    %8354 = vmatprep.subr.mxu0 %v8302
    %8355 = vmatpush1.msra.mxu0 %v8301
    %8356 = vmatprep.subr.mxu0 %v8300
    %8357 = vmatpush1.msra.mxu0 %v8299
    %8358 = vmatprep.subr.mxu0 %v8298
    %8359 = vmatpush1.msra.mxu0 %v8297
    %8360 = vmatprep.subr.mxu0 %v8296
    %8361 = vmatpush1.msra.mxu0 %v8295
    %8362 = vmatprep.subr.mxu0 %v8294
    %8363 = vmatpush1.msra.mxu0 %v8293
    %8364 = vmatprep.subr.mxu0 0.0
    %8365 = vmatpush2.msra.mxu0 0.0
    %8366 = vmatprep.subr.mxu0 0.0
    %8367 = vmatpush2.msra.mxu0 0.0
    %8368 = vmatprep.subr.mxu0 0.0
    %8369 = vmatpush2.msra.mxu0 0.0
    %8370 = vmatprep.subr.mxu0 0.0
    %8371 = vmatpush2.msra.mxu0 0.0
    %8372 = vmatprep.subr.mxu0 0.0
    %8373 = vmatpush2.msra.mxu0 0.0
    %8374 = vmatprep.subr.mxu0 0.0
    %8375 = vmatpush2.msra.mxu0 0.0
    %8376 = vmatprep.subr.mxu0 0.0
    %8377 = vmatpush2.msra.mxu0 0.0
    %8378 = vmatprep.subr.mxu0 0.0
    %8379 = vmatpush2.msra.mxu0 0.0
    %8380 = vmatprep.subr.mxu0 0.0
    %8381 = vmatpush2.msra.mxu0 0.0
    %8382 = vmatprep.subr.mxu0 0.0
    %8383 = vmatpush2.msra.mxu0 0.0
    %8384 = vmatprep.subr.mxu0 0.0
    %8385 = vmatpush2.msra.mxu0 0.0
    %8386 = vmatprep.subr.mxu0 0.0
    %8387 = vmatpush2.msra.mxu0 0.0
    %8388 = vmatprep.subr.mxu0 0.0
    %8389 = vmatpush2.msra.mxu0 0.0
    %8390 = vmatprep.subr.mxu0 0.0
    %8391 = vmatpush2.msra.mxu0 0.0
    %8392 = vmatprep.subr.mxu0 0.0
    %8393 = vmatpush2.msra.mxu0 0.0
    %8394 = vmatprep.subr.mxu0 0.0
    %8395 = vmatpush2.msra.mxu0 0.0
    %8396 = vmatprep.mubr.f32.mxu0 0.0
    %8397 = vmatmul.mubr.f32.gmra.mxu0 %v8322
    %v8398 = vpop.f32.mrf.mxu0
    %v8399 = vadd.f32 0.0, %v8398
    %v8400 = vpop.f32.mrf.mxu0
    %v8401 = vadd.f32 0.0, %v8400
    %8402 = vmatprep.mubr.f32.mxu0 0.0
    %8403 = vmatmul.mubr.f32.gmra.mxu0 %v8324
    %v8404 = vpop.f32.mrf.mxu0
    %v8405 = vadd.f32 0.0, %v8404
    %v8406 = vpop.f32.mrf.mxu0
    %v8407 = vadd.f32 0.0, %v8406
    %8408 = vdwg.mxu0
    %v8409 = vsel %vm2211, %v8261, 0
    %v8411 = vsel %vm2211, %v8266, 0
    %v8414 = vsel %vm2216, %v8291, 0
    %v8417 = vsel %vm2216, %v8292, 0
    %8419 = vmatprep.subr.mxu0 0.0
    %8420 = vmatpush1.msra.mxu0 0.0
    %8421 = vmatprep.subr.mxu0 0.0
    %8422 = vmatpush1.msra.mxu0 0.0
    %8423 = vmatprep.subr.mxu0 0.0
    %8424 = vmatpush1.msra.mxu0 0.0
    %8425 = vmatprep.subr.mxu0 0.0
    %8426 = vmatpush1.msra.mxu0 0.0
    %8427 = vmatprep.subr.mxu0 %v8417
    %8428 = vmatpush1.msra.mxu0 %v8414
    %8429 = vmatprep.subr.mxu0 %v8290
    %8430 = vmatpush1.msra.mxu0 %v8289
    %8431 = vmatprep.subr.mxu0 %v8288
    %8432 = vmatpush1.msra.mxu0 %v8287
    %8433 = vmatprep.subr.mxu0 %v8286
    %8434 = vmatpush1.msra.mxu0 %v8285
    %8435 = vmatprep.subr.mxu0 %v8284
    %8436 = vmatpush1.msra.mxu0 %v8283
    %8437 = vmatprep.subr.mxu0 %v8282
    %8438 = vmatpush1.msra.mxu0 %v8281
    %8439 = vmatprep.subr.mxu0 %v8280
    %8440 = vmatpush1.msra.mxu0 %v8279
    %8441 = vmatprep.subr.mxu0 %v8278
    %8442 = vmatpush1.msra.mxu0 %v8277
    %8443 = vmatprep.subr.mxu0 %v8276
    %8444 = vmatpush1.msra.mxu0 %v8275
    %8445 = vmatprep.subr.mxu0 %v8274
    %8446 = vmatpush1.msra.mxu0 %v8273
    %8447 = vmatprep.subr.mxu0 %v8272
    %8448 = vmatpush1.msra.mxu0 %v8271
    %8449 = vmatprep.subr.mxu0 %v8270
    %8450 = vmatpush1.msra.mxu0 %v8269
    %8451 = vmatprep.subr.mxu0 0.0
    %8452 = vmatpush2.msra.mxu0 0.0
    %8453 = vmatprep.subr.mxu0 0.0
    %8454 = vmatpush2.msra.mxu0 0.0
    %8455 = vmatprep.subr.mxu0 0.0
    %8456 = vmatpush2.msra.mxu0 0.0
    %8457 = vmatprep.subr.mxu0 0.0
    %8458 = vmatpush2.msra.mxu0 0.0
    %8459 = vmatprep.subr.mxu0 0.0
    %8460 = vmatpush2.msra.mxu0 0.0
    %8461 = vmatprep.subr.mxu0 0.0
    %8462 = vmatpush2.msra.mxu0 0.0
    %8463 = vmatprep.subr.mxu0 0.0
    %8464 = vmatpush2.msra.mxu0 0.0
    %8465 = vmatprep.subr.mxu0 0.0
    %8466 = vmatpush2.msra.mxu0 0.0
    %8467 = vmatprep.subr.mxu0 0.0
    %8468 = vmatpush2.msra.mxu0 0.0
    %8469 = vmatprep.subr.mxu0 0.0
    %8470 = vmatpush2.msra.mxu0 0.0
    %8471 = vmatprep.subr.mxu0 0.0
    %8472 = vmatpush2.msra.mxu0 0.0
    %8473 = vmatprep.subr.mxu0 0.0
    %8474 = vmatpush2.msra.mxu0 0.0
    %8475 = vmatprep.subr.mxu0 0.0
    %8476 = vmatpush2.msra.mxu0 0.0
    %8477 = vmatprep.subr.mxu0 0.0
    %8478 = vmatpush2.msra.mxu0 0.0
    %8479 = vmatprep.subr.mxu0 0.0
    %8480 = vmatpush2.msra.mxu0 0.0
    %8481 = vmatprep.subr.mxu0 0.0
    %8482 = vmatpush2.msra.mxu0 0.0
    %8483 = vmatprep.mubr.f32.mxu0 0.0
    %8484 = vmatmul.mubr.f32.gmra.mxu0 %v8409
    %v8485 = vpop.f32.mrf.mxu0
    %v8486 = vadd.f32 %v8399, %v8485
    %v8487 = vpop.f32.mrf.mxu0
    %v8488 = vadd.f32 %v8401, %v8487
    %8489 = vmatprep.mubr.f32.mxu0 0.0
    %8490 = vmatmul.mubr.f32.gmra.mxu0 %v8411
    %v8491 = vpop.f32.mrf.mxu0
    %v8492 = vadd.f32 %v8405, %v8491
    %v8493 = vpop.f32.mrf.mxu0
    %v8494 = vadd.f32 %v8407, %v8493
    %8495 = vdwg.mxu0
    %v8496 = vld [vmem:[%s2387] sm:$0xff]
    %v8497 = vld [vmem:[%s2387 + $0x8] sm:$0xff]
    %v8498 = vld [vmem:[%s2387 + $0x10] sm:$0xff]
    %v8499 = vld [vmem:[%s2387 + $0x18] sm:$0xff]
    %v8500 = vld [vmem:[%s2387 + $0x20] sm:$0xff]
    %v8501 = vld [vmem:[%s2387 + $0x28] sm:$0xff]
    %v8502 = vld [vmem:[%s2387 + $0x30] sm:$0xff]
    %v8503 = vld [vmem:[%s2387 + $0x38] sm:$0xff]
    %v8504 = vld [vmem:[%s2387 + $0x40] sm:$0xff]
    %v8505 = vld [vmem:[%s2387 + $0x48] sm:$0xff]
    %v8506 = vld [vmem:[%s2387 + $0x50] sm:$0xff]
    %v8507 = vld [vmem:[%s2387 + $0x58] sm:$0xff]
    %v8508 = vld [vmem:[%s2387 + $0x60] sm:$0xff]
    %v8509 = vld [vmem:[%s2387 + $0x68] sm:$0xff]
    %v8510 = vld [vmem:[%s2387 + $0x70] sm:$0xff]
    %v8511 = vld [vmem:[%s2387 + $0x78] sm:$0xff]
    %v8512 = vld [vmem:[%s2387 + $0x80] sm:$0xff]
    %v8513 = vld [vmem:[%s2387 + $0x88] sm:$0xff]
    %v8514 = vld [vmem:[%s2387 + $0x90] sm:$0xff]
    %v8515 = vld [vmem:[%s2387 + $0x98] sm:$0xff]
    %v8516 = vld [vmem:[%s2387 + $0xa0] sm:$0xff]
    %v8517 = vld [vmem:[%s2387 + $0xa8] sm:$0xff]
    %v8518 = vld [vmem:[%s2387 + $0xb0] sm:$0x3]
    %v8519 = vld [vmem:[%s2387 + $0xb8] sm:$0x3]
    %v8520 = vrot.slane %v8261, 2
    %v8521 = vrot.slane %v8266, 2
    %v8522 = vsel %vm2078, %v8520, %v8521
    %v8523 = vsel %vm2211, %v8522, 0
    %v8525 = vsel %vm2211, %v8521, 0
    %v8528 = vsel %vm2216, %v8518, 0
    %v8531 = vsel %vm2216, %v8519, 0
    %8533 = vmatprep.subr.mxu0 0.0
    %8534 = vmatpush1.msra.mxu0 0.0
    %8535 = vmatprep.subr.mxu0 0.0
    %8536 = vmatpush1.msra.mxu0 0.0
    %8537 = vmatprep.subr.mxu0 0.0
    %8538 = vmatpush1.msra.mxu0 0.0
    %8539 = vmatprep.subr.mxu0 0.0
    %8540 = vmatpush1.msra.mxu0 0.0
    %8541 = vmatprep.subr.mxu0 %v8531
    %8542 = vmatpush1.msra.mxu0 %v8528
    %8543 = vmatprep.subr.mxu0 %v8517
    %8544 = vmatpush1.msra.mxu0 %v8516
    %8545 = vmatprep.subr.mxu0 %v8515
    %8546 = vmatpush1.msra.mxu0 %v8514
    %8547 = vmatprep.subr.mxu0 %v8513
    %8548 = vmatpush1.msra.mxu0 %v8512
    %8549 = vmatprep.subr.mxu0 %v8511
    %8550 = vmatpush1.msra.mxu0 %v8510
    %8551 = vmatprep.subr.mxu0 %v8509
    %8552 = vmatpush1.msra.mxu0 %v8508
    %8553 = vmatprep.subr.mxu0 %v8507
    %8554 = vmatpush1.msra.mxu0 %v8506
    %8555 = vmatprep.subr.mxu0 %v8505
    %8556 = vmatpush1.msra.mxu0 %v8504
    %8557 = vmatprep.subr.mxu0 %v8503
    %8558 = vmatpush1.msra.mxu0 %v8502
    %8559 = vmatprep.subr.mxu0 %v8501
    %8560 = vmatpush1.msra.mxu0 %v8500
    %8561 = vmatprep.subr.mxu0 %v8499
    %8562 = vmatpush1.msra.mxu0 %v8498
    %8563 = vmatprep.subr.mxu0 %v8497
    %8564 = vmatpush1.msra.mxu0 %v8496
    %8565 = vmatprep.subr.mxu0 0.0
    %8566 = vmatpush2.msra.mxu0 0.0
    %8567 = vmatprep.subr.mxu0 0.0
    %8568 = vmatpush2.msra.mxu0 0.0
    %8569 = vmatprep.subr.mxu0 0.0
    %8570 = vmatpush2.msra.mxu0 0.0
    %8571 = vmatprep.subr.mxu0 0.0
    %8572 = vmatpush2.msra.mxu0 0.0
    %8573 = vmatprep.subr.mxu0 0.0
    %8574 = vmatpush2.msra.mxu0 0.0
    %8575 = vmatprep.subr.mxu0 0.0
    %8576 = vmatpush2.msra.mxu0 0.0
    %8577 = vmatprep.subr.mxu0 0.0
    %8578 = vmatpush2.msra.mxu0 0.0
    %8579 = vmatprep.subr.mxu0 0.0
    %8580 = vmatpush2.msra.mxu0 0.0
    %8581 = vmatprep.subr.mxu0 0.0
    %8582 = vmatpush2.msra.mxu0 0.0
    %8583 = vmatprep.subr.mxu0 0.0
    %8584 = vmatpush2.msra.mxu0 0.0
    %8585 = vmatprep.subr.mxu0 0.0
    %8586 = vmatpush2.msra.mxu0 0.0
    %8587 = vmatprep.subr.mxu0 0.0
    %8588 = vmatpush2.msra.mxu0 0.0
    %8589 = vmatprep.subr.mxu0 0.0
    %8590 = vmatpush2.msra.mxu0 0.0
    %8591 = vmatprep.subr.mxu0 0.0
    %8592 = vmatpush2.msra.mxu0 0.0
    %8593 = vmatprep.subr.mxu0 0.0
    %8594 = vmatpush2.msra.mxu0 0.0
    %8595 = vmatprep.subr.mxu0 0.0
    %8596 = vmatpush2.msra.mxu0 0.0
    %8597 = vmatprep.mubr.f32.mxu0 0.0
    %8598 = vmatmul.mubr.f32.gmra.mxu0 %v8523
    %v8599 = vpop.f32.mrf.mxu0
    %v8600 = vadd.f32 0.0, %v8599
    %v8601 = vpop.f32.mrf.mxu0
    %v8602 = vadd.f32 0.0, %v8601
    %8603 = vmatprep.mubr.f32.mxu0 0.0
    %8604 = vmatmul.mubr.f32.gmra.mxu0 %v8525
    %v8605 = vpop.f32.mrf.mxu0
    %v8606 = vadd.f32 0.0, %v8605
    %v8607 = vpop.f32.mrf.mxu0
    %v8608 = vadd.f32 0.0, %v8607
    %8609 = vdwg.mxu0
    %v8610 = vadd.f32 %v8486, %v8600
    %v8611 = vadd.f32 %v8488, %v8602
    %v8612 = vadd.f32 %v8492, %v8606
    %v8613 = vadd.f32 %v8494, %v8608
    %v8614 = vld [vmem:[%s4] sm:$0x3]
    %v8616 = vlaneseq
    %v8617 = vshrl.u32 %v8616, 7
    %v8618 = vsub.s32 0, %v8617
    %v8619 = vrot.slane %v8614, %v8618
    %v8620 = vlaneseq
    %v8621 = vshrl.u32 %v8620, 7
    %v8622 = vsub.s32 1, %v8621
    %v8623 = vrot.slane %v8614, %v8622
    %v8626 = vadd.f32 %v8610, %v8619
    %v8627 = vadd.f32 %v8611, %v8623
    %v8628 = vadd.f32 %v8612, %v8619
    %v8629 = vadd.f32 %v8613, %v8623
    %v8630 = vmax.f32 %v8626, 0.0
    %v8631 = vmax.f32 %v8627, 0.0
    %v8632 = vmax.f32 %v8628, 0.0
    %v8633 = vmax.f32 %v8629, 0.0
    %v8638 = vrot.slane %v8630, 1
    %v8639 = vrot.slane %v8632, 1
    %v8640 = vsel %vm1880, %v8638, %v8639
    %v8641 = vrot.slane %v8631, 1
    %v8642 = vrot.slane %v8633, 1
    %v8643 = vsel %vm1880, %v8641, %v8642
    %v8648 = vmax.f32 %v8630, %v8640
    %v8649 = vmax.f32 %v8631, %v8643
    %v8650 = vmax.f32 %v8632, %v8639
    %v8651 = vmax.f32 %v8633, %v8642
    %8656 = vrot.lane.b32.xlu0 %v8648, 112
    %v8657 = vpop.permute.xlu0 %8656
    %8658 = vrot.lane.b32.xlu0 %v8649, 112
    %v8659 = vpop.permute.xlu0 %8658
    %8660 = vrot.lane.b32.xlu0 %v8650, 112
    %v8661 = vpop.permute.xlu0 %8660
    %8662 = vrot.lane.b32.xlu0 %v8651, 112
    %v8663 = vpop.permute.xlu0 %8662
    %v8664 = vsel %vm2556, %v8657, %v8659
    %v8665 = vsel %vm2556, %v8661, %v8663
    %v8670 = vmax.f32 %v8648, %v8664
    %v8671 = vmax.f32 %v8649, %v8659
    %v8672 = vmax.f32 %v8650, %v8665
    %v8673 = vmax.f32 %v8651, %v8663
    %v8674 = vld [vmem:[%s7] sm:$0x3f]
    %v8676 = vsel %vm2568, %v8674, 0
    %v8679 = vsel %vm2572, %v8672, 0
    %v8682 = vsel %vm2572, %v8673, 0
    %8684 = vmatprep.subr.mxu0 0.0
    %8685 = vmatpush1.msra.mxu0 0.0
    %8686 = vmatprep.subr.mxu0 0.0
    %8687 = vmatpush1.msra.mxu0 0.0
    %8688 = vmatprep.subr.mxu0 0.0
    %8689 = vmatpush1.msra.mxu0 0.0
    %8690 = vmatprep.subr.mxu0 0.0
    %8691 = vmatpush1.msra.mxu0 0.0
    %8692 = vmatprep.subr.mxu0 0.0
    %8693 = vmatpush1.msra.mxu0 0.0
    %8694 = vmatprep.subr.mxu0 0.0
    %8695 = vmatpush1.msra.mxu0 0.0
    %8696 = vmatprep.subr.mxu0 0.0
    %8697 = vmatpush1.msra.mxu0 0.0
    %8698 = vmatprep.subr.mxu0 0.0
    %8699 = vmatpush1.msra.mxu0 0.0
    %8700 = vmatprep.subr.mxu0 0.0
    %8701 = vmatpush1.msra.mxu0 0.0
    %8702 = vmatprep.subr.mxu0 0.0
    %8703 = vmatpush1.msra.mxu0 0.0
    %8704 = vmatprep.subr.mxu0 0.0
    %8705 = vmatpush1.msra.mxu0 0.0
    %8706 = vmatprep.subr.mxu0 0.0
    %8707 = vmatpush1.msra.mxu0 0.0
    %8708 = vmatprep.subr.mxu0 0.0
    %8709 = vmatpush1.msra.mxu0 0.0
    %8710 = vmatprep.subr.mxu0 0.0
    %8711 = vmatpush1.msra.mxu0 0.0
    %8712 = vmatprep.subr.mxu0 %v8682
    %8713 = vmatpush1.msra.mxu0 %v8679
    %8714 = vmatprep.subr.mxu0 %v8671
    %8715 = vmatpush1.msra.mxu0 %v8670
    %8716 = vmatprep.subr.mxu0 0.0
    %8717 = vmatpush2.msra.mxu0 0.0
    %8718 = vmatprep.subr.mxu0 0.0
    %8719 = vmatpush2.msra.mxu0 0.0
    %8720 = vmatprep.subr.mxu0 0.0
    %8721 = vmatpush2.msra.mxu0 0.0
    %8722 = vmatprep.subr.mxu0 0.0
    %8723 = vmatpush2.msra.mxu0 0.0
    %8724 = vmatprep.subr.mxu0 0.0
    %8725 = vmatpush2.msra.mxu0 0.0
    %8726 = vmatprep.subr.mxu0 0.0
    %8727 = vmatpush2.msra.mxu0 0.0
    %8728 = vmatprep.subr.mxu0 0.0
    %8729 = vmatpush2.msra.mxu0 0.0
    %8730 = vmatprep.subr.mxu0 0.0
    %8731 = vmatpush2.msra.mxu0 0.0
    %8732 = vmatprep.subr.mxu0 0.0
    %8733 = vmatpush2.msra.mxu0 0.0
    %8734 = vmatprep.subr.mxu0 0.0
    %8735 = vmatpush2.msra.mxu0 0.0
    %8736 = vmatprep.subr.mxu0 0.0
    %8737 = vmatpush2.msra.mxu0 0.0
    %8738 = vmatprep.subr.mxu0 0.0
    %8739 = vmatpush2.msra.mxu0 0.0
    %8740 = vmatprep.subr.mxu0 0.0
    %8741 = vmatpush2.msra.mxu0 0.0
    %8742 = vmatprep.subr.mxu0 0.0
    %8743 = vmatpush2.msra.mxu0 0.0
    %8744 = vmatprep.subr.mxu0 0.0
    %8745 = vmatpush2.msra.mxu0 0.0
    %8746 = vmatprep.subr.mxu0 0.0
    %8747 = vmatpush2.msra.mxu0 0.0
    %8748 = vmatprep.mubr.f32.mxu0 0.0
    %8749 = vmatmul.mubr.f32.gmra.mxu0 %v8676
    %v8750 = vpop.f32.mrf.mxu0
    %v8751 = vadd.f32 0.0, %v8750
    %v8752 = vpop.f32.mrf.mxu0
    %v8753 = vadd.f32 0.0, %v8752
    %8754 = vdwg.mxu0
    %v8755 = vld [vmem:[%s8] sm:$0xff]
    %v8756 = vld [vmem:[%s8 + $0x8] sm:$0xff]
    %v8757 = vld [vmem:[%s8 + $0x10] sm:$0xff]
    %v8758 = vld [vmem:[%s8 + $0x18] sm:$0xff]
    %v8759 = vld [vmem:[%s8 + $0x20] sm:$0xff]
    %v8760 = vld [vmem:[%s8 + $0x28] sm:$0xff]
    %v8761 = vld [vmem:[%s8 + $0x30] sm:$0xff]
    %v8762 = vld [vmem:[%s8 + $0x38] sm:$0xff]
    %v8763 = vld [vmem:[%s8 + $0x40] sm:$0xff]
    %v8764 = vld [vmem:[%s8 + $0x48] sm:$0xff]
    %v8765 = vld [vmem:[%s8 + $0x50] sm:$0xff]
    %v8766 = vld [vmem:[%s8 + $0x58] sm:$0xff]
    %v8767 = vld [vmem:[%s8 + $0x60] sm:$0xff]
    %v8768 = vld [vmem:[%s8 + $0x68] sm:$0xff]
    %v8769 = vld [vmem:[%s8 + $0x70] sm:$0xff]
    %v8770 = vld [vmem:[%s8 + $0x78] sm:$0xff]
    %v8771 = vld [vmem:[%s8 + $0x80] sm:$0xff]
    %v8772 = vld [vmem:[%s8 + $0x88] sm:$0xff]
    %v8773 = vld [vmem:[%s8 + $0x90] sm:$0xff]
    %v8774 = vld [vmem:[%s8 + $0x98] sm:$0xff]
    %v8775 = vld [vmem:[%s8 + $0xa0] sm:$0xff]
    %v8776 = vld [vmem:[%s8 + $0xa8] sm:$0xff]
    %v8777 = vld [vmem:[%s8 + $0xb0] sm:$0xff]
    %v8778 = vld [vmem:[%s8 + $0xb8] sm:$0xff]
    %v8780 = vsel %vm2674, %v8753, 0
    %8782 = vmatprep.subr.mxu0 0.0
    %8783 = vmatpush1.msra.mxu0 %v8770
    %8784 = vmatprep.subr.mxu0 0.0
    %8785 = vmatpush1.msra.mxu0 %v8769
    %8786 = vmatprep.subr.mxu0 0.0
    %8787 = vmatpush1.msra.mxu0 %v8768
    %8788 = vmatprep.subr.mxu0 0.0
    %8789 = vmatpush1.msra.mxu0 %v8767
    %8790 = vmatprep.subr.mxu0 0.0
    %8791 = vmatpush1.msra.mxu0 %v8766
    %8792 = vmatprep.subr.mxu0 0.0
    %8793 = vmatpush1.msra.mxu0 %v8765
    %8794 = vmatprep.subr.mxu0 0.0
    %8795 = vmatpush1.msra.mxu0 %v8764
    %8796 = vmatprep.subr.mxu0 0.0
    %8797 = vmatpush1.msra.mxu0 %v8763
    %8798 = vmatprep.subr.mxu0 0.0
    %8799 = vmatpush1.msra.mxu0 %v8762
    %8800 = vmatprep.subr.mxu0 0.0
    %8801 = vmatpush1.msra.mxu0 %v8761
    %8802 = vmatprep.subr.mxu0 0.0
    %8803 = vmatpush1.msra.mxu0 %v8760
    %8804 = vmatprep.subr.mxu0 0.0
    %8805 = vmatpush1.msra.mxu0 %v8759
    %8806 = vmatprep.subr.mxu0 0.0
    %8807 = vmatpush1.msra.mxu0 %v8758
    %8808 = vmatprep.subr.mxu0 0.0
    %8809 = vmatpush1.msra.mxu0 %v8757
    %8810 = vmatprep.subr.mxu0 0.0
    %8811 = vmatpush1.msra.mxu0 %v8756
    %8812 = vmatprep.subr.mxu0 0.0
    %8813 = vmatpush1.msra.mxu0 %v8755
    %8814 = vmatprep.subr.mxu0 0.0
    %8815 = vmatpush2.msra.mxu0 0.0
    %8816 = vmatprep.subr.mxu0 0.0
    %8817 = vmatpush2.msra.mxu0 0.0
    %8818 = vmatprep.subr.mxu0 0.0
    %8819 = vmatpush2.msra.mxu0 0.0
    %8820 = vmatprep.subr.mxu0 0.0
    %8821 = vmatpush2.msra.mxu0 0.0
    %8822 = vmatprep.subr.mxu0 0.0
    %8823 = vmatpush2.msra.mxu0 0.0
    %8824 = vmatprep.subr.mxu0 0.0
    %8825 = vmatpush2.msra.mxu0 0.0
    %8826 = vmatprep.subr.mxu0 0.0
    %8827 = vmatpush2.msra.mxu0 0.0
    %8828 = vmatprep.subr.mxu0 0.0
    %8829 = vmatpush2.msra.mxu0 0.0
    %8830 = vmatprep.subr.mxu0 0.0
    %8831 = vmatpush2.msra.mxu0 %v8778
    %8832 = vmatprep.subr.mxu0 0.0
    %8833 = vmatpush2.msra.mxu0 %v8777
    %8834 = vmatprep.subr.mxu0 0.0
    %8835 = vmatpush2.msra.mxu0 %v8776
    %8836 = vmatprep.subr.mxu0 0.0
    %8837 = vmatpush2.msra.mxu0 %v8775
    %8838 = vmatprep.subr.mxu0 0.0
    %8839 = vmatpush2.msra.mxu0 %v8774
    %8840 = vmatprep.subr.mxu0 0.0
    %8841 = vmatpush2.msra.mxu0 %v8773
    %8842 = vmatprep.subr.mxu0 0.0
    %8843 = vmatpush2.msra.mxu0 %v8772
    %8844 = vmatprep.subr.mxu0 0.0
    %8845 = vmatpush2.msra.mxu0 %v8771
    %8846 = vmatprep.mubr.f32.mxu0 %v8780
    %8847 = vmatmul.mubr.f32.gmra.mxu0 %v8751
    %v8848 = vpop.f32.mrf.mxu0
    %v8849 = vadd.f32 0.0, %v8848
    %v8850 = vpop.f32.mrf.mxu0
    %8851 = vdwg.mxu0
    %s8852 = scalar_lea.vmem [#allocation3], 56
    %8853 = vst.msk [vmem:[%s8852] sm:$0x3f] %vm2748, %v8849
    %v8854 = vld [vmem:[#allocation3] sm:$0x1]
    %v8855 = vld [vmem:[#allocation3 + $0x8] sm:$0x1]
    %v8856 = vld [vmem:[#allocation3 + $0x10] sm:$0x1]
    %v8857 = vld [vmem:[#allocation3 + $0x18] sm:$0x1]
    %v8858 = vld [vmem:[#allocation3 + $0x20] sm:$0x1]
    %v8859 = vld [vmem:[#allocation3 + $0x28] sm:$0x1]
    %v8860 = vld [vmem:[#allocation3 + $0x30] sm:$0x1]
    %v8861 = vld [vmem:[#allocation3 + $0x38] sm:$0x1]
    %v8862 = vld [vmem:[#allocation9] sm:$0xff]
    %v8863 = vld [vmem:[#allocation9 + $0x8] sm:$0xff]
    %v8864 = vld [vmem:[#allocation9 + $0x10] sm:$0xff]
    %v8865 = vld [vmem:[#allocation9 + $0x18] sm:$0xff]
    %v8866 = vld [vmem:[#allocation9 + $0x20] sm:$0xff]
    %v8867 = vld [vmem:[#allocation9 + $0x28] sm:$0xff]
    %v8868 = vld [vmem:[#allocation9 + $0x30] sm:$0xff]
    %v8869 = vld [vmem:[#allocation9 + $0x38] sm:$0xff]
    %v8870 = vld [vmem:[#allocation9 + $0x40] sm:$0xff]
    %v8871 = vld [vmem:[#allocation9 + $0x48] sm:$0xff]
    %v8872 = vld [vmem:[#allocation9 + $0x50] sm:$0xff]
    %v8873 = vld [vmem:[#allocation9 + $0x58] sm:$0xff]
    %v8874 = vld [vmem:[#allocation3 + $0x1] sm:$0x1]
    %v8875 = vld [vmem:[#allocation3 + $0x9] sm:$0x1]
    %v8876 = vld [vmem:[#allocation3 + $0x11] sm:$0x1]
    %v8877 = vld [vmem:[#allocation3 + $0x19] sm:$0x1]
    %v8878 = vld [vmem:[#allocation3 + $0x21] sm:$0x1]
    %v8879 = vld [vmem:[#allocation3 + $0x29] sm:$0x1]
    %v8880 = vld [vmem:[#allocation3 + $0x31] sm:$0x1]
    %v8881 = vld [vmem:[#allocation3 + $0x39] sm:$0x1]
    %s8882 = scalar_lea.vmem [#allocation9], 96
    %v8883 = vld [vmem:[%s8882] sm:$0xff]
    %v8884 = vld [vmem:[%s8882 + $0x8] sm:$0xff]
    %v8885 = vld [vmem:[%s8882 + $0x10] sm:$0xff]
    %v8886 = vld [vmem:[%s8882 + $0x18] sm:$0xff]
    %v8887 = vld [vmem:[%s8882 + $0x20] sm:$0xff]
    %v8888 = vld [vmem:[%s8882 + $0x28] sm:$0xff]
    %v8889 = vld [vmem:[%s8882 + $0x30] sm:$0xff]
    %v8890 = vld [vmem:[%s8882 + $0x38] sm:$0xff]
    %v8891 = vld [vmem:[%s8882 + $0x40] sm:$0xff]
    %v8892 = vld [vmem:[%s8882 + $0x48] sm:$0xff]
    %v8893 = vld [vmem:[%s8882 + $0x50] sm:$0xff]
    %v8894 = vld [vmem:[%s8882 + $0x58] sm:$0xff]
    %v8903 = vrot.slane %v8875, 7
    %vm8904 = vcmask 1041409
    %v8905 = vsel %vm8904, %v8903, %v8874
    %v8906 = vrot.slane %v8876, 6
    %vm8907 = vcmask 1042434
    %v8908 = vsel %vm8907, %v8906, %v8905
    %v8909 = vrot.slane %v8877, 5
    %vm8910 = vcmask 1043459
    %v8911 = vsel %vm8910, %v8909, %v8908
    %v8912 = vrot.slane %v8878, 4
    %vm8913 = vcmask 1044484
    %v8914 = vsel %vm8913, %v8912, %v8911
    %v8915 = vrot.slane %v8879, 3
    %vm8916 = vcmask 1045509
    %v8917 = vsel %vm8916, %v8915, %v8914
    %v8918 = vrot.slane %v8880, 2
    %vm8919 = vcmask 1046534
    %v8920 = vsel %vm8919, %v8918, %v8917
    %v8921 = vrot.slane %v8881, 1
    %vm8922 = vcmask 1047559
    %v8923 = vsel %vm8922, %v8921, %v8920
    %vm8924 = vcmask 785408
    %v8925 = vsel %vm8924, %v8923, 0
    %8927 = vmatprep.subr.mxu0 0.0
    %8928 = vmatpush1.msra.mxu0 0.0
    %8929 = vmatprep.subr.mxu0 0.0
    %8930 = vmatpush1.msra.mxu0 0.0
    %8931 = vmatprep.subr.mxu0 0.0
    %8932 = vmatpush1.msra.mxu0 0.0
    %8933 = vmatprep.subr.mxu0 0.0
    %8934 = vmatpush1.msra.mxu0 0.0
    %8935 = vmatprep.subr.mxu0 0.0
    %8936 = vmatpush1.msra.mxu0 %v8894
    %8937 = vmatprep.subr.mxu0 0.0
    %8938 = vmatpush1.msra.mxu0 %v8893
    %8939 = vmatprep.subr.mxu0 0.0
    %8940 = vmatpush1.msra.mxu0 %v8892
    %8941 = vmatprep.subr.mxu0 0.0
    %8942 = vmatpush1.msra.mxu0 %v8891
    %8943 = vmatprep.subr.mxu0 0.0
    %8944 = vmatpush1.msra.mxu0 %v8890
    %8945 = vmatprep.subr.mxu0 0.0
    %8946 = vmatpush1.msra.mxu0 %v8889
    %8947 = vmatprep.subr.mxu0 0.0
    %8948 = vmatpush1.msra.mxu0 %v8888
    %8949 = vmatprep.subr.mxu0 0.0
    %8950 = vmatpush1.msra.mxu0 %v8887
    %8951 = vmatprep.subr.mxu0 0.0
    %8952 = vmatpush1.msra.mxu0 %v8886
    %8953 = vmatprep.subr.mxu0 0.0
    %8954 = vmatpush1.msra.mxu0 %v8885
    %8955 = vmatprep.subr.mxu0 0.0
    %8956 = vmatpush1.msra.mxu0 %v8884
    %8957 = vmatprep.subr.mxu0 0.0
    %8958 = vmatpush1.msra.mxu0 %v8883
    %8959 = vmatprep.subr.mxu0 0.0
    %8960 = vmatpush2.msra.mxu0 0.0
    %8961 = vmatprep.subr.mxu0 0.0
    %8962 = vmatpush2.msra.mxu0 0.0
    %8963 = vmatprep.subr.mxu0 0.0
    %8964 = vmatpush2.msra.mxu0 0.0
    %8965 = vmatprep.subr.mxu0 0.0
    %8966 = vmatpush2.msra.mxu0 0.0
    %8967 = vmatprep.subr.mxu0 0.0
    %8968 = vmatpush2.msra.mxu0 0.0
    %8969 = vmatprep.subr.mxu0 0.0
    %8970 = vmatpush2.msra.mxu0 0.0
    %8971 = vmatprep.subr.mxu0 0.0
    %8972 = vmatpush2.msra.mxu0 0.0
    %8973 = vmatprep.subr.mxu0 0.0
    %8974 = vmatpush2.msra.mxu0 0.0
    %8975 = vmatprep.subr.mxu0 0.0
    %8976 = vmatpush2.msra.mxu0 0.0
    %8977 = vmatprep.subr.mxu0 0.0
    %8978 = vmatpush2.msra.mxu0 0.0
    %8979 = vmatprep.subr.mxu0 0.0
    %8980 = vmatpush2.msra.mxu0 0.0
    %8981 = vmatprep.subr.mxu0 0.0
    %8982 = vmatpush2.msra.mxu0 0.0
    %8983 = vmatprep.subr.mxu0 0.0
    %8984 = vmatpush2.msra.mxu0 0.0
    %8985 = vmatprep.subr.mxu0 0.0
    %8986 = vmatpush2.msra.mxu0 0.0
    %8987 = vmatprep.subr.mxu0 0.0
    %8988 = vmatpush2.msra.mxu0 0.0
    %8989 = vmatprep.subr.mxu0 0.0
    %8990 = vmatpush2.msra.mxu0 0.0
    %8991 = vmatprep.mubr.f32.mxu0 0.0
    %8992 = vmatmul.mubr.f32.gmra.mxu0 %v8925
    %v8993 = vpop.f32.mrf.mxu0
    %v8994 = vadd.f32 0.0, %v8993
    %v8995 = vpop.f32.mrf.mxu0
    %8996 = vdwg.mxu0
    %v9005 = vrot.slane %v8855, 7
    %v9006 = vsel %vm8904, %v9005, %v8854
    %v9007 = vrot.slane %v8856, 6
    %v9008 = vsel %vm8907, %v9007, %v9006
    %v9009 = vrot.slane %v8857, 5
    %v9010 = vsel %vm8910, %v9009, %v9008
    %v9011 = vrot.slane %v8858, 4
    %v9012 = vsel %vm8913, %v9011, %v9010
    %v9013 = vrot.slane %v8859, 3
    %v9014 = vsel %vm8916, %v9013, %v9012
    %v9015 = vrot.slane %v8860, 2
    %v9016 = vsel %vm8919, %v9015, %v9014
    %v9017 = vrot.slane %v8861, 1
    %v9018 = vsel %vm8922, %v9017, %v9016
    %v9019 = vsel %vm8924, %v9018, 0
    %9021 = vmatprep.subr.mxu0 0.0
    %9022 = vmatpush1.msra.mxu0 0.0
    %9023 = vmatprep.subr.mxu0 0.0
    %9024 = vmatpush1.msra.mxu0 0.0
    %9025 = vmatprep.subr.mxu0 0.0
    %9026 = vmatpush1.msra.mxu0 0.0
    %9027 = vmatprep.subr.mxu0 0.0
    %9028 = vmatpush1.msra.mxu0 0.0
    %9029 = vmatprep.subr.mxu0 0.0
    %9030 = vmatpush1.msra.mxu0 %v8873
    %9031 = vmatprep.subr.mxu0 0.0
    %9032 = vmatpush1.msra.mxu0 %v8872
    %9033 = vmatprep.subr.mxu0 0.0
    %9034 = vmatpush1.msra.mxu0 %v8871
    %9035 = vmatprep.subr.mxu0 0.0
    %9036 = vmatpush1.msra.mxu0 %v8870
    %9037 = vmatprep.subr.mxu0 0.0
    %9038 = vmatpush1.msra.mxu0 %v8869
    %9039 = vmatprep.subr.mxu0 0.0
    %9040 = vmatpush1.msra.mxu0 %v8868
    %9041 = vmatprep.subr.mxu0 0.0
    %9042 = vmatpush1.msra.mxu0 %v8867
    %9043 = vmatprep.subr.mxu0 0.0
    %9044 = vmatpush1.msra.mxu0 %v8866
    %9045 = vmatprep.subr.mxu0 0.0
    %9046 = vmatpush1.msra.mxu0 %v8865
    %9047 = vmatprep.subr.mxu0 0.0
    %9048 = vmatpush1.msra.mxu0 %v8864
    %9049 = vmatprep.subr.mxu0 0.0
    %9050 = vmatpush1.msra.mxu0 %v8863
    %9051 = vmatprep.subr.mxu0 0.0
    %9052 = vmatpush1.msra.mxu0 %v8862
    %9053 = vmatprep.subr.mxu0 0.0
    %9054 = vmatpush2.msra.mxu0 0.0
    %9055 = vmatprep.subr.mxu0 0.0
    %9056 = vmatpush2.msra.mxu0 0.0
    %9057 = vmatprep.subr.mxu0 0.0
    %9058 = vmatpush2.msra.mxu0 0.0
    %9059 = vmatprep.subr.mxu0 0.0
    %9060 = vmatpush2.msra.mxu0 0.0
    %9061 = vmatprep.subr.mxu0 0.0
    %9062 = vmatpush2.msra.mxu0 0.0
    %9063 = vmatprep.subr.mxu0 0.0
    %9064 = vmatpush2.msra.mxu0 0.0
    %9065 = vmatprep.subr.mxu0 0.0
    %9066 = vmatpush2.msra.mxu0 0.0
    %9067 = vmatprep.subr.mxu0 0.0
    %9068 = vmatpush2.msra.mxu0 0.0
    %9069 = vmatprep.subr.mxu0 0.0
    %9070 = vmatpush2.msra.mxu0 0.0
    %9071 = vmatprep.subr.mxu0 0.0
    %9072 = vmatpush2.msra.mxu0 0.0
    %9073 = vmatprep.subr.mxu0 0.0
    %9074 = vmatpush2.msra.mxu0 0.0
    %9075 = vmatprep.subr.mxu0 0.0
    %9076 = vmatpush2.msra.mxu0 0.0
    %9077 = vmatprep.subr.mxu0 0.0
    %9078 = vmatpush2.msra.mxu0 0.0
    %9079 = vmatprep.subr.mxu0 0.0
    %9080 = vmatpush2.msra.mxu0 0.0
    %9081 = vmatprep.subr.mxu0 0.0
    %9082 = vmatpush2.msra.mxu0 0.0
    %9083 = vmatprep.subr.mxu0 0.0
    %9084 = vmatpush2.msra.mxu0 0.0
    %9085 = vmatprep.mubr.f32.mxu0 0.0
    %9086 = vmatmul.mubr.f32.gmra.mxu0 %v9019
    %v9087 = vpop.f32.mrf.mxu0
    %v9088 = vadd.f32 %v8994, %v9087
    %v9089 = vpop.f32.mrf.mxu0
    %9090 = vdwg.mxu0
    %v9091 = vld [vmem:[#allocation3 + $0x2] sm:$0x1]
    %v9092 = vld [vmem:[#allocation3 + $0xa] sm:$0x1]
    %v9093 = vld [vmem:[#allocation3 + $0x12] sm:$0x1]
    %v9094 = vld [vmem:[#allocation3 + $0x1a] sm:$0x1]
    %v9095 = vld [vmem:[#allocation3 + $0x22] sm:$0x1]
    %v9096 = vld [vmem:[#allocation3 + $0x2a] sm:$0x1]
    %v9097 = vld [vmem:[#allocation3 + $0x32] sm:$0x1]
    %v9098 = vld [vmem:[#allocation3 + $0x3a] sm:$0x1]
    %s9099 = scalar_lea.vmem [#allocation9], 192
    %v9100 = vld [vmem:[%s9099] sm:$0xff]
    %v9101 = vld [vmem:[%s9099 + $0x8] sm:$0xff]
    %v9102 = vld [vmem:[%s9099 + $0x10] sm:$0xff]
    %v9103 = vld [vmem:[%s9099 + $0x18] sm:$0xff]
    %v9104 = vld [vmem:[%s9099 + $0x20] sm:$0xff]
    %v9105 = vld [vmem:[%s9099 + $0x28] sm:$0xff]
    %v9106 = vld [vmem:[%s9099 + $0x30] sm:$0xff]
    %v9107 = vld [vmem:[%s9099 + $0x38] sm:$0xff]
    %v9108 = vld [vmem:[%s9099 + $0x40] sm:$0xff]
    %v9109 = vld [vmem:[%s9099 + $0x48] sm:$0xff]
    %v9110 = vld [vmem:[%s9099 + $0x50] sm:$0xff]
    %v9111 = vld [vmem:[%s9099 + $0x58] sm:$0xff]
    %v9120 = vrot.slane %v9092, 7
    %v9121 = vsel %vm8904, %v9120, %v9091
    %v9122 = vrot.slane %v9093, 6
    %v9123 = vsel %vm8907, %v9122, %v9121
    %v9124 = vrot.slane %v9094, 5
    %v9125 = vsel %vm8910, %v9124, %v9123
    %v9126 = vrot.slane %v9095, 4
    %v9127 = vsel %vm8913, %v9126, %v9125
    %v9128 = vrot.slane %v9096, 3
    %v9129 = vsel %vm8916, %v9128, %v9127
    %v9130 = vrot.slane %v9097, 2
    %v9131 = vsel %vm8919, %v9130, %v9129
    %v9132 = vrot.slane %v9098, 1
    %v9133 = vsel %vm8922, %v9132, %v9131
    %v9134 = vsel %vm8924, %v9133, 0
    %9136 = vmatprep.subr.mxu0 0.0
    %9137 = vmatpush1.msra.mxu0 0.0
    %9138 = vmatprep.subr.mxu0 0.0
    %9139 = vmatpush1.msra.mxu0 0.0
    %9140 = vmatprep.subr.mxu0 0.0
    %9141 = vmatpush1.msra.mxu0 0.0
    %9142 = vmatprep.subr.mxu0 0.0
    %9143 = vmatpush1.msra.mxu0 0.0
    %9144 = vmatprep.subr.mxu0 0.0
    %9145 = vmatpush1.msra.mxu0 %v9111
    %9146 = vmatprep.subr.mxu0 0.0
    %9147 = vmatpush1.msra.mxu0 %v9110
    %9148 = vmatprep.subr.mxu0 0.0
    %9149 = vmatpush1.msra.mxu0 %v9109
    %9150 = vmatprep.subr.mxu0 0.0
    %9151 = vmatpush1.msra.mxu0 %v9108
    %9152 = vmatprep.subr.mxu0 0.0
    %9153 = vmatpush1.msra.mxu0 %v9107
    %9154 = vmatprep.subr.mxu0 0.0
    %9155 = vmatpush1.msra.mxu0 %v9106
    %9156 = vmatprep.subr.mxu0 0.0
    %9157 = vmatpush1.msra.mxu0 %v9105
    %9158 = vmatprep.subr.mxu0 0.0
    %9159 = vmatpush1.msra.mxu0 %v9104
    %9160 = vmatprep.subr.mxu0 0.0
    %9161 = vmatpush1.msra.mxu0 %v9103
    %9162 = vmatprep.subr.mxu0 0.0
    %9163 = vmatpush1.msra.mxu0 %v9102
    %9164 = vmatprep.subr.mxu0 0.0
    %9165 = vmatpush1.msra.mxu0 %v9101
    %9166 = vmatprep.subr.mxu0 0.0
    %9167 = vmatpush1.msra.mxu0 %v9100
    %9168 = vmatprep.subr.mxu0 0.0
    %9169 = vmatpush2.msra.mxu0 0.0
    %9170 = vmatprep.subr.mxu0 0.0
    %9171 = vmatpush2.msra.mxu0 0.0
    %9172 = vmatprep.subr.mxu0 0.0
    %9173 = vmatpush2.msra.mxu0 0.0
    %9174 = vmatprep.subr.mxu0 0.0
    %9175 = vmatpush2.msra.mxu0 0.0
    %9176 = vmatprep.subr.mxu0 0.0
    %9177 = vmatpush2.msra.mxu0 0.0
    %9178 = vmatprep.subr.mxu0 0.0
    %9179 = vmatpush2.msra.mxu0 0.0
    %9180 = vmatprep.subr.mxu0 0.0
    %9181 = vmatpush2.msra.mxu0 0.0
    %9182 = vmatprep.subr.mxu0 0.0
    %9183 = vmatpush2.msra.mxu0 0.0
    %9184 = vmatprep.subr.mxu0 0.0
    %9185 = vmatpush2.msra.mxu0 0.0
    %9186 = vmatprep.subr.mxu0 0.0
    %9187 = vmatpush2.msra.mxu0 0.0
    %9188 = vmatprep.subr.mxu0 0.0
    %9189 = vmatpush2.msra.mxu0 0.0
    %9190 = vmatprep.subr.mxu0 0.0
    %9191 = vmatpush2.msra.mxu0 0.0
    %9192 = vmatprep.subr.mxu0 0.0
    %9193 = vmatpush2.msra.mxu0 0.0
    %9194 = vmatprep.subr.mxu0 0.0
    %9195 = vmatpush2.msra.mxu0 0.0
    %9196 = vmatprep.subr.mxu0 0.0
    %9197 = vmatpush2.msra.mxu0 0.0
    %9198 = vmatprep.subr.mxu0 0.0
    %9199 = vmatpush2.msra.mxu0 0.0
    %9200 = vmatprep.mubr.f32.mxu0 0.0
    %9201 = vmatmul.mubr.f32.gmra.mxu0 %v9134
    %v9202 = vpop.f32.mrf.mxu0
    %v9203 = vadd.f32 0.0, %v9202
    %v9204 = vpop.f32.mrf.mxu0
    %9205 = vdwg.mxu0
    %v9206 = vadd.f32 %v9088, %v9203
    %v9207 = vld [vmem:[#allocation3 + $0x3] sm:$0x1]
    %v9208 = vld [vmem:[#allocation3 + $0xb] sm:$0x1]
    %v9209 = vld [vmem:[#allocation3 + $0x13] sm:$0x1]
    %v9210 = vld [vmem:[#allocation3 + $0x1b] sm:$0x1]
    %v9211 = vld [vmem:[#allocation3 + $0x23] sm:$0x1]
    %v9212 = vld [vmem:[#allocation3 + $0x2b] sm:$0x1]
    %v9213 = vld [vmem:[#allocation3 + $0x33] sm:$0x1]
    %v9214 = vld [vmem:[#allocation3 + $0x3b] sm:$0x1]
    %s9215 = scalar_lea.vmem [#allocation9], 288
    %v9216 = vld [vmem:[%s9215] sm:$0xff]
    %v9217 = vld [vmem:[%s9215 + $0x8] sm:$0xff]
    %v9218 = vld [vmem:[%s9215 + $0x10] sm:$0xff]
    %v9219 = vld [vmem:[%s9215 + $0x18] sm:$0xff]
    %v9220 = vld [vmem:[%s9215 + $0x20] sm:$0xff]
    %v9221 = vld [vmem:[%s9215 + $0x28] sm:$0xff]
    %v9222 = vld [vmem:[%s9215 + $0x30] sm:$0xff]
    %v9223 = vld [vmem:[%s9215 + $0x38] sm:$0xff]
    %v9224 = vld [vmem:[%s9215 + $0x40] sm:$0xff]
    %v9225 = vld [vmem:[%s9215 + $0x48] sm:$0xff]
    %v9226 = vld [vmem:[%s9215 + $0x50] sm:$0xff]
    %v9227 = vld [vmem:[%s9215 + $0x58] sm:$0xff]
    %v9236 = vrot.slane %v9208, 7
    %v9237 = vsel %vm8904, %v9236, %v9207
    %v9238 = vrot.slane %v9209, 6
    %v9239 = vsel %vm8907, %v9238, %v9237
    %v9240 = vrot.slane %v9210, 5
    %v9241 = vsel %vm8910, %v9240, %v9239
    %v9242 = vrot.slane %v9211, 4
    %v9243 = vsel %vm8913, %v9242, %v9241
    %v9244 = vrot.slane %v9212, 3
    %v9245 = vsel %vm8916, %v9244, %v9243
    %v9246 = vrot.slane %v9213, 2
    %v9247 = vsel %vm8919, %v9246, %v9245
    %v9248 = vrot.slane %v9214, 1
    %v9249 = vsel %vm8922, %v9248, %v9247
    %v9250 = vsel %vm8924, %v9249, 0
    %9252 = vmatprep.subr.mxu0 0.0
    %9253 = vmatpush1.msra.mxu0 0.0
    %9254 = vmatprep.subr.mxu0 0.0
    %9255 = vmatpush1.msra.mxu0 0.0
    %9256 = vmatprep.subr.mxu0 0.0
    %9257 = vmatpush1.msra.mxu0 0.0
    %9258 = vmatprep.subr.mxu0 0.0
    %9259 = vmatpush1.msra.mxu0 0.0
    %9260 = vmatprep.subr.mxu0 0.0
    %9261 = vmatpush1.msra.mxu0 %v9227
    %9262 = vmatprep.subr.mxu0 0.0
    %9263 = vmatpush1.msra.mxu0 %v9226
    %9264 = vmatprep.subr.mxu0 0.0
    %9265 = vmatpush1.msra.mxu0 %v9225
    %9266 = vmatprep.subr.mxu0 0.0
    %9267 = vmatpush1.msra.mxu0 %v9224
    %9268 = vmatprep.subr.mxu0 0.0
    %9269 = vmatpush1.msra.mxu0 %v9223
    %9270 = vmatprep.subr.mxu0 0.0
    %9271 = vmatpush1.msra.mxu0 %v9222
    %9272 = vmatprep.subr.mxu0 0.0
    %9273 = vmatpush1.msra.mxu0 %v9221
    %9274 = vmatprep.subr.mxu0 0.0
    %9275 = vmatpush1.msra.mxu0 %v9220
    %9276 = vmatprep.subr.mxu0 0.0
    %9277 = vmatpush1.msra.mxu0 %v9219
    %9278 = vmatprep.subr.mxu0 0.0
    %9279 = vmatpush1.msra.mxu0 %v9218
    %9280 = vmatprep.subr.mxu0 0.0
    %9281 = vmatpush1.msra.mxu0 %v9217
    %9282 = vmatprep.subr.mxu0 0.0
    %9283 = vmatpush1.msra.mxu0 %v9216
    %9284 = vmatprep.subr.mxu0 0.0
    %9285 = vmatpush2.msra.mxu0 0.0
    %9286 = vmatprep.subr.mxu0 0.0
    %9287 = vmatpush2.msra.mxu0 0.0
    %9288 = vmatprep.subr.mxu0 0.0
    %9289 = vmatpush2.msra.mxu0 0.0
    %9290 = vmatprep.subr.mxu0 0.0
    %9291 = vmatpush2.msra.mxu0 0.0
    %9292 = vmatprep.subr.mxu0 0.0
    %9293 = vmatpush2.msra.mxu0 0.0
    %9294 = vmatprep.subr.mxu0 0.0
    %9295 = vmatpush2.msra.mxu0 0.0
    %9296 = vmatprep.subr.mxu0 0.0
    %9297 = vmatpush2.msra.mxu0 0.0
    %9298 = vmatprep.subr.mxu0 0.0
    %9299 = vmatpush2.msra.mxu0 0.0
    %9300 = vmatprep.subr.mxu0 0.0
    %9301 = vmatpush2.msra.mxu0 0.0
    %9302 = vmatprep.subr.mxu0 0.0
    %9303 = vmatpush2.msra.mxu0 0.0
    %9304 = vmatprep.subr.mxu0 0.0
    %9305 = vmatpush2.msra.mxu0 0.0
    %9306 = vmatprep.subr.mxu0 0.0
    %9307 = vmatpush2.msra.mxu0 0.0
    %9308 = vmatprep.subr.mxu0 0.0
    %9309 = vmatpush2.msra.mxu0 0.0
    %9310 = vmatprep.subr.mxu0 0.0
    %9311 = vmatpush2.msra.mxu0 0.0
    %9312 = vmatprep.subr.mxu0 0.0
    %9313 = vmatpush2.msra.mxu0 0.0
    %9314 = vmatprep.subr.mxu0 0.0
    %9315 = vmatpush2.msra.mxu0 0.0
    %9316 = vmatprep.mubr.f32.mxu0 0.0
    %9317 = vmatmul.mubr.f32.gmra.mxu0 %v9250
    %v9318 = vpop.f32.mrf.mxu0
    %v9319 = vadd.f32 0.0, %v9318
    %v9320 = vpop.f32.mrf.mxu0
    %9321 = vdwg.mxu0
    %v9322 = vadd.f32 %v9206, %v9319
    %v9323 = vld [vmem:[#allocation3 + $0x4] sm:$0x1]
    %v9324 = vld [vmem:[#allocation3 + $0xc] sm:$0x1]
    %v9325 = vld [vmem:[#allocation3 + $0x14] sm:$0x1]
    %v9326 = vld [vmem:[#allocation3 + $0x1c] sm:$0x1]
    %v9327 = vld [vmem:[#allocation3 + $0x24] sm:$0x1]
    %v9328 = vld [vmem:[#allocation3 + $0x2c] sm:$0x1]
    %v9329 = vld [vmem:[#allocation3 + $0x34] sm:$0x1]
    %v9330 = vld [vmem:[#allocation3 + $0x3c] sm:$0x1]
    %s9331 = scalar_lea.vmem [#allocation9], 384
    %v9332 = vld [vmem:[%s9331] sm:$0xff]
    %v9333 = vld [vmem:[%s9331 + $0x8] sm:$0xff]
    %v9334 = vld [vmem:[%s9331 + $0x10] sm:$0xff]
    %v9335 = vld [vmem:[%s9331 + $0x18] sm:$0xff]
    %v9336 = vld [vmem:[%s9331 + $0x20] sm:$0xff]
    %v9337 = vld [vmem:[%s9331 + $0x28] sm:$0xff]
    %v9338 = vld [vmem:[%s9331 + $0x30] sm:$0xff]
    %v9339 = vld [vmem:[%s9331 + $0x38] sm:$0xff]
    %v9340 = vld [vmem:[%s9331 + $0x40] sm:$0xff]
    %v9341 = vld [vmem:[%s9331 + $0x48] sm:$0xff]
    %v9342 = vld [vmem:[%s9331 + $0x50] sm:$0xff]
    %v9343 = vld [vmem:[%s9331 + $0x58] sm:$0xff]
    %v9352 = vrot.slane %v9324, 7
    %v9353 = vsel %vm8904, %v9352, %v9323
    %v9354 = vrot.slane %v9325, 6
    %v9355 = vsel %vm8907, %v9354, %v9353
    %v9356 = vrot.slane %v9326, 5
    %v9357 = vsel %vm8910, %v9356, %v9355
    %v9358 = vrot.slane %v9327, 4
    %v9359 = vsel %vm8913, %v9358, %v9357
    %v9360 = vrot.slane %v9328, 3
    %v9361 = vsel %vm8916, %v9360, %v9359
    %v9362 = vrot.slane %v9329, 2
    %v9363 = vsel %vm8919, %v9362, %v9361
    %v9364 = vrot.slane %v9330, 1
    %v9365 = vsel %vm8922, %v9364, %v9363
    %v9366 = vsel %vm8924, %v9365, 0
    %9368 = vmatprep.subr.mxu0 0.0
    %9369 = vmatpush1.msra.mxu0 0.0
    %9370 = vmatprep.subr.mxu0 0.0
    %9371 = vmatpush1.msra.mxu0 0.0
    %9372 = vmatprep.subr.mxu0 0.0
    %9373 = vmatpush1.msra.mxu0 0.0
    %9374 = vmatprep.subr.mxu0 0.0
    %9375 = vmatpush1.msra.mxu0 0.0
    %9376 = vmatprep.subr.mxu0 0.0
    %9377 = vmatpush1.msra.mxu0 %v9343
    %9378 = vmatprep.subr.mxu0 0.0
    %9379 = vmatpush1.msra.mxu0 %v9342
    %9380 = vmatprep.subr.mxu0 0.0
    %9381 = vmatpush1.msra.mxu0 %v9341
    %9382 = vmatprep.subr.mxu0 0.0
    %9383 = vmatpush1.msra.mxu0 %v9340
    %9384 = vmatprep.subr.mxu0 0.0
    %9385 = vmatpush1.msra.mxu0 %v9339
    %9386 = vmatprep.subr.mxu0 0.0
    %9387 = vmatpush1.msra.mxu0 %v9338
    %9388 = vmatprep.subr.mxu0 0.0
    %9389 = vmatpush1.msra.mxu0 %v9337
    %9390 = vmatprep.subr.mxu0 0.0
    %9391 = vmatpush1.msra.mxu0 %v9336
    %9392 = vmatprep.subr.mxu0 0.0
    %9393 = vmatpush1.msra.mxu0 %v9335
    %9394 = vmatprep.subr.mxu0 0.0
    %9395 = vmatpush1.msra.mxu0 %v9334
    %9396 = vmatprep.subr.mxu0 0.0
    %9397 = vmatpush1.msra.mxu0 %v9333
    %9398 = vmatprep.subr.mxu0 0.0
    %9399 = vmatpush1.msra.mxu0 %v9332
    %9400 = vmatprep.subr.mxu0 0.0
    %9401 = vmatpush2.msra.mxu0 0.0
    %9402 = vmatprep.subr.mxu0 0.0
    %9403 = vmatpush2.msra.mxu0 0.0
    %9404 = vmatprep.subr.mxu0 0.0
    %9405 = vmatpush2.msra.mxu0 0.0
    %9406 = vmatprep.subr.mxu0 0.0
    %9407 = vmatpush2.msra.mxu0 0.0
    %9408 = vmatprep.subr.mxu0 0.0
    %9409 = vmatpush2.msra.mxu0 0.0
    %9410 = vmatprep.subr.mxu0 0.0
    %9411 = vmatpush2.msra.mxu0 0.0
    %9412 = vmatprep.subr.mxu0 0.0
    %9413 = vmatpush2.msra.mxu0 0.0
    %9414 = vmatprep.subr.mxu0 0.0
    %9415 = vmatpush2.msra.mxu0 0.0
    %9416 = vmatprep.subr.mxu0 0.0
    %9417 = vmatpush2.msra.mxu0 0.0
    %9418 = vmatprep.subr.mxu0 0.0
    %9419 = vmatpush2.msra.mxu0 0.0
    %9420 = vmatprep.subr.mxu0 0.0
    %9421 = vmatpush2.msra.mxu0 0.0
    %9422 = vmatprep.subr.mxu0 0.0
    %9423 = vmatpush2.msra.mxu0 0.0
    %9424 = vmatprep.subr.mxu0 0.0
    %9425 = vmatpush2.msra.mxu0 0.0
    %9426 = vmatprep.subr.mxu0 0.0
    %9427 = vmatpush2.msra.mxu0 0.0
    %9428 = vmatprep.subr.mxu0 0.0
    %9429 = vmatpush2.msra.mxu0 0.0
    %9430 = vmatprep.subr.mxu0 0.0
    %9431 = vmatpush2.msra.mxu0 0.0
    %9432 = vmatprep.mubr.f32.mxu0 0.0
    %9433 = vmatmul.mubr.f32.gmra.mxu0 %v9366
    %v9434 = vpop.f32.mrf.mxu0
    %v9435 = vadd.f32 0.0, %v9434
    %v9436 = vpop.f32.mrf.mxu0
    %9437 = vdwg.mxu0
    %v9438 = vadd.f32 %v9322, %v9435
    %v9439 = vld [vmem:[#allocation3 + $0x5] sm:$0x1]
    %v9440 = vld [vmem:[#allocation3 + $0xd] sm:$0x1]
    %v9441 = vld [vmem:[#allocation3 + $0x15] sm:$0x1]
    %v9442 = vld [vmem:[#allocation3 + $0x1d] sm:$0x1]
    %v9443 = vld [vmem:[#allocation3 + $0x25] sm:$0x1]
    %v9444 = vld [vmem:[#allocation3 + $0x2d] sm:$0x1]
    %v9445 = vld [vmem:[#allocation3 + $0x35] sm:$0x1]
    %v9446 = vld [vmem:[#allocation3 + $0x3d] sm:$0x1]
    %s9447 = scalar_lea.vmem [#allocation9], 480
    %v9448 = vld [vmem:[%s9447] sm:$0xff]
    %v9449 = vld [vmem:[%s9447 + $0x8] sm:$0xff]
    %v9450 = vld [vmem:[%s9447 + $0x10] sm:$0xff]
    %v9451 = vld [vmem:[%s9447 + $0x18] sm:$0xff]
    %v9452 = vld [vmem:[%s9447 + $0x20] sm:$0xff]
    %v9453 = vld [vmem:[%s9447 + $0x28] sm:$0xff]
    %v9454 = vld [vmem:[%s9447 + $0x30] sm:$0xff]
    %v9455 = vld [vmem:[%s9447 + $0x38] sm:$0xff]
    %v9456 = vld [vmem:[%s9447 + $0x40] sm:$0xff]
    %v9457 = vld [vmem:[%s9447 + $0x48] sm:$0xff]
    %v9458 = vld [vmem:[%s9447 + $0x50] sm:$0xff]
    %v9459 = vld [vmem:[%s9447 + $0x58] sm:$0xff]
    %v9468 = vrot.slane %v9440, 7
    %v9469 = vsel %vm8904, %v9468, %v9439
    %v9470 = vrot.slane %v9441, 6
    %v9471 = vsel %vm8907, %v9470, %v9469
    %v9472 = vrot.slane %v9442, 5
    %v9473 = vsel %vm8910, %v9472, %v9471
    %v9474 = vrot.slane %v9443, 4
    %v9475 = vsel %vm8913, %v9474, %v9473
    %v9476 = vrot.slane %v9444, 3
    %v9477 = vsel %vm8916, %v9476, %v9475
    %v9478 = vrot.slane %v9445, 2
    %v9479 = vsel %vm8919, %v9478, %v9477
    %v9480 = vrot.slane %v9446, 1
    %v9481 = vsel %vm8922, %v9480, %v9479
    %v9482 = vsel %vm8924, %v9481, 0
    %9484 = vmatprep.subr.mxu0 0.0
    %9485 = vmatpush1.msra.mxu0 0.0
    %9486 = vmatprep.subr.mxu0 0.0
    %9487 = vmatpush1.msra.mxu0 0.0
    %9488 = vmatprep.subr.mxu0 0.0
    %9489 = vmatpush1.msra.mxu0 0.0
    %9490 = vmatprep.subr.mxu0 0.0
    %9491 = vmatpush1.msra.mxu0 0.0
    %9492 = vmatprep.subr.mxu0 0.0
    %9493 = vmatpush1.msra.mxu0 %v9459
    %9494 = vmatprep.subr.mxu0 0.0
    %9495 = vmatpush1.msra.mxu0 %v9458
    %9496 = vmatprep.subr.mxu0 0.0
    %9497 = vmatpush1.msra.mxu0 %v9457
    %9498 = vmatprep.subr.mxu0 0.0
    %9499 = vmatpush1.msra.mxu0 %v9456
    %9500 = vmatprep.subr.mxu0 0.0
    %9501 = vmatpush1.msra.mxu0 %v9455
    %9502 = vmatprep.subr.mxu0 0.0
    %9503 = vmatpush1.msra.mxu0 %v9454
    %9504 = vmatprep.subr.mxu0 0.0
    %9505 = vmatpush1.msra.mxu0 %v9453
    %9506 = vmatprep.subr.mxu0 0.0
    %9507 = vmatpush1.msra.mxu0 %v9452
    %9508 = vmatprep.subr.mxu0 0.0
    %9509 = vmatpush1.msra.mxu0 %v9451
    %9510 = vmatprep.subr.mxu0 0.0
    %9511 = vmatpush1.msra.mxu0 %v9450
    %9512 = vmatprep.subr.mxu0 0.0
    %9513 = vmatpush1.msra.mxu0 %v9449
    %9514 = vmatprep.subr.mxu0 0.0
    %9515 = vmatpush1.msra.mxu0 %v9448
    %9516 = vmatprep.subr.mxu0 0.0
    %9517 = vmatpush2.msra.mxu0 0.0
    %9518 = vmatprep.subr.mxu0 0.0
    %9519 = vmatpush2.msra.mxu0 0.0
    %9520 = vmatprep.subr.mxu0 0.0
    %9521 = vmatpush2.msra.mxu0 0.0
    %9522 = vmatprep.subr.mxu0 0.0
    %9523 = vmatpush2.msra.mxu0 0.0
    %9524 = vmatprep.subr.mxu0 0.0
    %9525 = vmatpush2.msra.mxu0 0.0
    %9526 = vmatprep.subr.mxu0 0.0
    %9527 = vmatpush2.msra.mxu0 0.0
    %9528 = vmatprep.subr.mxu0 0.0
    %9529 = vmatpush2.msra.mxu0 0.0
    %9530 = vmatprep.subr.mxu0 0.0
    %9531 = vmatpush2.msra.mxu0 0.0
    %9532 = vmatprep.subr.mxu0 0.0
    %9533 = vmatpush2.msra.mxu0 0.0
    %9534 = vmatprep.subr.mxu0 0.0
    %9535 = vmatpush2.msra.mxu0 0.0
    %9536 = vmatprep.subr.mxu0 0.0
    %9537 = vmatpush2.msra.mxu0 0.0
    %9538 = vmatprep.subr.mxu0 0.0
    %9539 = vmatpush2.msra.mxu0 0.0
    %9540 = vmatprep.subr.mxu0 0.0
    %9541 = vmatpush2.msra.mxu0 0.0
    %9542 = vmatprep.subr.mxu0 0.0
    %9543 = vmatpush2.msra.mxu0 0.0
    %9544 = vmatprep.subr.mxu0 0.0
    %9545 = vmatpush2.msra.mxu0 0.0
    %9546 = vmatprep.subr.mxu0 0.0
    %9547 = vmatpush2.msra.mxu0 0.0
    %9548 = vmatprep.mubr.f32.mxu0 0.0
    %9549 = vmatmul.mubr.f32.gmra.mxu0 %v9482
    %v9550 = vpop.f32.mrf.mxu0
    %v9551 = vadd.f32 0.0, %v9550
    %v9552 = vpop.f32.mrf.mxu0
    %9553 = vdwg.mxu0
    %v9554 = vadd.f32 %v9438, %v9551
    %v9555 = vld [vmem:[%s10] sm:$0x1]
    %v9557 = vlaneseq
    %v9558 = vshrl.u32 %v9557, 7
    %v9559 = vsub.s32 0, %v9558
    %v9560 = vrot.slane %v9555, %v9559
    %v9562 = vadd.f32 %v9554, %v9560
    %v9563 = vmax.f32 %v9562, 0.0
    %v9564 = vld [vmem:[%s11] sm:$0xff]
    %v9565 = vld [vmem:[%s11 + $0x8] sm:$0xff]
    %v9566 = vld [vmem:[%s11 + $0x10] sm:$0xff]
    %v9567 = vld [vmem:[%s11 + $0x18] sm:$0xff]
    %v9568 = vld [vmem:[%s11 + $0x20] sm:$0xff]
    %v9569 = vld [vmem:[%s11 + $0x28] sm:$0xff]
    %v9570 = vld [vmem:[%s11 + $0x30] sm:$0xff]
    %v9571 = vld [vmem:[%s11 + $0x38] sm:$0xff]
    %v9572 = vld [vmem:[%s11 + $0x40] sm:$0xff]
    %v9573 = vld [vmem:[%s11 + $0x48] sm:$0xff]
    %v9574 = vld [vmem:[%s11 + $0x50] sm:$0xff]
    %v9575 = vld [vmem:[%s11 + $0x58] sm:$0xff]
    %v9576 = vld [vmem:[%s11 + $0x60] sm:$0xff]
    %v9577 = vld [vmem:[%s11 + $0x68] sm:$0xff]
    %v9578 = vld [vmem:[%s11 + $0x70] sm:$0xff]
    %v9579 = vld [vmem:[%s12] sm:$0x1]
    %v9581 = vlaneseq
    %v9582 = vshrl.u32 %v9581, 7
    %v9583 = vsub.s32 0, %v9582
    %v9584 = vrot.slane %v9579, %v9583
    %vm9586 = vcmask 982016
    %v9588 = vsel %vm9586, %v9563, 0
    %9590 = vmatprep.subr.mxu0 0.0
    %9591 = vmatpush1.msra.mxu0 0.0
    %9592 = vmatprep.subr.mxu0 0.0
    %9593 = vmatpush1.msra.mxu0 %v9578
    %9594 = vmatprep.subr.mxu0 0.0
    %9595 = vmatpush1.msra.mxu0 %v9577
    %9596 = vmatprep.subr.mxu0 0.0
    %9597 = vmatpush1.msra.mxu0 %v9576
    %9598 = vmatprep.subr.mxu0 0.0
    %9599 = vmatpush1.msra.mxu0 %v9575
    %9600 = vmatprep.subr.mxu0 0.0
    %9601 = vmatpush1.msra.mxu0 %v9574
    %9602 = vmatprep.subr.mxu0 0.0
    %9603 = vmatpush1.msra.mxu0 %v9573
    %9604 = vmatprep.subr.mxu0 0.0
    %9605 = vmatpush1.msra.mxu0 %v9572
    %9606 = vmatprep.subr.mxu0 0.0
    %9607 = vmatpush1.msra.mxu0 %v9571
    %9608 = vmatprep.subr.mxu0 0.0
    %9609 = vmatpush1.msra.mxu0 %v9570
    %9610 = vmatprep.subr.mxu0 0.0
    %9611 = vmatpush1.msra.mxu0 %v9569
    %9612 = vmatprep.subr.mxu0 0.0
    %9613 = vmatpush1.msra.mxu0 %v9568
    %9614 = vmatprep.subr.mxu0 0.0
    %9615 = vmatpush1.msra.mxu0 %v9567
    %9616 = vmatprep.subr.mxu0 0.0
    %9617 = vmatpush1.msra.mxu0 %v9566
    %9618 = vmatprep.subr.mxu0 0.0
    %9619 = vmatpush1.msra.mxu0 %v9565
    %9620 = vmatprep.subr.mxu0 0.0
    %9621 = vmatpush1.msra.mxu0 %v9564
    %9622 = vmatprep.subr.mxu0 0.0
    %9623 = vmatpush2.msra.mxu0 0.0
    %9624 = vmatprep.subr.mxu0 0.0
    %9625 = vmatpush2.msra.mxu0 0.0
    %9626 = vmatprep.subr.mxu0 0.0
    %9627 = vmatpush2.msra.mxu0 0.0
    %9628 = vmatprep.subr.mxu0 0.0
    %9629 = vmatpush2.msra.mxu0 0.0
    %9630 = vmatprep.subr.mxu0 0.0
    %9631 = vmatpush2.msra.mxu0 0.0
    %9632 = vmatprep.subr.mxu0 0.0
    %9633 = vmatpush2.msra.mxu0 0.0
    %9634 = vmatprep.subr.mxu0 0.0
    %9635 = vmatpush2.msra.mxu0 0.0
    %9636 = vmatprep.subr.mxu0 0.0
    %9637 = vmatpush2.msra.mxu0 0.0
    %9638 = vmatprep.subr.mxu0 0.0
    %9639 = vmatpush2.msra.mxu0 0.0
    %9640 = vmatprep.subr.mxu0 0.0
    %9641 = vmatpush2.msra.mxu0 0.0
    %9642 = vmatprep.subr.mxu0 0.0
    %9643 = vmatpush2.msra.mxu0 0.0
    %9644 = vmatprep.subr.mxu0 0.0
    %9645 = vmatpush2.msra.mxu0 0.0
    %9646 = vmatprep.subr.mxu0 0.0
    %9647 = vmatpush2.msra.mxu0 0.0
    %9648 = vmatprep.subr.mxu0 0.0
    %9649 = vmatpush2.msra.mxu0 0.0
    %9650 = vmatprep.subr.mxu0 0.0
    %9651 = vmatpush2.msra.mxu0 0.0
    %9652 = vmatprep.subr.mxu0 0.0
    %9653 = vmatpush2.msra.mxu0 0.0
    %9654 = vmatprep.mubr.f32.mxu0 0.0
    %9655 = vmatmul.mubr.f32.gmra.mxu0 %v9588
    %v9656 = vpop.f32.mrf.mxu0
    %v9657 = vadd.f32 %v9584, %v9656
    %v9658 = vpop.f32.mrf.mxu0
    %9659 = vdwg.mxu0
    %v9660 = vmax.f32 %v9657, 0.0
    %v9661 = vld [vmem:[%s13] sm:$0xff]
    %v9662 = vld [vmem:[%s13 + $0x8] sm:$0xff]
    %v9663 = vld [vmem:[%s13 + $0x10] sm:$0xff]
    %v9664 = vld [vmem:[%s13 + $0x18] sm:$0xff]
    %v9665 = vld [vmem:[%s13 + $0x20] sm:$0xff]
    %v9666 = vld [vmem:[%s13 + $0x28] sm:$0xff]
    %v9667 = vld [vmem:[%s13 + $0x30] sm:$0xff]
    %v9668 = vld [vmem:[%s13 + $0x38] sm:$0xff]
    %v9669 = vld [vmem:[%s13 + $0x40] sm:$0xff]
    %v9670 = vld [vmem:[%s13 + $0x48] sm:$0xff]
    %v9671 = vld [vmem:[%s13 + $0x50] sm:$0xf]
    %v9672 = vld [vmem:[%s14] sm:$0x1]
    %v9674 = vlaneseq
    %v9675 = vshrl.u32 %v9674, 7
    %v9676 = vsub.s32 0, %v9675
    %v9677 = vrot.slane %v9672, %v9676
    %vm9679 = vcmask 687104
    %v9681 = vsel %vm9679, %v9660, 0
    %v9684 = vsel %vm2572, %v9671, 0
    %9686 = vmatprep.subr.mxu0 0.0
    %9687 = vmatpush1.msra.mxu0 0.0
    %9688 = vmatprep.subr.mxu0 0.0
    %9689 = vmatpush1.msra.mxu0 0.0
    %9690 = vmatprep.subr.mxu0 0.0
    %9691 = vmatpush1.msra.mxu0 0.0
    %9692 = vmatprep.subr.mxu0 0.0
    %9693 = vmatpush1.msra.mxu0 0.0
    %9694 = vmatprep.subr.mxu0 0.0
    %9695 = vmatpush1.msra.mxu0 0.0
    %9696 = vmatprep.subr.mxu0 0.0
    %9697 = vmatpush1.msra.mxu0 %v9684
    %9698 = vmatprep.subr.mxu0 0.0
    %9699 = vmatpush1.msra.mxu0 %v9670
    %9700 = vmatprep.subr.mxu0 0.0
    %9701 = vmatpush1.msra.mxu0 %v9669
    %9702 = vmatprep.subr.mxu0 0.0
    %9703 = vmatpush1.msra.mxu0 %v9668
    %9704 = vmatprep.subr.mxu0 0.0
    %9705 = vmatpush1.msra.mxu0 %v9667
    %9706 = vmatprep.subr.mxu0 0.0
    %9707 = vmatpush1.msra.mxu0 %v9666
    %9708 = vmatprep.subr.mxu0 0.0
    %9709 = vmatpush1.msra.mxu0 %v9665
    %9710 = vmatprep.subr.mxu0 0.0
    %9711 = vmatpush1.msra.mxu0 %v9664
    %9712 = vmatprep.subr.mxu0 0.0
    %9713 = vmatpush1.msra.mxu0 %v9663
    %9714 = vmatprep.subr.mxu0 0.0
    %9715 = vmatpush1.msra.mxu0 %v9662
    %9716 = vmatprep.subr.mxu0 0.0
    %9717 = vmatpush1.msra.mxu0 %v9661
    %9718 = vmatprep.subr.mxu0 0.0
    %9719 = vmatpush2.msra.mxu0 0.0
    %9720 = vmatprep.subr.mxu0 0.0
    %9721 = vmatpush2.msra.mxu0 0.0
    %9722 = vmatprep.subr.mxu0 0.0
    %9723 = vmatpush2.msra.mxu0 0.0
    %9724 = vmatprep.subr.mxu0 0.0
    %9725 = vmatpush2.msra.mxu0 0.0
    %9726 = vmatprep.subr.mxu0 0.0
    %9727 = vmatpush2.msra.mxu0 0.0
    %9728 = vmatprep.subr.mxu0 0.0
    %9729 = vmatpush2.msra.mxu0 0.0
    %9730 = vmatprep.subr.mxu0 0.0
    %9731 = vmatpush2.msra.mxu0 0.0
    %9732 = vmatprep.subr.mxu0 0.0
    %9733 = vmatpush2.msra.mxu0 0.0
    %9734 = vmatprep.subr.mxu0 0.0
    %9735 = vmatpush2.msra.mxu0 0.0
    %9736 = vmatprep.subr.mxu0 0.0
    %9737 = vmatpush2.msra.mxu0 0.0
    %9738 = vmatprep.subr.mxu0 0.0
    %9739 = vmatpush2.msra.mxu0 0.0
    %9740 = vmatprep.subr.mxu0 0.0
    %9741 = vmatpush2.msra.mxu0 0.0
    %9742 = vmatprep.subr.mxu0 0.0
    %9743 = vmatpush2.msra.mxu0 0.0
    %9744 = vmatprep.subr.mxu0 0.0
    %9745 = vmatpush2.msra.mxu0 0.0
    %9746 = vmatprep.subr.mxu0 0.0
    %9747 = vmatpush2.msra.mxu0 0.0
    %9748 = vmatprep.subr.mxu0 0.0
    %9749 = vmatpush2.msra.mxu0 0.0
    %9750 = vmatprep.mubr.f32.mxu0 0.0
    %9751 = vmatmul.mubr.f32.gmra.mxu0 %v9681
    %v9752 = vpop.f32.mrf.mxu0
    %v9753 = vadd.f32 %v9677, %v9752
    %v9754 = vpop.f32.mrf.mxu0
    %9755 = vdwg.mxu0
    %9756 = vst [vmem:[#allocation10] sm:$0xff] %v9753
    // Predicated region
    $region74: #{tpu_custom_call.1} parent=1 // pred_check
      _
    $region75: #{tpu_custom_call.1} parent=1 // pred_check_branch
      %9758 = sbr.rel (0) target = $region77
    $region76: #{tpu_custom_call.1} parent=1 // pred_region
      %s9760 = ssub.s32 128, 128
      %9761 = vsyncadd [#allocation6], %s9760
      %s9763 = sshll.u32 [#allocation10], 4
      %s9764 = int_to_ptr.vmem [resolvable:$true] %s9763
      %9766 = dma.vmem_to_hbm [thread:$0]  %s9764, 128, %s15, [#allocation6]
    $region77: #{tpu_custom_call.1} parent=1 // pred_fallthru
      _
    // Predicated region
    $region78: #{tpu_custom_call.1} parent=1 // pred_check
      _
    $region79: #{tpu_custom_call.1} parent=1 // pred_check_branch
      %9768 = sbr.rel (0) target = $region81
    $region80: #{tpu_custom_call.1} parent=1 // pred_region
      %9769 = dma.done [#allocation6], 128
    $region81: #{tpu_custom_call.1} parent=1 // pred_fallthru
      _
    %9770 = vsyncpa [#allocation5], 1
    %9771 = vsyncpa [#allocation8], 1
    %9772 = vsyncpa [#allocation6], 1

</llo_original>
